<compile_context>
chip_gen: v7x
topology: tpu7x:2x2x1
jax: 0.10.0
libtpu: 0.0.40
codegen_flags: <defaults>
</compile_context>

<pallas_src>
import numpy as np
import jax
import jax.numpy as jnp
from jax.experimental import pallas as pl
from jax.experimental.pallas import tpu as pltpu

# ----------------------------------------------------------------------------
# Problem constants (small, self-consistent example shape)
# ----------------------------------------------------------------------------
N = 4                                   # example batch
SAMPLES_PER_STEP = 2                    # samples packed along lanes per grid step
CIN, H, W = 3, 32, 32
K = 5                                   # conv kernel size (both convs)
C1, C2 = 6, 16                          # conv output channels
H1, W1 = H - K + 1, W - K + 1           # 28, 28  (conv1 valid)
HP1, WP1 = H1 // 2, W1 // 2             # 14, 14  (pool1)
H2, W2 = HP1 - K + 1, WP1 - K + 1       # 10, 10  (conv2 valid)
HP2, WP2 = H2 // 2, W2 // 2             # 5, 5    (pool2)
PP2 = HP2 * WP2                         # 25 spatial positions per sample after pool2
FC1_IN = C2 * PP2                       # 400
FC_PAD = 128                            # lane-padded FC width (120/84/10 -> 128)


# ----------------------------------------------------------------------------
# In-kernel building block: valid conv + bias + ReLU + 2x2/2 max-pool
# (handles B samples concatenated along the flat spatial/lane axis)
# ----------------------------------------------------------------------------
def _conv_relu_pool(act, w2d, bias, gsel, wg, k):
    """act:  (Cin, B*hg*wg) flat row-major grids, one contiguous block per sample.
    w2d:  (Cout, k*k*Cin) bf16, rows ordered tap-major / cin-minor.
    bias: (Cout, 1) f32.
    gsel: (vu, B*hp*wp) bf16 block-diagonal 0/1 pool-compaction matrix.
    Returns (Cout, B*hp*wp) f32, per-sample row-major over (hp, wp)."""
    act = act.astype(jnp.bfloat16)        # cast BEFORE slicing: halves relayout bytes
    L = act.shape[1]
    V = L - ((k - 1) * wg + (k - 1))      # conv taps live at flat m in [0, V)

    # im2col: k*k static lane-offset slices stacked along the contraction axis.
    taps = [act[:, i * wg + j: i * wg + j + V]
            for i in range(k) for j in range(k)]
    patches = jnp.concatenate(taps, axis=0)                        # (k*k*Cin, V) bf16

    # single lane-dense MXU matmul (output spatial dim on lanes)
    s = jax.lax.dot_general(w2d, patches, (((1,), (0,)), ((), ())),
                            preferred_element_type=jnp.float32)    # (Cout, V) f32
    s = jnp.maximum(s + bias, 0.0)                                 # bias + ReLU

    # 2x2 window max as two shifted VPU maxes on the flat grid
    t = jnp.maximum(s[:, :V - wg], s[:, wg:])                      # row below
    u = jnp.maximum(t[:, :V - wg - 1], t[:, 1:])                   # col right

    # compact stride-2 anchors -> dense (Cout, B*hp*wp) via a 0/1 matmul.
    # Cross-sample / row-wrap garbage positions are never selected by gsel.
    return jax.lax.dot_general(u.astype(jnp.bfloat16), gsel,
                               (((1,), (0,)), ((), ())),
                               preferred_element_type=jnp.float32)


# ----------------------------------------------------------------------------
# The single fused kernel (SAMPLES_PER_STEP samples per grid step)
# ----------------------------------------------------------------------------
def _net_kernel(x_ref, wconv_ref, bconv_ref, g1_ref, g2_ref,
                wf1_ref, wf23_ref, bfc_ref, o_ref):
    x = x_ref[...]                                                  # (CIN, B*H*W) bf16
    wconv = wconv_ref[...]                                          # (22, 150) bf16
    bconv = bconv_ref[...]                                          # (22, 1)   f32
    bfc = bfc_ref[...]                                              # (3, 128)  f32
    wf23 = wf23_ref[...]                                            # (256,128) bf16

    p1 = _conv_relu_pool(x, wconv[:C1, :CIN * K * K], bconv[:C1],
                         g1_ref[...], W, K)                         # (6,  B*196)
    p2 = _conv_relu_pool(p1, wconv[C1:, :], bconv[C1:],
                         g2_ref[...], WP1, K)                       # (16, B*25)

    # Flatten per sample in torch's NCHW view order: (C2, B*25) -> (B, C2*25).
    # Kept as plain slices + concats so every matmul stays 2-D (robust lowering);
    # small absolute cost on a tiny f32 array.
    rows = []
    for b in range(SAMPLES_PER_STEP):
        rows.append(jnp.concatenate(
            [p2[c:c + 1, b * PP2:(b + 1) * PP2] for c in range(C2)], axis=1))
    feats = jnp.concatenate(rows, axis=0) if SAMPLES_PER_STEP > 1 else rows[0]
    feats = feats.astype(jnp.bfloat16)                              # (B, 400)

    h = jnp.dot(feats, wf1_ref[...], preferred_element_type=jnp.float32) + bfc[0:1]
    h = jnp.maximum(h, 0.0).astype(jnp.bfloat16)
    h = jnp.dot(h, wf23[:FC_PAD, :], preferred_element_type=jnp.float32) + bfc[1:2]
    h = jnp.maximum(h, 0.0).astype(jnp.bfloat16)
    h = jnp.dot(h, wf23[FC_PAD:, :], preferred_element_type=jnp.float32) + bfc[2:3]
    o_ref[0] = h                                                    # (B, FC_PAD) f32


# ----------------------------------------------------------------------------
# Host-side helpers: pool-compaction selection matrices + parameter packing
# ----------------------------------------------------------------------------
def _pool_select(hg, wg, k, batch):
    """Block-diagonal 0/1 matrix (vu, batch*hp*wp) picking the 2x2-pool anchors
    (2hp, 2wp) off the flat conv grid of `batch` concatenated samples and
    packing them sample-major, row-major."""
    ho, wo = hg - k + 1, wg - k + 1
    hp_n, wp_n = ho // 2, wo // 2
    spp = hg * wg                                     # lanes per sample
    L = batch * spp
    vu = L - ((k - 1) * wg + (k - 1)) - wg - 1        # length of pooled vector u
    local = (2 * np.arange(hp_n)[:, None] * wg
             + 2 * np.arange(wp_n)[None, :]).reshape(-1)
    # Correctness invariant: every selected anchor's conv(k x k) + pool(2 x 2)
    # read window stays inside its own sample's lane block, and all anchors
    # index within u.  Cross-sample / row-wrap garbage is therefore never read.
    assert int(local.max()) + k * wg + k <= spp - 1
    assert (batch - 1) * spp + int(local.max()) < vu
    g = np.zeros((vu, batch * hp_n * wp_n), np.float32)
    for b in range(batch):
        g[b * spp + local, b * hp_n * wp_n + np.arange(hp_n * wp_n)] = 1.0
    return jnp.asarray(g, dtype=jnp.bfloat16)


def init_torch_params(key):
    """PyTorch-layout, PyTorch-default-init parameters (f32)."""
    ks = jax.random.split(key, 10)

    def u(k_, shape, fan_in):
        b = 1.0 / float(np.sqrt(fan_in))
        return jax.random.uniform(k_, shape, jnp.float32, -b, b)

    return {
        "conv1.weight": u(ks[0], (C1, CIN, K, K), CIN * K * K),
        "conv1.bias":   u(ks[1], (C1,), CIN * K * K),
        "conv2.weight": u(ks[2], (C2, C1, K, K), C1 * K * K),
        "conv2.bias":   u(ks[3], (C2,), C1 * K * K),
        "fc1.weight":   u(ks[4], (120, FC1_IN), FC1_IN),
        "fc1.bias":     u(ks[5], (120,), FC1_IN),
        "fc2.weight":   u(ks[6], (84, 120), 120),
        "fc2.bias":     u(ks[7], (84,), 120),
        "fc3.weight":   u(ks[8], (10, 84), 84),
        "fc3.bias":     u(ks[9], (10,), 84),
    }


def pack_params(tp, batch):
    """torch layout -> packed kernel layout (8 operands total).
    Coupled invariant: padded FC weight COLUMNS and padded FC bias LANES are
    both zero, so padded activation lanes stay exactly 0 through ReLU."""
    def conv_w(w):                              # (Cout,Cin,KH,KW) -> (Cout, KH*KW*Cin)
        w = np.asarray(w)
        return np.transpose(w, (0, 2, 3, 1)).reshape(w.shape[0], -1)

    wconv = np.zeros((C1 + C2, C1 * K * K), np.float32)          # (22, 150)
    wconv[:C1, :CIN * K * K] = conv_w(tp["conv1.weight"])
    wconv[C1:, :] = conv_w(tp["conv2.weight"])

    bconv = np.concatenate([np.asarray(tp["conv1.bias"]),
                            np.asarray(tp["conv2.bias"])]).reshape(C1 + C2, 1)

    def fc_pad(w, in_pad, out_pad):             # torch (out,in) -> (in_pad, out_pad)
        wt = np.transpose(np.asarray(w))
        out = np.zeros((in_pad, out_pad), np.float32)
        out[:wt.shape[0], :wt.shape[1]] = wt
        return out

    wf1 = fc_pad(tp["fc1.weight"], FC1_IN, FC_PAD)               # (400, 128)
    wf23 = np.concatenate([fc_pad(tp["fc2.weight"], FC_PAD, FC_PAD),
                           fc_pad(tp["fc3.weight"], FC_PAD, FC_PAD)], axis=0)

    bfc = np.zeros((3, FC_PAD), np.float32)
    bfc[0, :120] = np.asarray(tp["fc1.bias"])
    bfc[1, :84] = np.asarray(tp["fc2.bias"])
    bfc[2, :10] = np.asarray(tp["fc3.bias"])

    return {
        "wconv": jnp.asarray(wconv, jnp.bfloat16),
        "bconv": jnp.asarray(bconv, jnp.float32),
        "g1": _pool_select(H, W, K, batch),      # (B*1024-165, B*196) for B samples
        "g2": _pool_select(HP1, WP1, K, batch),  # (B*196-75,   B*25)
        "wf1": jnp.asarray(wf1, jnp.bfloat16),
        "wf23": jnp.asarray(wf23, jnp.bfloat16),
        "bfc": jnp.asarray(bfc, jnp.float32),
    }


# ----------------------------------------------------------------------------
# Full forward pass: one fused pallas_call, B samples per grid step
# ----------------------------------------------------------------------------
@jax.jit
def net_forward(x_nchw, kp):
    n = x_nchw.shape[0]
    assert n % SAMPLES_PER_STEP == 0
    steps = n // SAMPLES_PER_STEP
    # channel-major, batch-in-lanes layout: (CIN, N*H*W), per-sample contiguous.
    # bf16 cast happens here so the DMA and the in-kernel im2col are half-width.
    x_cl = jnp.transpose(x_nchw.astype(jnp.bfloat16),
                         (1, 0, 2, 3)).reshape(CIN, n * H * W)
    vmem = pl.BlockSpec(memory_space=pltpu.MemorySpace.VMEM)
    out = pl.pallas_call(
        _net_kernel,
        out_shape=jax.ShapeDtypeStruct((steps, SAMPLES_PER_STEP, FC_PAD), jnp.float32),
        grid=(steps,),
        in_specs=[pl.BlockSpec((CIN, SAMPLES_PER_STEP * H * W), lambda i: (0, i))]
                 + [vmem] * 7,
        out_specs=pl.BlockSpec((1, SAMPLES_PER_STEP, FC_PAD), lambda i: (i, 0, 0)),
        compiler_params=pltpu.CompilerParams(dimension_semantics=("parallel",)),
    )(x_cl, kp["wconv"], kp["bconv"], kp["g1"], kp["g2"],
      kp["wf1"], kp["wf23"], kp["bfc"])
    return out.reshape(n, FC_PAD)[:, :10]                           # drop lane padding


# ----------------------------------------------------------------------------
# Plain-JAX reference (f32) for a sanity check
# ----------------------------------------------------------------------------
def reference_forward(x_nchw, tp):
    dn = ("NCHW", "OIHW", "NCHW")
    y = jax.lax.conv_general_dilated(x_nchw, tp["conv1.weight"], (1, 1), "VALID",
                                     dimension_numbers=dn)
    y = jnp.maximum(y + tp["conv1.bias"][None, :, None, None], 0.0)
    y = jax.lax.reduce_window(y, -jnp.inf, jax.lax.max, (1, 1, 2, 2), (1, 1, 2, 2), "VALID")
    y = jax.lax.conv_general_dilated(y, tp["conv2.weight"], (1, 1), "VALID",
                                     dimension_numbers=dn)
    y = jnp.maximum(y + tp["conv2.bias"][None, :, None, None], 0.0)
    y = jax.lax.reduce_window(y, -jnp.inf, jax.lax.max, (1, 1, 2, 2), (1, 1, 2, 2), "VALID")
    y = y.reshape(y.shape[0], -1)
    y = jnp.maximum(y @ tp["fc1.weight"].T + tp["fc1.bias"], 0.0)
    y = jnp.maximum(y @ tp["fc2.weight"].T + tp["fc2.bias"], 0.0)
    return y @ tp["fc3.weight"].T + tp["fc3.bias"]


if __name__ == "__main__":
    key = jax.random.PRNGKey(0)
    k_x, k_p = jax.random.split(key)

    x = jax.random.normal(k_x, (N, CIN, H, W), jnp.float32)
    torch_params = init_torch_params(k_p)
    kernel_params = pack_params(torch_params, SAMPLES_PER_STEP)

    out = net_forward(x, kernel_params)
    jax.block_until_ready(out)
    assert out.shape == (N, 10), out.shape

    # sanity check vs plain-JAX f32 reference (kernel uses bf16 matmul operands)
    ref = reference_forward(x, torch_params)
    err = float(jnp.max(jnp.abs(out - ref)))
    assert err < 5e-2, f"max abs err {err}"

    print("KERNEL_OK")
</pallas_src>

<mosaic_0001>
module attributes {stable_mosaic.version = 11 : i64} {
  func.func @_net_kernel(%arg0: i32, %arg1: memref<3x2048xbf16, #tpu.memory_space<vmem>>, %arg2: memref<22x150xbf16, #tpu.memory_space<vmem>>, %arg3: memref<22x1xf32, #tpu.memory_space<vmem>>, %arg4: memref<1883x392xbf16, #tpu.memory_space<vmem>>, %arg5: memref<317x50xbf16, #tpu.memory_space<vmem>>, %arg6: memref<400x128xbf16, #tpu.memory_space<vmem>>, %arg7: memref<256x128xbf16, #tpu.memory_space<vmem>>, %arg8: memref<3x128xf32, #tpu.memory_space<vmem>>, %arg9: memref<1x2x128xf32, #tpu.memory_space<vmem>>) attributes {dimension_semantics = [#tpu.dimension_semantics<parallel>], iteration_bounds = array<i64: 2>, scalar_prefetch = 0 : i64, scratch_operands = 0 : i64, tpu.core_type = #tpu.core_type<tc>, window_params = [{transform_indices = @transform_0, window_bounds = array<i64: 3, 2048>}, {pipeline_mode = #tpu.pipeline_mode<synchronous>, transform_indices = @transform_1, window_bounds = array<i64: 22, 150>}, {pipeline_mode = #tpu.pipeline_mode<synchronous>, transform_indices = @transform_2, window_bounds = array<i64: 22, 1>}, {pipeline_mode = #tpu.pipeline_mode<synchronous>, transform_indices = @transform_3, window_bounds = array<i64: 1883, 392>}, {pipeline_mode = #tpu.pipeline_mode<synchronous>, transform_indices = @transform_4, window_bounds = array<i64: 317, 50>}, {pipeline_mode = #tpu.pipeline_mode<synchronous>, transform_indices = @transform_5, window_bounds = array<i64: 400, 128>}, {pipeline_mode = #tpu.pipeline_mode<synchronous>, transform_indices = @transform_6, window_bounds = array<i64: 256, 128>}, {pipeline_mode = #tpu.pipeline_mode<synchronous>, transform_indices = @transform_7, window_bounds = array<i64: 3, 128>}, {transform_indices = @transform_8, window_bounds = array<i64: 1, 2, 128>}]} {
    %c0 = arith.constant 0 : index
    %c0_0 = arith.constant 0 : index
    %0 = vector.load %arg1[%c0, %c0_0] : memref<3x2048xbf16, #tpu.memory_space<vmem>>, vector<3x2048xbf16>
    %c0_1 = arith.constant 0 : index
    %c0_2 = arith.constant 0 : index
    %1 = vector.load %arg2[%c0_1, %c0_2] : memref<22x150xbf16, #tpu.memory_space<vmem>>, vector<22x150xbf16>
    %c0_3 = arith.constant 0 : index
    %c0_4 = arith.constant 0 : index
    %2 = vector.load %arg3[%c0_3, %c0_4] : memref<22x1xf32, #tpu.memory_space<vmem>>, vector<22x1xf32>
    %c0_5 = arith.constant 0 : index
    %c0_6 = arith.constant 0 : index
    %3 = vector.load %arg8[%c0_5, %c0_6] : memref<3x128xf32, #tpu.memory_space<vmem>>, vector<3x128xf32>
    %c0_7 = arith.constant 0 : index
    %c0_8 = arith.constant 0 : index
    %4 = vector.load %arg7[%c0_7, %c0_8] : memref<256x128xbf16, #tpu.memory_space<vmem>>, vector<256x128xbf16>
    %5 = vector.extract_strided_slice %1 {offsets = [0, 0], sizes = [6, 75], strides = [1, 1]} : vector<22x150xbf16> to vector<6x75xbf16>
    %6 = vector.extract_strided_slice %2 {offsets = [0, 0], sizes = [6, 1], strides = [1, 1]} : vector<22x1xf32> to vector<6x1xf32>
    %c0_9 = arith.constant 0 : index
    %c0_10 = arith.constant 0 : index
    %7 = vector.load %arg4[%c0_9, %c0_10] : memref<1883x392xbf16, #tpu.memory_space<vmem>>, vector<1883x392xbf16>
    %8 = vector.extract_strided_slice %0 {offsets = [0, 0], sizes = [3, 1916], strides = [1, 1]} : vector<3x2048xbf16> to vector<3x1916xbf16>
    %9 = vector.extract_strided_slice %0 {offsets = [0, 1], sizes = [3, 1916], strides = [1, 1]} : vector<3x2048xbf16> to vector<3x1916xbf16>
    %10 = vector.extract_strided_slice %0 {offsets = [0, 2], sizes = [3, 1916], strides = [1, 1]} : vector<3x2048xbf16> to vector<3x1916xbf16>
    %11 = vector.extract_strided_slice %0 {offsets = [0, 3], sizes = [3, 1916], strides = [1, 1]} : vector<3x2048xbf16> to vector<3x1916xbf16>
    %12 = vector.extract_strided_slice %0 {offsets = [0, 4], sizes = [3, 1916], strides = [1, 1]} : vector<3x2048xbf16> to vector<3x1916xbf16>
    %13 = vector.extract_strided_slice %0 {offsets = [0, 32], sizes = [3, 1916], strides = [1, 1]} : vector<3x2048xbf16> to vector<3x1916xbf16>
    %14 = vector.extract_strided_slice %0 {offsets = [0, 33], sizes = [3, 1916], strides = [1, 1]} : vector<3x2048xbf16> to vector<3x1916xbf16>
    %15 = vector.extract_strided_slice %0 {offsets = [0, 34], sizes = [3, 1916], strides = [1, 1]} : vector<3x2048xbf16> to vector<3x1916xbf16>
    %16 = vector.extract_strided_slice %0 {offsets = [0, 35], sizes = [3, 1916], strides = [1, 1]} : vector<3x2048xbf16> to vector<3x1916xbf16>
    %17 = vector.extract_strided_slice %0 {offsets = [0, 36], sizes = [3, 1916], strides = [1, 1]} : vector<3x2048xbf16> to vector<3x1916xbf16>
    %18 = vector.extract_strided_slice %0 {offsets = [0, 64], sizes = [3, 1916], strides = [1, 1]} : vector<3x2048xbf16> to vector<3x1916xbf16>
    %19 = vector.extract_strided_slice %0 {offsets = [0, 65], sizes = [3, 1916], strides = [1, 1]} : vector<3x2048xbf16> to vector<3x1916xbf16>
    %20 = vector.extract_strided_slice %0 {offsets = [0, 66], sizes = [3, 1916], strides = [1, 1]} : vector<3x2048xbf16> to vector<3x1916xbf16>
    %21 = vector.extract_strided_slice %0 {offsets = [0, 67], sizes = [3, 1916], strides = [1, 1]} : vector<3x2048xbf16> to vector<3x1916xbf16>
    %22 = vector.extract_strided_slice %0 {offsets = [0, 68], sizes = [3, 1916], strides = [1, 1]} : vector<3x2048xbf16> to vector<3x1916xbf16>
    %23 = vector.extract_strided_slice %0 {offsets = [0, 96], sizes = [3, 1916], strides = [1, 1]} : vector<3x2048xbf16> to vector<3x1916xbf16>
    %24 = vector.extract_strided_slice %0 {offsets = [0, 97], sizes = [3, 1916], strides = [1, 1]} : vector<3x2048xbf16> to vector<3x1916xbf16>
    %25 = vector.extract_strided_slice %0 {offsets = [0, 98], sizes = [3, 1916], strides = [1, 1]} : vector<3x2048xbf16> to vector<3x1916xbf16>
    %26 = vector.extract_strided_slice %0 {offsets = [0, 99], sizes = [3, 1916], strides = [1, 1]} : vector<3x2048xbf16> to vector<3x1916xbf16>
    %27 = vector.extract_strided_slice %0 {offsets = [0, 100], sizes = [3, 1916], strides = [1, 1]} : vector<3x2048xbf16> to vector<3x1916xbf16>
    %28 = vector.extract_strided_slice %0 {offsets = [0, 128], sizes = [3, 1916], strides = [1, 1]} : vector<3x2048xbf16> to vector<3x1916xbf16>
    %29 = vector.extract_strided_slice %0 {offsets = [0, 129], sizes = [3, 1916], strides = [1, 1]} : vector<3x2048xbf16> to vector<3x1916xbf16>
    %30 = vector.extract_strided_slice %0 {offsets = [0, 130], sizes = [3, 1916], strides = [1, 1]} : vector<3x2048xbf16> to vector<3x1916xbf16>
    %31 = vector.extract_strided_slice %0 {offsets = [0, 131], sizes = [3, 1916], strides = [1, 1]} : vector<3x2048xbf16> to vector<3x1916xbf16>
    %32 = vector.extract_strided_slice %0 {offsets = [0, 132], sizes = [3, 1916], strides = [1, 1]} : vector<3x2048xbf16> to vector<3x1916xbf16>
    %33 = tpu.concatenate %8, %9, %10, %11, %12, %13, %14, %15, %16, %17, %18, %19, %20, %21, %22, %23 in 0 : vector<3x1916xbf16>, vector<3x1916xbf16>, vector<3x1916xbf16>, vector<3x1916xbf16>, vector<3x1916xbf16>, vector<3x1916xbf16>, vector<3x1916xbf16>, vector<3x1916xbf16>, vector<3x1916xbf16>, vector<3x1916xbf16>, vector<3x1916xbf16>, vector<3x1916xbf16>, vector<3x1916xbf16>, vector<3x1916xbf16>, vector<3x1916xbf16>, vector<3x1916xbf16> -> vector<48x1916xbf16>
    %34 = tpu.concatenate %24, %25, %26, %27, %28, %29, %30, %31, %32 in 0 : vector<3x1916xbf16>, vector<3x1916xbf16>, vector<3x1916xbf16>, vector<3x1916xbf16>, vector<3x1916xbf16>, vector<3x1916xbf16>, vector<3x1916xbf16>, vector<3x1916xbf16>, vector<3x1916xbf16> -> vector<27x1916xbf16>
    %35 = tpu.concatenate %33, %34 in 0 : vector<48x1916xbf16>, vector<27x1916xbf16> -> vector<75x1916xbf16>
    %cst = arith.constant dense<0.000000e+00> : vector<6x1916xf32>
    %36 = tpu.matmul %5, %35, %cst {dimension_numbers = #tpu.dot_dimension_numbers<[1], [0], [0], [1], [0, 0, 1, 1], [], []>} : vector<6x75xbf16>, vector<75x1916xbf16>, vector<6x1916xf32> -> vector<6x1916xf32>
    %37 = vector.broadcast %6 : vector<6x1xf32> to vector<6x1916xf32>
    %38 = arith.addf %36, %37 : vector<6x1916xf32>
    %cst_11 = arith.constant 0.000000e+00 : f32
    %39 = vector.broadcast %cst_11 : f32 to vector<6x1916xf32>
    %40 = arith.maximumf %38, %39 : vector<6x1916xf32>
    %41 = vector.extract_strided_slice %40 {offsets = [0, 0], sizes = [6, 1884], strides = [1, 1]} : vector<6x1916xf32> to vector<6x1884xf32>
    %42 = vector.extract_strided_slice %40 {offsets = [0, 32], sizes = [6, 1884], strides = [1, 1]} : vector<6x1916xf32> to vector<6x1884xf32>
    %43 = arith.maximumf %41, %42 : vector<6x1884xf32>
    %44 = vector.extract_strided_slice %43 {offsets = [0, 0], sizes = [6, 1883], strides = [1, 1]} : vector<6x1884xf32> to vector<6x1883xf32>
    %45 = vector.extract_strided_slice %43 {offsets = [0, 1], sizes = [6, 1883], strides = [1, 1]} : vector<6x1884xf32> to vector<6x1883xf32>
    %46 = arith.maximumf %44, %45 : vector<6x1883xf32>
    %47 = arith.truncf %46 : vector<6x1883xf32> to vector<6x1883xbf16>
    %cst_12 = arith.constant dense<0.000000e+00> : vector<6x392xf32>
    %48 = tpu.matmul %47, %7, %cst_12 {dimension_numbers = #tpu.dot_dimension_numbers<[1], [0], [0], [1], [0, 0, 1, 1], [], []>} : vector<6x1883xbf16>, vector<1883x392xbf16>, vector<6x392xf32> -> vector<6x392xf32>
    %49 = vector.extract_strided_slice %1 {offsets = [6, 0], sizes = [16, 150], strides = [1, 1]} : vector<22x150xbf16> to vector<16x150xbf16>
    %50 = vector.extract_strided_slice %2 {offsets = [6, 0], sizes = [16, 1], strides = [1, 1]} : vector<22x1xf32> to vector<16x1xf32>
    %c0_13 = arith.constant 0 : index
    %c0_14 = arith.constant 0 : index
    %51 = vector.load %arg5[%c0_13, %c0_14] : memref<317x50xbf16, #tpu.memory_space<vmem>>, vector<317x50xbf16>
    %52 = arith.truncf %48 : vector<6x392xf32> to vector<6x392xbf16>
    %53 = vector.extract_strided_slice %52 {offsets = [0, 0], sizes = [6, 332], strides = [1, 1]} : vector<6x392xbf16> to vector<6x332xbf16>
    %54 = vector.extract_strided_slice %52 {offsets = [0, 1], sizes = [6, 332], strides = [1, 1]} : vector<6x392xbf16> to vector<6x332xbf16>
    %55 = vector.extract_strided_slice %52 {offsets = [0, 2], sizes = [6, 332], strides = [1, 1]} : vector<6x392xbf16> to vector<6x332xbf16>
    %56 = vector.extract_strided_slice %52 {offsets = [0, 3], sizes = [6, 332], strides = [1, 1]} : vector<6x392xbf16> to vector<6x332xbf16>
    %57 = vector.extract_strided_slice %52 {offsets = [0, 4], sizes = [6, 332], strides = [1, 1]} : vector<6x392xbf16> to vector<6x332xbf16>
    %58 = vector.extract_strided_slice %52 {offsets = [0, 14], sizes = [6, 332], strides = [1, 1]} : vector<6x392xbf16> to vector<6x332xbf16>
    %59 = vector.extract_strided_slice %52 {offsets = [0, 15], sizes = [6, 332], strides = [1, 1]} : vector<6x392xbf16> to vector<6x332xbf16>
    %60 = vector.extract_strided_slice %52 {offsets = [0, 16], sizes = [6, 332], strides = [1, 1]} : vector<6x392xbf16> to vector<6x332xbf16>
    %61 = vector.extract_strided_slice %52 {offsets = [0, 17], sizes = [6, 332], strides = [1, 1]} : vector<6x392xbf16> to vector<6x332xbf16>
    %62 = vector.extract_strided_slice %52 {offsets = [0, 18], sizes = [6, 332], strides = [1, 1]} : vector<6x392xbf16> to vector<6x332xbf16>
    %63 = vector.extract_strided_slice %52 {offsets = [0, 28], sizes = [6, 332], strides = [1, 1]} : vector<6x392xbf16> to vector<6x332xbf16>
    %64 = vector.extract_strided_slice %52 {offsets = [0, 29], sizes = [6, 332], strides = [1, 1]} : vector<6x392xbf16> to vector<6x332xbf16>
    %65 = vector.extract_strided_slice %52 {offsets = [0, 30], sizes = [6, 332], strides = [1, 1]} : vector<6x392xbf16> to vector<6x332xbf16>
    %66 = vector.extract_strided_slice %52 {offsets = [0, 31], sizes = [6, 332], strides = [1, 1]} : vector<6x392xbf16> to vector<6x332xbf16>
    %67 = vector.extract_strided_slice %52 {offsets = [0, 32], sizes = [6, 332], strides = [1, 1]} : vector<6x392xbf16> to vector<6x332xbf16>
    %68 = vector.extract_strided_slice %52 {offsets = [0, 42], sizes = [6, 332], strides = [1, 1]} : vector<6x392xbf16> to vector<6x332xbf16>
    %69 = vector.extract_strided_slice %52 {offsets = [0, 43], sizes = [6, 332], strides = [1, 1]} : vector<6x392xbf16> to vector<6x332xbf16>
    %70 = vector.extract_strided_slice %52 {offsets = [0, 44], sizes = [6, 332], strides = [1, 1]} : vector<6x392xbf16> to vector<6x332xbf16>
    %71 = vector.extract_strided_slice %52 {offsets = [0, 45], sizes = [6, 332], strides = [1, 1]} : vector<6x392xbf16> to vector<6x332xbf16>
    %72 = vector.extract_strided_slice %52 {offsets = [0, 46], sizes = [6, 332], strides = [1, 1]} : vector<6x392xbf16> to vector<6x332xbf16>
    %73 = vector.extract_strided_slice %52 {offsets = [0, 56], sizes = [6, 332], strides = [1, 1]} : vector<6x392xbf16> to vector<6x332xbf16>
    %74 = vector.extract_strided_slice %52 {offsets = [0, 57], sizes = [6, 332], strides = [1, 1]} : vector<6x392xbf16> to vector<6x332xbf16>
    %75 = vector.extract_strided_slice %52 {offsets = [0, 58], sizes = [6, 332], strides = [1, 1]} : vector<6x392xbf16> to vector<6x332xbf16>
    %76 = vector.extract_strided_slice %52 {offsets = [0, 59], sizes = [6, 332], strides = [1, 1]} : vector<6x392xbf16> to vector<6x332xbf16>
    %77 = vector.extract_strided_slice %52 {offsets = [0, 60], sizes = [6, 332], strides = [1, 1]} : vector<6x392xbf16> to vector<6x332xbf16>
    %78 = tpu.concatenate %53, %54, %55, %56, %57, %58, %59, %60, %61, %62, %63, %64, %65, %66, %67, %68 in 0 : vector<6x332xbf16>, vector<6x332xbf16>, vector<6x332xbf16>, vector<6x332xbf16>, vector<6x332xbf16>, vector<6x332xbf16>, vector<6x332xbf16>, vector<6x332xbf16>, vector<6x332xbf16>, vector<6x332xbf16>, vector<6x332xbf16>, vector<6x332xbf16>, vector<6x332xbf16>, vector<6x332xbf16>, vector<6x332xbf16>, vector<6x332xbf16> -> vector<96x332xbf16>
    %79 = tpu.concatenate %69, %70, %71, %72, %73, %74, %75, %76, %77 in 0 : vector<6x332xbf16>, vector<6x332xbf16>, vector<6x332xbf16>, vector<6x332xbf16>, vector<6x332xbf16>, vector<6x332xbf16>, vector<6x332xbf16>, vector<6x332xbf16>, vector<6x332xbf16> -> vector<54x332xbf16>
    %80 = tpu.concatenate %78, %79 in 0 : vector<96x332xbf16>, vector<54x332xbf16> -> vector<150x332xbf16>
    %cst_15 = arith.constant dense<0.000000e+00> : vector<16x332xf32>
    %81 = tpu.matmul %49, %80, %cst_15 {dimension_numbers = #tpu.dot_dimension_numbers<[1], [0], [0], [1], [0, 0, 1, 1], [], []>} : vector<16x150xbf16>, vector<150x332xbf16>, vector<16x332xf32> -> vector<16x332xf32>
    %82 = vector.broadcast %50 : vector<16x1xf32> to vector<16x332xf32>
    %83 = arith.addf %81, %82 : vector<16x332xf32>
    %cst_16 = arith.constant 0.000000e+00 : f32
    %84 = vector.broadcast %cst_16 : f32 to vector<16x332xf32>
    %85 = arith.maximumf %83, %84 : vector<16x332xf32>
    %86 = vector.extract_strided_slice %85 {offsets = [0, 0], sizes = [16, 318], strides = [1, 1]} : vector<16x332xf32> to vector<16x318xf32>
    %87 = vector.extract_strided_slice %85 {offsets = [0, 14], sizes = [16, 318], strides = [1, 1]} : vector<16x332xf32> to vector<16x318xf32>
    %88 = arith.maximumf %86, %87 : vector<16x318xf32>
    %89 = vector.extract_strided_slice %88 {offsets = [0, 0], sizes = [16, 317], strides = [1, 1]} : vector<16x318xf32> to vector<16x317xf32>
    %90 = vector.extract_strided_slice %88 {offsets = [0, 1], sizes = [16, 317], strides = [1, 1]} : vector<16x318xf32> to vector<16x317xf32>
    %91 = arith.maximumf %89, %90 : vector<16x317xf32>
    %92 = arith.truncf %91 : vector<16x317xf32> to vector<16x317xbf16>
    %cst_17 = arith.constant dense<0.000000e+00> : vector<16x50xf32>
    %93 = tpu.matmul %92, %51, %cst_17 {dimension_numbers = #tpu.dot_dimension_numbers<[1], [0], [0], [1], [0, 0, 1, 1], [], []>} : vector<16x317xbf16>, vector<317x50xbf16>, vector<16x50xf32> -> vector<16x50xf32>
    %94 = vector.extract_strided_slice %93 {offsets = [0, 0], sizes = [1, 25], strides = [1, 1]} : vector<16x50xf32> to vector<1x25xf32>
    %95 = vector.extract_strided_slice %93 {offsets = [1, 0], sizes = [1, 25], strides = [1, 1]} : vector<16x50xf32> to vector<1x25xf32>
    %96 = vector.extract_strided_slice %93 {offsets = [2, 0], sizes = [1, 25], strides = [1, 1]} : vector<16x50xf32> to vector<1x25xf32>
    %97 = vector.extract_strided_slice %93 {offsets = [3, 0], sizes = [1, 25], strides = [1, 1]} : vector<16x50xf32> to vector<1x25xf32>
    %98 = vector.extract_strided_slice %93 {offsets = [4, 0], sizes = [1, 25], strides = [1, 1]} : vector<16x50xf32> to vector<1x25xf32>
    %99 = vector.extract_strided_slice %93 {offsets = [5, 0], sizes = [1, 25], strides = [1, 1]} : vector<16x50xf32> to vector<1x25xf32>
    %100 = vector.extract_strided_slice %93 {offsets = [6, 0], sizes = [1, 25], strides = [1, 1]} : vector<16x50xf32> to vector<1x25xf32>
    %101 = vector.extract_strided_slice %93 {offsets = [7, 0], sizes = [1, 25], strides = [1, 1]} : vector<16x50xf32> to vector<1x25xf32>
    %102 = vector.extract_strided_slice %93 {offsets = [8, 0], sizes = [1, 25], strides = [1, 1]} : vector<16x50xf32> to vector<1x25xf32>
    %103 = vector.extract_strided_slice %93 {offsets = [9, 0], sizes = [1, 25], strides = [1, 1]} : vector<16x50xf32> to vector<1x25xf32>
    %104 = vector.extract_strided_slice %93 {offsets = [10, 0], sizes = [1, 25], strides = [1, 1]} : vector<16x50xf32> to vector<1x25xf32>
    %105 = vector.extract_strided_slice %93 {offsets = [11, 0], sizes = [1, 25], strides = [1, 1]} : vector<16x50xf32> to vector<1x25xf32>
    %106 = vector.extract_strided_slice %93 {offsets = [12, 0], sizes = [1, 25], strides = [1, 1]} : vector<16x50xf32> to vector<1x25xf32>
    %107 = vector.extract_strided_slice %93 {offsets = [13, 0], sizes = [1, 25], strides = [1, 1]} : vector<16x50xf32> to vector<1x25xf32>
    %108 = vector.extract_strided_slice %93 {offsets = [14, 0], sizes = [1, 25], strides = [1, 1]} : vector<16x50xf32> to vector<1x25xf32>
    %109 = vector.extract_strided_slice %93 {offsets = [15, 0], sizes = [1, 25], strides = [1, 1]} : vector<16x50xf32> to vector<1x25xf32>
    %110 = tpu.concatenate %94, %95, %96, %97, %98, %99, %100, %101, %102, %103, %104, %105, %106, %107, %108, %109 in 1 : vector<1x25xf32>, vector<1x25xf32>, vector<1x25xf32>, vector<1x25xf32>, vector<1x25xf32>, vector<1x25xf32>, vector<1x25xf32>, vector<1x25xf32>, vector<1x25xf32>, vector<1x25xf32>, vector<1x25xf32>, vector<1x25xf32>, vector<1x25xf32>, vector<1x25xf32>, vector<1x25xf32>, vector<1x25xf32> -> vector<1x400xf32>
    %111 = vector.extract_strided_slice %93 {offsets = [0, 25], sizes = [1, 25], strides = [1, 1]} : vector<16x50xf32> to vector<1x25xf32>
    %112 = vector.extract_strided_slice %93 {offsets = [1, 25], sizes = [1, 25], strides = [1, 1]} : vector<16x50xf32> to vector<1x25xf32>
    %113 = vector.extract_strided_slice %93 {offsets = [2, 25], sizes = [1, 25], strides = [1, 1]} : vector<16x50xf32> to vector<1x25xf32>
    %114 = vector.extract_strided_slice %93 {offsets = [3, 25], sizes = [1, 25], strides = [1, 1]} : vector<16x50xf32> to vector<1x25xf32>
    %115 = vector.extract_strided_slice %93 {offsets = [4, 25], sizes = [1, 25], strides = [1, 1]} : vector<16x50xf32> to vector<1x25xf32>
    %116 = vector.extract_strided_slice %93 {offsets = [5, 25], sizes = [1, 25], strides = [1, 1]} : vector<16x50xf32> to vector<1x25xf32>
    %117 = vector.extract_strided_slice %93 {offsets = [6, 25], sizes = [1, 25], strides = [1, 1]} : vector<16x50xf32> to vector<1x25xf32>
    %118 = vector.extract_strided_slice %93 {offsets = [7, 25], sizes = [1, 25], strides = [1, 1]} : vector<16x50xf32> to vector<1x25xf32>
    %119 = vector.extract_strided_slice %93 {offsets = [8, 25], sizes = [1, 25], strides = [1, 1]} : vector<16x50xf32> to vector<1x25xf32>
    %120 = vector.extract_strided_slice %93 {offsets = [9, 25], sizes = [1, 25], strides = [1, 1]} : vector<16x50xf32> to vector<1x25xf32>
    %121 = vector.extract_strided_slice %93 {offsets = [10, 25], sizes = [1, 25], strides = [1, 1]} : vector<16x50xf32> to vector<1x25xf32>
    %122 = vector.extract_strided_slice %93 {offsets = [11, 25], sizes = [1, 25], strides = [1, 1]} : vector<16x50xf32> to vector<1x25xf32>
    %123 = vector.extract_strided_slice %93 {offsets = [12, 25], sizes = [1, 25], strides = [1, 1]} : vector<16x50xf32> to vector<1x25xf32>
    %124 = vector.extract_strided_slice %93 {offsets = [13, 25], sizes = [1, 25], strides = [1, 1]} : vector<16x50xf32> to vector<1x25xf32>
    %125 = vector.extract_strided_slice %93 {offsets = [14, 25], sizes = [1, 25], strides = [1, 1]} : vector<16x50xf32> to vector<1x25xf32>
    %126 = vector.extract_strided_slice %93 {offsets = [15, 25], sizes = [1, 25], strides = [1, 1]} : vector<16x50xf32> to vector<1x25xf32>
    %127 = tpu.concatenate %111, %112, %113, %114, %115, %116, %117, %118, %119, %120, %121, %122, %123, %124, %125, %126 in 1 : vector<1x25xf32>, vector<1x25xf32>, vector<1x25xf32>, vector<1x25xf32>, vector<1x25xf32>, vector<1x25xf32>, vector<1x25xf32>, vector<1x25xf32>, vector<1x25xf32>, vector<1x25xf32>, vector<1x25xf32>, vector<1x25xf32>, vector<1x25xf32>, vector<1x25xf32>, vector<1x25xf32>, vector<1x25xf32> -> vector<1x400xf32>
    %128 = tpu.concatenate %110, %127 in 0 : vector<1x400xf32>, vector<1x400xf32> -> vector<2x400xf32>
    %129 = arith.truncf %128 : vector<2x400xf32> to vector<2x400xbf16>
    %c0_18 = arith.constant 0 : index
    %c0_19 = arith.constant 0 : index
    %130 = vector.load %arg6[%c0_18, %c0_19] : memref<400x128xbf16, #tpu.memory_space<vmem>>, vector<400x128xbf16>
    %cst_20 = arith.constant dense<0.000000e+00> : vector<2x128xf32>
    %131 = tpu.matmul %129, %130, %cst_20 {dimension_numbers = #tpu.dot_dimension_numbers<[1], [0], [0], [1], [0, 0, 1, 1], [], []>} : vector<2x400xbf16>, vector<400x128xbf16>, vector<2x128xf32> -> vector<2x128xf32>
    %132 = vector.extract_strided_slice %3 {offsets = [0, 0], sizes = [1, 128], strides = [1, 1]} : vector<3x128xf32> to vector<1x128xf32>
    %133 = vector.broadcast %132 : vector<1x128xf32> to vector<2x128xf32>
    %134 = arith.addf %131, %133 : vector<2x128xf32>
    %cst_21 = arith.constant 0.000000e+00 : f32
    %135 = vector.broadcast %cst_21 : f32 to vector<2x128xf32>
    %136 = arith.maximumf %134, %135 : vector<2x128xf32>
    %137 = arith.truncf %136 : vector<2x128xf32> to vector<2x128xbf16>
    %138 = vector.extract_strided_slice %4 {offsets = [0, 0], sizes = [128, 128], strides = [1, 1]} : vector<256x128xbf16> to vector<128x128xbf16>
    %cst_22 = arith.constant dense<0.000000e+00> : vector<2x128xf32>
    %139 = tpu.matmul %137, %138, %cst_22 {dimension_numbers = #tpu.dot_dimension_numbers<[1], [0], [0], [1], [0, 0, 1, 1], [], []>} : vector<2x128xbf16>, vector<128x128xbf16>, vector<2x128xf32> -> vector<2x128xf32>
    %140 = vector.extract_strided_slice %3 {offsets = [1, 0], sizes = [1, 128], strides = [1, 1]} : vector<3x128xf32> to vector<1x128xf32>
    %141 = vector.broadcast %140 : vector<1x128xf32> to vector<2x128xf32>
    %142 = arith.addf %139, %141 : vector<2x128xf32>
    %cst_23 = arith.constant 0.000000e+00 : f32
    %143 = vector.broadcast %cst_23 : f32 to vector<2x128xf32>
    %144 = arith.maximumf %142, %143 : vector<2x128xf32>
    %145 = arith.truncf %144 : vector<2x128xf32> to vector<2x128xbf16>
    %146 = vector.extract_strided_slice %4 {offsets = [128, 0], sizes = [128, 128], strides = [1, 1]} : vector<256x128xbf16> to vector<128x128xbf16>
    %cst_24 = arith.constant dense<0.000000e+00> : vector<2x128xf32>
    %147 = tpu.matmul %145, %146, %cst_24 {dimension_numbers = #tpu.dot_dimension_numbers<[1], [0], [0], [1], [0, 0, 1, 1], [], []>} : vector<2x128xbf16>, vector<128x128xbf16>, vector<2x128xf32> -> vector<2x128xf32>
    %148 = vector.extract_strided_slice %3 {offsets = [2, 0], sizes = [1, 128], strides = [1, 1]} : vector<3x128xf32> to vector<1x128xf32>
    %149 = vector.broadcast %148 : vector<1x128xf32> to vector<2x128xf32>
    %150 = arith.addf %147, %149 : vector<2x128xf32>
    %c0_25 = arith.constant 0 : index
    %c0_26 = arith.constant 0 : index
    %c0_27 = arith.constant 0 : index
    %151 = vector.load %arg9[%c0_25, %c0_26, %c0_27] : memref<1x2x128xf32, #tpu.memory_space<vmem>>, vector<1x2x128xf32>
    %152 = vector.shape_cast %151 : vector<1x2x128xf32> to vector<2x128xf32>
    %153 = vector.shape_cast %150 : vector<2x128xf32> to vector<1x2x128xf32>
    tpu.vector_store %arg9[%c0_25, %c0_26, %c0_27], %153 {strides = array<i32>} : memref<1x2x128xf32, #tpu.memory_space<vmem>>, vector<1x2x128xf32>,
    return
  }
  func.func @transform_0(%arg0: i32) -> (i32, i32) {
    %c0_i32 = arith.constant 0 : i32
    %c0_i32_0 = arith.constant 0 : i32
    return %c0_i32, %arg0 : i32, i32
  }
  func.func @transform_1(%arg0: i32) -> (i32, i32) {
    %c0_i32 = arith.constant 0 : i32
    %c0_i32_0 = arith.constant 0 : i32
    %c0_i32_1 = arith.constant 0 : i32
    return %c0_i32, %c0_i32_0 : i32, i32
  }
  func.func @transform_2(%arg0: i32) -> (i32, i32) {
    %c0_i32 = arith.constant 0 : i32
    %c0_i32_0 = arith.constant 0 : i32
    %c0_i32_1 = arith.constant 0 : i32
    return %c0_i32, %c0_i32_0 : i32, i32
  }
  func.func @transform_3(%arg0: i32) -> (i32, i32) {
    %c0_i32 = arith.constant 0 : i32
    %c0_i32_0 = arith.constant 0 : i32
    %c0_i32_1 = arith.constant 0 : i32
    return %c0_i32, %c0_i32_0 : i32, i32
  }
  func.func @transform_4(%arg0: i32) -> (i32, i32) {
    %c0_i32 = arith.constant 0 : i32
    %c0_i32_0 = arith.constant 0 : i32
    %c0_i32_1 = arith.constant 0 : i32
    return %c0_i32, %c0_i32_0 : i32, i32
  }
  func.func @transform_5(%arg0: i32) -> (i32, i32) {
    %c0_i32 = arith.constant 0 : i32
    %c0_i32_0 = arith.constant 0 : i32
    %c0_i32_1 = arith.constant 0 : i32
    return %c0_i32, %c0_i32_0 : i32, i32
  }
  func.func @transform_6(%arg0: i32) -> (i32, i32) {
    %c0_i32 = arith.constant 0 : i32
    %c0_i32_0 = arith.constant 0 : i32
    %c0_i32_1 = arith.constant 0 : i32
    return %c0_i32, %c0_i32_0 : i32, i32
  }
  func.func @transform_7(%arg0: i32) -> (i32, i32) {
    %c0_i32 = arith.constant 0 : i32
    %c0_i32_0 = arith.constant 0 : i32
    %c0_i32_1 = arith.constant 0 : i32
    return %c0_i32, %c0_i32_0 : i32, i32
  }
  func.func @transform_8(%arg0: i32) -> (i32, i32, i32) {
    %c0_i32 = arith.constant 0 : i32
    %c0_i32_0 = arith.constant 0 : i32
    %c0_i32_1 = arith.constant 0 : i32
    return %arg0, %c0_i32, %c0_i32_0 : i32, i32, i32
  }
}

</mosaic_0001>

<llo_original>
// kernel: net_forward.1
$region0: #{net_forward.1}
  #allocation0 [shape = 'u32[]', space=smem, size = 0x4, offset = 0x4, fixed_abs, tag = 'smem constant byte address 0x4 - core index']
  #allocation1 [shape = 'u32[144,128]{1,0:T(1,128)}', space=vmem, size = 0x12000, scoped, tag = 'internal scratch']
  %s0 = inlined_call_operand.vmem [shape: bf16[3,4096], index: 0, kind: input, shape index: {}]
  %s1 = inlined_call_operand.vmem [shape: bf16[22,150], index: 1, kind: input, shape index: {}]
  %s2 = inlined_call_operand.vmem [shape: f32[22,1], index: 2, kind: input, shape index: {}]
  %s3 = inlined_call_operand.vmem [shape: bf16[1883,392], index: 3, kind: input, shape index: {}]
  %s4 = inlined_call_operand.vmem [shape: bf16[317,50], index: 4, kind: input, shape index: {}]
  %s5 = inlined_call_operand.vmem [shape: bf16[400,128], index: 5, kind: input, shape index: {}]
  %s6 = inlined_call_operand.vmem [shape: bf16[256,128], index: 6, kind: input, shape index: {}]
  %s7 = inlined_call_operand.vmem [shape: f32[3,128], index: 7, kind: input, shape index: {}]
  %s8 = inlined_call_operand.hbm [shape: f32[2,2,128], index: 8, kind: output, shape index: {}]
  %s9 = sld [smem:[#allocation0]]
  $region65: #{net_forward.1} parent=0
    _
  %s11 = ssub.s32 1, %s9
  %s12 = scalar_select 0, %s11, %s9
  $region1: #{net_forward.1} parent=0
    #allocation2 [shape = 'u8[2048]{0}', space=vmem, size = 0x800, scoped, tag = 'output window, operand 0']
    #allocation3 [shape = 's32[2]{0}', space=sflag, size = 0x8, scoped, tag = 'scoped memory for net_forward.1']
    %13 = vsyncpa [#allocation3], 0
    %s14 = scalar_lea.sflag [#allocation3], 1
    %15 = vsyncpa %s14, 0
    loop: start=0, step=1, limit=4
    $region2: #{net_forward.1} parent=1 // loop_pre_header
      _
    $region3: #{net_forward.1} parent=1 // loop_header
      %s17 = sphi 0, %s21
      %p18 = scmp.ge.s32.totalorder %s17, 4
      %s27 = sphi 0, %s29
      %s30 = sphi 0, %s27
      %s31 = sphi 0, %s30
      %s47 = sphi 0, %s31
      %s51 = sphi 0, %s51
      %s53 = sphi 0, %s51
      %s54 = sphi 0, %s53
      %s68 = sphi 0, %s54
      %s72 = sphi 0, %s72
      %s74 = sphi 0, %s72
      %s75 = sphi 0, %s74
      %s89 = sphi 0, %s75
      %s93 = sphi 0, %s93
      %s95 = sphi 0, %s93
      %s96 = sphi 0, %s95
      %s110 = sphi 0, %s96
      %s114 = sphi 0, %s114
      %s116 = sphi 0, %s114
      %s117 = sphi 0, %s116
      %s131 = sphi 0, %s117
      %s135 = sphi 0, %s135
      %s137 = sphi 0, %s135
      %s138 = sphi 0, %s137
      %s152 = sphi 0, %s138
      %s156 = sphi 0, %s156
      %s158 = sphi 0, %s156
      %s159 = sphi 0, %s158
      %s173 = sphi 0, %s159
      %s177 = sphi 0, %s177
      %s179 = sphi 0, %s177
      %s180 = sphi 0, %s179
      %s194 = sphi 0, %s180
      %s200 = sphi 0, %s202
      %s203 = sphi 0, %s200
      %s204 = sphi 0, %s203
      %s220 = sphi 0, %s204
    $region4: #{net_forward.1} parent=1 // loop_header_branch
      %20 = sbr.rel (%p18) target = $region8
    $region5: #{net_forward.1} parent=1 // loop_body
      %s22 = ssub.s32 %s17, 1
      %s23 = ssub.s32 %s17, 2
      %s24 = sadd.s32 %s17, 1
      %s25 = ssub.s32 %s17, %s24
      %p26 = scmp.eq.s32.totalorder %s25, 0
      %s28 = sadd.s32 %s27, 1
      %s29 = scalar_select %p26, %s27, %s28
      %p32 = pneg %p26
      %p33 = scmp.eq.s32.totalorder %s17, 1
      %p34 = por %p32, %p33
      %p35 = scmp.ne.s32.totalorder %s27, %s30
      %p36 = scmp.eq.s32.totalorder %s17, 0
      %p37 = por %p35, %p36
      %p38 = scmp.ne.s32.totalorder %s27, %s30
      %p39 = scmp.eq.s32.totalorder %s22, 1
      %p40 = por %p38, %p39
      %p41 = scmp.ne.s32.totalorder %s30, %s31
      %p42 = scmp.eq.s32.totalorder %s22, 0
      %p43 = por %p41, %p42
      %p44 = scmp.ne.s32.totalorder %s30, %s31
      %p45 = scmp.eq.s32.totalorder %s23, 1
      %p46 = por %p44, %p45
      %p48 = scmp.ne.s32.totalorder %s31, %s47
      %p49 = scmp.eq.s32.totalorder %s23, 0
      %p50 = por %p48, %p49
      %s52 = sadd.s32 %s51, 1
      %p55 = scmp.eq.s32.totalorder %s17, 1
      %p56 = scmp.ne.s32.totalorder %s51, %s53
      %p57 = scmp.eq.s32.totalorder %s17, 0
      %p58 = por %p56, %p57
      %p59 = scmp.ne.s32.totalorder %s51, %s53
      %p60 = scmp.eq.s32.totalorder %s22, 1
      %p61 = por %p59, %p60
      %p62 = scmp.ne.s32.totalorder %s53, %s54
      %p63 = scmp.eq.s32.totalorder %s22, 0
      %p64 = por %p62, %p63
      %p65 = scmp.ne.s32.totalorder %s53, %s54
      %p66 = scmp.eq.s32.totalorder %s23, 1
      %p67 = por %p65, %p66
      %p69 = scmp.ne.s32.totalorder %s54, %s68
      %p70 = scmp.eq.s32.totalorder %s23, 0
      %p71 = por %p69, %p70
      %s73 = sadd.s32 %s72, 1
      %p76 = scmp.eq.s32.totalorder %s17, 1
      %p77 = scmp.ne.s32.totalorder %s72, %s74
      %p78 = scmp.eq.s32.totalorder %s17, 0
      %p79 = por %p77, %p78
      %p80 = scmp.ne.s32.totalorder %s72, %s74
      %p81 = scmp.eq.s32.totalorder %s22, 1
      %p82 = por %p80, %p81
      %p83 = scmp.ne.s32.totalorder %s74, %s75
      %p84 = scmp.eq.s32.totalorder %s22, 0
      %p85 = por %p83, %p84
      %p86 = scmp.ne.s32.totalorder %s74, %s75
      %p87 = scmp.eq.s32.totalorder %s23, 1
      %p88 = por %p86, %p87
      %p90 = scmp.ne.s32.totalorder %s75, %s89
      %p91 = scmp.eq.s32.totalorder %s23, 0
      %p92 = por %p90, %p91
      %s94 = sadd.s32 %s93, 1
      %p97 = scmp.eq.s32.totalorder %s17, 1
      %p98 = scmp.ne.s32.totalorder %s93, %s95
      %p99 = scmp.eq.s32.totalorder %s17, 0
      %p100 = por %p98, %p99
      %p101 = scmp.ne.s32.totalorder %s93, %s95
      %p102 = scmp.eq.s32.totalorder %s22, 1
      %p103 = por %p101, %p102
      %p104 = scmp.ne.s32.totalorder %s95, %s96
      %p105 = scmp.eq.s32.totalorder %s22, 0
      %p106 = por %p104, %p105
      %p107 = scmp.ne.s32.totalorder %s95, %s96
      %p108 = scmp.eq.s32.totalorder %s23, 1
      %p109 = por %p107, %p108
      %p111 = scmp.ne.s32.totalorder %s96, %s110
      %p112 = scmp.eq.s32.totalorder %s23, 0
      %p113 = por %p111, %p112
      %s115 = sadd.s32 %s114, 1
      %p118 = scmp.eq.s32.totalorder %s17, 1
      %p119 = scmp.ne.s32.totalorder %s114, %s116
      %p120 = scmp.eq.s32.totalorder %s17, 0
      %p121 = por %p119, %p120
      %p122 = scmp.ne.s32.totalorder %s114, %s116
      %p123 = scmp.eq.s32.totalorder %s22, 1
      %p124 = por %p122, %p123
      %p125 = scmp.ne.s32.totalorder %s116, %s117
      %p126 = scmp.eq.s32.totalorder %s22, 0
      %p127 = por %p125, %p126
      %p128 = scmp.ne.s32.totalorder %s116, %s117
      %p129 = scmp.eq.s32.totalorder %s23, 1
      %p130 = por %p128, %p129
      %p132 = scmp.ne.s32.totalorder %s117, %s131
      %p133 = scmp.eq.s32.totalorder %s23, 0
      %p134 = por %p132, %p133
      %s136 = sadd.s32 %s135, 1
      %p139 = scmp.eq.s32.totalorder %s17, 1
      %p140 = scmp.ne.s32.totalorder %s135, %s137
      %p141 = scmp.eq.s32.totalorder %s17, 0
      %p142 = por %p140, %p141
      %p143 = scmp.ne.s32.totalorder %s135, %s137
      %p144 = scmp.eq.s32.totalorder %s22, 1
      %p145 = por %p143, %p144
      %p146 = scmp.ne.s32.totalorder %s137, %s138
      %p147 = scmp.eq.s32.totalorder %s22, 0
      %p148 = por %p146, %p147
      %p149 = scmp.ne.s32.totalorder %s137, %s138
      %p150 = scmp.eq.s32.totalorder %s23, 1
      %p151 = por %p149, %p150
      %p153 = scmp.ne.s32.totalorder %s138, %s152
      %p154 = scmp.eq.s32.totalorder %s23, 0
      %p155 = por %p153, %p154
      %s157 = sadd.s32 %s156, 1
      %p160 = scmp.eq.s32.totalorder %s17, 1
      %p161 = scmp.ne.s32.totalorder %s156, %s158
      %p162 = scmp.eq.s32.totalorder %s17, 0
      %p163 = por %p161, %p162
      %p164 = scmp.ne.s32.totalorder %s156, %s158
      %p165 = scmp.eq.s32.totalorder %s22, 1
      %p166 = por %p164, %p165
      %p167 = scmp.ne.s32.totalorder %s158, %s159
      %p168 = scmp.eq.s32.totalorder %s22, 0
      %p169 = por %p167, %p168
      %p170 = scmp.ne.s32.totalorder %s158, %s159
      %p171 = scmp.eq.s32.totalorder %s23, 1
      %p172 = por %p170, %p171
      %p174 = scmp.ne.s32.totalorder %s159, %s173
      %p175 = scmp.eq.s32.totalorder %s23, 0
      %p176 = por %p174, %p175
      %s178 = sadd.s32 %s177, 1
      %p181 = scmp.eq.s32.totalorder %s17, 1
      %p182 = scmp.ne.s32.totalorder %s177, %s179
      %p183 = scmp.eq.s32.totalorder %s17, 0
      %p184 = por %p182, %p183
      %p185 = scmp.ne.s32.totalorder %s177, %s179
      %p186 = scmp.eq.s32.totalorder %s22, 1
      %p187 = por %p185, %p186
      %p188 = scmp.ne.s32.totalorder %s179, %s180
      %p189 = scmp.eq.s32.totalorder %s22, 0
      %p190 = por %p188, %p189
      %p191 = scmp.ne.s32.totalorder %s179, %s180
      %p192 = scmp.eq.s32.totalorder %s23, 1
      %p193 = por %p191, %p192
      %p195 = scmp.ne.s32.totalorder %s180, %s194
      %p196 = scmp.eq.s32.totalorder %s23, 0
      %p197 = por %p195, %p196
      %s198 = ssub.s32 %s17, %s24
      %p199 = scmp.eq.s32.totalorder %s198, 0
      %s201 = sadd.s32 %s200, 1
      %s202 = scalar_select %p199, %s200, %s201
      %p205 = pneg %p199
      %p206 = scmp.eq.s32.totalorder %s17, 1
      %p207 = por %p205, %p206
      %p208 = scmp.ne.s32.totalorder %s200, %s203
      %p209 = scmp.eq.s32.totalorder %s17, 0
      %p210 = por %p208, %p209
      %p211 = scmp.ne.s32.totalorder %s200, %s203
      %p212 = scmp.eq.s32.totalorder %s22, 1
      %p213 = por %p211, %p212
      %p214 = scmp.ne.s32.totalorder %s203, %s204
      %p215 = scmp.eq.s32.totalorder %s22, 0
      %p216 = por %p214, %p215
      %p217 = scmp.ne.s32.totalorder %s203, %s204
      %p218 = scmp.eq.s32.totalorder %s23, 1
      %p219 = por %p217, %p218
      %p221 = scmp.ne.s32.totalorder %s204, %s220
      %p222 = scmp.eq.s32.totalorder %s23, 0
      %p223 = por %p221, %p222
      %p224 = scmp.le.s32.totalorder 1, %s17
      %p225 = scmp.lt.s32.totalorder %s17, 3
      %p226 = pnand %p224, %p225
      %p227 = pneg %p226
      // Predicated region
      $region9: #{net_forward.1} parent=5 // pred_check
        _
      $region10: #{net_forward.1} parent=5 // pred_check_branch
        %229 = sbr.rel (%p226) target = $region12
      $region11: #{net_forward.1} parent=5 // pred_region
        %s230 = ssub.s32 %s17, 1
        // Predicated region
        $region13: #{net_forward.1} parent=11 // pred_check
          %p231 = pneg %p64
        $region14: #{net_forward.1} parent=11 // pred_check_branch
          %233 = sbr.rel (%p231) target = $region16
        $region15: #{net_forward.1} parent=11 // pred_region
          _
        $region16: #{net_forward.1} parent=11 // pred_fallthru
          _
        // Predicated region
        $region17: #{net_forward.1} parent=11 // pred_check
          %p234 = pneg %p85
        $region18: #{net_forward.1} parent=11 // pred_check_branch
          %236 = sbr.rel (%p234) target = $region20
        $region19: #{net_forward.1} parent=11 // pred_region
          _
        $region20: #{net_forward.1} parent=11 // pred_fallthru
          _
        // Predicated region
        $region21: #{net_forward.1} parent=11 // pred_check
          %p237 = pneg %p106
        $region22: #{net_forward.1} parent=11 // pred_check_branch
          %239 = sbr.rel (%p237) target = $region24
        $region23: #{net_forward.1} parent=11 // pred_region
          _
        $region24: #{net_forward.1} parent=11 // pred_fallthru
          _
        // Predicated region
        $region25: #{net_forward.1} parent=11 // pred_check
          %p240 = pneg %p127
        $region26: #{net_forward.1} parent=11 // pred_check_branch
          %242 = sbr.rel (%p240) target = $region28
        $region27: #{net_forward.1} parent=11 // pred_region
          _
        $region28: #{net_forward.1} parent=11 // pred_fallthru
          _
        // Predicated region
        $region29: #{net_forward.1} parent=11 // pred_check
          %p243 = pneg %p148
        $region30: #{net_forward.1} parent=11 // pred_check_branch
          %245 = sbr.rel (%p243) target = $region32
        $region31: #{net_forward.1} parent=11 // pred_region
          _
        $region32: #{net_forward.1} parent=11 // pred_fallthru
          _
        // Predicated region
        $region33: #{net_forward.1} parent=11 // pred_check
          %p246 = pneg %p169
        $region34: #{net_forward.1} parent=11 // pred_check_branch
          %248 = sbr.rel (%p246) target = $region36
        $region35: #{net_forward.1} parent=11 // pred_region
          _
        $region36: #{net_forward.1} parent=11 // pred_fallthru
          _
        // Predicated region
        $region37: #{net_forward.1} parent=11 // pred_check
          %p249 = pneg %p190
        $region38: #{net_forward.1} parent=11 // pred_check_branch
          %251 = sbr.rel (%p249) target = $region40
        $region39: #{net_forward.1} parent=11 // pred_region
          _
        $region40: #{net_forward.1} parent=11 // pred_fallthru
          _
      $region12: #{net_forward.1} parent=5 // pred_fallthru
        _
      %p252 = scmp.lt.s32.totalorder %s17, 2
      // Predicated region
      $region41: #{net_forward.1} parent=5 // pred_check
        %p253 = pneg %p252
      $region42: #{net_forward.1} parent=5 // pred_check_branch
        %255 = sbr.rel (%p253) target = $region44
      $region43: #{net_forward.1} parent=5 // pred_region
        // Predicated region
        $region45: #{net_forward.1} parent=43 // pred_check
          %p256 = pneg %p37
        $region46: #{net_forward.1} parent=43 // pred_check_branch
          %258 = sbr.rel (%p256) target = $region48
        $region47: #{net_forward.1} parent=43 // pred_region
          %s259 = smul.u32 16, %s17
          %p260 = scmp.lt.s32.totalorder %s259, 31
          %s261 = scalar_select %p260, %s259, 31
          %s262 = smul.addr %s261, 2
          %s263 = scalar_lea.vmem %s0, %s262
          %s264 = smul.u32 16, %s17
        $region48: #{net_forward.1} parent=43 // pred_fallthru
          _
      $region44: #{net_forward.1} parent=5 // pred_fallthru
        _
      %p265 = scmp.le.s32.totalorder 1, %s17
      %p266 = scmp.lt.s32.totalorder %s17, 3
      %p267 = pnand %p265, %p266
      %p268 = pneg %p267
      // Predicated region
      $region49: #{net_forward.1} parent=5 // pred_check
        _
      $region50: #{net_forward.1} parent=5 // pred_check_branch
        %270 = sbr.rel (%p267) target = $region52
      $region51: #{net_forward.1} parent=5 // pred_region
        %s271 = ssub.s32 %s17, 1
        %s272 = smul.u32 16, %s22
        %p273 = scmp.lt.s32.totalorder %s272, 31
        %s274 = scalar_select %p273, %s272, 31
        %s275 = smul.addr %s274, 2
        %s276 = scalar_lea.vmem %s0, %s275
        %p277 = pneg %p43
        %p278 = pneg %p40
        %p279 = pneg %p64
        %p280 = pneg %p61
        %p281 = pneg %p85
        %p282 = pneg %p82
        %p283 = pneg %p106
        %p284 = pneg %p103
        %p285 = pneg %p127
        %p286 = pneg %p124
        %p287 = pneg %p148
        %p288 = pneg %p145
        %p289 = pneg %p169
        %p290 = pneg %p166
        %p291 = pneg %p190
        %p292 = pneg %p187
        %p293 = pneg %p216
        %p294 = pneg %p213
        %s295 = sand.u32 %s203, 1
        %s296 = scalar_lea.sflag [#allocation3], %s295
        %s297 = sand.u32 %s203, 1
        %s298 = smul.addr %s297, 2
        %s299 = scalar_lea.vmem [#allocation2], %s298
        %s300 = smul.u32 16, %s22
        %p301 = scmp.lt.s32.totalorder %s300, 31
        %s302 = scalar_select %p301, %s300, 31
        %s303 = smul.addr %s302, 2
        %s304 = scalar_lea.vmem %s0, %s303
        %s305 = smul.u32 16, %s22
        %v307 = vld [vmem:[%s304] sm:$0xff]
        %v308 = vld [vmem:[%s304 + $0x8] sm:$0xff]
        %v309 = vld [vmem:[%s304 + $0x10] sm:$0xff]
        %v310 = vld [vmem:[%s304 + $0x18] sm:$0xff]
        %v311 = vld [vmem:[%s1] sm:$0xff]
        %v312 = vld [vmem:[%s1 + $0x8] sm:$0xff]
        %v313 = vld [vmem:[%s1 + $0x10] sm:$0x77]
        %v314 = vld [vmem:[%s2] sm:$0xff]
        %v315 = vld [vmem:[%s2 + $0x8] sm:$0xff]
        %v316 = vld [vmem:[%s2 + $0x10] sm:$0x3f]
        %v317 = vld [vmem:[%s7] sm:$0x7]
        %v318 = vld [vmem:[%s6] sm:$0xf]
        %v319 = vld [vmem:[%s6 + $0x4] sm:$0xf]
        %v320 = vld [vmem:[%s6 + $0x8] sm:$0xf]
        %v321 = vld [vmem:[%s6 + $0xc] sm:$0xf]
        %v322 = vld [vmem:[%s6 + $0x10] sm:$0xf]
        %v323 = vld [vmem:[%s6 + $0x14] sm:$0xf]
        %v324 = vld [vmem:[%s6 + $0x18] sm:$0xf]
        %v325 = vld [vmem:[%s6 + $0x1c] sm:$0xf]
        %v326 = vld [vmem:[%s6 + $0x20] sm:$0xf]
        %v327 = vld [vmem:[%s6 + $0x24] sm:$0xf]
        %v328 = vld [vmem:[%s6 + $0x28] sm:$0xf]
        %v329 = vld [vmem:[%s6 + $0x2c] sm:$0xf]
        %v330 = vld [vmem:[%s6 + $0x30] sm:$0xf]
        %v331 = vld [vmem:[%s6 + $0x34] sm:$0xf]
        %v332 = vld [vmem:[%s6 + $0x38] sm:$0xf]
        %v333 = vld [vmem:[%s6 + $0x3c] sm:$0xf]
        %v334 = vld [vmem:[%s6 + $0x40] sm:$0xf]
        %v335 = vld [vmem:[%s6 + $0x44] sm:$0xf]
        %v336 = vld [vmem:[%s6 + $0x48] sm:$0xf]
        %v337 = vld [vmem:[%s6 + $0x4c] sm:$0xf]
        %v338 = vld [vmem:[%s6 + $0x50] sm:$0xf]
        %v339 = vld [vmem:[%s6 + $0x54] sm:$0xf]
        %v340 = vld [vmem:[%s6 + $0x58] sm:$0xf]
        %v341 = vld [vmem:[%s6 + $0x5c] sm:$0xf]
        %v342 = vld [vmem:[%s6 + $0x60] sm:$0xf]
        %v343 = vld [vmem:[%s6 + $0x64] sm:$0xf]
        %v344 = vld [vmem:[%s6 + $0x68] sm:$0xf]
        %v345 = vld [vmem:[%s6 + $0x6c] sm:$0xf]
        %v346 = vld [vmem:[%s6 + $0x70] sm:$0xf]
        %v347 = vld [vmem:[%s6 + $0x74] sm:$0xf]
        %v348 = vld [vmem:[%s6 + $0x78] sm:$0xf]
        %v349 = vld [vmem:[%s6 + $0x7c] sm:$0xf]
        %v350 = vld [vmem:[%s3] sm:$0xff]
        %v351 = vld [vmem:[%s3 + $0x8] sm:$0xff]
        %v352 = vld [vmem:[%s3 + $0x10] sm:$0xff]
        %v353 = vld [vmem:[%s3 + $0x18] sm:$0xff]
        %v354 = vld [vmem:[%s3 + $0x20] sm:$0xff]
        %v355 = vld [vmem:[%s3 + $0x28] sm:$0xff]
        %v356 = vld [vmem:[%s3 + $0x30] sm:$0xff]
        %v357 = vld [vmem:[%s3 + $0x38] sm:$0xff]
        %v358 = vld [vmem:[%s3 + $0x40] sm:$0xff]
        %v359 = vld [vmem:[%s3 + $0x48] sm:$0xff]
        %v360 = vld [vmem:[%s3 + $0x50] sm:$0xff]
        %v361 = vld [vmem:[%s3 + $0x58] sm:$0xff]
        %v362 = vld [vmem:[%s3 + $0x60] sm:$0xff]
        %v363 = vld [vmem:[%s3 + $0x68] sm:$0xff]
        %v364 = vld [vmem:[%s3 + $0x70] sm:$0xff]
        %v365 = vld [vmem:[%s3 + $0x78] sm:$0xff]
        %v366 = vld [vmem:[%s3 + $0x80] sm:$0xff]
        %v367 = vld [vmem:[%s3 + $0x88] sm:$0xff]
        %v368 = vld [vmem:[%s3 + $0x90] sm:$0xff]
        %v369 = vld [vmem:[%s3 + $0x98] sm:$0xff]
        %v370 = vld [vmem:[%s3 + $0xa0] sm:$0xff]
        %v371 = vld [vmem:[%s3 + $0xa8] sm:$0xff]
        %v372 = vld [vmem:[%s3 + $0xb0] sm:$0xff]
        %v373 = vld [vmem:[%s3 + $0xb8] sm:$0xff]
        %v374 = vld [vmem:[%s3 + $0xc0] sm:$0xff]
        %v375 = vld [vmem:[%s3 + $0xc8] sm:$0xff]
        %v376 = vld [vmem:[%s3 + $0xd0] sm:$0xff]
        %v377 = vld [vmem:[%s3 + $0xd8] sm:$0xff]
        %v378 = vld [vmem:[%s3 + $0xe0] sm:$0xff]
        %v379 = vld [vmem:[%s3 + $0xe8] sm:$0xff]
        %v380 = vld [vmem:[%s3 + $0xf0] sm:$0xff]
        %v381 = vld [vmem:[%s3 + $0xf8] sm:$0xff]
        %v382 = vld [vmem:[%s3 + $0x100] sm:$0xff]
        %v383 = vld [vmem:[%s3 + $0x108] sm:$0xff]
        %v384 = vld [vmem:[%s3 + $0x110] sm:$0xff]
        %v385 = vld [vmem:[%s3 + $0x118] sm:$0xff]
        %v386 = vld [vmem:[%s3 + $0x120] sm:$0xff]
        %v387 = vld [vmem:[%s3 + $0x128] sm:$0xff]
        %v388 = vld [vmem:[%s3 + $0x130] sm:$0xff]
        %v389 = vld [vmem:[%s3 + $0x138] sm:$0xff]
        %v390 = vld [vmem:[%s3 + $0x140] sm:$0xff]
        %v391 = vld [vmem:[%s3 + $0x148] sm:$0xff]
        %v392 = vld [vmem:[%s3 + $0x150] sm:$0xff]
        %v393 = vld [vmem:[%s3 + $0x158] sm:$0xff]
        %v394 = vld [vmem:[%s3 + $0x160] sm:$0xff]
        %v395 = vld [vmem:[%s3 + $0x168] sm:$0xff]
        %v396 = vld [vmem:[%s3 + $0x170] sm:$0xff]
        %v397 = vld [vmem:[%s3 + $0x178] sm:$0xff]
        %v398 = vld [vmem:[%s3 + $0x180] sm:$0xff]
        %v399 = vld [vmem:[%s3 + $0x188] sm:$0xff]
        %v400 = vld [vmem:[%s3 + $0x190] sm:$0xff]
        %v401 = vld [vmem:[%s3 + $0x198] sm:$0xff]
        %v402 = vld [vmem:[%s3 + $0x1a0] sm:$0xff]
        %v403 = vld [vmem:[%s3 + $0x1a8] sm:$0xff]
        %v404 = vld [vmem:[%s3 + $0x1b0] sm:$0xff]
        %v405 = vld [vmem:[%s3 + $0x1b8] sm:$0xff]
        %v406 = vld [vmem:[%s3 + $0x1c0] sm:$0xff]
        %v407 = vld [vmem:[%s3 + $0x1c8] sm:$0xff]
        %v408 = vld [vmem:[%s3 + $0x1d0] sm:$0xff]
        %v409 = vld [vmem:[%s3 + $0x1d8] sm:$0xff]
        %v410 = vld [vmem:[%s3 + $0x1e0] sm:$0xff]
        %v411 = vld [vmem:[%s3 + $0x1e8] sm:$0xff]
        %v412 = vld [vmem:[%s3 + $0x1f0] sm:$0xff]
        %v413 = vld [vmem:[%s3 + $0x1f8] sm:$0xff]
        %v414 = vld [vmem:[%s3 + $0x200] sm:$0xff]
        %v415 = vld [vmem:[%s3 + $0x208] sm:$0xff]
        %v416 = vld [vmem:[%s3 + $0x210] sm:$0xff]
        %v417 = vld [vmem:[%s3 + $0x218] sm:$0xff]
        %v418 = vld [vmem:[%s3 + $0x220] sm:$0xff]
        %v419 = vld [vmem:[%s3 + $0x228] sm:$0xff]
        %v420 = vld [vmem:[%s3 + $0x230] sm:$0xff]
        %v421 = vld [vmem:[%s3 + $0x238] sm:$0xff]
        %v422 = vld [vmem:[%s3 + $0x240] sm:$0xff]
        %v423 = vld [vmem:[%s3 + $0x248] sm:$0xff]
        %v424 = vld [vmem:[%s3 + $0x250] sm:$0xff]
        %v425 = vld [vmem:[%s3 + $0x258] sm:$0xff]
        %v426 = vld [vmem:[%s3 + $0x260] sm:$0xff]
        %v427 = vld [vmem:[%s3 + $0x268] sm:$0xff]
        %v428 = vld [vmem:[%s3 + $0x270] sm:$0xff]
        %v429 = vld [vmem:[%s3 + $0x278] sm:$0xff]
        %v430 = vld [vmem:[%s3 + $0x280] sm:$0xff]
        %v431 = vld [vmem:[%s3 + $0x288] sm:$0xff]
        %v432 = vld [vmem:[%s3 + $0x290] sm:$0xff]
        %v433 = vld [vmem:[%s3 + $0x298] sm:$0xff]
        %v434 = vld [vmem:[%s3 + $0x2a0] sm:$0xff]
        %v435 = vld [vmem:[%s3 + $0x2a8] sm:$0xff]
        %v436 = vld [vmem:[%s3 + $0x2b0] sm:$0xff]
        %v437 = vld [vmem:[%s3 + $0x2b8] sm:$0xff]
        %v438 = vld [vmem:[%s3 + $0x2c0] sm:$0xff]
        %v439 = vld [vmem:[%s3 + $0x2c8] sm:$0xff]
        %v440 = vld [vmem:[%s3 + $0x2d0] sm:$0xff]
        %v441 = vld [vmem:[%s3 + $0x2d8] sm:$0xff]
        %v442 = vld [vmem:[%s3 + $0x2e0] sm:$0xff]
        %v443 = vld [vmem:[%s3 + $0x2e8] sm:$0xff]
        %v444 = vld [vmem:[%s3 + $0x2f0] sm:$0xff]
        %v445 = vld [vmem:[%s3 + $0x2f8] sm:$0xff]
        %v446 = vld [vmem:[%s3 + $0x300] sm:$0xff]
        %v447 = vld [vmem:[%s3 + $0x308] sm:$0xff]
        %v448 = vld [vmem:[%s3 + $0x310] sm:$0xff]
        %v449 = vld [vmem:[%s3 + $0x318] sm:$0xff]
        %v450 = vld [vmem:[%s3 + $0x320] sm:$0xff]
        %v451 = vld [vmem:[%s3 + $0x328] sm:$0xff]
        %v452 = vld [vmem:[%s3 + $0x330] sm:$0xff]
        %v453 = vld [vmem:[%s3 + $0x338] sm:$0xff]
        %v454 = vld [vmem:[%s3 + $0x340] sm:$0xff]
        %v455 = vld [vmem:[%s3 + $0x348] sm:$0xff]
        %v456 = vld [vmem:[%s3 + $0x350] sm:$0xff]
        %v457 = vld [vmem:[%s3 + $0x358] sm:$0xff]
        %v458 = vld [vmem:[%s3 + $0x360] sm:$0xff]
        %v459 = vld [vmem:[%s3 + $0x368] sm:$0xff]
        %v460 = vld [vmem:[%s3 + $0x370] sm:$0xff]
        %v461 = vld [vmem:[%s3 + $0x378] sm:$0xff]
        %v462 = vld [vmem:[%s3 + $0x380] sm:$0xff]
        %v463 = vld [vmem:[%s3 + $0x388] sm:$0xff]
        %v464 = vld [vmem:[%s3 + $0x390] sm:$0xff]
        %v465 = vld [vmem:[%s3 + $0x398] sm:$0xff]
        %v466 = vld [vmem:[%s3 + $0x3a0] sm:$0xff]
        %v467 = vld [vmem:[%s3 + $0x3a8] sm:$0xff]
        %v468 = vld [vmem:[%s3 + $0x3b0] sm:$0xff]
        %v469 = vld [vmem:[%s3 + $0x3b8] sm:$0xff]
        %v470 = vld [vmem:[%s3 + $0x3c0] sm:$0xff]
        %v471 = vld [vmem:[%s3 + $0x3c8] sm:$0xff]
        %v472 = vld [vmem:[%s3 + $0x3d0] sm:$0xff]
        %v473 = vld [vmem:[%s3 + $0x3d8] sm:$0xff]
        %v474 = vld [vmem:[%s3 + $0x3e0] sm:$0xff]
        %v475 = vld [vmem:[%s3 + $0x3e8] sm:$0xff]
        %v476 = vld [vmem:[%s3 + $0x3f0] sm:$0xff]
        %v477 = vld [vmem:[%s3 + $0x3f8] sm:$0xff]
        %v478 = vld [vmem:[%s3 + $0x400] sm:$0xff]
        %v479 = vld [vmem:[%s3 + $0x408] sm:$0xff]
        %v480 = vld [vmem:[%s3 + $0x410] sm:$0xff]
        %v481 = vld [vmem:[%s3 + $0x418] sm:$0xff]
        %v482 = vld [vmem:[%s3 + $0x420] sm:$0xff]
        %v483 = vld [vmem:[%s3 + $0x428] sm:$0xff]
        %v484 = vld [vmem:[%s3 + $0x430] sm:$0xff]
        %v485 = vld [vmem:[%s3 + $0x438] sm:$0xff]
        %v486 = vld [vmem:[%s3 + $0x440] sm:$0xff]
        %v487 = vld [vmem:[%s3 + $0x448] sm:$0xff]
        %v488 = vld [vmem:[%s3 + $0x450] sm:$0xff]
        %v489 = vld [vmem:[%s3 + $0x458] sm:$0xff]
        %v490 = vld [vmem:[%s3 + $0x460] sm:$0xff]
        %v491 = vld [vmem:[%s3 + $0x468] sm:$0xff]
        %v492 = vld [vmem:[%s3 + $0x470] sm:$0xff]
        %v493 = vld [vmem:[%s3 + $0x478] sm:$0xff]
        %v494 = vld [vmem:[%s3 + $0x480] sm:$0xff]
        %v495 = vld [vmem:[%s3 + $0x488] sm:$0xff]
        %v496 = vld [vmem:[%s3 + $0x490] sm:$0xff]
        %v497 = vld [vmem:[%s3 + $0x498] sm:$0xff]
        %v498 = vld [vmem:[%s3 + $0x4a0] sm:$0xff]
        %v499 = vld [vmem:[%s3 + $0x4a8] sm:$0xff]
        %v500 = vld [vmem:[%s3 + $0x4b0] sm:$0xff]
        %v501 = vld [vmem:[%s3 + $0x4b8] sm:$0xff]
        %v502 = vld [vmem:[%s3 + $0x4c0] sm:$0xff]
        %v503 = vld [vmem:[%s3 + $0x4c8] sm:$0xff]
        %v504 = vld [vmem:[%s3 + $0x4d0] sm:$0xff]
        %v505 = vld [vmem:[%s3 + $0x4d8] sm:$0xff]
        %v506 = vld [vmem:[%s3 + $0x4e0] sm:$0xff]
        %v507 = vld [vmem:[%s3 + $0x4e8] sm:$0xff]
        %v508 = vld [vmem:[%s3 + $0x4f0] sm:$0xff]
        %v509 = vld [vmem:[%s3 + $0x4f8] sm:$0xff]
        %v510 = vld [vmem:[%s3 + $0x500] sm:$0xff]
        %v511 = vld [vmem:[%s3 + $0x508] sm:$0xff]
        %v512 = vld [vmem:[%s3 + $0x510] sm:$0xff]
        %v513 = vld [vmem:[%s3 + $0x518] sm:$0xff]
        %v514 = vld [vmem:[%s3 + $0x520] sm:$0xff]
        %v515 = vld [vmem:[%s3 + $0x528] sm:$0xff]
        %v516 = vld [vmem:[%s3 + $0x530] sm:$0xff]
        %v517 = vld [vmem:[%s3 + $0x538] sm:$0xff]
        %v518 = vld [vmem:[%s3 + $0x540] sm:$0xff]
        %v519 = vld [vmem:[%s3 + $0x548] sm:$0xff]
        %v520 = vld [vmem:[%s3 + $0x550] sm:$0xff]
        %v521 = vld [vmem:[%s3 + $0x558] sm:$0xff]
        %v522 = vld [vmem:[%s3 + $0x560] sm:$0xff]
        %v523 = vld [vmem:[%s3 + $0x568] sm:$0xff]
        %v524 = vld [vmem:[%s3 + $0x570] sm:$0xff]
        %v525 = vld [vmem:[%s3 + $0x578] sm:$0xff]
        %v526 = vld [vmem:[%s3 + $0x580] sm:$0xff]
        %v527 = vld [vmem:[%s3 + $0x588] sm:$0xff]
        %v528 = vld [vmem:[%s3 + $0x590] sm:$0xff]
        %v529 = vld [vmem:[%s3 + $0x598] sm:$0xff]
        %v530 = vld [vmem:[%s3 + $0x5a0] sm:$0xff]
        %v531 = vld [vmem:[%s3 + $0x5a8] sm:$0xff]
        %v532 = vld [vmem:[%s3 + $0x5b0] sm:$0xff]
        %v533 = vld [vmem:[%s3 + $0x5b8] sm:$0xff]
        %v534 = vld [vmem:[%s3 + $0x5c0] sm:$0xff]
        %v535 = vld [vmem:[%s3 + $0x5c8] sm:$0xff]
        %v536 = vld [vmem:[%s3 + $0x5d0] sm:$0xff]
        %v537 = vld [vmem:[%s3 + $0x5d8] sm:$0xff]
        %v538 = vld [vmem:[%s3 + $0x5e0] sm:$0xff]
        %v539 = vld [vmem:[%s3 + $0x5e8] sm:$0xff]
        %v540 = vld [vmem:[%s3 + $0x5f0] sm:$0xff]
        %v541 = vld [vmem:[%s3 + $0x5f8] sm:$0xff]
        %v542 = vld [vmem:[%s3 + $0x600] sm:$0xff]
        %v543 = vld [vmem:[%s3 + $0x608] sm:$0xff]
        %v544 = vld [vmem:[%s3 + $0x610] sm:$0xff]
        %v545 = vld [vmem:[%s3 + $0x618] sm:$0xff]
        %v546 = vld [vmem:[%s3 + $0x620] sm:$0xff]
        %v547 = vld [vmem:[%s3 + $0x628] sm:$0xff]
        %v548 = vld [vmem:[%s3 + $0x630] sm:$0xff]
        %v549 = vld [vmem:[%s3 + $0x638] sm:$0xff]
        %v550 = vld [vmem:[%s3 + $0x640] sm:$0xff]
        %v551 = vld [vmem:[%s3 + $0x648] sm:$0xff]
        %v552 = vld [vmem:[%s3 + $0x650] sm:$0xff]
        %v553 = vld [vmem:[%s3 + $0x658] sm:$0xff]
        %v554 = vld [vmem:[%s3 + $0x660] sm:$0xff]
        %v555 = vld [vmem:[%s3 + $0x668] sm:$0xff]
        %v556 = vld [vmem:[%s3 + $0x670] sm:$0xff]
        %v557 = vld [vmem:[%s3 + $0x678] sm:$0xff]
        %v558 = vld [vmem:[%s3 + $0x680] sm:$0xff]
        %v559 = vld [vmem:[%s3 + $0x688] sm:$0xff]
        %v560 = vld [vmem:[%s3 + $0x690] sm:$0xff]
        %v561 = vld [vmem:[%s3 + $0x698] sm:$0xff]
        %v562 = vld [vmem:[%s3 + $0x6a0] sm:$0xff]
        %v563 = vld [vmem:[%s3 + $0x6a8] sm:$0xff]
        %v564 = vld [vmem:[%s3 + $0x6b0] sm:$0xff]
        %v565 = vld [vmem:[%s3 + $0x6b8] sm:$0xff]
        %v566 = vld [vmem:[%s3 + $0x6c0] sm:$0xff]
        %v567 = vld [vmem:[%s3 + $0x6c8] sm:$0xff]
        %v568 = vld [vmem:[%s3 + $0x6d0] sm:$0xff]
        %v569 = vld [vmem:[%s3 + $0x6d8] sm:$0xff]
        %v570 = vld [vmem:[%s3 + $0x6e0] sm:$0xff]
        %v571 = vld [vmem:[%s3 + $0x6e8] sm:$0xff]
        %v572 = vld [vmem:[%s3 + $0x6f0] sm:$0xff]
        %v573 = vld [vmem:[%s3 + $0x6f8] sm:$0xff]
        %v574 = vld [vmem:[%s3 + $0x700] sm:$0xff]
        %v575 = vld [vmem:[%s3 + $0x708] sm:$0xff]
        %v576 = vld [vmem:[%s3 + $0x710] sm:$0xff]
        %v577 = vld [vmem:[%s3 + $0x718] sm:$0xff]
        %v578 = vld [vmem:[%s3 + $0x720] sm:$0xff]
        %v579 = vld [vmem:[%s3 + $0x728] sm:$0xff]
        %v580 = vld [vmem:[%s3 + $0x730] sm:$0xff]
        %v581 = vld [vmem:[%s3 + $0x738] sm:$0xff]
        %v582 = vld [vmem:[%s3 + $0x740] sm:$0xff]
        %v583 = vld [vmem:[%s3 + $0x748] sm:$0xff]
        %v584 = vld [vmem:[%s3 + $0x750] sm:$0xff]
        %v585 = vld [vmem:[%s3 + $0x758] sm:$0xff]
        %v586 = vld [vmem:[%s3 + $0x760] sm:$0xff]
        %v587 = vld [vmem:[%s3 + $0x768] sm:$0xff]
        %v588 = vld [vmem:[%s3 + $0x770] sm:$0xff]
        %v589 = vld [vmem:[%s3 + $0x778] sm:$0xff]
        %v590 = vld [vmem:[%s3 + $0x780] sm:$0xff]
        %v591 = vld [vmem:[%s3 + $0x788] sm:$0xff]
        %v592 = vld [vmem:[%s3 + $0x790] sm:$0xff]
        %v593 = vld [vmem:[%s3 + $0x798] sm:$0xff]
        %v594 = vld [vmem:[%s3 + $0x7a0] sm:$0xff]
        %v595 = vld [vmem:[%s3 + $0x7a8] sm:$0xff]
        %v596 = vld [vmem:[%s3 + $0x7b0] sm:$0xff]
        %v597 = vld [vmem:[%s3 + $0x7b8] sm:$0xff]
        %v598 = vld [vmem:[%s3 + $0x7c0] sm:$0xff]
        %v599 = vld [vmem:[%s3 + $0x7c8] sm:$0xff]
        %v600 = vld [vmem:[%s3 + $0x7d0] sm:$0xff]
        %v601 = vld [vmem:[%s3 + $0x7d8] sm:$0xff]
        %v602 = vld [vmem:[%s3 + $0x7e0] sm:$0xff]
        %v603 = vld [vmem:[%s3 + $0x7e8] sm:$0xff]
        %v604 = vld [vmem:[%s3 + $0x7f0] sm:$0xff]
        %v605 = vld [vmem:[%s3 + $0x7f8] sm:$0xff]
        %v606 = vld [vmem:[%s3 + $0x800] sm:$0xff]
        %v607 = vld [vmem:[%s3 + $0x808] sm:$0xff]
        %v608 = vld [vmem:[%s3 + $0x810] sm:$0xff]
        %v609 = vld [vmem:[%s3 + $0x818] sm:$0xff]
        %v610 = vld [vmem:[%s3 + $0x820] sm:$0xff]
        %v611 = vld [vmem:[%s3 + $0x828] sm:$0xff]
        %v612 = vld [vmem:[%s3 + $0x830] sm:$0xff]
        %v613 = vld [vmem:[%s3 + $0x838] sm:$0xff]
        %v614 = vld [vmem:[%s3 + $0x840] sm:$0xff]
        %v615 = vld [vmem:[%s3 + $0x848] sm:$0xff]
        %v616 = vld [vmem:[%s3 + $0x850] sm:$0xff]
        %v617 = vld [vmem:[%s3 + $0x858] sm:$0xff]
        %v618 = vld [vmem:[%s3 + $0x860] sm:$0xff]
        %v619 = vld [vmem:[%s3 + $0x868] sm:$0xff]
        %v620 = vld [vmem:[%s3 + $0x870] sm:$0xff]
        %v621 = vld [vmem:[%s3 + $0x878] sm:$0xff]
        %v622 = vld [vmem:[%s3 + $0x880] sm:$0xff]
        %v623 = vld [vmem:[%s3 + $0x888] sm:$0xff]
        %v624 = vld [vmem:[%s3 + $0x890] sm:$0xff]
        %v625 = vld [vmem:[%s3 + $0x898] sm:$0xff]
        %v626 = vld [vmem:[%s3 + $0x8a0] sm:$0xff]
        %v627 = vld [vmem:[%s3 + $0x8a8] sm:$0xff]
        %v628 = vld [vmem:[%s3 + $0x8b0] sm:$0xff]
        %v629 = vld [vmem:[%s3 + $0x8b8] sm:$0xff]
        %v630 = vld [vmem:[%s3 + $0x8c0] sm:$0xff]
        %v631 = vld [vmem:[%s3 + $0x8c8] sm:$0xff]
        %v632 = vld [vmem:[%s3 + $0x8d0] sm:$0xff]
        %v633 = vld [vmem:[%s3 + $0x8d8] sm:$0xff]
        %v634 = vld [vmem:[%s3 + $0x8e0] sm:$0xff]
        %v635 = vld [vmem:[%s3 + $0x8e8] sm:$0xff]
        %v636 = vld [vmem:[%s3 + $0x8f0] sm:$0xff]
        %v637 = vld [vmem:[%s3 + $0x8f8] sm:$0xff]
        %v638 = vld [vmem:[%s3 + $0x900] sm:$0xff]
        %v639 = vld [vmem:[%s3 + $0x908] sm:$0xff]
        %v640 = vld [vmem:[%s3 + $0x910] sm:$0xff]
        %v641 = vld [vmem:[%s3 + $0x918] sm:$0xff]
        %v642 = vld [vmem:[%s3 + $0x920] sm:$0xff]
        %v643 = vld [vmem:[%s3 + $0x928] sm:$0xff]
        %v644 = vld [vmem:[%s3 + $0x930] sm:$0xff]
        %v645 = vld [vmem:[%s3 + $0x938] sm:$0xff]
        %v646 = vld [vmem:[%s3 + $0x940] sm:$0xff]
        %v647 = vld [vmem:[%s3 + $0x948] sm:$0xff]
        %v648 = vld [vmem:[%s3 + $0x950] sm:$0xff]
        %v649 = vld [vmem:[%s3 + $0x958] sm:$0xff]
        %v650 = vld [vmem:[%s3 + $0x960] sm:$0xff]
        %v651 = vld [vmem:[%s3 + $0x968] sm:$0xff]
        %v652 = vld [vmem:[%s3 + $0x970] sm:$0xff]
        %v653 = vld [vmem:[%s3 + $0x978] sm:$0xff]
        %v654 = vld [vmem:[%s3 + $0x980] sm:$0xff]
        %v655 = vld [vmem:[%s3 + $0x988] sm:$0xff]
        %v656 = vld [vmem:[%s3 + $0x990] sm:$0xff]
        %v657 = vld [vmem:[%s3 + $0x998] sm:$0xff]
        %v658 = vld [vmem:[%s3 + $0x9a0] sm:$0xff]
        %v659 = vld [vmem:[%s3 + $0x9a8] sm:$0xff]
        %v660 = vld [vmem:[%s3 + $0x9b0] sm:$0xff]
        %v661 = vld [vmem:[%s3 + $0x9b8] sm:$0xff]
        %v662 = vld [vmem:[%s3 + $0x9c0] sm:$0xff]
        %v663 = vld [vmem:[%s3 + $0x9c8] sm:$0xff]
        %v664 = vld [vmem:[%s3 + $0x9d0] sm:$0xff]
        %v665 = vld [vmem:[%s3 + $0x9d8] sm:$0xff]
        %v666 = vld [vmem:[%s3 + $0x9e0] sm:$0xff]
        %v667 = vld [vmem:[%s3 + $0x9e8] sm:$0xff]
        %v668 = vld [vmem:[%s3 + $0x9f0] sm:$0xff]
        %v669 = vld [vmem:[%s3 + $0x9f8] sm:$0xff]
        %v670 = vld [vmem:[%s3 + $0xa00] sm:$0xff]
        %v671 = vld [vmem:[%s3 + $0xa08] sm:$0xff]
        %v672 = vld [vmem:[%s3 + $0xa10] sm:$0xff]
        %v673 = vld [vmem:[%s3 + $0xa18] sm:$0xff]
        %v674 = vld [vmem:[%s3 + $0xa20] sm:$0xff]
        %v675 = vld [vmem:[%s3 + $0xa28] sm:$0xff]
        %v676 = vld [vmem:[%s3 + $0xa30] sm:$0xff]
        %v677 = vld [vmem:[%s3 + $0xa38] sm:$0xff]
        %v678 = vld [vmem:[%s3 + $0xa40] sm:$0xff]
        %v679 = vld [vmem:[%s3 + $0xa48] sm:$0xff]
        %v680 = vld [vmem:[%s3 + $0xa50] sm:$0xff]
        %v681 = vld [vmem:[%s3 + $0xa58] sm:$0xff]
        %v682 = vld [vmem:[%s3 + $0xa60] sm:$0xff]
        %v683 = vld [vmem:[%s3 + $0xa68] sm:$0xff]
        %v684 = vld [vmem:[%s3 + $0xa70] sm:$0xff]
        %v685 = vld [vmem:[%s3 + $0xa78] sm:$0xff]
        %v686 = vld [vmem:[%s3 + $0xa80] sm:$0xff]
        %v687 = vld [vmem:[%s3 + $0xa88] sm:$0xff]
        %v688 = vld [vmem:[%s3 + $0xa90] sm:$0xff]
        %v689 = vld [vmem:[%s3 + $0xa98] sm:$0xff]
        %v690 = vld [vmem:[%s3 + $0xaa0] sm:$0xff]
        %v691 = vld [vmem:[%s3 + $0xaa8] sm:$0xff]
        %v692 = vld [vmem:[%s3 + $0xab0] sm:$0xff]
        %v693 = vld [vmem:[%s3 + $0xab8] sm:$0xff]
        %v694 = vld [vmem:[%s3 + $0xac0] sm:$0xff]
        %v695 = vld [vmem:[%s3 + $0xac8] sm:$0xff]
        %v696 = vld [vmem:[%s3 + $0xad0] sm:$0xff]
        %v697 = vld [vmem:[%s3 + $0xad8] sm:$0xff]
        %v698 = vld [vmem:[%s3 + $0xae0] sm:$0xff]
        %v699 = vld [vmem:[%s3 + $0xae8] sm:$0xff]
        %v700 = vld [vmem:[%s3 + $0xaf0] sm:$0xff]
        %v701 = vld [vmem:[%s3 + $0xaf8] sm:$0xff]
        %v702 = vld [vmem:[%s3 + $0xb00] sm:$0xff]
        %v703 = vld [vmem:[%s3 + $0xb08] sm:$0xff]
        %v704 = vld [vmem:[%s3 + $0xb10] sm:$0xff]
        %v705 = vld [vmem:[%s3 + $0xb18] sm:$0xff]
        %v706 = vld [vmem:[%s3 + $0xb20] sm:$0xff]
        %v707 = vld [vmem:[%s3 + $0xb28] sm:$0xff]
        %v708 = vld [vmem:[%s3 + $0xb30] sm:$0xff]
        %v709 = vld [vmem:[%s3 + $0xb38] sm:$0xff]
        %v710 = vld [vmem:[%s3 + $0xb40] sm:$0xff]
        %v711 = vld [vmem:[%s3 + $0xb48] sm:$0xff]
        %v712 = vld [vmem:[%s3 + $0xb50] sm:$0xff]
        %v713 = vld [vmem:[%s3 + $0xb58] sm:$0xff]
        %v714 = vld [vmem:[%s3 + $0xb60] sm:$0xff]
        %v715 = vld [vmem:[%s3 + $0xb68] sm:$0xff]
        %v716 = vld [vmem:[%s3 + $0xb70] sm:$0xff]
        %v717 = vld [vmem:[%s3 + $0xb78] sm:$0xff]
        %v718 = vld [vmem:[%s3 + $0xb80] sm:$0xff]
        %v719 = vld [vmem:[%s3 + $0xb88] sm:$0xff]
        %v720 = vld [vmem:[%s3 + $0xb90] sm:$0xff]
        %v721 = vld [vmem:[%s3 + $0xb98] sm:$0xff]
        %v722 = vld [vmem:[%s3 + $0xba0] sm:$0xff]
        %v723 = vld [vmem:[%s3 + $0xba8] sm:$0xff]
        %v724 = vld [vmem:[%s3 + $0xbb0] sm:$0xff]
        %v725 = vld [vmem:[%s3 + $0xbb8] sm:$0xff]
        %v726 = vld [vmem:[%s3 + $0xbc0] sm:$0xff]
        %v727 = vld [vmem:[%s3 + $0xbc8] sm:$0xff]
        %v728 = vld [vmem:[%s3 + $0xbd0] sm:$0xff]
        %v729 = vld [vmem:[%s3 + $0xbd8] sm:$0xff]
        %v730 = vld [vmem:[%s3 + $0xbe0] sm:$0xff]
        %v731 = vld [vmem:[%s3 + $0xbe8] sm:$0xff]
        %v732 = vld [vmem:[%s3 + $0xbf0] sm:$0xff]
        %v733 = vld [vmem:[%s3 + $0xbf8] sm:$0xff]
        %v734 = vld [vmem:[%s3 + $0xc00] sm:$0xff]
        %v735 = vld [vmem:[%s3 + $0xc08] sm:$0xff]
        %v736 = vld [vmem:[%s3 + $0xc10] sm:$0xff]
        %v737 = vld [vmem:[%s3 + $0xc18] sm:$0xff]
        %v738 = vld [vmem:[%s3 + $0xc20] sm:$0xff]
        %v739 = vld [vmem:[%s3 + $0xc28] sm:$0xff]
        %v740 = vld [vmem:[%s3 + $0xc30] sm:$0xff]
        %v741 = vld [vmem:[%s3 + $0xc38] sm:$0xff]
        %v742 = vld [vmem:[%s3 + $0xc40] sm:$0xff]
        %v743 = vld [vmem:[%s3 + $0xc48] sm:$0xff]
        %v744 = vld [vmem:[%s3 + $0xc50] sm:$0xff]
        %v745 = vld [vmem:[%s3 + $0xc58] sm:$0xff]
        %v746 = vld [vmem:[%s3 + $0xc60] sm:$0xff]
        %v747 = vld [vmem:[%s3 + $0xc68] sm:$0xff]
        %v748 = vld [vmem:[%s3 + $0xc70] sm:$0xff]
        %v749 = vld [vmem:[%s3 + $0xc78] sm:$0xff]
        %v750 = vld [vmem:[%s3 + $0xc80] sm:$0xff]
        %v751 = vld [vmem:[%s3 + $0xc88] sm:$0xff]
        %v752 = vld [vmem:[%s3 + $0xc90] sm:$0xff]
        %v753 = vld [vmem:[%s3 + $0xc98] sm:$0xff]
        %v754 = vld [vmem:[%s3 + $0xca0] sm:$0xff]
        %v755 = vld [vmem:[%s3 + $0xca8] sm:$0xff]
        %v756 = vld [vmem:[%s3 + $0xcb0] sm:$0xff]
        %v757 = vld [vmem:[%s3 + $0xcb8] sm:$0xff]
        %v758 = vld [vmem:[%s3 + $0xcc0] sm:$0xff]
        %v759 = vld [vmem:[%s3 + $0xcc8] sm:$0xff]
        %v760 = vld [vmem:[%s3 + $0xcd0] sm:$0xff]
        %v761 = vld [vmem:[%s3 + $0xcd8] sm:$0xff]
        %v762 = vld [vmem:[%s3 + $0xce0] sm:$0xff]
        %v763 = vld [vmem:[%s3 + $0xce8] sm:$0xff]
        %v764 = vld [vmem:[%s3 + $0xcf0] sm:$0xff]
        %v765 = vld [vmem:[%s3 + $0xcf8] sm:$0xff]
        %v766 = vld [vmem:[%s3 + $0xd00] sm:$0xff]
        %v767 = vld [vmem:[%s3 + $0xd08] sm:$0xff]
        %v768 = vld [vmem:[%s3 + $0xd10] sm:$0xff]
        %v769 = vld [vmem:[%s3 + $0xd18] sm:$0xff]
        %v770 = vld [vmem:[%s3 + $0xd20] sm:$0xff]
        %v771 = vld [vmem:[%s3 + $0xd28] sm:$0xff]
        %v772 = vld [vmem:[%s3 + $0xd30] sm:$0xff]
        %v773 = vld [vmem:[%s3 + $0xd38] sm:$0xff]
        %v774 = vld [vmem:[%s3 + $0xd40] sm:$0xff]
        %v775 = vld [vmem:[%s3 + $0xd48] sm:$0xff]
        %v776 = vld [vmem:[%s3 + $0xd50] sm:$0xff]
        %v777 = vld [vmem:[%s3 + $0xd58] sm:$0xff]
        %v778 = vld [vmem:[%s3 + $0xd60] sm:$0xff]
        %v779 = vld [vmem:[%s3 + $0xd68] sm:$0xff]
        %v780 = vld [vmem:[%s3 + $0xd70] sm:$0xff]
        %v781 = vld [vmem:[%s3 + $0xd78] sm:$0xff]
        %v782 = vld [vmem:[%s3 + $0xd80] sm:$0xff]
        %v783 = vld [vmem:[%s3 + $0xd88] sm:$0xff]
        %v784 = vld [vmem:[%s3 + $0xd90] sm:$0xff]
        %v785 = vld [vmem:[%s3 + $0xd98] sm:$0xff]
        %v786 = vld [vmem:[%s3 + $0xda0] sm:$0xff]
        %v787 = vld [vmem:[%s3 + $0xda8] sm:$0xff]
        %v788 = vld [vmem:[%s3 + $0xdb0] sm:$0xff]
        %v789 = vld [vmem:[%s3 + $0xdb8] sm:$0xff]
        %v790 = vld [vmem:[%s3 + $0xdc0] sm:$0xff]
        %v791 = vld [vmem:[%s3 + $0xdc8] sm:$0xff]
        %v792 = vld [vmem:[%s3 + $0xdd0] sm:$0xff]
        %v793 = vld [vmem:[%s3 + $0xdd8] sm:$0xff]
        %v794 = vld [vmem:[%s3 + $0xde0] sm:$0xff]
        %v795 = vld [vmem:[%s3 + $0xde8] sm:$0xff]
        %v796 = vld [vmem:[%s3 + $0xdf0] sm:$0xff]
        %v797 = vld [vmem:[%s3 + $0xdf8] sm:$0xff]
        %v798 = vld [vmem:[%s3 + $0xe00] sm:$0xff]
        %v799 = vld [vmem:[%s3 + $0xe08] sm:$0xff]
        %v800 = vld [vmem:[%s3 + $0xe10] sm:$0xff]
        %v801 = vld [vmem:[%s3 + $0xe18] sm:$0xff]
        %v802 = vld [vmem:[%s3 + $0xe20] sm:$0xff]
        %v803 = vld [vmem:[%s3 + $0xe28] sm:$0xff]
        %v804 = vld [vmem:[%s3 + $0xe30] sm:$0xff]
        %v805 = vld [vmem:[%s3 + $0xe38] sm:$0xff]
        %v806 = vld [vmem:[%s3 + $0xe40] sm:$0xff]
        %v807 = vld [vmem:[%s3 + $0xe48] sm:$0xff]
        %v808 = vld [vmem:[%s3 + $0xe50] sm:$0xff]
        %v809 = vld [vmem:[%s3 + $0xe58] sm:$0xff]
        %v810 = vld [vmem:[%s3 + $0xe60] sm:$0xff]
        %v811 = vld [vmem:[%s3 + $0xe68] sm:$0xff]
        %v812 = vld [vmem:[%s3 + $0xe70] sm:$0xff]
        %v813 = vld [vmem:[%s3 + $0xe78] sm:$0xff]
        %v814 = vld [vmem:[%s3 + $0xe80] sm:$0xff]
        %v815 = vld [vmem:[%s3 + $0xe88] sm:$0xff]
        %v816 = vld [vmem:[%s3 + $0xe90] sm:$0xff]
        %v817 = vld [vmem:[%s3 + $0xe98] sm:$0xff]
        %v818 = vld [vmem:[%s3 + $0xea0] sm:$0xff]
        %v819 = vld [vmem:[%s3 + $0xea8] sm:$0xff]
        %v820 = vld [vmem:[%s3 + $0xeb0] sm:$0x33]
        %v821 = vld [vmem:[%s3 + $0xeb8] sm:$0x33]
        %v826 = vcombine.high %v307, %v307
        %v828 = vunpack.c.l.s4 1983009808
        %v829 = vunpack.c.0.s8 %v828
        %v830 = vlaneseq
        %v831 = vshrl.u32 %v830, 7
        %v832 = vsub.s32 %v829, %v831
        %v833 = vrot.slane %v307, %v832
        %v835 = vunpack.c.l.s4 1983009808
        %v836 = vunpack.c.0.s8 %v835
        %v837 = vlaneseq
        %v838 = vshrl.u32 %v837, 7
        %v839 = vsub.s32 %v836, %v838
        %v840 = vrot.slane %v826, %v839
        %v841 = vcombine.high %v833, %v833
        %v842 = vcombine.high %v840, %v840
        %v843 = vcombine.high %v308, %v308
        %v845 = vunpack.c.l.s4 1983009808
        %v846 = vunpack.c.0.s8 %v845
        %v847 = vlaneseq
        %v848 = vshrl.u32 %v847, 7
        %v849 = vsub.s32 %v846, %v848
        %v850 = vrot.slane %v308, %v849
        %v852 = vunpack.c.l.s4 1983009808
        %v853 = vunpack.c.0.s8 %v852
        %v854 = vlaneseq
        %v855 = vshrl.u32 %v854, 7
        %v856 = vsub.s32 %v853, %v855
        %v857 = vrot.slane %v843, %v856
        %v858 = vcombine.high %v850, %v850
        %v859 = vcombine.high %v857, %v857
        %v860 = vcombine.high %v309, %v309
        %v862 = vunpack.c.l.s4 1983009808
        %v863 = vunpack.c.0.s8 %v862
        %v864 = vlaneseq
        %v865 = vshrl.u32 %v864, 7
        %v866 = vsub.s32 %v863, %v865
        %v867 = vrot.slane %v309, %v866
        %v869 = vunpack.c.l.s4 1983009808
        %v870 = vunpack.c.0.s8 %v869
        %v871 = vlaneseq
        %v872 = vshrl.u32 %v871, 7
        %v873 = vsub.s32 %v870, %v872
        %v874 = vrot.slane %v860, %v873
        %v875 = vcombine.high %v867, %v867
        %v876 = vcombine.high %v874, %v874
        %v877 = vcombine.high %v310, %v310
        %v879 = vunpack.c.l.s4 1983009808
        %v880 = vunpack.c.0.s8 %v879
        %v881 = vlaneseq
        %v882 = vshrl.u32 %v881, 7
        %v883 = vsub.s32 %v880, %v882
        %v884 = vrot.slane %v310, %v883
        %v886 = vunpack.c.l.s4 1983009808
        %v887 = vunpack.c.0.s8 %v886
        %v888 = vlaneseq
        %v889 = vshrl.u32 %v888, 7
        %v890 = vsub.s32 %v887, %v889
        %v891 = vrot.slane %v877, %v890
        %v892 = vcombine.high %v884, %v884
        %v909 = vshrl.u32 %v833, 16
        %v911 = vrot.slane %v909, 6
        %v912 = vshll.u32 %v833, 16
        %v914 = vrot.slane %v912, 7
        %v915 = vor.u32 %v911, %v914
        %v917 = vshrl.u32 %v841, 16
        %v919 = vrot.slane %v917, 6
        %v920 = vshll.u32 %v841, 16
        %v922 = vrot.slane %v920, 7
        %v923 = vor.u32 %v919, %v922
        %v925 = vshrl.u32 %v840, 16
        %v927 = vrot.slane %v925, 6
        %v928 = vshll.u32 %v840, 16
        %v930 = vrot.slane %v928, 7
        %v931 = vor.u32 %v927, %v930
        %v933 = vshrl.u32 %v842, 16
        %v935 = vrot.slane %v933, 6
        %v936 = vshll.u32 %v842, 16
        %v938 = vrot.slane %v936, 7
        %v939 = vor.u32 %v935, %v938
        %v941 = vshrl.u32 %v850, 16
        %v943 = vrot.slane %v941, 6
        %v944 = vshll.u32 %v850, 16
        %v946 = vrot.slane %v944, 7
        %v947 = vor.u32 %v943, %v946
        %v949 = vshrl.u32 %v858, 16
        %v951 = vrot.slane %v949, 6
        %v952 = vshll.u32 %v858, 16
        %v954 = vrot.slane %v952, 7
        %v955 = vor.u32 %v951, %v954
        %v957 = vshrl.u32 %v857, 16
        %v959 = vrot.slane %v957, 6
        %v960 = vshll.u32 %v857, 16
        %v962 = vrot.slane %v960, 7
        %v963 = vor.u32 %v959, %v962
        %v965 = vshrl.u32 %v859, 16
        %v967 = vrot.slane %v965, 6
        %v968 = vshll.u32 %v859, 16
        %v970 = vrot.slane %v968, 7
        %v971 = vor.u32 %v967, %v970
        %v973 = vshrl.u32 %v867, 16
        %v975 = vrot.slane %v973, 6
        %v976 = vshll.u32 %v867, 16
        %v978 = vrot.slane %v976, 7
        %v979 = vor.u32 %v975, %v978
        %v981 = vshrl.u32 %v875, 16
        %v983 = vrot.slane %v981, 6
        %v984 = vshll.u32 %v875, 16
        %v986 = vrot.slane %v984, 7
        %v987 = vor.u32 %v983, %v986
        %v989 = vshrl.u32 %v874, 16
        %v991 = vrot.slane %v989, 6
        %v992 = vshll.u32 %v874, 16
        %v994 = vrot.slane %v992, 7
        %v995 = vor.u32 %v991, %v994
        %v997 = vshrl.u32 %v876, 16
        %v999 = vrot.slane %v997, 6
        %v1000 = vshll.u32 %v876, 16
        %v1002 = vrot.slane %v1000, 7
        %v1003 = vor.u32 %v999, %v1002
        %v1005 = vshrl.u32 %v884, 16
        %v1007 = vrot.slane %v1005, 6
        %v1008 = vshll.u32 %v884, 16
        %v1010 = vrot.slane %v1008, 7
        %v1011 = vor.u32 %v1007, %v1010
        %v1013 = vshrl.u32 %v892, 16
        %v1015 = vrot.slane %v1013, 6
        %v1016 = vshll.u32 %v892, 16
        %v1018 = vrot.slane %v1016, 7
        %v1019 = vor.u32 %v1015, %v1018
        %v1021 = vshrl.u32 %v891, 16
        %v1023 = vrot.slane %v1021, 6
        %v1024 = vshll.u32 %v891, 16
        %v1026 = vrot.slane %v1024, 7
        %v1027 = vor.u32 %v1023, %v1026
        %1028 = vrot.lane.b32.xlu0 %v915, 127
        %v1029 = vpop.permute.xlu0 %1028
        %1030 = vrot.lane.b32.xlu0 %v923, 127
        %v1031 = vpop.permute.xlu0 %1030
        %1032 = vrot.lane.b32.xlu0 %v931, 127
        %v1033 = vpop.permute.xlu0 %1032
        %1034 = vrot.lane.b32.xlu0 %v939, 127
        %v1035 = vpop.permute.xlu0 %1034
        %1036 = vrot.lane.b32.xlu0 %v947, 127
        %v1037 = vpop.permute.xlu0 %1036
        %1038 = vrot.lane.b32.xlu0 %v955, 127
        %v1039 = vpop.permute.xlu0 %1038
        %1040 = vrot.lane.b32.xlu0 %v963, 127
        %v1041 = vpop.permute.xlu0 %1040
        %1042 = vrot.lane.b32.xlu0 %v971, 127
        %v1043 = vpop.permute.xlu0 %1042
        %1044 = vrot.lane.b32.xlu0 %v979, 127
        %v1045 = vpop.permute.xlu0 %1044
        %1046 = vrot.lane.b32.xlu0 %v987, 127
        %v1047 = vpop.permute.xlu0 %1046
        %1048 = vrot.lane.b32.xlu0 %v995, 127
        %v1049 = vpop.permute.xlu0 %1048
        %1050 = vrot.lane.b32.xlu0 %v1003, 127
        %v1051 = vpop.permute.xlu0 %1050
        %1052 = vrot.lane.b32.xlu0 %v1011, 127
        %v1053 = vpop.permute.xlu0 %1052
        %1054 = vrot.lane.b32.xlu0 %v1019, 127
        %v1055 = vpop.permute.xlu0 %1054
        %1056 = vrot.lane.b32.xlu0 %v1027, 127
        %v1057 = vpop.permute.xlu0 %1056
        %vm1058 = vcmask 1039360
        %v1059 = vsel %vm1058, %v1029, %v1031
        %v1060 = vsel %vm1058, %v1031, %v1033
        %v1061 = vsel %vm1058, %v1033, %v1035
        %v1062 = vsel %vm1058, %v1035, %v1037
        %v1063 = vsel %vm1058, %v1037, %v1039
        %v1064 = vsel %vm1058, %v1039, %v1041
        %v1065 = vsel %vm1058, %v1041, %v1043
        %v1066 = vsel %vm1058, %v1043, %v1045
        %v1067 = vsel %vm1058, %v1045, %v1047
        %v1068 = vsel %vm1058, %v1047, %v1049
        %v1069 = vsel %vm1058, %v1049, %v1051
        %v1070 = vsel %vm1058, %v1051, %v1053
        %v1071 = vsel %vm1058, %v1053, %v1055
        %v1072 = vsel %vm1058, %v1055, %v1057
        %v1088 = vrot.slane %v833, 5
        %v1089 = vrot.slane %v841, 5
        %v1090 = vrot.slane %v840, 5
        %v1091 = vrot.slane %v842, 5
        %v1092 = vrot.slane %v850, 5
        %v1093 = vrot.slane %v858, 5
        %v1094 = vrot.slane %v857, 5
        %v1095 = vrot.slane %v859, 5
        %v1096 = vrot.slane %v867, 5
        %v1097 = vrot.slane %v875, 5
        %v1098 = vrot.slane %v874, 5
        %v1099 = vrot.slane %v876, 5
        %v1100 = vrot.slane %v884, 5
        %v1101 = vrot.slane %v892, 5
        %v1102 = vrot.slane %v891, 5
        %1103 = vrot.lane.b32.xlu0 %v1088, 126
        %v1104 = vpop.permute.xlu0 %1103
        %1105 = vrot.lane.b32.xlu0 %v1089, 126
        %v1106 = vpop.permute.xlu0 %1105
        %1107 = vrot.lane.b32.xlu0 %v1090, 126
        %v1108 = vpop.permute.xlu0 %1107
        %1109 = vrot.lane.b32.xlu0 %v1091, 126
        %v1110 = vpop.permute.xlu0 %1109
        %1111 = vrot.lane.b32.xlu0 %v1092, 126
        %v1112 = vpop.permute.xlu0 %1111
        %1113 = vrot.lane.b32.xlu0 %v1093, 126
        %v1114 = vpop.permute.xlu0 %1113
        %1115 = vrot.lane.b32.xlu0 %v1094, 126
        %v1116 = vpop.permute.xlu0 %1115
        %1117 = vrot.lane.b32.xlu0 %v1095, 126
        %v1118 = vpop.permute.xlu0 %1117
        %1119 = vrot.lane.b32.xlu0 %v1096, 126
        %v1120 = vpop.permute.xlu0 %1119
        %1121 = vrot.lane.b32.xlu0 %v1097, 126
        %v1122 = vpop.permute.xlu0 %1121
        %1123 = vrot.lane.b32.xlu0 %v1098, 126
        %v1124 = vpop.permute.xlu0 %1123
        %1125 = vrot.lane.b32.xlu0 %v1099, 126
        %v1126 = vpop.permute.xlu0 %1125
        %1127 = vrot.lane.b32.xlu0 %v1100, 126
        %v1128 = vpop.permute.xlu0 %1127
        %1129 = vrot.lane.b32.xlu0 %v1101, 126
        %v1130 = vpop.permute.xlu0 %1129
        %1131 = vrot.lane.b32.xlu0 %v1102, 126
        %v1132 = vpop.permute.xlu0 %1131
        %vm1133 = vcmask 1031168
        %v1134 = vsel %vm1133, %v1104, %v1106
        %v1135 = vsel %vm1133, %v1106, %v1108
        %v1136 = vsel %vm1133, %v1108, %v1110
        %v1137 = vsel %vm1133, %v1110, %v1112
        %v1138 = vsel %vm1133, %v1112, %v1114
        %v1139 = vsel %vm1133, %v1114, %v1116
        %v1140 = vsel %vm1133, %v1116, %v1118
        %v1141 = vsel %vm1133, %v1118, %v1120
        %v1142 = vsel %vm1133, %v1120, %v1122
        %v1143 = vsel %vm1133, %v1122, %v1124
        %v1144 = vsel %vm1133, %v1124, %v1126
        %v1145 = vsel %vm1133, %v1126, %v1128
        %v1146 = vsel %vm1133, %v1128, %v1130
        %v1147 = vsel %vm1133, %v1130, %v1132
        %v1148 = vrot.slane %v909, 3
        %v1149 = vrot.slane %v912, 4
        %v1150 = vor.u32 %v1148, %v1149
        %v1151 = vrot.slane %v917, 3
        %v1152 = vrot.slane %v920, 4
        %v1153 = vor.u32 %v1151, %v1152
        %v1154 = vrot.slane %v925, 3
        %v1155 = vrot.slane %v928, 4
        %v1156 = vor.u32 %v1154, %v1155
        %v1157 = vrot.slane %v933, 3
        %v1158 = vrot.slane %v936, 4
        %v1159 = vor.u32 %v1157, %v1158
        %v1160 = vrot.slane %v941, 3
        %v1161 = vrot.slane %v944, 4
        %v1162 = vor.u32 %v1160, %v1161
        %v1163 = vrot.slane %v949, 3
        %v1164 = vrot.slane %v952, 4
        %v1165 = vor.u32 %v1163, %v1164
        %v1166 = vrot.slane %v957, 3
        %v1167 = vrot.slane %v960, 4
        %v1168 = vor.u32 %v1166, %v1167
        %v1169 = vrot.slane %v965, 3
        %v1170 = vrot.slane %v968, 4
        %v1171 = vor.u32 %v1169, %v1170
        %v1172 = vrot.slane %v973, 3
        %v1173 = vrot.slane %v976, 4
        %v1174 = vor.u32 %v1172, %v1173
        %v1175 = vrot.slane %v981, 3
        %v1176 = vrot.slane %v984, 4
        %v1177 = vor.u32 %v1175, %v1176
        %v1178 = vrot.slane %v989, 3
        %v1179 = vrot.slane %v992, 4
        %v1180 = vor.u32 %v1178, %v1179
        %v1181 = vrot.slane %v997, 3
        %v1182 = vrot.slane %v1000, 4
        %v1183 = vor.u32 %v1181, %v1182
        %v1184 = vrot.slane %v1005, 3
        %v1185 = vrot.slane %v1008, 4
        %v1186 = vor.u32 %v1184, %v1185
        %v1187 = vrot.slane %v1013, 3
        %v1188 = vrot.slane %v1016, 4
        %v1189 = vor.u32 %v1187, %v1188
        %v1190 = vrot.slane %v1021, 3
        %v1191 = vrot.slane %v1024, 4
        %v1192 = vor.u32 %v1190, %v1191
        %1193 = vrot.lane.b32.xlu0 %v1150, 125
        %v1194 = vpop.permute.xlu0 %1193
        %1195 = vrot.lane.b32.xlu0 %v1153, 125
        %v1196 = vpop.permute.xlu0 %1195
        %1197 = vrot.lane.b32.xlu0 %v1156, 125
        %v1198 = vpop.permute.xlu0 %1197
        %1199 = vrot.lane.b32.xlu0 %v1159, 125
        %v1200 = vpop.permute.xlu0 %1199
        %1201 = vrot.lane.b32.xlu0 %v1162, 125
        %v1202 = vpop.permute.xlu0 %1201
        %1203 = vrot.lane.b32.xlu0 %v1165, 125
        %v1204 = vpop.permute.xlu0 %1203
        %1205 = vrot.lane.b32.xlu0 %v1168, 125
        %v1206 = vpop.permute.xlu0 %1205
        %1207 = vrot.lane.b32.xlu0 %v1171, 125
        %v1208 = vpop.permute.xlu0 %1207
        %1209 = vrot.lane.b32.xlu0 %v1174, 125
        %v1210 = vpop.permute.xlu0 %1209
        %1211 = vrot.lane.b32.xlu0 %v1177, 125
        %v1212 = vpop.permute.xlu0 %1211
        %1213 = vrot.lane.b32.xlu0 %v1180, 125
        %v1214 = vpop.permute.xlu0 %1213
        %1215 = vrot.lane.b32.xlu0 %v1183, 125
        %v1216 = vpop.permute.xlu0 %1215
        %1217 = vrot.lane.b32.xlu0 %v1186, 125
        %v1218 = vpop.permute.xlu0 %1217
        %1219 = vrot.lane.b32.xlu0 %v1189, 125
        %v1220 = vpop.permute.xlu0 %1219
        %1221 = vrot.lane.b32.xlu0 %v1192, 125
        %v1222 = vpop.permute.xlu0 %1221
        %vm1223 = vcmask 1022976
        %v1224 = vsel %vm1223, %v1194, %v1196
        %v1225 = vsel %vm1223, %v1196, %v1198
        %v1226 = vsel %vm1223, %v1198, %v1200
        %v1227 = vsel %vm1223, %v1200, %v1202
        %v1228 = vsel %vm1223, %v1202, %v1204
        %v1229 = vsel %vm1223, %v1204, %v1206
        %v1230 = vsel %vm1223, %v1206, %v1208
        %v1231 = vsel %vm1223, %v1208, %v1210
        %v1232 = vsel %vm1223, %v1210, %v1212
        %v1233 = vsel %vm1223, %v1212, %v1214
        %v1234 = vsel %vm1223, %v1214, %v1216
        %v1235 = vsel %vm1223, %v1216, %v1218
        %v1236 = vsel %vm1223, %v1218, %v1220
        %v1237 = vsel %vm1223, %v1220, %v1222
        %v1253 = vcombine.low %v307, %v307
        %v1255 = vunpack.c.l.s4 1983009808
        %v1256 = vunpack.c.0.s8 %v1255
        %v1257 = vlaneseq
        %v1258 = vshrl.u32 %v1257, 7
        %v1259 = vsub.s32 %v1256, %v1258
        %v1260 = vrot.slane %v1253, %v1259
        %v1261 = vcombine.low %v1260, %v1260
        %v1262 = vcombine.low %v833, %v833
        %v1263 = vcombine.low %v308, %v308
        %v1265 = vunpack.c.l.s4 1983009808
        %v1266 = vunpack.c.0.s8 %v1265
        %v1267 = vlaneseq
        %v1268 = vshrl.u32 %v1267, 7
        %v1269 = vsub.s32 %v1266, %v1268
        %v1270 = vrot.slane %v1263, %v1269
        %v1271 = vcombine.low %v1270, %v1270
        %v1272 = vcombine.low %v850, %v850
        %v1273 = vcombine.low %v309, %v309
        %v1275 = vunpack.c.l.s4 1983009808
        %v1276 = vunpack.c.0.s8 %v1275
        %v1277 = vlaneseq
        %v1278 = vshrl.u32 %v1277, 7
        %v1279 = vsub.s32 %v1276, %v1278
        %v1280 = vrot.slane %v1273, %v1279
        %v1281 = vcombine.low %v1280, %v1280
        %v1282 = vcombine.low %v867, %v867
        %v1283 = vcombine.low %v310, %v310
        %v1285 = vunpack.c.l.s4 1983009808
        %v1286 = vunpack.c.0.s8 %v1285
        %v1287 = vlaneseq
        %v1288 = vshrl.u32 %v1287, 7
        %v1289 = vsub.s32 %v1286, %v1288
        %v1290 = vrot.slane %v1283, %v1289
        %v1291 = vcombine.low %v1290, %v1290
        %v1292 = vcombine.low %v884, %v884
        %1293 = vrot.lane.b32.xlu0 %v1261, 124
        %v1294 = vpop.permute.xlu0 %1293
        %1295 = vrot.lane.b32.xlu0 %v1260, 124
        %v1296 = vpop.permute.xlu0 %1295
        %1297 = vrot.lane.b32.xlu0 %v1262, 124
        %v1298 = vpop.permute.xlu0 %1297
        %1299 = vrot.lane.b32.xlu0 %v833, 124
        %v1300 = vpop.permute.xlu0 %1299
        %1301 = vrot.lane.b32.xlu0 %v1271, 124
        %v1302 = vpop.permute.xlu0 %1301
        %1303 = vrot.lane.b32.xlu0 %v1270, 124
        %v1304 = vpop.permute.xlu0 %1303
        %1305 = vrot.lane.b32.xlu0 %v1272, 124
        %v1306 = vpop.permute.xlu0 %1305
        %1307 = vrot.lane.b32.xlu0 %v850, 124
        %v1308 = vpop.permute.xlu0 %1307
        %1309 = vrot.lane.b32.xlu0 %v1281, 124
        %v1310 = vpop.permute.xlu0 %1309
        %1311 = vrot.lane.b32.xlu0 %v1280, 124
        %v1312 = vpop.permute.xlu0 %1311
        %1313 = vrot.lane.b32.xlu0 %v1282, 124
        %v1314 = vpop.permute.xlu0 %1313
        %1315 = vrot.lane.b32.xlu0 %v867, 124
        %v1316 = vpop.permute.xlu0 %1315
        %1317 = vrot.lane.b32.xlu0 %v1291, 124
        %v1318 = vpop.permute.xlu0 %1317
        %1319 = vrot.lane.b32.xlu0 %v1290, 124
        %v1320 = vpop.permute.xlu0 %1319
        %1321 = vrot.lane.b32.xlu0 %v1292, 124
        %v1322 = vpop.permute.xlu0 %1321
        %vm1323 = vcmask 1014784
        %v1324 = vsel %vm1323, %v1294, %v1296
        %v1325 = vsel %vm1323, %v1296, %v1298
        %v1326 = vsel %vm1323, %v1298, %v1300
        %v1327 = vsel %vm1323, %v1300, %v1302
        %v1328 = vsel %vm1323, %v1302, %v1304
        %v1329 = vsel %vm1323, %v1304, %v1306
        %v1330 = vsel %vm1323, %v1306, %v1308
        %v1331 = vsel %vm1323, %v1308, %v1310
        %v1332 = vsel %vm1323, %v1310, %v1312
        %v1333 = vsel %vm1323, %v1312, %v1314
        %v1334 = vsel %vm1323, %v1314, %v1316
        %v1335 = vsel %vm1323, %v1316, %v1318
        %v1336 = vsel %vm1323, %v1318, %v1320
        %v1337 = vsel %vm1323, %v1320, %v1322
        %v1338 = vcombine.high %v891, %v891
        %v1339 = vrot.slane %v912, 1
        %v1340 = vrot.slane %v920, 1
        %v1341 = vrot.slane %v928, 1
        %v1342 = vrot.slane %v936, 1
        %v1343 = vrot.slane %v944, 1
        %v1344 = vrot.slane %v952, 1
        %v1345 = vrot.slane %v960, 1
        %v1346 = vrot.slane %v968, 1
        %v1347 = vrot.slane %v976, 1
        %v1348 = vrot.slane %v984, 1
        %v1349 = vrot.slane %v992, 1
        %v1350 = vrot.slane %v1000, 1
        %v1351 = vrot.slane %v1008, 1
        %v1352 = vrot.slane %v1016, 1
        %v1353 = vrot.slane %v1024, 1
        %v1355 = vshll.u32 %v1338, 16
        %v1357 = vrot.slane %v1355, 1
        %v1358 = vor.u32 %v909, %v1339
        %v1359 = vor.u32 %v917, %v1340
        %v1360 = vor.u32 %v925, %v1341
        %v1361 = vor.u32 %v933, %v1342
        %v1362 = vor.u32 %v941, %v1343
        %v1363 = vor.u32 %v949, %v1344
        %v1364 = vor.u32 %v957, %v1345
        %v1365 = vor.u32 %v965, %v1346
        %v1366 = vor.u32 %v973, %v1347
        %v1367 = vor.u32 %v981, %v1348
        %v1368 = vor.u32 %v989, %v1349
        %v1369 = vor.u32 %v997, %v1350
        %v1370 = vor.u32 %v1005, %v1351
        %v1371 = vor.u32 %v1013, %v1352
        %v1372 = vor.u32 %v1021, %v1353
        %v1373 = vshrl.u32 %v1338, 16
        %v1375 = vor.u32 %v1373, %v1357
        %1376 = vrot.lane.b32.xlu0 %v1339, 96
        %v1377 = vpop.permute.xlu0 %1376
        %1378 = vrot.lane.b32.xlu0 %v1340, 96
        %v1379 = vpop.permute.xlu0 %1378
        %1380 = vrot.lane.b32.xlu0 %v1341, 96
        %v1381 = vpop.permute.xlu0 %1380
        %1382 = vrot.lane.b32.xlu0 %v1342, 96
        %v1383 = vpop.permute.xlu0 %1382
        %1384 = vrot.lane.b32.xlu0 %v1343, 96
        %v1385 = vpop.permute.xlu0 %1384
        %1386 = vrot.lane.b32.xlu0 %v1344, 96
        %v1387 = vpop.permute.xlu0 %1386
        %1388 = vrot.lane.b32.xlu0 %v1345, 96
        %v1389 = vpop.permute.xlu0 %1388
        %1390 = vrot.lane.b32.xlu0 %v1346, 96
        %v1391 = vpop.permute.xlu0 %1390
        %1392 = vrot.lane.b32.xlu0 %v1347, 96
        %v1393 = vpop.permute.xlu0 %1392
        %1394 = vrot.lane.b32.xlu0 %v1348, 96
        %v1395 = vpop.permute.xlu0 %1394
        %1396 = vrot.lane.b32.xlu0 %v1349, 96
        %v1397 = vpop.permute.xlu0 %1396
        %1398 = vrot.lane.b32.xlu0 %v1350, 96
        %v1399 = vpop.permute.xlu0 %1398
        %1400 = vrot.lane.b32.xlu0 %v1351, 96
        %v1401 = vpop.permute.xlu0 %1400
        %1402 = vrot.lane.b32.xlu0 %v1352, 96
        %v1403 = vpop.permute.xlu0 %1402
        %1404 = vrot.lane.b32.xlu0 %v1353, 96
        %v1405 = vpop.permute.xlu0 %1404
        %1406 = vrot.lane.b32.xlu0 %v1357, 96
        %v1407 = vpop.permute.xlu0 %1406
        %1408 = vrot.lane.b32.xlu0 %v1358, 96
        %v1409 = vpop.permute.xlu0 %1408
        %1410 = vrot.lane.b32.xlu0 %v1359, 96
        %v1411 = vpop.permute.xlu0 %1410
        %1412 = vrot.lane.b32.xlu0 %v1360, 96
        %v1413 = vpop.permute.xlu0 %1412
        %1414 = vrot.lane.b32.xlu0 %v1361, 96
        %v1415 = vpop.permute.xlu0 %1414
        %1416 = vrot.lane.b32.xlu0 %v1362, 96
        %v1417 = vpop.permute.xlu0 %1416
        %1418 = vrot.lane.b32.xlu0 %v1363, 96
        %v1419 = vpop.permute.xlu0 %1418
        %1420 = vrot.lane.b32.xlu0 %v1364, 96
        %v1421 = vpop.permute.xlu0 %1420
        %1422 = vrot.lane.b32.xlu0 %v1365, 96
        %v1423 = vpop.permute.xlu0 %1422
        %1424 = vrot.lane.b32.xlu0 %v1366, 96
        %v1425 = vpop.permute.xlu0 %1424
        %1426 = vrot.lane.b32.xlu0 %v1367, 96
        %v1427 = vpop.permute.xlu0 %1426
        %1428 = vrot.lane.b32.xlu0 %v1368, 96
        %v1429 = vpop.permute.xlu0 %1428
        %1430 = vrot.lane.b32.xlu0 %v1369, 96
        %v1431 = vpop.permute.xlu0 %1430
        %1432 = vrot.lane.b32.xlu0 %v1370, 96
        %v1433 = vpop.permute.xlu0 %1432
        %1434 = vrot.lane.b32.xlu0 %v1371, 96
        %v1435 = vpop.permute.xlu0 %1434
        %1436 = vrot.lane.b32.xlu0 %v1372, 96
        %v1437 = vpop.permute.xlu0 %1436
        %1438 = vrot.lane.b32.xlu0 %v1375, 96
        %v1439 = vpop.permute.xlu0 %1438
        %vm1440 = vcmask 785408
        %v1441 = vsel %vm1440, %v1377, %v1379
        %v1442 = vsel %vm1440, %v1379, %v1381
        %v1443 = vsel %vm1440, %v1381, %v1383
        %v1444 = vsel %vm1440, %v1383, %v1385
        %v1445 = vsel %vm1440, %v1385, %v1387
        %v1446 = vsel %vm1440, %v1387, %v1389
        %v1447 = vsel %vm1440, %v1389, %v1391
        %v1448 = vsel %vm1440, %v1391, %v1393
        %v1449 = vsel %vm1440, %v1393, %v1395
        %v1450 = vsel %vm1440, %v1395, %v1397
        %v1451 = vsel %vm1440, %v1397, %v1399
        %v1452 = vsel %vm1440, %v1399, %v1401
        %v1453 = vsel %vm1440, %v1401, %v1403
        %v1454 = vsel %vm1440, %v1403, %v1405
        %v1455 = vsel %vm1440, %v1405, %v1407
        %v1456 = vsel %vm1440, %v1409, %v1411
        %v1457 = vsel %vm1440, %v1411, %v1413
        %v1458 = vsel %vm1440, %v1413, %v1415
        %v1459 = vsel %vm1440, %v1415, %v1417
        %v1460 = vsel %vm1440, %v1417, %v1419
        %v1461 = vsel %vm1440, %v1419, %v1421
        %v1462 = vsel %vm1440, %v1421, %v1423
        %v1463 = vsel %vm1440, %v1423, %v1425
        %v1464 = vsel %vm1440, %v1425, %v1427
        %v1465 = vsel %vm1440, %v1427, %v1429
        %v1466 = vsel %vm1440, %v1429, %v1431
        %v1467 = vsel %vm1440, %v1431, %v1433
        %v1468 = vsel %vm1440, %v1433, %v1435
        %v1469 = vsel %vm1440, %v1435, %v1437
        %v1470 = vsel %vm1440, %v1437, %v1439
        %v1486 = vrot.slane %v833, 7
        %v1487 = vrot.slane %v841, 7
        %v1488 = vrot.slane %v840, 7
        %v1489 = vrot.slane %v842, 7
        %v1490 = vrot.slane %v850, 7
        %v1491 = vrot.slane %v858, 7
        %v1492 = vrot.slane %v857, 7
        %v1493 = vrot.slane %v859, 7
        %v1494 = vrot.slane %v867, 7
        %v1495 = vrot.slane %v875, 7
        %v1496 = vrot.slane %v874, 7
        %v1497 = vrot.slane %v876, 7
        %v1498 = vrot.slane %v884, 7
        %v1499 = vrot.slane %v892, 7
        %v1500 = vrot.slane %v891, 7
        %v1501 = vrot.slane %v1338, 7
        %1502 = vrot.lane.b32.xlu0 %v1486, 95
        %v1503 = vpop.permute.xlu0 %1502
        %1504 = vrot.lane.b32.xlu0 %v1487, 95
        %v1505 = vpop.permute.xlu0 %1504
        %1506 = vrot.lane.b32.xlu0 %v1488, 95
        %v1507 = vpop.permute.xlu0 %1506
        %1508 = vrot.lane.b32.xlu0 %v1489, 95
        %v1509 = vpop.permute.xlu0 %1508
        %1510 = vrot.lane.b32.xlu0 %v1490, 95
        %v1511 = vpop.permute.xlu0 %1510
        %1512 = vrot.lane.b32.xlu0 %v1491, 95
        %v1513 = vpop.permute.xlu0 %1512
        %1514 = vrot.lane.b32.xlu0 %v1492, 95
        %v1515 = vpop.permute.xlu0 %1514
        %1516 = vrot.lane.b32.xlu0 %v1493, 95
        %v1517 = vpop.permute.xlu0 %1516
        %1518 = vrot.lane.b32.xlu0 %v1494, 95
        %v1519 = vpop.permute.xlu0 %1518
        %1520 = vrot.lane.b32.xlu0 %v1495, 95
        %v1521 = vpop.permute.xlu0 %1520
        %1522 = vrot.lane.b32.xlu0 %v1496, 95
        %v1523 = vpop.permute.xlu0 %1522
        %1524 = vrot.lane.b32.xlu0 %v1497, 95
        %v1525 = vpop.permute.xlu0 %1524
        %1526 = vrot.lane.b32.xlu0 %v1498, 95
        %v1527 = vpop.permute.xlu0 %1526
        %1528 = vrot.lane.b32.xlu0 %v1499, 95
        %v1529 = vpop.permute.xlu0 %1528
        %1530 = vrot.lane.b32.xlu0 %v1500, 95
        %v1531 = vpop.permute.xlu0 %1530
        %1532 = vrot.lane.b32.xlu0 %v1501, 95
        %v1533 = vpop.permute.xlu0 %1532
        %vm1534 = vcmask 777216
        %v1535 = vsel %vm1534, %v1503, %v1505
        %v1536 = vsel %vm1534, %v1505, %v1507
        %v1537 = vsel %vm1534, %v1507, %v1509
        %v1538 = vsel %vm1534, %v1509, %v1511
        %v1539 = vsel %vm1534, %v1511, %v1513
        %v1540 = vsel %vm1534, %v1513, %v1515
        %v1541 = vsel %vm1534, %v1515, %v1517
        %v1542 = vsel %vm1534, %v1517, %v1519
        %v1543 = vsel %vm1534, %v1519, %v1521
        %v1544 = vsel %vm1534, %v1521, %v1523
        %v1545 = vsel %vm1534, %v1523, %v1525
        %v1546 = vsel %vm1534, %v1525, %v1527
        %v1547 = vsel %vm1534, %v1527, %v1529
        %v1548 = vsel %vm1534, %v1529, %v1531
        %v1549 = vsel %vm1534, %v1531, %v1533
        %v1550 = vrot.slane %v909, 5
        %v1551 = vrot.slane %v912, 6
        %v1552 = vor.u32 %v1550, %v1551
        %v1553 = vrot.slane %v917, 5
        %v1554 = vrot.slane %v920, 6
        %v1555 = vor.u32 %v1553, %v1554
        %v1556 = vrot.slane %v925, 5
        %v1557 = vrot.slane %v928, 6
        %v1558 = vor.u32 %v1556, %v1557
        %v1559 = vrot.slane %v933, 5
        %v1560 = vrot.slane %v936, 6
        %v1561 = vor.u32 %v1559, %v1560
        %v1562 = vrot.slane %v941, 5
        %v1563 = vrot.slane %v944, 6
        %v1564 = vor.u32 %v1562, %v1563
        %v1565 = vrot.slane %v949, 5
        %v1566 = vrot.slane %v952, 6
        %v1567 = vor.u32 %v1565, %v1566
        %v1568 = vrot.slane %v957, 5
        %v1569 = vrot.slane %v960, 6
        %v1570 = vor.u32 %v1568, %v1569
        %v1571 = vrot.slane %v965, 5
        %v1572 = vrot.slane %v968, 6
        %v1573 = vor.u32 %v1571, %v1572
        %v1574 = vrot.slane %v973, 5
        %v1575 = vrot.slane %v976, 6
        %v1576 = vor.u32 %v1574, %v1575
        %v1577 = vrot.slane %v981, 5
        %v1578 = vrot.slane %v984, 6
        %v1579 = vor.u32 %v1577, %v1578
        %v1580 = vrot.slane %v989, 5
        %v1581 = vrot.slane %v992, 6
        %v1582 = vor.u32 %v1580, %v1581
        %v1583 = vrot.slane %v997, 5
        %v1584 = vrot.slane %v1000, 6
        %v1585 = vor.u32 %v1583, %v1584
        %v1586 = vrot.slane %v1005, 5
        %v1587 = vrot.slane %v1008, 6
        %v1588 = vor.u32 %v1586, %v1587
        %v1589 = vrot.slane %v1013, 5
        %v1590 = vrot.slane %v1016, 6
        %v1591 = vor.u32 %v1589, %v1590
        %v1592 = vrot.slane %v1021, 5
        %v1593 = vrot.slane %v1024, 6
        %v1594 = vor.u32 %v1592, %v1593
        %v1595 = vrot.slane %v1373, 5
        %v1596 = vrot.slane %v1355, 6
        %v1597 = vor.u32 %v1595, %v1596
        %1598 = vrot.lane.b32.xlu0 %v1552, 94
        %v1599 = vpop.permute.xlu0 %1598
        %1600 = vrot.lane.b32.xlu0 %v1555, 94
        %v1601 = vpop.permute.xlu0 %1600
        %1602 = vrot.lane.b32.xlu0 %v1558, 94
        %v1603 = vpop.permute.xlu0 %1602
        %1604 = vrot.lane.b32.xlu0 %v1561, 94
        %v1605 = vpop.permute.xlu0 %1604
        %1606 = vrot.lane.b32.xlu0 %v1564, 94
        %v1607 = vpop.permute.xlu0 %1606
        %1608 = vrot.lane.b32.xlu0 %v1567, 94
        %v1609 = vpop.permute.xlu0 %1608
        %1610 = vrot.lane.b32.xlu0 %v1570, 94
        %v1611 = vpop.permute.xlu0 %1610
        %1612 = vrot.lane.b32.xlu0 %v1573, 94
        %v1613 = vpop.permute.xlu0 %1612
        %1614 = vrot.lane.b32.xlu0 %v1576, 94
        %v1615 = vpop.permute.xlu0 %1614
        %1616 = vrot.lane.b32.xlu0 %v1579, 94
        %v1617 = vpop.permute.xlu0 %1616
        %1618 = vrot.lane.b32.xlu0 %v1582, 94
        %v1619 = vpop.permute.xlu0 %1618
        %1620 = vrot.lane.b32.xlu0 %v1585, 94
        %v1621 = vpop.permute.xlu0 %1620
        %1622 = vrot.lane.b32.xlu0 %v1588, 94
        %v1623 = vpop.permute.xlu0 %1622
        %1624 = vrot.lane.b32.xlu0 %v1591, 94
        %v1625 = vpop.permute.xlu0 %1624
        %1626 = vrot.lane.b32.xlu0 %v1594, 94
        %v1627 = vpop.permute.xlu0 %1626
        %1628 = vrot.lane.b32.xlu0 %v1597, 94
        %v1629 = vpop.permute.xlu0 %1628
        %vm1630 = vcmask 769024
        %v1631 = vsel %vm1630, %v1599, %v1601
        %v1632 = vsel %vm1630, %v1601, %v1603
        %v1633 = vsel %vm1630, %v1603, %v1605
        %v1634 = vsel %vm1630, %v1605, %v1607
        %v1635 = vsel %vm1630, %v1607, %v1609
        %v1636 = vsel %vm1630, %v1609, %v1611
        %v1637 = vsel %vm1630, %v1611, %v1613
        %v1638 = vsel %vm1630, %v1613, %v1615
        %v1639 = vsel %vm1630, %v1615, %v1617
        %v1640 = vsel %vm1630, %v1617, %v1619
        %v1641 = vsel %vm1630, %v1619, %v1621
        %v1642 = vsel %vm1630, %v1621, %v1623
        %v1643 = vsel %vm1630, %v1623, %v1625
        %v1644 = vsel %vm1630, %v1625, %v1627
        %v1645 = vsel %vm1630, %v1627, %v1629
        %v1661 = vcombine.low %v840, %v840
        %v1662 = vcombine.low %v857, %v857
        %v1663 = vcombine.low %v874, %v874
        %v1664 = vcombine.low %v891, %v891
        %1665 = vrot.lane.b32.xlu0 %v1262, 93
        %v1666 = vpop.permute.xlu0 %1665
        %1667 = vrot.lane.b32.xlu0 %v833, 93
        %v1668 = vpop.permute.xlu0 %1667
        %1669 = vrot.lane.b32.xlu0 %v1661, 93
        %v1670 = vpop.permute.xlu0 %1669
        %1671 = vrot.lane.b32.xlu0 %v840, 93
        %v1672 = vpop.permute.xlu0 %1671
        %1673 = vrot.lane.b32.xlu0 %v1272, 93
        %v1674 = vpop.permute.xlu0 %1673
        %1675 = vrot.lane.b32.xlu0 %v850, 93
        %v1676 = vpop.permute.xlu0 %1675
        %1677 = vrot.lane.b32.xlu0 %v1662, 93
        %v1678 = vpop.permute.xlu0 %1677
        %1679 = vrot.lane.b32.xlu0 %v857, 93
        %v1680 = vpop.permute.xlu0 %1679
        %1681 = vrot.lane.b32.xlu0 %v1282, 93
        %v1682 = vpop.permute.xlu0 %1681
        %1683 = vrot.lane.b32.xlu0 %v867, 93
        %v1684 = vpop.permute.xlu0 %1683
        %1685 = vrot.lane.b32.xlu0 %v1663, 93
        %v1686 = vpop.permute.xlu0 %1685
        %1687 = vrot.lane.b32.xlu0 %v874, 93
        %v1688 = vpop.permute.xlu0 %1687
        %1689 = vrot.lane.b32.xlu0 %v1292, 93
        %v1690 = vpop.permute.xlu0 %1689
        %1691 = vrot.lane.b32.xlu0 %v884, 93
        %v1692 = vpop.permute.xlu0 %1691
        %1693 = vrot.lane.b32.xlu0 %v1664, 93
        %v1694 = vpop.permute.xlu0 %1693
        %1695 = vrot.lane.b32.xlu0 %v891, 93
        %v1696 = vpop.permute.xlu0 %1695
        %vm1697 = vcmask 760832
        %v1698 = vsel %vm1697, %v1666, %v1668
        %v1699 = vsel %vm1697, %v1668, %v1670
        %v1700 = vsel %vm1697, %v1670, %v1672
        %v1701 = vsel %vm1697, %v1672, %v1674
        %v1702 = vsel %vm1697, %v1674, %v1676
        %v1703 = vsel %vm1697, %v1676, %v1678
        %v1704 = vsel %vm1697, %v1678, %v1680
        %v1705 = vsel %vm1697, %v1680, %v1682
        %v1706 = vsel %vm1697, %v1682, %v1684
        %v1707 = vsel %vm1697, %v1684, %v1686
        %v1708 = vsel %vm1697, %v1686, %v1688
        %v1709 = vsel %vm1697, %v1688, %v1690
        %v1710 = vsel %vm1697, %v1690, %v1692
        %v1711 = vsel %vm1697, %v1692, %v1694
        %v1712 = vsel %vm1697, %v1694, %v1696
        %v1713 = vrot.slane %v909, 2
        %v1714 = vrot.slane %v912, 3
        %v1715 = vor.u32 %v1713, %v1714
        %v1716 = vrot.slane %v917, 2
        %v1717 = vrot.slane %v920, 3
        %v1718 = vor.u32 %v1716, %v1717
        %v1719 = vrot.slane %v925, 2
        %v1720 = vrot.slane %v928, 3
        %v1721 = vor.u32 %v1719, %v1720
        %v1722 = vrot.slane %v933, 2
        %v1723 = vrot.slane %v936, 3
        %v1724 = vor.u32 %v1722, %v1723
        %v1725 = vrot.slane %v941, 2
        %v1726 = vrot.slane %v944, 3
        %v1727 = vor.u32 %v1725, %v1726
        %v1728 = vrot.slane %v949, 2
        %v1729 = vrot.slane %v952, 3
        %v1730 = vor.u32 %v1728, %v1729
        %v1731 = vrot.slane %v957, 2
        %v1732 = vrot.slane %v960, 3
        %v1733 = vor.u32 %v1731, %v1732
        %v1734 = vrot.slane %v965, 2
        %v1735 = vrot.slane %v968, 3
        %v1736 = vor.u32 %v1734, %v1735
        %v1737 = vrot.slane %v973, 2
        %v1738 = vrot.slane %v976, 3
        %v1739 = vor.u32 %v1737, %v1738
        %v1740 = vrot.slane %v981, 2
        %v1741 = vrot.slane %v984, 3
        %v1742 = vor.u32 %v1740, %v1741
        %v1743 = vrot.slane %v989, 2
        %v1744 = vrot.slane %v992, 3
        %v1745 = vor.u32 %v1743, %v1744
        %v1746 = vrot.slane %v997, 2
        %v1747 = vrot.slane %v1000, 3
        %v1748 = vor.u32 %v1746, %v1747
        %v1749 = vrot.slane %v1005, 2
        %v1750 = vrot.slane %v1008, 3
        %v1751 = vor.u32 %v1749, %v1750
        %v1752 = vrot.slane %v1013, 2
        %v1753 = vrot.slane %v1016, 3
        %v1754 = vor.u32 %v1752, %v1753
        %v1755 = vrot.slane %v1021, 2
        %v1756 = vrot.slane %v1024, 3
        %v1757 = vor.u32 %v1755, %v1756
        %v1758 = vrot.slane %v1373, 2
        %v1759 = vrot.slane %v1355, 3
        %v1760 = vor.u32 %v1758, %v1759
        %1761 = vrot.lane.b32.xlu0 %v1715, 92
        %v1762 = vpop.permute.xlu0 %1761
        %1763 = vrot.lane.b32.xlu0 %v1718, 92
        %v1764 = vpop.permute.xlu0 %1763
        %1765 = vrot.lane.b32.xlu0 %v1721, 92
        %v1766 = vpop.permute.xlu0 %1765
        %1767 = vrot.lane.b32.xlu0 %v1724, 92
        %v1768 = vpop.permute.xlu0 %1767
        %1769 = vrot.lane.b32.xlu0 %v1727, 92
        %v1770 = vpop.permute.xlu0 %1769
        %1771 = vrot.lane.b32.xlu0 %v1730, 92
        %v1772 = vpop.permute.xlu0 %1771
        %1773 = vrot.lane.b32.xlu0 %v1733, 92
        %v1774 = vpop.permute.xlu0 %1773
        %1775 = vrot.lane.b32.xlu0 %v1736, 92
        %v1776 = vpop.permute.xlu0 %1775
        %1777 = vrot.lane.b32.xlu0 %v1739, 92
        %v1778 = vpop.permute.xlu0 %1777
        %1779 = vrot.lane.b32.xlu0 %v1742, 92
        %v1780 = vpop.permute.xlu0 %1779
        %1781 = vrot.lane.b32.xlu0 %v1745, 92
        %v1782 = vpop.permute.xlu0 %1781
        %1783 = vrot.lane.b32.xlu0 %v1748, 92
        %v1784 = vpop.permute.xlu0 %1783
        %1785 = vrot.lane.b32.xlu0 %v1751, 92
        %v1786 = vpop.permute.xlu0 %1785
        %1787 = vrot.lane.b32.xlu0 %v1754, 92
        %v1788 = vpop.permute.xlu0 %1787
        %1789 = vrot.lane.b32.xlu0 %v1757, 92
        %v1790 = vpop.permute.xlu0 %1789
        %1791 = vrot.lane.b32.xlu0 %v1760, 92
        %v1792 = vpop.permute.xlu0 %1791
        %vm1793 = vcmask 752640
        %v1794 = vsel %vm1793, %v1762, %v1764
        %v1795 = vsel %vm1793, %v1764, %v1766
        %v1796 = vsel %vm1793, %v1766, %v1768
        %v1797 = vsel %vm1793, %v1768, %v1770
        %v1798 = vsel %vm1793, %v1770, %v1772
        %v1799 = vsel %vm1793, %v1772, %v1774
        %v1800 = vsel %vm1793, %v1774, %v1776
        %v1801 = vsel %vm1793, %v1776, %v1778
        %v1802 = vsel %vm1793, %v1778, %v1780
        %v1803 = vsel %vm1793, %v1780, %v1782
        %v1804 = vsel %vm1793, %v1782, %v1784
        %v1805 = vsel %vm1793, %v1784, %v1786
        %v1806 = vsel %vm1793, %v1786, %v1788
        %v1807 = vsel %vm1793, %v1788, %v1790
        %v1808 = vsel %vm1793, %v1790, %v1792
        %v1824 = vrot.slane %v833, 1
        %v1825 = vrot.slane %v841, 1
        %v1826 = vrot.slane %v840, 1
        %v1827 = vrot.slane %v842, 1
        %v1828 = vrot.slane %v850, 1
        %v1829 = vrot.slane %v858, 1
        %v1830 = vrot.slane %v857, 1
        %v1831 = vrot.slane %v859, 1
        %v1832 = vrot.slane %v867, 1
        %v1833 = vrot.slane %v875, 1
        %v1834 = vrot.slane %v874, 1
        %v1835 = vrot.slane %v876, 1
        %v1836 = vrot.slane %v884, 1
        %v1837 = vrot.slane %v892, 1
        %v1838 = vrot.slane %v891, 1
        %v1839 = vrot.slane %v1338, 1
        %1840 = vrot.lane.b32.xlu0 %v1824, 64
        %v1841 = vpop.permute.xlu0 %1840
        %1842 = vrot.lane.b32.xlu0 %v1825, 64
        %v1843 = vpop.permute.xlu0 %1842
        %1844 = vrot.lane.b32.xlu0 %v1826, 64
        %v1845 = vpop.permute.xlu0 %1844
        %1846 = vrot.lane.b32.xlu0 %v1827, 64
        %v1847 = vpop.permute.xlu0 %1846
        %1848 = vrot.lane.b32.xlu0 %v1828, 64
        %v1849 = vpop.permute.xlu0 %1848
        %1850 = vrot.lane.b32.xlu0 %v1829, 64
        %v1851 = vpop.permute.xlu0 %1850
        %1852 = vrot.lane.b32.xlu0 %v1830, 64
        %v1853 = vpop.permute.xlu0 %1852
        %1854 = vrot.lane.b32.xlu0 %v1831, 64
        %v1855 = vpop.permute.xlu0 %1854
        %1856 = vrot.lane.b32.xlu0 %v1832, 64
        %v1857 = vpop.permute.xlu0 %1856
        %1858 = vrot.lane.b32.xlu0 %v1833, 64
        %v1859 = vpop.permute.xlu0 %1858
        %1860 = vrot.lane.b32.xlu0 %v1834, 64
        %v1861 = vpop.permute.xlu0 %1860
        %1862 = vrot.lane.b32.xlu0 %v1835, 64
        %v1863 = vpop.permute.xlu0 %1862
        %1864 = vrot.lane.b32.xlu0 %v1836, 64
        %v1865 = vpop.permute.xlu0 %1864
        %1866 = vrot.lane.b32.xlu0 %v1837, 64
        %v1867 = vpop.permute.xlu0 %1866
        %1868 = vrot.lane.b32.xlu0 %v1838, 64
        %v1869 = vpop.permute.xlu0 %1868
        %1870 = vrot.lane.b32.xlu0 %v1839, 64
        %v1871 = vpop.permute.xlu0 %1870
        %vm1872 = vcmask 523264
        %v1873 = vsel %vm1872, %v1841, %v1843
        %v1874 = vsel %vm1872, %v1843, %v1845
        %v1875 = vsel %vm1872, %v1845, %v1847
        %v1876 = vsel %vm1872, %v1847, %v1849
        %v1877 = vsel %vm1872, %v1849, %v1851
        %v1878 = vsel %vm1872, %v1851, %v1853
        %v1879 = vsel %vm1872, %v1853, %v1855
        %v1880 = vsel %vm1872, %v1855, %v1857
        %v1881 = vsel %vm1872, %v1857, %v1859
        %v1882 = vsel %vm1872, %v1859, %v1861
        %v1883 = vsel %vm1872, %v1861, %v1863
        %v1884 = vsel %vm1872, %v1863, %v1865
        %v1885 = vsel %vm1872, %v1865, %v1867
        %v1886 = vsel %vm1872, %v1867, %v1869
        %v1887 = vsel %vm1872, %v1869, %v1871
        %v1903 = vrot.slane %v909, 7
        %v1904 = vor.u32 %v1903, %v912
        %v1905 = vrot.slane %v917, 7
        %v1906 = vor.u32 %v1905, %v920
        %v1907 = vrot.slane %v925, 7
        %v1908 = vor.u32 %v1907, %v928
        %v1909 = vrot.slane %v933, 7
        %v1910 = vor.u32 %v1909, %v936
        %v1911 = vrot.slane %v941, 7
        %v1912 = vor.u32 %v1911, %v944
        %v1913 = vrot.slane %v949, 7
        %v1914 = vor.u32 %v1913, %v952
        %v1915 = vrot.slane %v957, 7
        %v1916 = vor.u32 %v1915, %v960
        %v1917 = vrot.slane %v965, 7
        %v1918 = vor.u32 %v1917, %v968
        %v1919 = vrot.slane %v973, 7
        %v1920 = vor.u32 %v1919, %v976
        %v1921 = vrot.slane %v981, 7
        %v1922 = vor.u32 %v1921, %v984
        %v1923 = vrot.slane %v989, 7
        %v1924 = vor.u32 %v1923, %v992
        %v1925 = vrot.slane %v997, 7
        %v1926 = vor.u32 %v1925, %v1000
        %v1927 = vrot.slane %v1005, 7
        %v1928 = vor.u32 %v1927, %v1008
        %v1929 = vrot.slane %v1013, 7
        %v1930 = vor.u32 %v1929, %v1016
        %v1931 = vrot.slane %v1021, 7
        %v1932 = vor.u32 %v1931, %v1024
        %v1933 = vrot.slane %v1373, 7
        %v1934 = vor.u32 %v1933, %v1355
        %1935 = vrot.lane.b32.xlu0 %v1904, 63
        %v1936 = vpop.permute.xlu0 %1935
        %1937 = vrot.lane.b32.xlu0 %v1906, 63
        %v1938 = vpop.permute.xlu0 %1937
        %1939 = vrot.lane.b32.xlu0 %v1908, 63
        %v1940 = vpop.permute.xlu0 %1939
        %1941 = vrot.lane.b32.xlu0 %v1910, 63
        %v1942 = vpop.permute.xlu0 %1941
        %1943 = vrot.lane.b32.xlu0 %v1912, 63
        %v1944 = vpop.permute.xlu0 %1943
        %1945 = vrot.lane.b32.xlu0 %v1914, 63
        %v1946 = vpop.permute.xlu0 %1945
        %1947 = vrot.lane.b32.xlu0 %v1916, 63
        %v1948 = vpop.permute.xlu0 %1947
        %1949 = vrot.lane.b32.xlu0 %v1918, 63
        %v1950 = vpop.permute.xlu0 %1949
        %1951 = vrot.lane.b32.xlu0 %v1920, 63
        %v1952 = vpop.permute.xlu0 %1951
        %1953 = vrot.lane.b32.xlu0 %v1922, 63
        %v1954 = vpop.permute.xlu0 %1953
        %1955 = vrot.lane.b32.xlu0 %v1924, 63
        %v1956 = vpop.permute.xlu0 %1955
        %1957 = vrot.lane.b32.xlu0 %v1926, 63
        %v1958 = vpop.permute.xlu0 %1957
        %1959 = vrot.lane.b32.xlu0 %v1928, 63
        %v1960 = vpop.permute.xlu0 %1959
        %1961 = vrot.lane.b32.xlu0 %v1930, 63
        %v1962 = vpop.permute.xlu0 %1961
        %1963 = vrot.lane.b32.xlu0 %v1932, 63
        %v1964 = vpop.permute.xlu0 %1963
        %1965 = vrot.lane.b32.xlu0 %v1934, 63
        %v1966 = vpop.permute.xlu0 %1965
        %vm1967 = vcmask 515072
        %v1968 = vsel %vm1967, %v1936, %v1938
        %v1969 = vsel %vm1967, %v1938, %v1940
        %v1970 = vsel %vm1967, %v1940, %v1942
        %v1971 = vsel %vm1967, %v1942, %v1944
        %v1972 = vsel %vm1967, %v1944, %v1946
        %v1973 = vsel %vm1967, %v1946, %v1948
        %v1974 = vsel %vm1967, %v1948, %v1950
        %v1975 = vsel %vm1967, %v1950, %v1952
        %v1976 = vsel %vm1967, %v1952, %v1954
        %v1977 = vsel %vm1967, %v1954, %v1956
        %v1978 = vsel %vm1967, %v1956, %v1958
        %v1979 = vsel %vm1967, %v1958, %v1960
        %v1980 = vsel %vm1967, %v1960, %v1962
        %v1981 = vsel %vm1967, %v1962, %v1964
        %v1982 = vsel %vm1967, %v1964, %v1966
        %v1998 = vcombine.high %v1260, %v1260
        %v1999 = vcombine.high %v1270, %v1270
        %v2000 = vcombine.high %v1280, %v1280
        %v2001 = vcombine.high %v1290, %v1290
        %2002 = vrot.lane.b32.xlu0 %v1260, 62
        %v2003 = vpop.permute.xlu0 %2002
        %2004 = vrot.lane.b32.xlu0 %v1998, 62
        %v2005 = vpop.permute.xlu0 %2004
        %2006 = vrot.lane.b32.xlu0 %v833, 62
        %v2007 = vpop.permute.xlu0 %2006
        %2008 = vrot.lane.b32.xlu0 %v841, 62
        %v2009 = vpop.permute.xlu0 %2008
        %2010 = vrot.lane.b32.xlu0 %v1270, 62
        %v2011 = vpop.permute.xlu0 %2010
        %2012 = vrot.lane.b32.xlu0 %v1999, 62
        %v2013 = vpop.permute.xlu0 %2012
        %2014 = vrot.lane.b32.xlu0 %v850, 62
        %v2015 = vpop.permute.xlu0 %2014
        %2016 = vrot.lane.b32.xlu0 %v858, 62
        %v2017 = vpop.permute.xlu0 %2016
        %2018 = vrot.lane.b32.xlu0 %v1280, 62
        %v2019 = vpop.permute.xlu0 %2018
        %2020 = vrot.lane.b32.xlu0 %v2000, 62
        %v2021 = vpop.permute.xlu0 %2020
        %2022 = vrot.lane.b32.xlu0 %v867, 62
        %v2023 = vpop.permute.xlu0 %2022
        %2024 = vrot.lane.b32.xlu0 %v875, 62
        %v2025 = vpop.permute.xlu0 %2024
        %2026 = vrot.lane.b32.xlu0 %v1290, 62
        %v2027 = vpop.permute.xlu0 %2026
        %2028 = vrot.lane.b32.xlu0 %v2001, 62
        %v2029 = vpop.permute.xlu0 %2028
        %2030 = vrot.lane.b32.xlu0 %v884, 62
        %v2031 = vpop.permute.xlu0 %2030
        %2032 = vrot.lane.b32.xlu0 %v892, 62
        %v2033 = vpop.permute.xlu0 %2032
        %vm2034 = vcmask 506880
        %v2035 = vsel %vm2034, %v2003, %v2005
        %v2036 = vsel %vm2034, %v2005, %v2007
        %v2037 = vsel %vm2034, %v2007, %v2009
        %v2038 = vsel %vm2034, %v2009, %v2011
        %v2039 = vsel %vm2034, %v2011, %v2013
        %v2040 = vsel %vm2034, %v2013, %v2015
        %v2041 = vsel %vm2034, %v2015, %v2017
        %v2042 = vsel %vm2034, %v2017, %v2019
        %v2043 = vsel %vm2034, %v2019, %v2021
        %v2044 = vsel %vm2034, %v2021, %v2023
        %v2045 = vsel %vm2034, %v2023, %v2025
        %v2046 = vsel %vm2034, %v2025, %v2027
        %v2047 = vsel %vm2034, %v2027, %v2029
        %v2048 = vsel %vm2034, %v2029, %v2031
        %v2049 = vsel %vm2034, %v2031, %v2033
        %v2050 = vrot.slane %v909, 4
        %v2051 = vrot.slane %v912, 5
        %v2052 = vor.u32 %v2050, %v2051
        %v2053 = vrot.slane %v917, 4
        %v2054 = vrot.slane %v920, 5
        %v2055 = vor.u32 %v2053, %v2054
        %v2056 = vrot.slane %v925, 4
        %v2057 = vrot.slane %v928, 5
        %v2058 = vor.u32 %v2056, %v2057
        %v2059 = vrot.slane %v933, 4
        %v2060 = vrot.slane %v936, 5
        %v2061 = vor.u32 %v2059, %v2060
        %v2062 = vrot.slane %v941, 4
        %v2063 = vrot.slane %v944, 5
        %v2064 = vor.u32 %v2062, %v2063
        %v2065 = vrot.slane %v949, 4
        %v2066 = vrot.slane %v952, 5
        %v2067 = vor.u32 %v2065, %v2066
        %v2068 = vrot.slane %v957, 4
        %v2069 = vrot.slane %v960, 5
        %v2070 = vor.u32 %v2068, %v2069
        %v2071 = vrot.slane %v965, 4
        %v2072 = vrot.slane %v968, 5
        %v2073 = vor.u32 %v2071, %v2072
        %v2074 = vrot.slane %v973, 4
        %v2075 = vrot.slane %v976, 5
        %v2076 = vor.u32 %v2074, %v2075
        %v2077 = vrot.slane %v981, 4
        %v2078 = vrot.slane %v984, 5
        %v2079 = vor.u32 %v2077, %v2078
        %v2080 = vrot.slane %v989, 4
        %v2081 = vrot.slane %v992, 5
        %v2082 = vor.u32 %v2080, %v2081
        %v2083 = vrot.slane %v997, 4
        %v2084 = vrot.slane %v1000, 5
        %v2085 = vor.u32 %v2083, %v2084
        %v2086 = vrot.slane %v1005, 4
        %v2087 = vrot.slane %v1008, 5
        %v2088 = vor.u32 %v2086, %v2087
        %v2089 = vrot.slane %v1013, 4
        %v2090 = vrot.slane %v1016, 5
        %v2091 = vor.u32 %v2089, %v2090
        %v2092 = vrot.slane %v1021, 4
        %v2093 = vrot.slane %v1024, 5
        %v2094 = vor.u32 %v2092, %v2093
        %v2095 = vrot.slane %v1373, 4
        %v2096 = vrot.slane %v1355, 5
        %v2097 = vor.u32 %v2095, %v2096
        %2098 = vrot.lane.b32.xlu0 %v2052, 61
        %v2099 = vpop.permute.xlu0 %2098
        %2100 = vrot.lane.b32.xlu0 %v2055, 61
        %v2101 = vpop.permute.xlu0 %2100
        %2102 = vrot.lane.b32.xlu0 %v2058, 61
        %v2103 = vpop.permute.xlu0 %2102
        %2104 = vrot.lane.b32.xlu0 %v2061, 61
        %v2105 = vpop.permute.xlu0 %2104
        %2106 = vrot.lane.b32.xlu0 %v2064, 61
        %v2107 = vpop.permute.xlu0 %2106
        %2108 = vrot.lane.b32.xlu0 %v2067, 61
        %v2109 = vpop.permute.xlu0 %2108
        %2110 = vrot.lane.b32.xlu0 %v2070, 61
        %v2111 = vpop.permute.xlu0 %2110
        %2112 = vrot.lane.b32.xlu0 %v2073, 61
        %v2113 = vpop.permute.xlu0 %2112
        %2114 = vrot.lane.b32.xlu0 %v2076, 61
        %v2115 = vpop.permute.xlu0 %2114
        %2116 = vrot.lane.b32.xlu0 %v2079, 61
        %v2117 = vpop.permute.xlu0 %2116
        %2118 = vrot.lane.b32.xlu0 %v2082, 61
        %v2119 = vpop.permute.xlu0 %2118
        %2120 = vrot.lane.b32.xlu0 %v2085, 61
        %v2121 = vpop.permute.xlu0 %2120
        %2122 = vrot.lane.b32.xlu0 %v2088, 61
        %v2123 = vpop.permute.xlu0 %2122
        %2124 = vrot.lane.b32.xlu0 %v2091, 61
        %v2125 = vpop.permute.xlu0 %2124
        %2126 = vrot.lane.b32.xlu0 %v2094, 61
        %v2127 = vpop.permute.xlu0 %2126
        %2128 = vrot.lane.b32.xlu0 %v2097, 61
        %v2129 = vpop.permute.xlu0 %2128
        %vm2130 = vcmask 498688
        %v2131 = vsel %vm2130, %v2099, %v2101
        %v2132 = vsel %vm2130, %v2101, %v2103
        %v2133 = vsel %vm2130, %v2103, %v2105
        %v2134 = vsel %vm2130, %v2105, %v2107
        %v2135 = vsel %vm2130, %v2107, %v2109
        %v2136 = vsel %vm2130, %v2109, %v2111
        %v2137 = vsel %vm2130, %v2111, %v2113
        %v2138 = vsel %vm2130, %v2113, %v2115
        %v2139 = vsel %vm2130, %v2115, %v2117
        %v2140 = vsel %vm2130, %v2117, %v2119
        %v2141 = vsel %vm2130, %v2119, %v2121
        %v2142 = vsel %vm2130, %v2121, %v2123
        %v2143 = vsel %vm2130, %v2123, %v2125
        %v2144 = vsel %vm2130, %v2125, %v2127
        %v2145 = vsel %vm2130, %v2127, %v2129
        %v2161 = vrot.slane %v833, 3
        %v2162 = vrot.slane %v841, 3
        %v2163 = vrot.slane %v840, 3
        %v2164 = vrot.slane %v842, 3
        %v2165 = vrot.slane %v850, 3
        %v2166 = vrot.slane %v858, 3
        %v2167 = vrot.slane %v857, 3
        %v2168 = vrot.slane %v859, 3
        %v2169 = vrot.slane %v867, 3
        %v2170 = vrot.slane %v875, 3
        %v2171 = vrot.slane %v874, 3
        %v2172 = vrot.slane %v876, 3
        %v2173 = vrot.slane %v884, 3
        %v2174 = vrot.slane %v892, 3
        %v2175 = vrot.slane %v891, 3
        %v2176 = vrot.slane %v1338, 3
        %2177 = vrot.lane.b32.xlu0 %v2161, 60
        %v2178 = vpop.permute.xlu0 %2177
        %2179 = vrot.lane.b32.xlu0 %v2162, 60
        %v2180 = vpop.permute.xlu0 %2179
        %2181 = vrot.lane.b32.xlu0 %v2163, 60
        %v2182 = vpop.permute.xlu0 %2181
        %2183 = vrot.lane.b32.xlu0 %v2164, 60
        %v2184 = vpop.permute.xlu0 %2183
        %2185 = vrot.lane.b32.xlu0 %v2165, 60
        %v2186 = vpop.permute.xlu0 %2185
        %2187 = vrot.lane.b32.xlu0 %v2166, 60
        %v2188 = vpop.permute.xlu0 %2187
        %2189 = vrot.lane.b32.xlu0 %v2167, 60
        %v2190 = vpop.permute.xlu0 %2189
        %2191 = vrot.lane.b32.xlu0 %v2168, 60
        %v2192 = vpop.permute.xlu0 %2191
        %2193 = vrot.lane.b32.xlu0 %v2169, 60
        %v2194 = vpop.permute.xlu0 %2193
        %2195 = vrot.lane.b32.xlu0 %v2170, 60
        %v2196 = vpop.permute.xlu0 %2195
        %2197 = vrot.lane.b32.xlu0 %v2171, 60
        %v2198 = vpop.permute.xlu0 %2197
        %2199 = vrot.lane.b32.xlu0 %v2172, 60
        %v2200 = vpop.permute.xlu0 %2199
        %2201 = vrot.lane.b32.xlu0 %v2173, 60
        %v2202 = vpop.permute.xlu0 %2201
        %2203 = vrot.lane.b32.xlu0 %v2174, 60
        %v2204 = vpop.permute.xlu0 %2203
        %2205 = vrot.lane.b32.xlu0 %v2175, 60
        %v2206 = vpop.permute.xlu0 %2205
        %2207 = vrot.lane.b32.xlu0 %v2176, 60
        %v2208 = vpop.permute.xlu0 %2207
        %vm2209 = vcmask 490496
        %v2210 = vsel %vm2209, %v2178, %v2180
        %v2211 = vsel %vm2209, %v2180, %v2182
        %v2212 = vsel %vm2209, %v2182, %v2184
        %v2213 = vsel %vm2209, %v2184, %v2186
        %v2214 = vsel %vm2209, %v2186, %v2188
        %v2215 = vsel %vm2209, %v2188, %v2190
        %v2216 = vsel %vm2209, %v2190, %v2192
        %v2217 = vsel %vm2209, %v2192, %v2194
        %v2218 = vsel %vm2209, %v2194, %v2196
        %v2219 = vsel %vm2209, %v2196, %v2198
        %v2220 = vsel %vm2209, %v2198, %v2200
        %v2221 = vsel %vm2209, %v2200, %v2202
        %v2222 = vsel %vm2209, %v2202, %v2204
        %v2223 = vsel %vm2209, %v2204, %v2206
        %v2224 = vsel %vm2209, %v2206, %v2208
        %v2225 = vrot.slane %v909, 1
        %v2226 = vrot.slane %v912, 2
        %v2227 = vor.u32 %v2225, %v2226
        %v2228 = vrot.slane %v917, 1
        %v2229 = vrot.slane %v920, 2
        %v2230 = vor.u32 %v2228, %v2229
        %v2231 = vrot.slane %v925, 1
        %v2232 = vrot.slane %v928, 2
        %v2233 = vor.u32 %v2231, %v2232
        %v2234 = vrot.slane %v933, 1
        %v2235 = vrot.slane %v936, 2
        %v2236 = vor.u32 %v2234, %v2235
        %v2237 = vrot.slane %v941, 1
        %v2238 = vrot.slane %v944, 2
        %v2239 = vor.u32 %v2237, %v2238
        %v2240 = vrot.slane %v949, 1
        %v2241 = vrot.slane %v952, 2
        %v2242 = vor.u32 %v2240, %v2241
        %v2243 = vrot.slane %v957, 1
        %v2244 = vrot.slane %v960, 2
        %v2245 = vor.u32 %v2243, %v2244
        %v2246 = vrot.slane %v965, 1
        %v2247 = vrot.slane %v968, 2
        %v2248 = vor.u32 %v2246, %v2247
        %v2249 = vrot.slane %v973, 1
        %v2250 = vrot.slane %v976, 2
        %v2251 = vor.u32 %v2249, %v2250
        %v2252 = vrot.slane %v981, 1
        %v2253 = vrot.slane %v984, 2
        %v2254 = vor.u32 %v2252, %v2253
        %v2255 = vrot.slane %v989, 1
        %v2256 = vrot.slane %v992, 2
        %v2257 = vor.u32 %v2255, %v2256
        %v2258 = vrot.slane %v997, 1
        %v2259 = vrot.slane %v1000, 2
        %v2260 = vor.u32 %v2258, %v2259
        %v2261 = vrot.slane %v1005, 1
        %v2262 = vrot.slane %v1008, 2
        %v2263 = vor.u32 %v2261, %v2262
        %v2264 = vrot.slane %v1013, 1
        %v2265 = vrot.slane %v1016, 2
        %v2266 = vor.u32 %v2264, %v2265
        %v2267 = vrot.slane %v1021, 1
        %v2268 = vrot.slane %v1024, 2
        %v2269 = vor.u32 %v2267, %v2268
        %v2270 = vrot.slane %v1373, 1
        %v2271 = vrot.slane %v1355, 2
        %v2272 = vor.u32 %v2270, %v2271
        %2273 = vrot.lane.b32.xlu0 %v2227, 32
        %v2274 = vpop.permute.xlu0 %2273
        %2275 = vrot.lane.b32.xlu0 %v2230, 32
        %v2276 = vpop.permute.xlu0 %2275
        %2277 = vrot.lane.b32.xlu0 %v2233, 32
        %v2278 = vpop.permute.xlu0 %2277
        %2279 = vrot.lane.b32.xlu0 %v2236, 32
        %v2280 = vpop.permute.xlu0 %2279
        %2281 = vrot.lane.b32.xlu0 %v2239, 32
        %v2282 = vpop.permute.xlu0 %2281
        %2283 = vrot.lane.b32.xlu0 %v2242, 32
        %v2284 = vpop.permute.xlu0 %2283
        %2285 = vrot.lane.b32.xlu0 %v2245, 32
        %v2286 = vpop.permute.xlu0 %2285
        %2287 = vrot.lane.b32.xlu0 %v2248, 32
        %v2288 = vpop.permute.xlu0 %2287
        %2289 = vrot.lane.b32.xlu0 %v2251, 32
        %v2290 = vpop.permute.xlu0 %2289
        %2291 = vrot.lane.b32.xlu0 %v2254, 32
        %v2292 = vpop.permute.xlu0 %2291
        %2293 = vrot.lane.b32.xlu0 %v2257, 32
        %v2294 = vpop.permute.xlu0 %2293
        %2295 = vrot.lane.b32.xlu0 %v2260, 32
        %v2296 = vpop.permute.xlu0 %2295
        %2297 = vrot.lane.b32.xlu0 %v2263, 32
        %v2298 = vpop.permute.xlu0 %2297
        %2299 = vrot.lane.b32.xlu0 %v2266, 32
        %v2300 = vpop.permute.xlu0 %2299
        %2301 = vrot.lane.b32.xlu0 %v2269, 32
        %v2302 = vpop.permute.xlu0 %2301
        %2303 = vrot.lane.b32.xlu0 %v2272, 32
        %v2304 = vpop.permute.xlu0 %2303
        %vm2305 = vcmask 261120
        %v2306 = vsel %vm2305, %v2274, %v2276
        %v2307 = vsel %vm2305, %v2276, %v2278
        %v2308 = vsel %vm2305, %v2278, %v2280
        %v2309 = vsel %vm2305, %v2280, %v2282
        %v2310 = vsel %vm2305, %v2282, %v2284
        %v2311 = vsel %vm2305, %v2284, %v2286
        %v2312 = vsel %vm2305, %v2286, %v2288
        %v2313 = vsel %vm2305, %v2288, %v2290
        %v2314 = vsel %vm2305, %v2290, %v2292
        %v2315 = vsel %vm2305, %v2292, %v2294
        %v2316 = vsel %vm2305, %v2294, %v2296
        %v2317 = vsel %vm2305, %v2296, %v2298
        %v2318 = vsel %vm2305, %v2298, %v2300
        %v2319 = vsel %vm2305, %v2300, %v2302
        %v2320 = vsel %vm2305, %v2302, %v2304
        %vm2336 = vcmask 1041408
        %vm2337 = vsmask.f32 1280
        %vm2338 = vmand %vm2336, %vm2337
        %v2339 = vsel %vm2338, %v833, %v1059
        %v2340 = vsel %vm2338, %v841, %v1060
        %v2341 = vsel %vm2338, %v840, %v1061
        %v2342 = vsel %vm2338, %v842, %v1062
        %v2343 = vsel %vm2338, %v850, %v1063
        %v2344 = vsel %vm2338, %v858, %v1064
        %v2345 = vsel %vm2338, %v857, %v1065
        %v2346 = vsel %vm2338, %v859, %v1066
        %v2347 = vsel %vm2338, %v867, %v1067
        %v2348 = vsel %vm2338, %v875, %v1068
        %v2349 = vsel %vm2338, %v874, %v1069
        %v2350 = vsel %vm2338, %v876, %v1070
        %v2351 = vsel %vm2338, %v884, %v1071
        %v2352 = vsel %vm2338, %v892, %v1072
        %v2353 = vsel %vm2338, %v891, %v1057
        %vm2354 = vcmask 1042432
        %v2357 = vsel %vm2354, %v2339, %v1134
        %v2361 = vsel %vm2354, %v2340, %v1135
        %v2365 = vsel %vm2354, %v2341, %v1136
        %v2369 = vsel %vm2354, %v2342, %v1137
        %v2373 = vsel %vm2354, %v2343, %v1138
        %v2377 = vsel %vm2354, %v2344, %v1139
        %v2381 = vsel %vm2354, %v2345, %v1140
        %v2385 = vsel %vm2354, %v2346, %v1141
        %v2389 = vsel %vm2354, %v2347, %v1142
        %v2393 = vsel %vm2354, %v2348, %v1143
        %v2397 = vsel %vm2354, %v2349, %v1144
        %v2401 = vsel %vm2354, %v2350, %v1145
        %v2405 = vsel %vm2354, %v2351, %v1146
        %v2409 = vsel %vm2354, %v2352, %v1147
        %v2413 = vsel %vm2354, %v2353, %v1132
        %vm2415 = vcmask 1044480
        %vm2416 = vsmask.f32 4352
        %vm2417 = vmand %vm2415, %vm2416
        %v2418 = vsel %vm2417, %v2357, %v1224
        %v2419 = vsel %vm2417, %v2361, %v1225
        %v2420 = vsel %vm2417, %v2365, %v1226
        %v2421 = vsel %vm2417, %v2369, %v1227
        %v2422 = vsel %vm2417, %v2373, %v1228
        %v2423 = vsel %vm2417, %v2377, %v1229
        %v2424 = vsel %vm2417, %v2381, %v1230
        %v2425 = vsel %vm2417, %v2385, %v1231
        %v2426 = vsel %vm2417, %v2389, %v1232
        %v2427 = vsel %vm2417, %v2393, %v1233
        %v2428 = vsel %vm2417, %v2397, %v1234
        %v2429 = vsel %vm2417, %v2401, %v1235
        %v2430 = vsel %vm2417, %v2405, %v1236
        %v2431 = vsel %vm2417, %v2409, %v1237
        %v2432 = vsel %vm2417, %v2413, %v1222
        %vm2433 = vcmask 1045504
        %v2436 = vsel %vm2433, %v2418, %v1324
        %v2440 = vsel %vm2433, %v2419, %v1325
        %v2444 = vsel %vm2433, %v2420, %v1326
        %v2448 = vsel %vm2433, %v2421, %v1327
        %v2452 = vsel %vm2433, %v2422, %v1328
        %v2456 = vsel %vm2433, %v2423, %v1329
        %v2460 = vsel %vm2433, %v2424, %v1330
        %v2464 = vsel %vm2433, %v2425, %v1331
        %v2468 = vsel %vm2433, %v2426, %v1332
        %v2472 = vsel %vm2433, %v2427, %v1333
        %v2476 = vsel %vm2433, %v2428, %v1334
        %v2480 = vsel %vm2433, %v2429, %v1335
        %v2484 = vsel %vm2433, %v2430, %v1336
        %v2488 = vsel %vm2433, %v2431, %v1337
        %v2492 = vsel %vm2433, %v2432, %v1322
        %vm2494 = vcmask 1047552
        %vm2495 = vsmask.f32 7424
        %vm2496 = vmand %vm2494, %vm2495
        %v2497 = vsel %vm2496, %v2436, %v1441
        %v2498 = vsel %vm2496, %v2440, %v1442
        %v2499 = vsel %vm2496, %v2444, %v1443
        %v2500 = vsel %vm2496, %v2448, %v1444
        %v2501 = vsel %vm2496, %v2452, %v1445
        %v2502 = vsel %vm2496, %v2456, %v1446
        %v2503 = vsel %vm2496, %v2460, %v1447
        %v2504 = vsel %vm2496, %v2464, %v1448
        %v2505 = vsel %vm2496, %v2468, %v1449
        %v2506 = vsel %vm2496, %v2472, %v1450
        %v2507 = vsel %vm2496, %v2476, %v1451
        %v2508 = vsel %vm2496, %v2480, %v1452
        %v2509 = vsel %vm2496, %v2484, %v1453
        %v2510 = vsel %vm2496, %v2488, %v1454
        %v2511 = vsel %vm2496, %v2492, %v1455
        %vm2512 = vcmask 1040384
        %v2515 = vsel %vm2512, %v1456, %v1535
        %v2519 = vsel %vm2512, %v1457, %v1536
        %v2523 = vsel %vm2512, %v1458, %v1537
        %v2527 = vsel %vm2512, %v1459, %v1538
        %v2531 = vsel %vm2512, %v1460, %v1539
        %v2535 = vsel %vm2512, %v1461, %v1540
        %v2539 = vsel %vm2512, %v1462, %v1541
        %v2543 = vsel %vm2512, %v1463, %v1542
        %v2547 = vsel %vm2512, %v1464, %v1543
        %v2551 = vsel %vm2512, %v1465, %v1544
        %v2555 = vsel %vm2512, %v1466, %v1545
        %v2559 = vsel %vm2512, %v1467, %v1546
        %v2563 = vsel %vm2512, %v1468, %v1547
        %v2567 = vsel %vm2512, %v1469, %v1548
        %v2571 = vsel %vm2512, %v1470, %v1549
        %vm2573 = vcmask 1042432
        %vm2574 = vsmask.f32 2304
        %vm2575 = vmand %vm2573, %vm2574
        %v2576 = vsel %vm2575, %v2515, %v1631
        %v2577 = vsel %vm2575, %v2519, %v1632
        %v2578 = vsel %vm2575, %v2523, %v1633
        %v2579 = vsel %vm2575, %v2527, %v1634
        %v2580 = vsel %vm2575, %v2531, %v1635
        %v2581 = vsel %vm2575, %v2535, %v1636
        %v2582 = vsel %vm2575, %v2539, %v1637
        %v2583 = vsel %vm2575, %v2543, %v1638
        %v2584 = vsel %vm2575, %v2547, %v1639
        %v2585 = vsel %vm2575, %v2551, %v1640
        %v2586 = vsel %vm2575, %v2555, %v1641
        %v2587 = vsel %vm2575, %v2559, %v1642
        %v2588 = vsel %vm2575, %v2563, %v1643
        %v2589 = vsel %vm2575, %v2567, %v1644
        %v2590 = vsel %vm2575, %v2571, %v1645
        %vm2591 = vcmask 1043456
        %v2594 = vsel %vm2591, %v2576, %v1698
        %v2598 = vsel %vm2591, %v2577, %v1699
        %v2602 = vsel %vm2591, %v2578, %v1700
        %v2606 = vsel %vm2591, %v2579, %v1701
        %v2610 = vsel %vm2591, %v2580, %v1702
        %v2614 = vsel %vm2591, %v2581, %v1703
        %v2618 = vsel %vm2591, %v2582, %v1704
        %v2622 = vsel %vm2591, %v2583, %v1705
        %v2626 = vsel %vm2591, %v2584, %v1706
        %v2630 = vsel %vm2591, %v2585, %v1707
        %v2634 = vsel %vm2591, %v2586, %v1708
        %v2638 = vsel %vm2591, %v2587, %v1709
        %v2642 = vsel %vm2591, %v2588, %v1710
        %v2646 = vsel %vm2591, %v2589, %v1711
        %v2650 = vsel %vm2591, %v2590, %v1712
        %vm2652 = vcmask 1045504
        %vm2653 = vsmask.f32 5376
        %vm2654 = vmand %vm2652, %vm2653
        %v2655 = vsel %vm2654, %v2594, %v1794
        %v2656 = vsel %vm2654, %v2598, %v1795
        %v2657 = vsel %vm2654, %v2602, %v1796
        %v2658 = vsel %vm2654, %v2606, %v1797
        %v2659 = vsel %vm2654, %v2610, %v1798
        %v2660 = vsel %vm2654, %v2614, %v1799
        %v2661 = vsel %vm2654, %v2618, %v1800
        %v2662 = vsel %vm2654, %v2622, %v1801
        %v2663 = vsel %vm2654, %v2626, %v1802
        %v2664 = vsel %vm2654, %v2630, %v1803
        %v2665 = vsel %vm2654, %v2634, %v1804
        %v2666 = vsel %vm2654, %v2638, %v1805
        %v2667 = vsel %vm2654, %v2642, %v1806
        %v2668 = vsel %vm2654, %v2646, %v1807
        %v2669 = vsel %vm2654, %v2650, %v1808
        %vm2670 = vcmask 1046528
        %v2673 = vsel %vm2670, %v2655, %v1873
        %v2677 = vsel %vm2670, %v2656, %v1874
        %v2681 = vsel %vm2670, %v2657, %v1875
        %v2685 = vsel %vm2670, %v2658, %v1876
        %v2689 = vsel %vm2670, %v2659, %v1877
        %v2693 = vsel %vm2670, %v2660, %v1878
        %v2697 = vsel %vm2670, %v2661, %v1879
        %v2701 = vsel %vm2670, %v2662, %v1880
        %v2705 = vsel %vm2670, %v2663, %v1881
        %v2709 = vsel %vm2670, %v2664, %v1882
        %v2713 = vsel %vm2670, %v2665, %v1883
        %v2717 = vsel %vm2670, %v2666, %v1884
        %v2721 = vsel %vm2670, %v2667, %v1885
        %v2725 = vsel %vm2670, %v2668, %v1886
        %v2729 = vsel %vm2670, %v2669, %v1887
        %vm2731 = vcmask 1040384
        %vm2732 = vsmask.f32 256
        %vm2733 = vmand %vm2731, %vm2732
        %v2734 = vsel %vm2733, %v1873, %v1968
        %v2735 = vsel %vm2733, %v1874, %v1969
        %v2736 = vsel %vm2733, %v1875, %v1970
        %v2737 = vsel %vm2733, %v1876, %v1971
        %v2738 = vsel %vm2733, %v1877, %v1972
        %v2739 = vsel %vm2733, %v1878, %v1973
        %v2740 = vsel %vm2733, %v1879, %v1974
        %v2741 = vsel %vm2733, %v1880, %v1975
        %v2742 = vsel %vm2733, %v1881, %v1976
        %v2743 = vsel %vm2733, %v1882, %v1977
        %v2744 = vsel %vm2733, %v1883, %v1978
        %v2745 = vsel %vm2733, %v1884, %v1979
        %v2746 = vsel %vm2733, %v1885, %v1980
        %v2747 = vsel %vm2733, %v1886, %v1981
        %v2748 = vsel %vm2733, %v1887, %v1982
        %vm2749 = vcmask 1041408
        %v2752 = vsel %vm2749, %v2734, %v2035
        %v2756 = vsel %vm2749, %v2735, %v2036
        %v2760 = vsel %vm2749, %v2736, %v2037
        %v2764 = vsel %vm2749, %v2737, %v2038
        %v2768 = vsel %vm2749, %v2738, %v2039
        %v2772 = vsel %vm2749, %v2739, %v2040
        %v2776 = vsel %vm2749, %v2740, %v2041
        %v2780 = vsel %vm2749, %v2741, %v2042
        %v2784 = vsel %vm2749, %v2742, %v2043
        %v2788 = vsel %vm2749, %v2743, %v2044
        %v2792 = vsel %vm2749, %v2744, %v2045
        %v2796 = vsel %vm2749, %v2745, %v2046
        %v2800 = vsel %vm2749, %v2746, %v2047
        %v2804 = vsel %vm2749, %v2747, %v2048
        %v2808 = vsel %vm2749, %v2748, %v2049
        %vm2810 = vcmask 1043456
        %vm2811 = vsmask.f32 3328
        %vm2812 = vmand %vm2810, %vm2811
        %v2813 = vsel %vm2812, %v2752, %v2131
        %v2814 = vsel %vm2812, %v2756, %v2132
        %v2815 = vsel %vm2812, %v2760, %v2133
        %v2816 = vsel %vm2812, %v2764, %v2134
        %v2817 = vsel %vm2812, %v2768, %v2135
        %v2818 = vsel %vm2812, %v2772, %v2136
        %v2819 = vsel %vm2812, %v2776, %v2137
        %v2820 = vsel %vm2812, %v2780, %v2138
        %v2821 = vsel %vm2812, %v2784, %v2139
        %v2822 = vsel %vm2812, %v2788, %v2140
        %v2823 = vsel %vm2812, %v2792, %v2141
        %v2824 = vsel %vm2812, %v2796, %v2142
        %v2825 = vsel %vm2812, %v2800, %v2143
        %v2826 = vsel %vm2812, %v2804, %v2144
        %v2827 = vsel %vm2812, %v2808, %v2145
        %vm2828 = vcmask 1044480
        %v2831 = vsel %vm2828, %v2813, %v2210
        %v2835 = vsel %vm2828, %v2814, %v2211
        %v2839 = vsel %vm2828, %v2815, %v2212
        %v2843 = vsel %vm2828, %v2816, %v2213
        %v2847 = vsel %vm2828, %v2817, %v2214
        %v2851 = vsel %vm2828, %v2818, %v2215
        %v2855 = vsel %vm2828, %v2819, %v2216
        %v2859 = vsel %vm2828, %v2820, %v2217
        %v2863 = vsel %vm2828, %v2821, %v2218
        %v2867 = vsel %vm2828, %v2822, %v2219
        %v2871 = vsel %vm2828, %v2823, %v2220
        %v2875 = vsel %vm2828, %v2824, %v2221
        %v2879 = vsel %vm2828, %v2825, %v2222
        %v2883 = vsel %vm2828, %v2826, %v2223
        %v2887 = vsel %vm2828, %v2827, %v2224
        %vm2889 = vcmask 1046528
        %vm2890 = vsmask.f32 6400
        %vm2891 = vmand %vm2889, %vm2890
        %v2892 = vsel %vm2891, %v2831, %v2306
        %v2893 = vsel %vm2891, %v2835, %v2307
        %v2894 = vsel %vm2891, %v2839, %v2308
        %v2895 = vsel %vm2891, %v2843, %v2309
        %v2896 = vsel %vm2891, %v2847, %v2310
        %v2897 = vsel %vm2891, %v2851, %v2311
        %v2898 = vsel %vm2891, %v2855, %v2312
        %v2899 = vsel %vm2891, %v2859, %v2313
        %v2900 = vsel %vm2891, %v2863, %v2314
        %v2901 = vsel %vm2891, %v2867, %v2315
        %v2902 = vsel %vm2891, %v2871, %v2316
        %v2903 = vsel %vm2891, %v2875, %v2317
        %v2904 = vsel %vm2891, %v2879, %v2318
        %v2905 = vsel %vm2891, %v2883, %v2319
        %v2906 = vsel %vm2891, %v2887, %v2320
        %v2908 = vrot.slane %v1373, 6
        %v2909 = vrot.slane %v1355, 7
        %v2910 = vor.u32 %v2908, %v2909
        %2911 = vrot.lane.b32.xlu0 %v2910, 127
        %v2912 = vpop.permute.xlu0 %2911
        %v2913 = vsel %vm1058, %v1057, %v2912
        %v2916 = vrot.slane %v1338, 5
        %2917 = vrot.lane.b32.xlu0 %v2916, 126
        %v2918 = vpop.permute.xlu0 %2917
        %v2919 = vsel %vm1133, %v1132, %v2918
        %v2920 = vrot.slane %v1373, 3
        %v2921 = vrot.slane %v1355, 4
        %v2922 = vor.u32 %v2920, %v2921
        %2923 = vrot.lane.b32.xlu0 %v2922, 125
        %v2924 = vpop.permute.xlu0 %2923
        %v2925 = vsel %vm1223, %v1222, %v2924
        %2928 = vrot.lane.b32.xlu0 %v1260, 97
        %v2929 = vpop.permute.xlu0 %2928
        %2930 = vrot.lane.b32.xlu0 %v1262, 97
        %v2931 = vpop.permute.xlu0 %2930
        %2932 = vrot.lane.b32.xlu0 %v833, 97
        %v2933 = vpop.permute.xlu0 %2932
        %2934 = vrot.lane.b32.xlu0 %v1271, 97
        %v2935 = vpop.permute.xlu0 %2934
        %2936 = vrot.lane.b32.xlu0 %v1270, 97
        %v2937 = vpop.permute.xlu0 %2936
        %2938 = vrot.lane.b32.xlu0 %v1272, 97
        %v2939 = vpop.permute.xlu0 %2938
        %2940 = vrot.lane.b32.xlu0 %v850, 97
        %v2941 = vpop.permute.xlu0 %2940
        %2942 = vrot.lane.b32.xlu0 %v1281, 97
        %v2943 = vpop.permute.xlu0 %2942
        %2944 = vrot.lane.b32.xlu0 %v1280, 97
        %v2945 = vpop.permute.xlu0 %2944
        %2946 = vrot.lane.b32.xlu0 %v1282, 97
        %v2947 = vpop.permute.xlu0 %2946
        %2948 = vrot.lane.b32.xlu0 %v867, 97
        %v2949 = vpop.permute.xlu0 %2948
        %2950 = vrot.lane.b32.xlu0 %v1291, 97
        %v2951 = vpop.permute.xlu0 %2950
        %2952 = vrot.lane.b32.xlu0 %v1290, 97
        %v2953 = vpop.permute.xlu0 %2952
        %2954 = vrot.lane.b32.xlu0 %v1292, 97
        %v2955 = vpop.permute.xlu0 %2954
        %2956 = vrot.lane.b32.xlu0 %v884, 97
        %v2957 = vpop.permute.xlu0 %2956
        %vm2958 = vcmask 793600
        %v2959 = vsel %vm2958, %v2929, %v2931
        %v2960 = vsel %vm2958, %v2931, %v2933
        %v2961 = vsel %vm2958, %v2933, %v2935
        %v2962 = vsel %vm2958, %v2935, %v2937
        %v2963 = vsel %vm2958, %v2937, %v2939
        %v2964 = vsel %vm2958, %v2939, %v2941
        %v2965 = vsel %vm2958, %v2941, %v2943
        %v2966 = vsel %vm2958, %v2943, %v2945
        %v2967 = vsel %vm2958, %v2945, %v2947
        %v2968 = vsel %vm2958, %v2947, %v2949
        %v2969 = vsel %vm2958, %v2949, %v2951
        %v2970 = vsel %vm2958, %v2951, %v2953
        %v2971 = vsel %vm2958, %v2953, %v2955
        %v2972 = vsel %vm2958, %v2955, %v2957
        %v2977 = vsel %vm2338, %v891, %v2913
        %v2978 = vsel %vm2338, %v1338, %v2912
        %v2981 = vsel %vm2354, %v2977, %v2919
        %v2985 = vsel %vm2354, %v2978, %v2918
        %v2987 = vsel %vm2417, %v2981, %v2925
        %v2988 = vsel %vm2417, %v2985, %v2924
        %v2990 = vsel %vm2433, %v2418, %v2929
        %v2993 = vsel %vm2433, %v2419, %v2959
        %v2996 = vsel %vm2433, %v2420, %v2960
        %v2999 = vsel %vm2433, %v2421, %v2961
        %v3002 = vsel %vm2433, %v2422, %v2962
        %v3005 = vsel %vm2433, %v2423, %v2963
        %v3008 = vsel %vm2433, %v2424, %v2964
        %v3011 = vsel %vm2433, %v2425, %v2965
        %v3014 = vsel %vm2433, %v2426, %v2966
        %v3017 = vsel %vm2433, %v2427, %v2967
        %v3020 = vsel %vm2433, %v2428, %v2968
        %v3023 = vsel %vm2433, %v2429, %v2969
        %v3026 = vsel %vm2433, %v2430, %v2970
        %v3029 = vsel %vm2433, %v2431, %v2971
        %v3033 = vsel %vm2433, %v2987, %v2972
        %v3037 = vsel %vm2433, %v2988, %v2957
        %v3039 = vsel %vm2496, %v2990, %v1379
        %v3040 = vsel %vm2496, %v2993, %v1442
        %v3041 = vsel %vm2496, %v2996, %v1443
        %v3042 = vsel %vm2496, %v2999, %v1444
        %v3043 = vsel %vm2496, %v3002, %v1445
        %v3044 = vsel %vm2496, %v3005, %v1446
        %v3045 = vsel %vm2496, %v3008, %v1447
        %v3046 = vsel %vm2496, %v3011, %v1448
        %v3047 = vsel %vm2496, %v3014, %v1449
        %v3048 = vsel %vm2496, %v3017, %v1450
        %v3049 = vsel %vm2496, %v3020, %v1451
        %v3050 = vsel %vm2496, %v3023, %v1452
        %v3051 = vsel %vm2496, %v3026, %v1453
        %v3052 = vsel %vm2496, %v3029, %v1454
        %v3053 = vsel %vm2496, %v3033, %v1455
        %v3054 = vsel %vm2496, %v3037, %v1407
        %v3057 = vsel %vm2512, %v1411, %v1505
        %v3061 = vsel %vm2512, %v1439, %v1533
        %v3063 = vsel %vm2575, %v3057, %v1601
        %v3064 = vsel %vm2575, %v3061, %v1629
        %v3067 = vsel %vm2591, %v3063, %v1668
        %v3070 = vsel %vm2591, %v3064, %v1696
        %3103 = vrot.lane.b32.xlu0 %v3039, 31
        %v3104 = vpop.permute.xlu0 %3103
        %3105 = vrot.lane.b32.xlu0 %v3040, 31
        %v3106 = vpop.permute.xlu0 %3105
        %3107 = vrot.lane.b32.xlu0 %v3041, 31
        %v3108 = vpop.permute.xlu0 %3107
        %3109 = vrot.lane.b32.xlu0 %v3042, 31
        %v3110 = vpop.permute.xlu0 %3109
        %3111 = vrot.lane.b32.xlu0 %v3043, 31
        %v3112 = vpop.permute.xlu0 %3111
        %3113 = vrot.lane.b32.xlu0 %v3044, 31
        %v3114 = vpop.permute.xlu0 %3113
        %3115 = vrot.lane.b32.xlu0 %v3045, 31
        %v3116 = vpop.permute.xlu0 %3115
        %3117 = vrot.lane.b32.xlu0 %v3046, 31
        %v3118 = vpop.permute.xlu0 %3117
        %3119 = vrot.lane.b32.xlu0 %v3047, 31
        %v3120 = vpop.permute.xlu0 %3119
        %3121 = vrot.lane.b32.xlu0 %v3048, 31
        %v3122 = vpop.permute.xlu0 %3121
        %3123 = vrot.lane.b32.xlu0 %v3049, 31
        %v3124 = vpop.permute.xlu0 %3123
        %3125 = vrot.lane.b32.xlu0 %v3050, 31
        %v3126 = vpop.permute.xlu0 %3125
        %3127 = vrot.lane.b32.xlu0 %v3051, 31
        %v3128 = vpop.permute.xlu0 %3127
        %3129 = vrot.lane.b32.xlu0 %v3052, 31
        %v3130 = vpop.permute.xlu0 %3129
        %3131 = vrot.lane.b32.xlu0 %v3053, 31
        %v3132 = vpop.permute.xlu0 %3131
        %3133 = vrot.lane.b32.xlu0 %v3054, 31
        %v3134 = vpop.permute.xlu0 %3133
        %3135 = vrot.lane.b32.xlu0 %v3067, 31
        %v3136 = vpop.permute.xlu0 %3135
        %3137 = vrot.lane.b32.xlu0 %v2598, 31
        %v3138 = vpop.permute.xlu0 %3137
        %3139 = vrot.lane.b32.xlu0 %v2602, 31
        %v3140 = vpop.permute.xlu0 %3139
        %3141 = vrot.lane.b32.xlu0 %v2606, 31
        %v3142 = vpop.permute.xlu0 %3141
        %3143 = vrot.lane.b32.xlu0 %v2610, 31
        %v3144 = vpop.permute.xlu0 %3143
        %3145 = vrot.lane.b32.xlu0 %v2614, 31
        %v3146 = vpop.permute.xlu0 %3145
        %3147 = vrot.lane.b32.xlu0 %v2618, 31
        %v3148 = vpop.permute.xlu0 %3147
        %3149 = vrot.lane.b32.xlu0 %v2622, 31
        %v3150 = vpop.permute.xlu0 %3149
        %3151 = vrot.lane.b32.xlu0 %v2626, 31
        %v3152 = vpop.permute.xlu0 %3151
        %3153 = vrot.lane.b32.xlu0 %v2630, 31
        %v3154 = vpop.permute.xlu0 %3153
        %3155 = vrot.lane.b32.xlu0 %v2634, 31
        %v3156 = vpop.permute.xlu0 %3155
        %3157 = vrot.lane.b32.xlu0 %v2638, 31
        %v3158 = vpop.permute.xlu0 %3157
        %3159 = vrot.lane.b32.xlu0 %v2642, 31
        %v3160 = vpop.permute.xlu0 %3159
        %3161 = vrot.lane.b32.xlu0 %v2646, 31
        %v3162 = vpop.permute.xlu0 %3161
        %3163 = vrot.lane.b32.xlu0 %v2650, 31
        %v3164 = vpop.permute.xlu0 %3163
        %3165 = vrot.lane.b32.xlu0 %v3070, 31
        %v3166 = vpop.permute.xlu0 %3165
        %vm3167 = vcmask 252928
        %v3168 = vsel %vm3167, %v3104, %v3106
        %v3169 = vsel %vm3167, %v3106, %v3108
        %v3170 = vsel %vm3167, %v3108, %v3110
        %v3171 = vsel %vm3167, %v3110, %v3112
        %v3172 = vsel %vm3167, %v3112, %v3114
        %v3173 = vsel %vm3167, %v3114, %v3116
        %v3174 = vsel %vm3167, %v3116, %v3118
        %v3175 = vsel %vm3167, %v3118, %v3120
        %v3176 = vsel %vm3167, %v3120, %v3122
        %v3177 = vsel %vm3167, %v3122, %v3124
        %v3178 = vsel %vm3167, %v3124, %v3126
        %v3179 = vsel %vm3167, %v3126, %v3128
        %v3180 = vsel %vm3167, %v3128, %v3130
        %v3181 = vsel %vm3167, %v3130, %v3132
        %v3182 = vsel %vm3167, %v3132, %v3134
        %v3183 = vsel %vm3167, %v3136, %v3138
        %v3184 = vsel %vm3167, %v3138, %v3140
        %v3185 = vsel %vm3167, %v3140, %v3142
        %v3186 = vsel %vm3167, %v3142, %v3144
        %v3187 = vsel %vm3167, %v3144, %v3146
        %v3188 = vsel %vm3167, %v3146, %v3148
        %v3189 = vsel %vm3167, %v3148, %v3150
        %v3190 = vsel %vm3167, %v3150, %v3152
        %v3191 = vsel %vm3167, %v3152, %v3154
        %v3192 = vsel %vm3167, %v3154, %v3156
        %v3193 = vsel %vm3167, %v3156, %v3158
        %v3194 = vsel %vm3167, %v3158, %v3160
        %v3195 = vsel %vm3167, %v3160, %v3162
        %v3196 = vsel %vm3167, %v3162, %v3164
        %v3197 = vsel %vm3167, %v3164, %v3166
        %3214 = vset.pattern.permute.xlu0 0
        %3215 = vperm.xlu0 %3214, %v314
        %v3216 = vpop.permute.xlu0 %3215
        %vm3218 = vcmask 613376
        %v3220 = vsel %vm3218, %v311, 0
        %v3222 = vsel %vm2828, 4294967295, 65535
        %v3223 = vsel %vm2433, %v3222, 0
        %v3225 = vand.u32 %v3183, %v3223
        %v3228 = vand.u32 %v3184, %v3223
        %v3231 = vand.u32 %v3185, %v3223
        %v3234 = vand.u32 %v3186, %v3223
        %v3237 = vand.u32 %v3187, %v3223
        %v3240 = vand.u32 %v3188, %v3223
        %v3243 = vand.u32 %v3189, %v3223
        %v3246 = vand.u32 %v3190, %v3223
        %v3249 = vand.u32 %v3191, %v3223
        %v3252 = vand.u32 %v3192, %v3223
        %v3255 = vand.u32 %v3193, %v3223
        %v3258 = vand.u32 %v3194, %v3223
        %v3261 = vand.u32 %v3195, %v3223
        %v3264 = vand.u32 %v3196, %v3223
        %v3267 = vand.u32 %v3197, %v3223
        %3269 = vmatprep.subr.bf16.mxu0 %v2498
        %3270 = vmatpush1.bf16.msra.mxu0 %v2497
        %3271 = vmatprep.subr.bf16.mxu0 %v2677
        %3272 = vmatpush1.bf16.msra.mxu0 %v2673
        %3273 = vmatprep.subr.bf16.mxu0 %v2893
        %3274 = vmatpush1.bf16.msra.mxu0 %v2892
        %3275 = vmatprep.subr.bf16.mxu0 %v3169
        %3276 = vmatpush1.bf16.msra.mxu0 %v3168
        %3277 = vmatprep.subr.bf16.mxu0 %v3228
        %3278 = vmatpush1.bf16.msra.mxu0 %v3225
        %3279 = vmatprep.subr.bf16.mxu0 0
        %3280 = vmatpush1.bf16.msra.mxu0 0
        %3281 = vmatprep.subr.bf16.mxu0 0
        %3282 = vmatpush1.bf16.msra.mxu0 0
        %3283 = vmatprep.subr.bf16.mxu0 0
        %3284 = vmatpush1.bf16.msra.mxu0 0
        %3285 = vmatprep.subr.bf16.mxu0 0
        %3286 = vmatpush1.bf16.msra.mxu0 0
        %3287 = vmatprep.subr.bf16.mxu0 0
        %3288 = vmatpush1.bf16.msra.mxu0 0
        %3289 = vmatprep.subr.bf16.mxu0 0
        %3290 = vmatpush1.bf16.msra.mxu0 0
        %3291 = vmatprep.subr.bf16.mxu0 0
        %3292 = vmatpush1.bf16.msra.mxu0 0
        %3293 = vmatprep.subr.bf16.mxu0 0
        %3294 = vmatpush1.bf16.msra.mxu0 0
        %3295 = vmatprep.subr.bf16.mxu0 0
        %3296 = vmatpush1.bf16.msra.mxu0 0
        %3297 = vmatprep.subr.bf16.mxu0 0
        %3298 = vmatpush1.bf16.msra.mxu0 0
        %3299 = vmatprep.subr.bf16.mxu0 0
        %3300 = vmatpush1.bf16.msra.mxu0 0
        %3301 = vmatprep.mubr.bf16.mxu0 0
        %3302 = vmatmul.mubr.bf16.gmra.mrb[0].mxu0 %v3220
        %v3303 = vpop.f32.mrb[0].mxu0
        %v3304 = vadd.f32 %v3216, %v3303
        %v3305 = vpop.f32.mrb[0].mxu0
        %v3306 = vadd.f32 %v3216, %v3305
        %v3307 = vpop.f32.mrb[0].mxu0
        %v3308 = vpop.f32.mrb[0].mxu0
        %3309 = vdwg.mxu0
        %3310 = vmatprep.subr.bf16.mxu0 %v2500
        %3311 = vmatpush1.bf16.msra.mxu0 %v2499
        %3312 = vmatprep.subr.bf16.mxu0 %v2685
        %3313 = vmatpush1.bf16.msra.mxu0 %v2681
        %3314 = vmatprep.subr.bf16.mxu0 %v2895
        %3315 = vmatpush1.bf16.msra.mxu0 %v2894
        %3316 = vmatprep.subr.bf16.mxu0 %v3171
        %3317 = vmatpush1.bf16.msra.mxu0 %v3170
        %3318 = vmatprep.subr.bf16.mxu0 %v3234
        %3319 = vmatpush1.bf16.msra.mxu0 %v3231
        %3320 = vmatprep.subr.bf16.mxu0 0
        %3321 = vmatpush1.bf16.msra.mxu0 0
        %3322 = vmatprep.subr.bf16.mxu0 0
        %3323 = vmatpush1.bf16.msra.mxu0 0
        %3324 = vmatprep.subr.bf16.mxu0 0
        %3325 = vmatpush1.bf16.msra.mxu0 0
        %3326 = vmatprep.subr.bf16.mxu0 0
        %3327 = vmatpush1.bf16.msra.mxu0 0
        %3328 = vmatprep.subr.bf16.mxu0 0
        %3329 = vmatpush1.bf16.msra.mxu0 0
        %3330 = vmatprep.subr.bf16.mxu0 0
        %3331 = vmatpush1.bf16.msra.mxu0 0
        %3332 = vmatprep.subr.bf16.mxu0 0
        %3333 = vmatpush1.bf16.msra.mxu0 0
        %3334 = vmatprep.subr.bf16.mxu0 0
        %3335 = vmatpush1.bf16.msra.mxu0 0
        %3336 = vmatprep.subr.bf16.mxu0 0
        %3337 = vmatpush1.bf16.msra.mxu0 0
        %3338 = vmatprep.subr.bf16.mxu0 0
        %3339 = vmatpush1.bf16.msra.mxu0 0
        %3340 = vmatprep.subr.bf16.mxu0 0
        %3341 = vmatpush1.bf16.msra.mxu0 0
        %3342 = vmatprep.mubr.bf16.mxu0 0
        %3343 = vmatmul.mubr.bf16.gmra.mrb[0].mxu0 %v3220
        %v3344 = vpop.f32.mrb[0].mxu0
        %v3345 = vadd.f32 %v3216, %v3344
        %v3346 = vpop.f32.mrb[0].mxu0
        %v3347 = vadd.f32 %v3216, %v3346
        %v3348 = vpop.f32.mrb[0].mxu0
        %v3349 = vpop.f32.mrb[0].mxu0
        %3350 = vdwg.mxu0
        %3351 = vmatprep.subr.bf16.mxu0 %v2502
        %3352 = vmatpush1.bf16.msra.mxu0 %v2501
        %3353 = vmatprep.subr.bf16.mxu0 %v2693
        %3354 = vmatpush1.bf16.msra.mxu0 %v2689
        %3355 = vmatprep.subr.bf16.mxu0 %v2897
        %3356 = vmatpush1.bf16.msra.mxu0 %v2896
        %3357 = vmatprep.subr.bf16.mxu0 %v3173
        %3358 = vmatpush1.bf16.msra.mxu0 %v3172
        %3359 = vmatprep.subr.bf16.mxu0 %v3240
        %3360 = vmatpush1.bf16.msra.mxu0 %v3237
        %3361 = vmatprep.subr.bf16.mxu0 0
        %3362 = vmatpush1.bf16.msra.mxu0 0
        %3363 = vmatprep.subr.bf16.mxu0 0
        %3364 = vmatpush1.bf16.msra.mxu0 0
        %3365 = vmatprep.subr.bf16.mxu0 0
        %3366 = vmatpush1.bf16.msra.mxu0 0
        %3367 = vmatprep.subr.bf16.mxu0 0
        %3368 = vmatpush1.bf16.msra.mxu0 0
        %3369 = vmatprep.subr.bf16.mxu0 0
        %3370 = vmatpush1.bf16.msra.mxu0 0
        %3371 = vmatprep.subr.bf16.mxu0 0
        %3372 = vmatpush1.bf16.msra.mxu0 0
        %3373 = vmatprep.subr.bf16.mxu0 0
        %3374 = vmatpush1.bf16.msra.mxu0 0
        %3375 = vmatprep.subr.bf16.mxu0 0
        %3376 = vmatpush1.bf16.msra.mxu0 0
        %3377 = vmatprep.subr.bf16.mxu0 0
        %3378 = vmatpush1.bf16.msra.mxu0 0
        %3379 = vmatprep.subr.bf16.mxu0 0
        %3380 = vmatpush1.bf16.msra.mxu0 0
        %3381 = vmatprep.subr.bf16.mxu0 0
        %3382 = vmatpush1.bf16.msra.mxu0 0
        %3383 = vmatprep.mubr.bf16.mxu0 0
        %3384 = vmatmul.mubr.bf16.gmra.mrb[0].mxu0 %v3220
        %v3385 = vpop.f32.mrb[0].mxu0
        %v3386 = vadd.f32 %v3216, %v3385
        %v3387 = vpop.f32.mrb[0].mxu0
        %v3388 = vadd.f32 %v3216, %v3387
        %v3389 = vpop.f32.mrb[0].mxu0
        %v3390 = vpop.f32.mrb[0].mxu0
        %3391 = vdwg.mxu0
        %3392 = vmatprep.subr.bf16.mxu0 %v2504
        %3393 = vmatpush1.bf16.msra.mxu0 %v2503
        %3394 = vmatprep.subr.bf16.mxu0 %v2701
        %3395 = vmatpush1.bf16.msra.mxu0 %v2697
        %3396 = vmatprep.subr.bf16.mxu0 %v2899
        %3397 = vmatpush1.bf16.msra.mxu0 %v2898
        %3398 = vmatprep.subr.bf16.mxu0 %v3175
        %3399 = vmatpush1.bf16.msra.mxu0 %v3174
        %3400 = vmatprep.subr.bf16.mxu0 %v3246
        %3401 = vmatpush1.bf16.msra.mxu0 %v3243
        %3402 = vmatprep.subr.bf16.mxu0 0
        %3403 = vmatpush1.bf16.msra.mxu0 0
        %3404 = vmatprep.subr.bf16.mxu0 0
        %3405 = vmatpush1.bf16.msra.mxu0 0
        %3406 = vmatprep.subr.bf16.mxu0 0
        %3407 = vmatpush1.bf16.msra.mxu0 0
        %3408 = vmatprep.subr.bf16.mxu0 0
        %3409 = vmatpush1.bf16.msra.mxu0 0
        %3410 = vmatprep.subr.bf16.mxu0 0
        %3411 = vmatpush1.bf16.msra.mxu0 0
        %3412 = vmatprep.subr.bf16.mxu0 0
        %3413 = vmatpush1.bf16.msra.mxu0 0
        %3414 = vmatprep.subr.bf16.mxu0 0
        %3415 = vmatpush1.bf16.msra.mxu0 0
        %3416 = vmatprep.subr.bf16.mxu0 0
        %3417 = vmatpush1.bf16.msra.mxu0 0
        %3418 = vmatprep.subr.bf16.mxu0 0
        %3419 = vmatpush1.bf16.msra.mxu0 0
        %3420 = vmatprep.subr.bf16.mxu0 0
        %3421 = vmatpush1.bf16.msra.mxu0 0
        %3422 = vmatprep.subr.bf16.mxu0 0
        %3423 = vmatpush1.bf16.msra.mxu0 0
        %3424 = vmatprep.mubr.bf16.mxu0 0
        %3425 = vmatmul.mubr.bf16.gmra.mrb[0].mxu0 %v3220
        %v3426 = vpop.f32.mrb[0].mxu0
        %v3427 = vadd.f32 %v3216, %v3426
        %v3428 = vpop.f32.mrb[0].mxu0
        %v3429 = vadd.f32 %v3216, %v3428
        %v3430 = vpop.f32.mrb[0].mxu0
        %v3431 = vpop.f32.mrb[0].mxu0
        %3432 = vdwg.mxu0
        %3433 = vmatprep.subr.bf16.mxu0 %v2506
        %3434 = vmatpush1.bf16.msra.mxu0 %v2505
        %3435 = vmatprep.subr.bf16.mxu0 %v2709
        %3436 = vmatpush1.bf16.msra.mxu0 %v2705
        %3437 = vmatprep.subr.bf16.mxu0 %v2901
        %3438 = vmatpush1.bf16.msra.mxu0 %v2900
        %3439 = vmatprep.subr.bf16.mxu0 %v3177
        %3440 = vmatpush1.bf16.msra.mxu0 %v3176
        %3441 = vmatprep.subr.bf16.mxu0 %v3252
        %3442 = vmatpush1.bf16.msra.mxu0 %v3249
        %3443 = vmatprep.subr.bf16.mxu0 0
        %3444 = vmatpush1.bf16.msra.mxu0 0
        %3445 = vmatprep.subr.bf16.mxu0 0
        %3446 = vmatpush1.bf16.msra.mxu0 0
        %3447 = vmatprep.subr.bf16.mxu0 0
        %3448 = vmatpush1.bf16.msra.mxu0 0
        %3449 = vmatprep.subr.bf16.mxu0 0
        %3450 = vmatpush1.bf16.msra.mxu0 0
        %3451 = vmatprep.subr.bf16.mxu0 0
        %3452 = vmatpush1.bf16.msra.mxu0 0
        %3453 = vmatprep.subr.bf16.mxu0 0
        %3454 = vmatpush1.bf16.msra.mxu0 0
        %3455 = vmatprep.subr.bf16.mxu0 0
        %3456 = vmatpush1.bf16.msra.mxu0 0
        %3457 = vmatprep.subr.bf16.mxu0 0
        %3458 = vmatpush1.bf16.msra.mxu0 0
        %3459 = vmatprep.subr.bf16.mxu0 0
        %3460 = vmatpush1.bf16.msra.mxu0 0
        %3461 = vmatprep.subr.bf16.mxu0 0
        %3462 = vmatpush1.bf16.msra.mxu0 0
        %3463 = vmatprep.subr.bf16.mxu0 0
        %3464 = vmatpush1.bf16.msra.mxu0 0
        %3465 = vmatprep.mubr.bf16.mxu0 0
        %3466 = vmatmul.mubr.bf16.gmra.mrb[0].mxu0 %v3220
        %v3467 = vpop.f32.mrb[0].mxu0
        %v3468 = vadd.f32 %v3216, %v3467
        %v3469 = vpop.f32.mrb[0].mxu0
        %v3470 = vadd.f32 %v3216, %v3469
        %v3471 = vpop.f32.mrb[0].mxu0
        %v3472 = vpop.f32.mrb[0].mxu0
        %3473 = vdwg.mxu0
        %3474 = vmatprep.subr.bf16.mxu0 %v2508
        %3475 = vmatpush1.bf16.msra.mxu0 %v2507
        %3476 = vmatprep.subr.bf16.mxu0 %v2717
        %3477 = vmatpush1.bf16.msra.mxu0 %v2713
        %3478 = vmatprep.subr.bf16.mxu0 %v2903
        %3479 = vmatpush1.bf16.msra.mxu0 %v2902
        %3480 = vmatprep.subr.bf16.mxu0 %v3179
        %3481 = vmatpush1.bf16.msra.mxu0 %v3178
        %3482 = vmatprep.subr.bf16.mxu0 %v3258
        %3483 = vmatpush1.bf16.msra.mxu0 %v3255
        %3484 = vmatprep.subr.bf16.mxu0 0
        %3485 = vmatpush1.bf16.msra.mxu0 0
        %3486 = vmatprep.subr.bf16.mxu0 0
        %3487 = vmatpush1.bf16.msra.mxu0 0
        %3488 = vmatprep.subr.bf16.mxu0 0
        %3489 = vmatpush1.bf16.msra.mxu0 0
        %3490 = vmatprep.subr.bf16.mxu0 0
        %3491 = vmatpush1.bf16.msra.mxu0 0
        %3492 = vmatprep.subr.bf16.mxu0 0
        %3493 = vmatpush1.bf16.msra.mxu0 0
        %3494 = vmatprep.subr.bf16.mxu0 0
        %3495 = vmatpush1.bf16.msra.mxu0 0
        %3496 = vmatprep.subr.bf16.mxu0 0
        %3497 = vmatpush1.bf16.msra.mxu0 0
        %3498 = vmatprep.subr.bf16.mxu0 0
        %3499 = vmatpush1.bf16.msra.mxu0 0
        %3500 = vmatprep.subr.bf16.mxu0 0
        %3501 = vmatpush1.bf16.msra.mxu0 0
        %3502 = vmatprep.subr.bf16.mxu0 0
        %3503 = vmatpush1.bf16.msra.mxu0 0
        %3504 = vmatprep.subr.bf16.mxu0 0
        %3505 = vmatpush1.bf16.msra.mxu0 0
        %3506 = vmatprep.mubr.bf16.mxu0 0
        %3507 = vmatmul.mubr.bf16.gmra.mrb[0].mxu0 %v3220
        %v3508 = vpop.f32.mrb[0].mxu0
        %v3509 = vadd.f32 %v3216, %v3508
        %v3510 = vpop.f32.mrb[0].mxu0
        %v3511 = vadd.f32 %v3216, %v3510
        %v3512 = vpop.f32.mrb[0].mxu0
        %v3513 = vpop.f32.mrb[0].mxu0
        %3514 = vdwg.mxu0
        %3515 = vmatprep.subr.bf16.mxu0 %v2510
        %3516 = vmatpush1.bf16.msra.mxu0 %v2509
        %3517 = vmatprep.subr.bf16.mxu0 %v2725
        %3518 = vmatpush1.bf16.msra.mxu0 %v2721
        %3519 = vmatprep.subr.bf16.mxu0 %v2905
        %3520 = vmatpush1.bf16.msra.mxu0 %v2904
        %3521 = vmatprep.subr.bf16.mxu0 %v3181
        %3522 = vmatpush1.bf16.msra.mxu0 %v3180
        %3523 = vmatprep.subr.bf16.mxu0 %v3264
        %3524 = vmatpush1.bf16.msra.mxu0 %v3261
        %3525 = vmatprep.subr.bf16.mxu0 0
        %3526 = vmatpush1.bf16.msra.mxu0 0
        %3527 = vmatprep.subr.bf16.mxu0 0
        %3528 = vmatpush1.bf16.msra.mxu0 0
        %3529 = vmatprep.subr.bf16.mxu0 0
        %3530 = vmatpush1.bf16.msra.mxu0 0
        %3531 = vmatprep.subr.bf16.mxu0 0
        %3532 = vmatpush1.bf16.msra.mxu0 0
        %3533 = vmatprep.subr.bf16.mxu0 0
        %3534 = vmatpush1.bf16.msra.mxu0 0
        %3535 = vmatprep.subr.bf16.mxu0 0
        %3536 = vmatpush1.bf16.msra.mxu0 0
        %3537 = vmatprep.subr.bf16.mxu0 0
        %3538 = vmatpush1.bf16.msra.mxu0 0
        %3539 = vmatprep.subr.bf16.mxu0 0
        %3540 = vmatpush1.bf16.msra.mxu0 0
        %3541 = vmatprep.subr.bf16.mxu0 0
        %3542 = vmatpush1.bf16.msra.mxu0 0
        %3543 = vmatprep.subr.bf16.mxu0 0
        %3544 = vmatpush1.bf16.msra.mxu0 0
        %3545 = vmatprep.subr.bf16.mxu0 0
        %3546 = vmatpush1.bf16.msra.mxu0 0
        %3547 = vmatprep.mubr.bf16.mxu0 0
        %3548 = vmatmul.mubr.bf16.gmra.mrb[0].mxu0 %v3220
        %v3549 = vpop.f32.mrb[0].mxu0
        %v3550 = vadd.f32 %v3216, %v3549
        %v3551 = vpop.f32.mrb[0].mxu0
        %v3552 = vadd.f32 %v3216, %v3551
        %v3553 = vpop.f32.mrb[0].mxu0
        %v3554 = vpop.f32.mrb[0].mxu0
        %3555 = vdwg.mxu0
        %3556 = vmatprep.subr.bf16.mxu0 0
        %3557 = vmatpush1.bf16.msra.mxu0 %v2511
        %3558 = vmatprep.subr.bf16.mxu0 0
        %3559 = vmatpush1.bf16.msra.mxu0 %v2729
        %3560 = vmatprep.subr.bf16.mxu0 0
        %3561 = vmatpush1.bf16.msra.mxu0 %v2906
        %3562 = vmatprep.subr.bf16.mxu0 0
        %3563 = vmatpush1.bf16.msra.mxu0 %v3182
        %3564 = vmatprep.subr.bf16.mxu0 0
        %3565 = vmatpush1.bf16.msra.mxu0 %v3267
        %3566 = vmatprep.subr.bf16.mxu0 0
        %3567 = vmatpush1.bf16.msra.mxu0 0
        %3568 = vmatprep.subr.bf16.mxu0 0
        %3569 = vmatpush1.bf16.msra.mxu0 0
        %3570 = vmatprep.subr.bf16.mxu0 0
        %3571 = vmatpush1.bf16.msra.mxu0 0
        %3572 = vmatprep.subr.bf16.mxu0 0
        %3573 = vmatpush1.bf16.msra.mxu0 0
        %3574 = vmatprep.subr.bf16.mxu0 0
        %3575 = vmatpush1.bf16.msra.mxu0 0
        %3576 = vmatprep.subr.bf16.mxu0 0
        %3577 = vmatpush1.bf16.msra.mxu0 0
        %3578 = vmatprep.subr.bf16.mxu0 0
        %3579 = vmatpush1.bf16.msra.mxu0 0
        %3580 = vmatprep.subr.bf16.mxu0 0
        %3581 = vmatpush1.bf16.msra.mxu0 0
        %3582 = vmatprep.subr.bf16.mxu0 0
        %3583 = vmatpush1.bf16.msra.mxu0 0
        %3584 = vmatprep.subr.bf16.mxu0 0
        %3585 = vmatpush1.bf16.msra.mxu0 0
        %3586 = vmatprep.subr.bf16.mxu0 0
        %3587 = vmatpush1.bf16.msra.mxu0 0
        %3588 = vmatprep.mubr.bf16.mxu0 0
        %3589 = vmatmul.mubr.bf16.gmra.mrb[0].mxu0 %v3220
        %v3590 = vpop.f32.mrb[0].mxu0
        %v3591 = vadd.f32 %v3216, %v3590
        %v3592 = vpop.f32.mrb[0].mxu0
        %v3593 = vpop.f32.mrb[0].mxu0
        %v3594 = vpop.f32.mrb[0].mxu0
        %3595 = vdwg.mxu0
        %v3596 = vmax.f32 %v3304, 0.0
        %v3597 = vmax.f32 %v3306, 0.0
        %v3598 = vmax.f32 %v3345, 0.0
        %v3599 = vmax.f32 %v3347, 0.0
        %v3600 = vmax.f32 %v3386, 0.0
        %v3601 = vmax.f32 %v3388, 0.0
        %v3602 = vmax.f32 %v3427, 0.0
        %v3603 = vmax.f32 %v3429, 0.0
        %v3604 = vmax.f32 %v3468, 0.0
        %v3605 = vmax.f32 %v3470, 0.0
        %v3606 = vmax.f32 %v3509, 0.0
        %v3607 = vmax.f32 %v3511, 0.0
        %v3608 = vmax.f32 %v3550, 0.0
        %v3609 = vmax.f32 %v3552, 0.0
        %v3610 = vmax.f32 %v3591, 0.0
        %3626 = vrot.lane.b32.xlu0 %v3596, 96
        %v3627 = vpop.permute.xlu0 %3626
        %3628 = vrot.lane.b32.xlu0 %v3597, 96
        %v3629 = vpop.permute.xlu0 %3628
        %3630 = vrot.lane.b32.xlu0 %v3598, 96
        %v3631 = vpop.permute.xlu0 %3630
        %3632 = vrot.lane.b32.xlu0 %v3599, 96
        %v3633 = vpop.permute.xlu0 %3632
        %3634 = vrot.lane.b32.xlu0 %v3600, 96
        %v3635 = vpop.permute.xlu0 %3634
        %3636 = vrot.lane.b32.xlu0 %v3601, 96
        %v3637 = vpop.permute.xlu0 %3636
        %3638 = vrot.lane.b32.xlu0 %v3602, 96
        %v3639 = vpop.permute.xlu0 %3638
        %3640 = vrot.lane.b32.xlu0 %v3603, 96
        %v3641 = vpop.permute.xlu0 %3640
        %3642 = vrot.lane.b32.xlu0 %v3604, 96
        %v3643 = vpop.permute.xlu0 %3642
        %3644 = vrot.lane.b32.xlu0 %v3605, 96
        %v3645 = vpop.permute.xlu0 %3644
        %3646 = vrot.lane.b32.xlu0 %v3606, 96
        %v3647 = vpop.permute.xlu0 %3646
        %3648 = vrot.lane.b32.xlu0 %v3607, 96
        %v3649 = vpop.permute.xlu0 %3648
        %3650 = vrot.lane.b32.xlu0 %v3608, 96
        %v3651 = vpop.permute.xlu0 %3650
        %3652 = vrot.lane.b32.xlu0 %v3609, 96
        %v3653 = vpop.permute.xlu0 %3652
        %3654 = vrot.lane.b32.xlu0 %v3610, 96
        %v3655 = vpop.permute.xlu0 %3654
        %vm3656 = vcmask 785408
        %v3657 = vsel %vm3656, %v3627, %v3629
        %v3658 = vsel %vm3656, %v3629, %v3631
        %v3659 = vsel %vm3656, %v3631, %v3633
        %v3660 = vsel %vm3656, %v3633, %v3635
        %v3661 = vsel %vm3656, %v3635, %v3637
        %v3662 = vsel %vm3656, %v3637, %v3639
        %v3663 = vsel %vm3656, %v3639, %v3641
        %v3664 = vsel %vm3656, %v3641, %v3643
        %v3665 = vsel %vm3656, %v3643, %v3645
        %v3666 = vsel %vm3656, %v3645, %v3647
        %v3667 = vsel %vm3656, %v3647, %v3649
        %v3668 = vsel %vm3656, %v3649, %v3651
        %v3669 = vsel %vm3656, %v3651, %v3653
        %v3670 = vsel %vm3656, %v3653, %v3655
        %v3686 = vmax.f32 %v3596, %v3657
        %v3687 = vmax.f32 %v3597, %v3658
        %v3688 = vmax.f32 %v3598, %v3659
        %v3689 = vmax.f32 %v3599, %v3660
        %v3690 = vmax.f32 %v3600, %v3661
        %v3691 = vmax.f32 %v3601, %v3662
        %v3692 = vmax.f32 %v3602, %v3663
        %v3693 = vmax.f32 %v3603, %v3664
        %v3694 = vmax.f32 %v3604, %v3665
        %v3695 = vmax.f32 %v3605, %v3666
        %v3696 = vmax.f32 %v3606, %v3667
        %v3697 = vmax.f32 %v3607, %v3668
        %v3698 = vmax.f32 %v3608, %v3669
        %v3699 = vmax.f32 %v3609, %v3670
        %v3700 = vmax.f32 %v3610, %v3655
        %3716 = vrot.lane.b32.xlu0 %v3686, 127
        %v3717 = vpop.permute.xlu0 %3716
        %3718 = vrot.lane.b32.xlu0 %v3687, 127
        %v3719 = vpop.permute.xlu0 %3718
        %3720 = vrot.lane.b32.xlu0 %v3688, 127
        %v3721 = vpop.permute.xlu0 %3720
        %3722 = vrot.lane.b32.xlu0 %v3689, 127
        %v3723 = vpop.permute.xlu0 %3722
        %3724 = vrot.lane.b32.xlu0 %v3690, 127
        %v3725 = vpop.permute.xlu0 %3724
        %3726 = vrot.lane.b32.xlu0 %v3691, 127
        %v3727 = vpop.permute.xlu0 %3726
        %3728 = vrot.lane.b32.xlu0 %v3692, 127
        %v3729 = vpop.permute.xlu0 %3728
        %3730 = vrot.lane.b32.xlu0 %v3693, 127
        %v3731 = vpop.permute.xlu0 %3730
        %3732 = vrot.lane.b32.xlu0 %v3694, 127
        %v3733 = vpop.permute.xlu0 %3732
        %3734 = vrot.lane.b32.xlu0 %v3695, 127
        %v3735 = vpop.permute.xlu0 %3734
        %3736 = vrot.lane.b32.xlu0 %v3696, 127
        %v3737 = vpop.permute.xlu0 %3736
        %3738 = vrot.lane.b32.xlu0 %v3697, 127
        %v3739 = vpop.permute.xlu0 %3738
        %3740 = vrot.lane.b32.xlu0 %v3698, 127
        %v3741 = vpop.permute.xlu0 %3740
        %3742 = vrot.lane.b32.xlu0 %v3699, 127
        %v3743 = vpop.permute.xlu0 %3742
        %3744 = vrot.lane.b32.xlu0 %v3700, 127
        %v3745 = vpop.permute.xlu0 %3744
        %vm3746 = vcmask 1039360
        %v3747 = vsel %vm3746, %v3717, %v3719
        %v3748 = vsel %vm3746, %v3719, %v3721
        %v3749 = vsel %vm3746, %v3721, %v3723
        %v3750 = vsel %vm3746, %v3723, %v3725
        %v3751 = vsel %vm3746, %v3725, %v3727
        %v3752 = vsel %vm3746, %v3727, %v3729
        %v3753 = vsel %vm3746, %v3729, %v3731
        %v3754 = vsel %vm3746, %v3731, %v3733
        %v3755 = vsel %vm3746, %v3733, %v3735
        %v3756 = vsel %vm3746, %v3735, %v3737
        %v3757 = vsel %vm3746, %v3737, %v3739
        %v3758 = vsel %vm3746, %v3739, %v3741
        %v3759 = vsel %vm3746, %v3741, %v3743
        %v3760 = vsel %vm3746, %v3743, %v3745
        %v3776 = vmax.f32 %v3686, %v3747
        %v3777 = vmax.f32 %v3687, %v3748
        %v3778 = vmax.f32 %v3688, %v3749
        %v3779 = vmax.f32 %v3689, %v3750
        %v3780 = vmax.f32 %v3690, %v3751
        %v3781 = vmax.f32 %v3691, %v3752
        %v3782 = vmax.f32 %v3692, %v3753
        %v3783 = vmax.f32 %v3693, %v3754
        %v3784 = vmax.f32 %v3694, %v3755
        %v3785 = vmax.f32 %v3695, %v3756
        %v3786 = vmax.f32 %v3696, %v3757
        %v3787 = vmax.f32 %v3697, %v3758
        %v3788 = vmax.f32 %v3698, %v3759
        %v3789 = vmax.f32 %v3699, %v3760
        %v3790 = vmax.f32 %v3700, %v3745
        %v3791 = vpack.c.bf16 %v3776, %v3776
        %v3792 = vpack.c.bf16 %v3777, %v3777
        %v3793 = vpack.c.bf16 %v3778, %v3778
        %v3794 = vpack.c.bf16 %v3779, %v3779
        %v3795 = vpack.c.bf16 %v3780, %v3780
        %v3796 = vpack.c.bf16 %v3781, %v3781
        %v3797 = vpack.c.bf16 %v3782, %v3782
        %v3798 = vpack.c.bf16 %v3783, %v3783
        %v3799 = vpack.c.bf16 %v3784, %v3784
        %v3800 = vpack.c.bf16 %v3785, %v3785
        %v3801 = vpack.c.bf16 %v3786, %v3786
        %v3802 = vpack.c.bf16 %v3787, %v3787
        %v3803 = vpack.c.bf16 %v3788, %v3788
        %v3804 = vpack.c.bf16 %v3789, %v3789
        %v3805 = vpack.c.bf16 %v3790, %v3790
        %v4278 = vunpack.c.l.b16 %v350
        %v4279 = vunpack.c.h.b16 %v350
        %v4280 = vunpack.c.l.b16 %v351
        %v4281 = vunpack.c.h.b16 %v351
        %v4282 = vunpack.c.l.b16 %v352
        %v4283 = vunpack.c.h.b16 %v352
        %v4284 = vunpack.c.l.b16 %v353
        %v4285 = vunpack.c.h.b16 %v353
        %v4286 = vunpack.c.l.b16 %v354
        %v4287 = vunpack.c.h.b16 %v354
        %v4288 = vunpack.c.l.b16 %v355
        %v4289 = vunpack.c.h.b16 %v355
        %v4290 = vunpack.c.l.b16 %v356
        %v4291 = vunpack.c.h.b16 %v356
        %v4292 = vunpack.c.l.b16 %v357
        %v4293 = vunpack.c.h.b16 %v357
        %v4294 = vunpack.c.l.b16 %v358
        %v4295 = vunpack.c.h.b16 %v358
        %v4296 = vunpack.c.l.b16 %v359
        %v4297 = vunpack.c.h.b16 %v359
        %v4298 = vunpack.c.l.b16 %v360
        %v4299 = vunpack.c.h.b16 %v360
        %v4300 = vunpack.c.l.b16 %v361
        %v4301 = vunpack.c.h.b16 %v361
        %v4302 = vunpack.c.l.b16 %v362
        %v4303 = vunpack.c.h.b16 %v362
        %v4304 = vunpack.c.l.b16 %v363
        %v4305 = vunpack.c.h.b16 %v363
        %v4306 = vunpack.c.l.b16 %v364
        %v4307 = vunpack.c.h.b16 %v364
        %v4308 = vunpack.c.l.b16 %v365
        %v4309 = vunpack.c.h.b16 %v365
        %v4310 = vunpack.c.l.b16 %v366
        %v4311 = vunpack.c.h.b16 %v366
        %v4312 = vunpack.c.l.b16 %v367
        %v4313 = vunpack.c.h.b16 %v367
        %v4314 = vunpack.c.l.b16 %v368
        %v4315 = vunpack.c.h.b16 %v368
        %v4316 = vunpack.c.l.b16 %v369
        %v4317 = vunpack.c.h.b16 %v369
        %v4318 = vunpack.c.l.b16 %v370
        %v4319 = vunpack.c.h.b16 %v370
        %v4320 = vunpack.c.l.b16 %v371
        %v4321 = vunpack.c.h.b16 %v371
        %v4322 = vunpack.c.l.b16 %v372
        %v4323 = vunpack.c.h.b16 %v372
        %v4324 = vunpack.c.l.b16 %v373
        %v4325 = vunpack.c.h.b16 %v373
        %v4326 = vunpack.c.l.b16 %v374
        %v4327 = vunpack.c.h.b16 %v374
        %v4328 = vunpack.c.l.b16 %v375
        %v4329 = vunpack.c.h.b16 %v375
        %v4330 = vunpack.c.l.b16 %v376
        %v4331 = vunpack.c.h.b16 %v376
        %v4332 = vunpack.c.l.b16 %v377
        %v4333 = vunpack.c.h.b16 %v377
        %v4334 = vunpack.c.l.b16 %v378
        %v4335 = vunpack.c.h.b16 %v378
        %v4336 = vunpack.c.l.b16 %v379
        %v4337 = vunpack.c.h.b16 %v379
        %v4338 = vunpack.c.l.b16 %v380
        %v4339 = vunpack.c.h.b16 %v380
        %v4340 = vunpack.c.l.b16 %v381
        %v4341 = vunpack.c.h.b16 %v381
        %v4342 = vunpack.c.l.b16 %v382
        %v4343 = vunpack.c.h.b16 %v382
        %v4344 = vunpack.c.l.b16 %v383
        %v4345 = vunpack.c.h.b16 %v383
        %v4346 = vunpack.c.l.b16 %v384
        %v4347 = vunpack.c.h.b16 %v384
        %v4348 = vunpack.c.l.b16 %v385
        %v4349 = vunpack.c.h.b16 %v385
        %v4350 = vunpack.c.l.b16 %v386
        %v4351 = vunpack.c.h.b16 %v386
        %v4352 = vunpack.c.l.b16 %v387
        %v4353 = vunpack.c.h.b16 %v387
        %v4354 = vunpack.c.l.b16 %v388
        %v4355 = vunpack.c.h.b16 %v388
        %v4356 = vunpack.c.l.b16 %v389
        %v4357 = vunpack.c.h.b16 %v389
        %v4358 = vunpack.c.l.b16 %v390
        %v4359 = vunpack.c.h.b16 %v390
        %v4360 = vunpack.c.l.b16 %v391
        %v4361 = vunpack.c.h.b16 %v391
        %v4362 = vunpack.c.l.b16 %v392
        %v4363 = vunpack.c.h.b16 %v392
        %v4364 = vunpack.c.l.b16 %v393
        %v4365 = vunpack.c.h.b16 %v393
        %v4366 = vunpack.c.l.b16 %v394
        %v4367 = vunpack.c.h.b16 %v394
        %v4368 = vunpack.c.l.b16 %v395
        %v4369 = vunpack.c.h.b16 %v395
        %v4370 = vunpack.c.l.b16 %v396
        %v4371 = vunpack.c.h.b16 %v396
        %v4372 = vunpack.c.l.b16 %v397
        %v4373 = vunpack.c.h.b16 %v397
        %v4374 = vunpack.c.l.b16 %v398
        %v4375 = vunpack.c.h.b16 %v398
        %v4376 = vunpack.c.l.b16 %v399
        %v4377 = vunpack.c.h.b16 %v399
        %v4378 = vunpack.c.l.b16 %v400
        %v4379 = vunpack.c.h.b16 %v400
        %v4380 = vunpack.c.l.b16 %v401
        %v4381 = vunpack.c.h.b16 %v401
        %v4382 = vunpack.c.l.b16 %v402
        %v4383 = vunpack.c.h.b16 %v402
        %v4384 = vunpack.c.l.b16 %v403
        %v4385 = vunpack.c.h.b16 %v403
        %v4386 = vunpack.c.l.b16 %v404
        %v4387 = vunpack.c.h.b16 %v404
        %v4388 = vunpack.c.l.b16 %v405
        %v4389 = vunpack.c.h.b16 %v405
        %v4390 = vunpack.c.l.b16 %v406
        %v4391 = vunpack.c.h.b16 %v406
        %v4392 = vunpack.c.l.b16 %v407
        %v4393 = vunpack.c.h.b16 %v407
        %v4394 = vunpack.c.l.b16 %v408
        %v4395 = vunpack.c.h.b16 %v408
        %v4396 = vunpack.c.l.b16 %v409
        %v4397 = vunpack.c.h.b16 %v409
        %v4398 = vunpack.c.l.b16 %v410
        %v4399 = vunpack.c.h.b16 %v410
        %v4400 = vunpack.c.l.b16 %v411
        %v4401 = vunpack.c.h.b16 %v411
        %v4402 = vunpack.c.l.b16 %v412
        %v4403 = vunpack.c.h.b16 %v412
        %v4404 = vunpack.c.l.b16 %v413
        %v4405 = vunpack.c.h.b16 %v413
        %v4406 = vunpack.c.l.b16 %v414
        %v4407 = vunpack.c.h.b16 %v414
        %v4408 = vunpack.c.l.b16 %v415
        %v4409 = vunpack.c.h.b16 %v415
        %v4410 = vunpack.c.l.b16 %v416
        %v4411 = vunpack.c.h.b16 %v416
        %v4412 = vunpack.c.l.b16 %v417
        %v4413 = vunpack.c.h.b16 %v417
        %v4414 = vunpack.c.l.b16 %v418
        %v4415 = vunpack.c.h.b16 %v418
        %v4416 = vunpack.c.l.b16 %v419
        %v4417 = vunpack.c.h.b16 %v419
        %v4418 = vunpack.c.l.b16 %v420
        %v4419 = vunpack.c.h.b16 %v420
        %v4420 = vunpack.c.l.b16 %v421
        %v4421 = vunpack.c.h.b16 %v421
        %v4422 = vunpack.c.l.b16 %v422
        %v4423 = vunpack.c.h.b16 %v422
        %v4424 = vunpack.c.l.b16 %v423
        %v4425 = vunpack.c.h.b16 %v423
        %v4426 = vunpack.c.l.b16 %v424
        %v4427 = vunpack.c.h.b16 %v424
        %v4428 = vunpack.c.l.b16 %v425
        %v4429 = vunpack.c.h.b16 %v425
        %v4430 = vunpack.c.l.b16 %v426
        %v4431 = vunpack.c.h.b16 %v426
        %v4432 = vunpack.c.l.b16 %v427
        %v4433 = vunpack.c.h.b16 %v427
        %v4434 = vunpack.c.l.b16 %v428
        %v4435 = vunpack.c.h.b16 %v428
        %v4436 = vunpack.c.l.b16 %v429
        %v4437 = vunpack.c.h.b16 %v429
        %v4438 = vunpack.c.l.b16 %v430
        %v4439 = vunpack.c.h.b16 %v430
        %v4440 = vunpack.c.l.b16 %v431
        %v4441 = vunpack.c.h.b16 %v431
        %v4442 = vunpack.c.l.b16 %v432
        %v4443 = vunpack.c.h.b16 %v432
        %v4444 = vunpack.c.l.b16 %v433
        %v4445 = vunpack.c.h.b16 %v433
        %v4446 = vunpack.c.l.b16 %v434
        %v4447 = vunpack.c.h.b16 %v434
        %v4448 = vunpack.c.l.b16 %v435
        %v4449 = vunpack.c.h.b16 %v435
        %v4450 = vunpack.c.l.b16 %v436
        %v4451 = vunpack.c.h.b16 %v436
        %v4452 = vunpack.c.l.b16 %v437
        %v4453 = vunpack.c.h.b16 %v437
        %v4454 = vunpack.c.l.b16 %v438
        %v4455 = vunpack.c.h.b16 %v438
        %v4456 = vunpack.c.l.b16 %v439
        %v4457 = vunpack.c.h.b16 %v439
        %v4458 = vunpack.c.l.b16 %v440
        %v4459 = vunpack.c.h.b16 %v440
        %v4460 = vunpack.c.l.b16 %v441
        %v4461 = vunpack.c.h.b16 %v441
        %v4462 = vunpack.c.l.b16 %v442
        %v4463 = vunpack.c.h.b16 %v442
        %v4464 = vunpack.c.l.b16 %v443
        %v4465 = vunpack.c.h.b16 %v443
        %v4466 = vunpack.c.l.b16 %v444
        %v4467 = vunpack.c.h.b16 %v444
        %v4468 = vunpack.c.l.b16 %v445
        %v4469 = vunpack.c.h.b16 %v445
        %v4470 = vunpack.c.l.b16 %v446
        %v4471 = vunpack.c.h.b16 %v446
        %v4472 = vunpack.c.l.b16 %v447
        %v4473 = vunpack.c.h.b16 %v447
        %v4474 = vunpack.c.l.b16 %v448
        %v4475 = vunpack.c.h.b16 %v448
        %v4476 = vunpack.c.l.b16 %v449
        %v4477 = vunpack.c.h.b16 %v449
        %v4478 = vunpack.c.l.b16 %v450
        %v4479 = vunpack.c.h.b16 %v450
        %v4480 = vunpack.c.l.b16 %v451
        %v4481 = vunpack.c.h.b16 %v451
        %v4482 = vunpack.c.l.b16 %v452
        %v4483 = vunpack.c.h.b16 %v452
        %v4484 = vunpack.c.l.b16 %v453
        %v4485 = vunpack.c.h.b16 %v453
        %v4486 = vunpack.c.l.b16 %v454
        %v4487 = vunpack.c.h.b16 %v454
        %v4488 = vunpack.c.l.b16 %v455
        %v4489 = vunpack.c.h.b16 %v455
        %v4490 = vunpack.c.l.b16 %v456
        %v4491 = vunpack.c.h.b16 %v456
        %v4492 = vunpack.c.l.b16 %v457
        %v4493 = vunpack.c.h.b16 %v457
        %v4494 = vunpack.c.l.b16 %v458
        %v4495 = vunpack.c.h.b16 %v458
        %v4496 = vunpack.c.l.b16 %v459
        %v4497 = vunpack.c.h.b16 %v459
        %v4498 = vunpack.c.l.b16 %v460
        %v4499 = vunpack.c.h.b16 %v460
        %v4500 = vunpack.c.l.b16 %v461
        %v4501 = vunpack.c.h.b16 %v461
        %v4502 = vunpack.c.l.b16 %v462
        %v4503 = vunpack.c.h.b16 %v462
        %v4504 = vunpack.c.l.b16 %v463
        %v4505 = vunpack.c.h.b16 %v463
        %v4506 = vunpack.c.l.b16 %v464
        %v4507 = vunpack.c.h.b16 %v464
        %v4508 = vunpack.c.l.b16 %v465
        %v4509 = vunpack.c.h.b16 %v465
        %v4510 = vunpack.c.l.b16 %v466
        %v4511 = vunpack.c.h.b16 %v466
        %v4512 = vunpack.c.l.b16 %v467
        %v4513 = vunpack.c.h.b16 %v467
        %v4514 = vunpack.c.l.b16 %v468
        %v4515 = vunpack.c.h.b16 %v468
        %v4516 = vunpack.c.l.b16 %v469
        %v4517 = vunpack.c.h.b16 %v469
        %v4518 = vunpack.c.l.b16 %v470
        %v4519 = vunpack.c.h.b16 %v470
        %v4520 = vunpack.c.l.b16 %v471
        %v4521 = vunpack.c.h.b16 %v471
        %v4522 = vunpack.c.l.b16 %v472
        %v4523 = vunpack.c.h.b16 %v472
        %v4524 = vunpack.c.l.b16 %v473
        %v4525 = vunpack.c.h.b16 %v473
        %v4526 = vunpack.c.l.b16 %v474
        %v4527 = vunpack.c.h.b16 %v474
        %v4528 = vunpack.c.l.b16 %v475
        %v4529 = vunpack.c.h.b16 %v475
        %v4530 = vunpack.c.l.b16 %v476
        %v4531 = vunpack.c.h.b16 %v476
        %v4532 = vunpack.c.l.b16 %v477
        %v4533 = vunpack.c.h.b16 %v477
        %v4534 = vunpack.c.l.b16 %v478
        %v4535 = vunpack.c.h.b16 %v478
        %v4536 = vunpack.c.l.b16 %v479
        %v4537 = vunpack.c.h.b16 %v479
        %v4538 = vunpack.c.l.b16 %v480
        %v4539 = vunpack.c.h.b16 %v480
        %v4540 = vunpack.c.l.b16 %v481
        %v4541 = vunpack.c.h.b16 %v481
        %v4542 = vunpack.c.l.b16 %v482
        %v4543 = vunpack.c.h.b16 %v482
        %v4544 = vunpack.c.l.b16 %v483
        %v4545 = vunpack.c.h.b16 %v483
        %v4546 = vunpack.c.l.b16 %v484
        %v4547 = vunpack.c.h.b16 %v484
        %v4548 = vunpack.c.l.b16 %v485
        %v4549 = vunpack.c.h.b16 %v485
        %v4550 = vunpack.c.l.b16 %v486
        %v4551 = vunpack.c.h.b16 %v486
        %v4552 = vunpack.c.l.b16 %v487
        %v4553 = vunpack.c.h.b16 %v487
        %v4554 = vunpack.c.l.b16 %v488
        %v4555 = vunpack.c.h.b16 %v488
        %v4556 = vunpack.c.l.b16 %v489
        %v4557 = vunpack.c.h.b16 %v489
        %v4558 = vunpack.c.l.b16 %v490
        %v4559 = vunpack.c.h.b16 %v490
        %v4560 = vunpack.c.l.b16 %v491
        %v4561 = vunpack.c.h.b16 %v491
        %v4562 = vunpack.c.l.b16 %v492
        %v4563 = vunpack.c.h.b16 %v492
        %v4564 = vunpack.c.l.b16 %v493
        %v4565 = vunpack.c.h.b16 %v493
        %v4566 = vunpack.c.l.b16 %v494
        %v4567 = vunpack.c.h.b16 %v494
        %v4568 = vunpack.c.l.b16 %v495
        %v4569 = vunpack.c.h.b16 %v495
        %v4570 = vunpack.c.l.b16 %v496
        %v4571 = vunpack.c.h.b16 %v496
        %v4572 = vunpack.c.l.b16 %v497
        %v4573 = vunpack.c.h.b16 %v497
        %v4574 = vunpack.c.l.b16 %v498
        %v4575 = vunpack.c.h.b16 %v498
        %v4576 = vunpack.c.l.b16 %v499
        %v4577 = vunpack.c.h.b16 %v499
        %v4578 = vunpack.c.l.b16 %v500
        %v4579 = vunpack.c.h.b16 %v500
        %v4580 = vunpack.c.l.b16 %v501
        %v4581 = vunpack.c.h.b16 %v501
        %v4582 = vunpack.c.l.b16 %v502
        %v4583 = vunpack.c.h.b16 %v502
        %v4584 = vunpack.c.l.b16 %v503
        %v4585 = vunpack.c.h.b16 %v503
        %v4586 = vunpack.c.l.b16 %v504
        %v4587 = vunpack.c.h.b16 %v504
        %v4588 = vunpack.c.l.b16 %v505
        %v4589 = vunpack.c.h.b16 %v505
        %v4590 = vunpack.c.l.b16 %v506
        %v4591 = vunpack.c.h.b16 %v506
        %v4592 = vunpack.c.l.b16 %v507
        %v4593 = vunpack.c.h.b16 %v507
        %v4594 = vunpack.c.l.b16 %v508
        %v4595 = vunpack.c.h.b16 %v508
        %v4596 = vunpack.c.l.b16 %v509
        %v4597 = vunpack.c.h.b16 %v509
        %v4598 = vunpack.c.l.b16 %v510
        %v4599 = vunpack.c.h.b16 %v510
        %v4600 = vunpack.c.l.b16 %v511
        %v4601 = vunpack.c.h.b16 %v511
        %v4602 = vunpack.c.l.b16 %v512
        %v4603 = vunpack.c.h.b16 %v512
        %v4604 = vunpack.c.l.b16 %v513
        %v4605 = vunpack.c.h.b16 %v513
        %v4606 = vunpack.c.l.b16 %v514
        %v4607 = vunpack.c.h.b16 %v514
        %v4608 = vunpack.c.l.b16 %v515
        %v4609 = vunpack.c.h.b16 %v515
        %v4610 = vunpack.c.l.b16 %v516
        %v4611 = vunpack.c.h.b16 %v516
        %v4612 = vunpack.c.l.b16 %v517
        %v4613 = vunpack.c.h.b16 %v517
        %v4614 = vunpack.c.l.b16 %v518
        %v4615 = vunpack.c.h.b16 %v518
        %v4616 = vunpack.c.l.b16 %v519
        %v4617 = vunpack.c.h.b16 %v519
        %v4618 = vunpack.c.l.b16 %v520
        %v4619 = vunpack.c.h.b16 %v520
        %v4620 = vunpack.c.l.b16 %v521
        %v4621 = vunpack.c.h.b16 %v521
        %v4622 = vunpack.c.l.b16 %v522
        %v4623 = vunpack.c.h.b16 %v522
        %v4624 = vunpack.c.l.b16 %v523
        %v4625 = vunpack.c.h.b16 %v523
        %v4626 = vunpack.c.l.b16 %v524
        %v4627 = vunpack.c.h.b16 %v524
        %v4628 = vunpack.c.l.b16 %v525
        %v4629 = vunpack.c.h.b16 %v525
        %v4630 = vunpack.c.l.b16 %v526
        %v4631 = vunpack.c.h.b16 %v526
        %v4632 = vunpack.c.l.b16 %v527
        %v4633 = vunpack.c.h.b16 %v527
        %v4634 = vunpack.c.l.b16 %v528
        %v4635 = vunpack.c.h.b16 %v528
        %v4636 = vunpack.c.l.b16 %v529
        %v4637 = vunpack.c.h.b16 %v529
        %v4638 = vunpack.c.l.b16 %v530
        %v4639 = vunpack.c.h.b16 %v530
        %v4640 = vunpack.c.l.b16 %v531
        %v4641 = vunpack.c.h.b16 %v531
        %v4642 = vunpack.c.l.b16 %v532
        %v4643 = vunpack.c.h.b16 %v532
        %v4644 = vunpack.c.l.b16 %v533
        %v4645 = vunpack.c.h.b16 %v533
        %v4646 = vunpack.c.l.b16 %v534
        %v4647 = vunpack.c.h.b16 %v534
        %v4648 = vunpack.c.l.b16 %v535
        %v4649 = vunpack.c.h.b16 %v535
        %v4650 = vunpack.c.l.b16 %v536
        %v4651 = vunpack.c.h.b16 %v536
        %v4652 = vunpack.c.l.b16 %v537
        %v4653 = vunpack.c.h.b16 %v537
        %v4654 = vunpack.c.l.b16 %v538
        %v4655 = vunpack.c.h.b16 %v538
        %v4656 = vunpack.c.l.b16 %v539
        %v4657 = vunpack.c.h.b16 %v539
        %v4658 = vunpack.c.l.b16 %v540
        %v4659 = vunpack.c.h.b16 %v540
        %v4660 = vunpack.c.l.b16 %v541
        %v4661 = vunpack.c.h.b16 %v541
        %v4662 = vunpack.c.l.b16 %v542
        %v4663 = vunpack.c.h.b16 %v542
        %v4664 = vunpack.c.l.b16 %v543
        %v4665 = vunpack.c.h.b16 %v543
        %v4666 = vunpack.c.l.b16 %v544
        %v4667 = vunpack.c.h.b16 %v544
        %v4668 = vunpack.c.l.b16 %v545
        %v4669 = vunpack.c.h.b16 %v545
        %v4670 = vunpack.c.l.b16 %v546
        %v4671 = vunpack.c.h.b16 %v546
        %v4672 = vunpack.c.l.b16 %v547
        %v4673 = vunpack.c.h.b16 %v547
        %v4674 = vunpack.c.l.b16 %v548
        %v4675 = vunpack.c.h.b16 %v548
        %v4676 = vunpack.c.l.b16 %v549
        %v4677 = vunpack.c.h.b16 %v549
        %v4678 = vunpack.c.l.b16 %v550
        %v4679 = vunpack.c.h.b16 %v550
        %v4680 = vunpack.c.l.b16 %v551
        %v4681 = vunpack.c.h.b16 %v551
        %v4682 = vunpack.c.l.b16 %v552
        %v4683 = vunpack.c.h.b16 %v552
        %v4684 = vunpack.c.l.b16 %v553
        %v4685 = vunpack.c.h.b16 %v553
        %v4686 = vunpack.c.l.b16 %v554
        %v4687 = vunpack.c.h.b16 %v554
        %v4688 = vunpack.c.l.b16 %v555
        %v4689 = vunpack.c.h.b16 %v555
        %v4690 = vunpack.c.l.b16 %v556
        %v4691 = vunpack.c.h.b16 %v556
        %v4692 = vunpack.c.l.b16 %v557
        %v4693 = vunpack.c.h.b16 %v557
        %v4694 = vunpack.c.l.b16 %v558
        %v4695 = vunpack.c.h.b16 %v558
        %v4696 = vunpack.c.l.b16 %v559
        %v4697 = vunpack.c.h.b16 %v559
        %v4698 = vunpack.c.l.b16 %v560
        %v4699 = vunpack.c.h.b16 %v560
        %v4700 = vunpack.c.l.b16 %v561
        %v4701 = vunpack.c.h.b16 %v561
        %v4702 = vunpack.c.l.b16 %v562
        %v4703 = vunpack.c.h.b16 %v562
        %v4704 = vunpack.c.l.b16 %v563
        %v4705 = vunpack.c.h.b16 %v563
        %v4706 = vunpack.c.l.b16 %v564
        %v4707 = vunpack.c.h.b16 %v564
        %v4708 = vunpack.c.l.b16 %v565
        %v4709 = vunpack.c.h.b16 %v565
        %v4710 = vunpack.c.l.b16 %v566
        %v4711 = vunpack.c.h.b16 %v566
        %v4712 = vunpack.c.l.b16 %v567
        %v4713 = vunpack.c.h.b16 %v567
        %v4714 = vunpack.c.l.b16 %v568
        %v4715 = vunpack.c.h.b16 %v568
        %v4716 = vunpack.c.l.b16 %v569
        %v4717 = vunpack.c.h.b16 %v569
        %v4718 = vunpack.c.l.b16 %v570
        %v4719 = vunpack.c.h.b16 %v570
        %v4720 = vunpack.c.l.b16 %v571
        %v4721 = vunpack.c.h.b16 %v571
        %v4722 = vunpack.c.l.b16 %v572
        %v4723 = vunpack.c.h.b16 %v572
        %v4724 = vunpack.c.l.b16 %v573
        %v4725 = vunpack.c.h.b16 %v573
        %v4726 = vunpack.c.l.b16 %v574
        %v4727 = vunpack.c.h.b16 %v574
        %v4728 = vunpack.c.l.b16 %v575
        %v4729 = vunpack.c.h.b16 %v575
        %v4730 = vunpack.c.l.b16 %v576
        %v4731 = vunpack.c.h.b16 %v576
        %v4732 = vunpack.c.l.b16 %v577
        %v4733 = vunpack.c.h.b16 %v577
        %v4734 = vunpack.c.l.b16 %v578
        %v4735 = vunpack.c.h.b16 %v578
        %v4736 = vunpack.c.l.b16 %v579
        %v4737 = vunpack.c.h.b16 %v579
        %v4738 = vunpack.c.l.b16 %v580
        %v4739 = vunpack.c.h.b16 %v580
        %v4740 = vunpack.c.l.b16 %v581
        %v4741 = vunpack.c.h.b16 %v581
        %v4742 = vunpack.c.l.b16 %v582
        %v4743 = vunpack.c.h.b16 %v582
        %v4744 = vunpack.c.l.b16 %v583
        %v4745 = vunpack.c.h.b16 %v583
        %v4746 = vunpack.c.l.b16 %v584
        %v4747 = vunpack.c.h.b16 %v584
        %v4748 = vunpack.c.l.b16 %v585
        %v4749 = vunpack.c.h.b16 %v585
        %v4750 = vunpack.c.l.b16 %v586
        %v4751 = vunpack.c.h.b16 %v586
        %v4752 = vunpack.c.l.b16 %v587
        %v4753 = vunpack.c.h.b16 %v587
        %v4754 = vunpack.c.l.b16 %v588
        %v4755 = vunpack.c.h.b16 %v588
        %v4756 = vunpack.c.l.b16 %v589
        %v4757 = vunpack.c.h.b16 %v589
        %v4758 = vunpack.c.l.b16 %v590
        %v4759 = vunpack.c.h.b16 %v590
        %v4760 = vunpack.c.l.b16 %v591
        %v4761 = vunpack.c.h.b16 %v591
        %v4762 = vunpack.c.l.b16 %v592
        %v4763 = vunpack.c.h.b16 %v592
        %v4764 = vunpack.c.l.b16 %v593
        %v4765 = vunpack.c.h.b16 %v593
        %v4766 = vunpack.c.l.b16 %v594
        %v4767 = vunpack.c.h.b16 %v594
        %v4768 = vunpack.c.l.b16 %v595
        %v4769 = vunpack.c.h.b16 %v595
        %v4770 = vunpack.c.l.b16 %v596
        %v4771 = vunpack.c.h.b16 %v596
        %v4772 = vunpack.c.l.b16 %v597
        %v4773 = vunpack.c.h.b16 %v597
        %v4774 = vunpack.c.l.b16 %v598
        %v4775 = vunpack.c.h.b16 %v598
        %v4776 = vunpack.c.l.b16 %v599
        %v4777 = vunpack.c.h.b16 %v599
        %v4778 = vunpack.c.l.b16 %v600
        %v4779 = vunpack.c.h.b16 %v600
        %v4780 = vunpack.c.l.b16 %v601
        %v4781 = vunpack.c.h.b16 %v601
        %v4782 = vunpack.c.l.b16 %v602
        %v4783 = vunpack.c.h.b16 %v602
        %v4784 = vunpack.c.l.b16 %v603
        %v4785 = vunpack.c.h.b16 %v603
        %v4786 = vunpack.c.l.b16 %v604
        %v4787 = vunpack.c.h.b16 %v604
        %v4788 = vunpack.c.l.b16 %v605
        %v4789 = vunpack.c.h.b16 %v605
        %v4790 = vunpack.c.l.b16 %v606
        %v4791 = vunpack.c.h.b16 %v606
        %v4792 = vunpack.c.l.b16 %v607
        %v4793 = vunpack.c.h.b16 %v607
        %v4794 = vunpack.c.l.b16 %v608
        %v4795 = vunpack.c.h.b16 %v608
        %v4796 = vunpack.c.l.b16 %v609
        %v4797 = vunpack.c.h.b16 %v609
        %v4798 = vunpack.c.l.b16 %v610
        %v4799 = vunpack.c.h.b16 %v610
        %v4800 = vunpack.c.l.b16 %v611
        %v4801 = vunpack.c.h.b16 %v611
        %v4802 = vunpack.c.l.b16 %v612
        %v4803 = vunpack.c.h.b16 %v612
        %v4804 = vunpack.c.l.b16 %v613
        %v4805 = vunpack.c.h.b16 %v613
        %v4806 = vunpack.c.l.b16 %v614
        %v4807 = vunpack.c.h.b16 %v614
        %v4808 = vunpack.c.l.b16 %v615
        %v4809 = vunpack.c.h.b16 %v615
        %v4810 = vunpack.c.l.b16 %v616
        %v4811 = vunpack.c.h.b16 %v616
        %v4812 = vunpack.c.l.b16 %v617
        %v4813 = vunpack.c.h.b16 %v617
        %v4814 = vunpack.c.l.b16 %v618
        %v4815 = vunpack.c.h.b16 %v618
        %v4816 = vunpack.c.l.b16 %v619
        %v4817 = vunpack.c.h.b16 %v619
        %v4818 = vunpack.c.l.b16 %v620
        %v4819 = vunpack.c.h.b16 %v620
        %v4820 = vunpack.c.l.b16 %v621
        %v4821 = vunpack.c.h.b16 %v621
        %v4822 = vunpack.c.l.b16 %v622
        %v4823 = vunpack.c.h.b16 %v622
        %v4824 = vunpack.c.l.b16 %v623
        %v4825 = vunpack.c.h.b16 %v623
        %v4826 = vunpack.c.l.b16 %v624
        %v4827 = vunpack.c.h.b16 %v624
        %v4828 = vunpack.c.l.b16 %v625
        %v4829 = vunpack.c.h.b16 %v625
        %v4830 = vunpack.c.l.b16 %v626
        %v4831 = vunpack.c.h.b16 %v626
        %v4832 = vunpack.c.l.b16 %v627
        %v4833 = vunpack.c.h.b16 %v627
        %v4834 = vunpack.c.l.b16 %v628
        %v4835 = vunpack.c.h.b16 %v628
        %v4836 = vunpack.c.l.b16 %v629
        %v4837 = vunpack.c.h.b16 %v629
        %v4838 = vunpack.c.l.b16 %v630
        %v4839 = vunpack.c.h.b16 %v630
        %v4840 = vunpack.c.l.b16 %v631
        %v4841 = vunpack.c.h.b16 %v631
        %v4842 = vunpack.c.l.b16 %v632
        %v4843 = vunpack.c.h.b16 %v632
        %v4844 = vunpack.c.l.b16 %v633
        %v4845 = vunpack.c.h.b16 %v633
        %v4846 = vunpack.c.l.b16 %v634
        %v4847 = vunpack.c.h.b16 %v634
        %v4848 = vunpack.c.l.b16 %v635
        %v4849 = vunpack.c.h.b16 %v635
        %v4850 = vunpack.c.l.b16 %v636
        %v4851 = vunpack.c.h.b16 %v636
        %v4852 = vunpack.c.l.b16 %v637
        %v4853 = vunpack.c.h.b16 %v637
        %v4854 = vunpack.c.l.b16 %v638
        %v4855 = vunpack.c.h.b16 %v638
        %v4856 = vunpack.c.l.b16 %v639
        %v4857 = vunpack.c.h.b16 %v639
        %v4858 = vunpack.c.l.b16 %v640
        %v4859 = vunpack.c.h.b16 %v640
        %v4860 = vunpack.c.l.b16 %v641
        %v4861 = vunpack.c.h.b16 %v641
        %v4862 = vunpack.c.l.b16 %v642
        %v4863 = vunpack.c.h.b16 %v642
        %v4864 = vunpack.c.l.b16 %v643
        %v4865 = vunpack.c.h.b16 %v643
        %v4866 = vunpack.c.l.b16 %v644
        %v4867 = vunpack.c.h.b16 %v644
        %v4868 = vunpack.c.l.b16 %v645
        %v4869 = vunpack.c.h.b16 %v645
        %v4870 = vunpack.c.l.b16 %v646
        %v4871 = vunpack.c.h.b16 %v646
        %v4872 = vunpack.c.l.b16 %v647
        %v4873 = vunpack.c.h.b16 %v647
        %v4874 = vunpack.c.l.b16 %v648
        %v4875 = vunpack.c.h.b16 %v648
        %v4876 = vunpack.c.l.b16 %v649
        %v4877 = vunpack.c.h.b16 %v649
        %v4878 = vunpack.c.l.b16 %v650
        %v4879 = vunpack.c.h.b16 %v650
        %v4880 = vunpack.c.l.b16 %v651
        %v4881 = vunpack.c.h.b16 %v651
        %v4882 = vunpack.c.l.b16 %v652
        %v4883 = vunpack.c.h.b16 %v652
        %v4884 = vunpack.c.l.b16 %v653
        %v4885 = vunpack.c.h.b16 %v653
        %v4886 = vunpack.c.l.b16 %v654
        %v4887 = vunpack.c.h.b16 %v654
        %v4888 = vunpack.c.l.b16 %v655
        %v4889 = vunpack.c.h.b16 %v655
        %v4890 = vunpack.c.l.b16 %v656
        %v4891 = vunpack.c.h.b16 %v656
        %v4892 = vunpack.c.l.b16 %v657
        %v4893 = vunpack.c.h.b16 %v657
        %v4894 = vunpack.c.l.b16 %v658
        %v4895 = vunpack.c.h.b16 %v658
        %v4896 = vunpack.c.l.b16 %v659
        %v4897 = vunpack.c.h.b16 %v659
        %v4898 = vunpack.c.l.b16 %v660
        %v4899 = vunpack.c.h.b16 %v660
        %v4900 = vunpack.c.l.b16 %v661
        %v4901 = vunpack.c.h.b16 %v661
        %v4902 = vunpack.c.l.b16 %v662
        %v4903 = vunpack.c.h.b16 %v662
        %v4904 = vunpack.c.l.b16 %v663
        %v4905 = vunpack.c.h.b16 %v663
        %v4906 = vunpack.c.l.b16 %v664
        %v4907 = vunpack.c.h.b16 %v664
        %v4908 = vunpack.c.l.b16 %v665
        %v4909 = vunpack.c.h.b16 %v665
        %v4910 = vunpack.c.l.b16 %v666
        %v4911 = vunpack.c.h.b16 %v666
        %v4912 = vunpack.c.l.b16 %v667
        %v4913 = vunpack.c.h.b16 %v667
        %v4914 = vunpack.c.l.b16 %v668
        %v4915 = vunpack.c.h.b16 %v668
        %v4916 = vunpack.c.l.b16 %v669
        %v4917 = vunpack.c.h.b16 %v669
        %v4918 = vunpack.c.l.b16 %v670
        %v4919 = vunpack.c.h.b16 %v670
        %v4920 = vunpack.c.l.b16 %v671
        %v4921 = vunpack.c.h.b16 %v671
        %v4922 = vunpack.c.l.b16 %v672
        %v4923 = vunpack.c.h.b16 %v672
        %v4924 = vunpack.c.l.b16 %v673
        %v4925 = vunpack.c.h.b16 %v673
        %v4926 = vunpack.c.l.b16 %v674
        %v4927 = vunpack.c.h.b16 %v674
        %v4928 = vunpack.c.l.b16 %v675
        %v4929 = vunpack.c.h.b16 %v675
        %v4930 = vunpack.c.l.b16 %v676
        %v4931 = vunpack.c.h.b16 %v676
        %v4932 = vunpack.c.l.b16 %v677
        %v4933 = vunpack.c.h.b16 %v677
        %v4934 = vunpack.c.l.b16 %v678
        %v4935 = vunpack.c.h.b16 %v678
        %v4936 = vunpack.c.l.b16 %v679
        %v4937 = vunpack.c.h.b16 %v679
        %v4938 = vunpack.c.l.b16 %v680
        %v4939 = vunpack.c.h.b16 %v680
        %v4940 = vunpack.c.l.b16 %v681
        %v4941 = vunpack.c.h.b16 %v681
        %v4942 = vunpack.c.l.b16 %v682
        %v4943 = vunpack.c.h.b16 %v682
        %v4944 = vunpack.c.l.b16 %v683
        %v4945 = vunpack.c.h.b16 %v683
        %v4946 = vunpack.c.l.b16 %v684
        %v4947 = vunpack.c.h.b16 %v684
        %v4948 = vunpack.c.l.b16 %v685
        %v4949 = vunpack.c.h.b16 %v685
        %v4950 = vunpack.c.l.b16 %v686
        %v4951 = vunpack.c.h.b16 %v686
        %v4952 = vunpack.c.l.b16 %v687
        %v4953 = vunpack.c.h.b16 %v687
        %v4954 = vunpack.c.l.b16 %v688
        %v4955 = vunpack.c.h.b16 %v688
        %v4956 = vunpack.c.l.b16 %v689
        %v4957 = vunpack.c.h.b16 %v689
        %v4958 = vunpack.c.l.b16 %v690
        %v4959 = vunpack.c.h.b16 %v690
        %v4960 = vunpack.c.l.b16 %v691
        %v4961 = vunpack.c.h.b16 %v691
        %v4962 = vunpack.c.l.b16 %v692
        %v4963 = vunpack.c.h.b16 %v692
        %v4964 = vunpack.c.l.b16 %v693
        %v4965 = vunpack.c.h.b16 %v693
        %v4966 = vunpack.c.l.b16 %v694
        %v4967 = vunpack.c.h.b16 %v694
        %v4968 = vunpack.c.l.b16 %v695
        %v4969 = vunpack.c.h.b16 %v695
        %v4970 = vunpack.c.l.b16 %v696
        %v4971 = vunpack.c.h.b16 %v696
        %v4972 = vunpack.c.l.b16 %v697
        %v4973 = vunpack.c.h.b16 %v697
        %v4974 = vunpack.c.l.b16 %v698
        %v4975 = vunpack.c.h.b16 %v698
        %v4976 = vunpack.c.l.b16 %v699
        %v4977 = vunpack.c.h.b16 %v699
        %v4978 = vunpack.c.l.b16 %v700
        %v4979 = vunpack.c.h.b16 %v700
        %v4980 = vunpack.c.l.b16 %v701
        %v4981 = vunpack.c.h.b16 %v701
        %v4982 = vunpack.c.l.b16 %v702
        %v4983 = vunpack.c.h.b16 %v702
        %v4984 = vunpack.c.l.b16 %v703
        %v4985 = vunpack.c.h.b16 %v703
        %v4986 = vunpack.c.l.b16 %v704
        %v4987 = vunpack.c.h.b16 %v704
        %v4988 = vunpack.c.l.b16 %v705
        %v4989 = vunpack.c.h.b16 %v705
        %v4990 = vunpack.c.l.b16 %v706
        %v4991 = vunpack.c.h.b16 %v706
        %v4992 = vunpack.c.l.b16 %v707
        %v4993 = vunpack.c.h.b16 %v707
        %v4994 = vunpack.c.l.b16 %v708
        %v4995 = vunpack.c.h.b16 %v708
        %v4996 = vunpack.c.l.b16 %v709
        %v4997 = vunpack.c.h.b16 %v709
        %v4998 = vunpack.c.l.b16 %v710
        %v4999 = vunpack.c.h.b16 %v710
        %v5000 = vunpack.c.l.b16 %v711
        %v5001 = vunpack.c.h.b16 %v711
        %v5002 = vunpack.c.l.b16 %v712
        %v5003 = vunpack.c.h.b16 %v712
        %v5004 = vunpack.c.l.b16 %v713
        %v5005 = vunpack.c.h.b16 %v713
        %v5006 = vunpack.c.l.b16 %v714
        %v5007 = vunpack.c.h.b16 %v714
        %v5008 = vunpack.c.l.b16 %v715
        %v5009 = vunpack.c.h.b16 %v715
        %v5010 = vunpack.c.l.b16 %v716
        %v5011 = vunpack.c.h.b16 %v716
        %v5012 = vunpack.c.l.b16 %v717
        %v5013 = vunpack.c.h.b16 %v717
        %v5014 = vunpack.c.l.b16 %v718
        %v5015 = vunpack.c.h.b16 %v718
        %v5016 = vunpack.c.l.b16 %v719
        %v5017 = vunpack.c.h.b16 %v719
        %v5018 = vunpack.c.l.b16 %v720
        %v5019 = vunpack.c.h.b16 %v720
        %v5020 = vunpack.c.l.b16 %v721
        %v5021 = vunpack.c.h.b16 %v721
        %v5022 = vunpack.c.l.b16 %v722
        %v5023 = vunpack.c.h.b16 %v722
        %v5024 = vunpack.c.l.b16 %v723
        %v5025 = vunpack.c.h.b16 %v723
        %v5026 = vunpack.c.l.b16 %v724
        %v5027 = vunpack.c.h.b16 %v724
        %v5028 = vunpack.c.l.b16 %v725
        %v5029 = vunpack.c.h.b16 %v725
        %v5030 = vunpack.c.l.b16 %v726
        %v5031 = vunpack.c.h.b16 %v726
        %v5032 = vunpack.c.l.b16 %v727
        %v5033 = vunpack.c.h.b16 %v727
        %v5034 = vunpack.c.l.b16 %v728
        %v5035 = vunpack.c.h.b16 %v728
        %v5036 = vunpack.c.l.b16 %v729
        %v5037 = vunpack.c.h.b16 %v729
        %v5038 = vunpack.c.l.b16 %v730
        %v5039 = vunpack.c.h.b16 %v730
        %v5040 = vunpack.c.l.b16 %v731
        %v5041 = vunpack.c.h.b16 %v731
        %v5042 = vunpack.c.l.b16 %v732
        %v5043 = vunpack.c.h.b16 %v732
        %v5044 = vunpack.c.l.b16 %v733
        %v5045 = vunpack.c.h.b16 %v733
        %v5046 = vunpack.c.l.b16 %v734
        %v5047 = vunpack.c.h.b16 %v734
        %v5048 = vunpack.c.l.b16 %v735
        %v5049 = vunpack.c.h.b16 %v735
        %v5050 = vunpack.c.l.b16 %v736
        %v5051 = vunpack.c.h.b16 %v736
        %v5052 = vunpack.c.l.b16 %v737
        %v5053 = vunpack.c.h.b16 %v737
        %v5054 = vunpack.c.l.b16 %v738
        %v5055 = vunpack.c.h.b16 %v738
        %v5056 = vunpack.c.l.b16 %v739
        %v5057 = vunpack.c.h.b16 %v739
        %v5058 = vunpack.c.l.b16 %v740
        %v5059 = vunpack.c.h.b16 %v740
        %v5060 = vunpack.c.l.b16 %v741
        %v5061 = vunpack.c.h.b16 %v741
        %v5062 = vunpack.c.l.b16 %v742
        %v5063 = vunpack.c.h.b16 %v742
        %v5064 = vunpack.c.l.b16 %v743
        %v5065 = vunpack.c.h.b16 %v743
        %v5066 = vunpack.c.l.b16 %v744
        %v5067 = vunpack.c.h.b16 %v744
        %v5068 = vunpack.c.l.b16 %v745
        %v5069 = vunpack.c.h.b16 %v745
        %v5070 = vunpack.c.l.b16 %v746
        %v5071 = vunpack.c.h.b16 %v746
        %v5072 = vunpack.c.l.b16 %v747
        %v5073 = vunpack.c.h.b16 %v747
        %v5074 = vunpack.c.l.b16 %v748
        %v5075 = vunpack.c.h.b16 %v748
        %v5076 = vunpack.c.l.b16 %v749
        %v5077 = vunpack.c.h.b16 %v749
        %v5078 = vunpack.c.l.b16 %v750
        %v5079 = vunpack.c.h.b16 %v750
        %v5080 = vunpack.c.l.b16 %v751
        %v5081 = vunpack.c.h.b16 %v751
        %v5082 = vunpack.c.l.b16 %v752
        %v5083 = vunpack.c.h.b16 %v752
        %v5084 = vunpack.c.l.b16 %v753
        %v5085 = vunpack.c.h.b16 %v753
        %v5086 = vunpack.c.l.b16 %v754
        %v5087 = vunpack.c.h.b16 %v754
        %v5088 = vunpack.c.l.b16 %v755
        %v5089 = vunpack.c.h.b16 %v755
        %v5090 = vunpack.c.l.b16 %v756
        %v5091 = vunpack.c.h.b16 %v756
        %v5092 = vunpack.c.l.b16 %v757
        %v5093 = vunpack.c.h.b16 %v757
        %v5094 = vunpack.c.l.b16 %v758
        %v5095 = vunpack.c.h.b16 %v758
        %v5096 = vunpack.c.l.b16 %v759
        %v5097 = vunpack.c.h.b16 %v759
        %v5098 = vunpack.c.l.b16 %v760
        %v5099 = vunpack.c.h.b16 %v760
        %v5100 = vunpack.c.l.b16 %v761
        %v5101 = vunpack.c.h.b16 %v761
        %v5102 = vunpack.c.l.b16 %v762
        %v5103 = vunpack.c.h.b16 %v762
        %v5104 = vunpack.c.l.b16 %v763
        %v5105 = vunpack.c.h.b16 %v763
        %v5106 = vunpack.c.l.b16 %v764
        %v5107 = vunpack.c.h.b16 %v764
        %v5108 = vunpack.c.l.b16 %v765
        %v5109 = vunpack.c.h.b16 %v765
        %v5110 = vunpack.c.l.b16 %v766
        %v5111 = vunpack.c.h.b16 %v766
        %v5112 = vunpack.c.l.b16 %v767
        %v5113 = vunpack.c.h.b16 %v767
        %v5114 = vunpack.c.l.b16 %v768
        %v5115 = vunpack.c.h.b16 %v768
        %v5116 = vunpack.c.l.b16 %v769
        %v5117 = vunpack.c.h.b16 %v769
        %v5118 = vunpack.c.l.b16 %v770
        %v5119 = vunpack.c.h.b16 %v770
        %v5120 = vunpack.c.l.b16 %v771
        %v5121 = vunpack.c.h.b16 %v771
        %v5122 = vunpack.c.l.b16 %v772
        %v5123 = vunpack.c.h.b16 %v772
        %v5124 = vunpack.c.l.b16 %v773
        %v5125 = vunpack.c.h.b16 %v773
        %v5126 = vunpack.c.l.b16 %v774
        %v5127 = vunpack.c.h.b16 %v774
        %v5128 = vunpack.c.l.b16 %v775
        %v5129 = vunpack.c.h.b16 %v775
        %v5130 = vunpack.c.l.b16 %v776
        %v5131 = vunpack.c.h.b16 %v776
        %v5132 = vunpack.c.l.b16 %v777
        %v5133 = vunpack.c.h.b16 %v777
        %v5134 = vunpack.c.l.b16 %v778
        %v5135 = vunpack.c.h.b16 %v778
        %v5136 = vunpack.c.l.b16 %v779
        %v5137 = vunpack.c.h.b16 %v779
        %v5138 = vunpack.c.l.b16 %v780
        %v5139 = vunpack.c.h.b16 %v780
        %v5140 = vunpack.c.l.b16 %v781
        %v5141 = vunpack.c.h.b16 %v781
        %v5142 = vunpack.c.l.b16 %v782
        %v5143 = vunpack.c.h.b16 %v782
        %v5144 = vunpack.c.l.b16 %v783
        %v5145 = vunpack.c.h.b16 %v783
        %v5146 = vunpack.c.l.b16 %v784
        %v5147 = vunpack.c.h.b16 %v784
        %v5148 = vunpack.c.l.b16 %v785
        %v5149 = vunpack.c.h.b16 %v785
        %v5150 = vunpack.c.l.b16 %v786
        %v5151 = vunpack.c.h.b16 %v786
        %v5152 = vunpack.c.l.b16 %v787
        %v5153 = vunpack.c.h.b16 %v787
        %v5154 = vunpack.c.l.b16 %v788
        %v5155 = vunpack.c.h.b16 %v788
        %v5156 = vunpack.c.l.b16 %v789
        %v5157 = vunpack.c.h.b16 %v789
        %v5158 = vunpack.c.l.b16 %v790
        %v5159 = vunpack.c.h.b16 %v790
        %v5160 = vunpack.c.l.b16 %v791
        %v5161 = vunpack.c.h.b16 %v791
        %v5162 = vunpack.c.l.b16 %v792
        %v5163 = vunpack.c.h.b16 %v792
        %v5164 = vunpack.c.l.b16 %v793
        %v5165 = vunpack.c.h.b16 %v793
        %v5166 = vunpack.c.l.b16 %v794
        %v5167 = vunpack.c.h.b16 %v794
        %v5168 = vunpack.c.l.b16 %v795
        %v5169 = vunpack.c.h.b16 %v795
        %v5170 = vunpack.c.l.b16 %v796
        %v5171 = vunpack.c.h.b16 %v796
        %v5172 = vunpack.c.l.b16 %v797
        %v5173 = vunpack.c.h.b16 %v797
        %v5174 = vunpack.c.l.b16 %v798
        %v5175 = vunpack.c.h.b16 %v798
        %v5176 = vunpack.c.l.b16 %v799
        %v5177 = vunpack.c.h.b16 %v799
        %v5178 = vunpack.c.l.b16 %v800
        %v5179 = vunpack.c.h.b16 %v800
        %v5180 = vunpack.c.l.b16 %v801
        %v5181 = vunpack.c.h.b16 %v801
        %v5182 = vunpack.c.l.b16 %v802
        %v5183 = vunpack.c.h.b16 %v802
        %v5184 = vunpack.c.l.b16 %v803
        %v5185 = vunpack.c.h.b16 %v803
        %v5186 = vunpack.c.l.b16 %v804
        %v5187 = vunpack.c.h.b16 %v804
        %v5188 = vunpack.c.l.b16 %v805
        %v5189 = vunpack.c.h.b16 %v805
        %v5190 = vunpack.c.l.b16 %v806
        %v5191 = vunpack.c.h.b16 %v806
        %v5192 = vunpack.c.l.b16 %v807
        %v5193 = vunpack.c.h.b16 %v807
        %v5194 = vunpack.c.l.b16 %v808
        %v5195 = vunpack.c.h.b16 %v808
        %v5196 = vunpack.c.l.b16 %v809
        %v5197 = vunpack.c.h.b16 %v809
        %v5198 = vunpack.c.l.b16 %v810
        %v5199 = vunpack.c.h.b16 %v810
        %v5200 = vunpack.c.l.b16 %v811
        %v5201 = vunpack.c.h.b16 %v811
        %v5202 = vunpack.c.l.b16 %v812
        %v5203 = vunpack.c.h.b16 %v812
        %v5204 = vunpack.c.l.b16 %v813
        %v5205 = vunpack.c.h.b16 %v813
        %v5206 = vunpack.c.l.b16 %v814
        %v5207 = vunpack.c.h.b16 %v814
        %v5208 = vunpack.c.l.b16 %v815
        %v5209 = vunpack.c.h.b16 %v815
        %v5210 = vunpack.c.l.b16 %v816
        %v5211 = vunpack.c.h.b16 %v816
        %v5212 = vunpack.c.l.b16 %v817
        %v5213 = vunpack.c.h.b16 %v817
        %v5214 = vunpack.c.l.b16 %v818
        %v5215 = vunpack.c.h.b16 %v818
        %v5216 = vunpack.c.l.b16 %v819
        %v5217 = vunpack.c.h.b16 %v819
        %v5218 = vunpack.c.l.b16 %v820
        %v5219 = vunpack.c.h.b16 %v820
        %v5220 = vunpack.c.l.b16 %v821
        %v5221 = vunpack.c.h.b16 %v821
        %v5222 = vpack.c.b16 %v4282, %v4278
        %v5223 = vpack.c.b16 %v4283, %v4279
        %v5224 = vpack.c.b16 %v4284, %v4280
        %v5225 = vpack.c.b16 %v4285, %v4281
        %v5226 = vpack.c.b16 %v4290, %v4286
        %v5227 = vpack.c.b16 %v4291, %v4287
        %v5228 = vpack.c.b16 %v4292, %v4288
        %v5229 = vpack.c.b16 %v4293, %v4289
        %v5230 = vpack.c.b16 %v4298, %v4294
        %v5231 = vpack.c.b16 %v4299, %v4295
        %v5232 = vpack.c.b16 %v4300, %v4296
        %v5233 = vpack.c.b16 %v4301, %v4297
        %v5234 = vpack.c.b16 %v4306, %v4302
        %v5235 = vpack.c.b16 %v4307, %v4303
        %v5236 = vpack.c.b16 %v4308, %v4304
        %v5237 = vpack.c.b16 %v4309, %v4305
        %v5238 = vpack.c.b16 %v4314, %v4310
        %v5239 = vpack.c.b16 %v4315, %v4311
        %v5240 = vpack.c.b16 %v4316, %v4312
        %v5241 = vpack.c.b16 %v4317, %v4313
        %v5242 = vpack.c.b16 %v4322, %v4318
        %v5243 = vpack.c.b16 %v4323, %v4319
        %v5244 = vpack.c.b16 %v4324, %v4320
        %v5245 = vpack.c.b16 %v4325, %v4321
        %v5246 = vpack.c.b16 %v4330, %v4326
        %v5247 = vpack.c.b16 %v4331, %v4327
        %v5248 = vpack.c.b16 %v4332, %v4328
        %v5249 = vpack.c.b16 %v4333, %v4329
        %v5250 = vpack.c.b16 %v4338, %v4334
        %v5251 = vpack.c.b16 %v4339, %v4335
        %v5252 = vpack.c.b16 %v4340, %v4336
        %v5253 = vpack.c.b16 %v4341, %v4337
        %v5254 = vpack.c.b16 %v4346, %v4342
        %v5255 = vpack.c.b16 %v4347, %v4343
        %v5256 = vpack.c.b16 %v4348, %v4344
        %v5257 = vpack.c.b16 %v4349, %v4345
        %v5258 = vpack.c.b16 %v4354, %v4350
        %v5259 = vpack.c.b16 %v4355, %v4351
        %v5260 = vpack.c.b16 %v4356, %v4352
        %v5261 = vpack.c.b16 %v4357, %v4353
        %v5262 = vpack.c.b16 %v4362, %v4358
        %v5263 = vpack.c.b16 %v4363, %v4359
        %v5264 = vpack.c.b16 %v4364, %v4360
        %v5265 = vpack.c.b16 %v4365, %v4361
        %v5266 = vpack.c.b16 %v4370, %v4366
        %v5267 = vpack.c.b16 %v4371, %v4367
        %v5268 = vpack.c.b16 %v4372, %v4368
        %v5269 = vpack.c.b16 %v4373, %v4369
        %v5270 = vpack.c.b16 %v4378, %v4374
        %v5271 = vpack.c.b16 %v4379, %v4375
        %v5272 = vpack.c.b16 %v4380, %v4376
        %v5273 = vpack.c.b16 %v4381, %v4377
        %v5274 = vpack.c.b16 %v4386, %v4382
        %v5275 = vpack.c.b16 %v4387, %v4383
        %v5276 = vpack.c.b16 %v4388, %v4384
        %v5277 = vpack.c.b16 %v4389, %v4385
        %v5278 = vpack.c.b16 %v4394, %v4390
        %v5279 = vpack.c.b16 %v4395, %v4391
        %v5280 = vpack.c.b16 %v4396, %v4392
        %v5281 = vpack.c.b16 %v4397, %v4393
        %v5282 = vpack.c.b16 %v4402, %v4398
        %v5283 = vpack.c.b16 %v4403, %v4399
        %v5284 = vpack.c.b16 %v4404, %v4400
        %v5285 = vpack.c.b16 %v4405, %v4401
        %v5286 = vpack.c.b16 %v4410, %v4406
        %v5287 = vpack.c.b16 %v4411, %v4407
        %v5288 = vpack.c.b16 %v4412, %v4408
        %v5289 = vpack.c.b16 %v4413, %v4409
        %v5290 = vpack.c.b16 %v4418, %v4414
        %v5291 = vpack.c.b16 %v4419, %v4415
        %v5292 = vpack.c.b16 %v4420, %v4416
        %v5293 = vpack.c.b16 %v4421, %v4417
        %v5294 = vpack.c.b16 %v4426, %v4422
        %v5295 = vpack.c.b16 %v4427, %v4423
        %v5296 = vpack.c.b16 %v4428, %v4424
        %v5297 = vpack.c.b16 %v4429, %v4425
        %v5298 = vpack.c.b16 %v4434, %v4430
        %v5299 = vpack.c.b16 %v4435, %v4431
        %v5300 = vpack.c.b16 %v4436, %v4432
        %v5301 = vpack.c.b16 %v4437, %v4433
        %v5302 = vpack.c.b16 %v4442, %v4438
        %v5303 = vpack.c.b16 %v4443, %v4439
        %v5304 = vpack.c.b16 %v4444, %v4440
        %v5305 = vpack.c.b16 %v4445, %v4441
        %v5306 = vpack.c.b16 %v4450, %v4446
        %v5307 = vpack.c.b16 %v4451, %v4447
        %v5308 = vpack.c.b16 %v4452, %v4448
        %v5309 = vpack.c.b16 %v4453, %v4449
        %v5310 = vpack.c.b16 %v4458, %v4454
        %v5311 = vpack.c.b16 %v4459, %v4455
        %v5312 = vpack.c.b16 %v4460, %v4456
        %v5313 = vpack.c.b16 %v4461, %v4457
        %v5314 = vpack.c.b16 %v4466, %v4462
        %v5315 = vpack.c.b16 %v4467, %v4463
        %v5316 = vpack.c.b16 %v4468, %v4464
        %v5317 = vpack.c.b16 %v4469, %v4465
        %v5318 = vpack.c.b16 %v4474, %v4470
        %v5319 = vpack.c.b16 %v4475, %v4471
        %v5320 = vpack.c.b16 %v4476, %v4472
        %v5321 = vpack.c.b16 %v4477, %v4473
        %v5322 = vpack.c.b16 %v4482, %v4478
        %v5323 = vpack.c.b16 %v4483, %v4479
        %v5324 = vpack.c.b16 %v4484, %v4480
        %v5325 = vpack.c.b16 %v4485, %v4481
        %v5326 = vpack.c.b16 %v4490, %v4486
        %v5327 = vpack.c.b16 %v4491, %v4487
        %v5328 = vpack.c.b16 %v4492, %v4488
        %v5329 = vpack.c.b16 %v4493, %v4489
        %v5330 = vpack.c.b16 %v4498, %v4494
        %v5331 = vpack.c.b16 %v4499, %v4495
        %v5332 = vpack.c.b16 %v4500, %v4496
        %v5333 = vpack.c.b16 %v4501, %v4497
        %v5334 = vpack.c.b16 %v4506, %v4502
        %v5335 = vpack.c.b16 %v4507, %v4503
        %v5336 = vpack.c.b16 %v4508, %v4504
        %v5337 = vpack.c.b16 %v4509, %v4505
        %v5338 = vpack.c.b16 %v4514, %v4510
        %v5339 = vpack.c.b16 %v4515, %v4511
        %v5340 = vpack.c.b16 %v4516, %v4512
        %v5341 = vpack.c.b16 %v4517, %v4513
        %v5342 = vpack.c.b16 %v4522, %v4518
        %v5343 = vpack.c.b16 %v4523, %v4519
        %v5344 = vpack.c.b16 %v4524, %v4520
        %v5345 = vpack.c.b16 %v4525, %v4521
        %v5346 = vpack.c.b16 %v4530, %v4526
        %v5347 = vpack.c.b16 %v4531, %v4527
        %v5348 = vpack.c.b16 %v4532, %v4528
        %v5349 = vpack.c.b16 %v4533, %v4529
        %v5350 = vpack.c.b16 %v4538, %v4534
        %v5351 = vpack.c.b16 %v4539, %v4535
        %v5352 = vpack.c.b16 %v4540, %v4536
        %v5353 = vpack.c.b16 %v4541, %v4537
        %v5354 = vpack.c.b16 %v4546, %v4542
        %v5355 = vpack.c.b16 %v4547, %v4543
        %v5356 = vpack.c.b16 %v4548, %v4544
        %v5357 = vpack.c.b16 %v4549, %v4545
        %v5358 = vpack.c.b16 %v4554, %v4550
        %v5359 = vpack.c.b16 %v4555, %v4551
        %v5360 = vpack.c.b16 %v4556, %v4552
        %v5361 = vpack.c.b16 %v4557, %v4553
        %v5362 = vpack.c.b16 %v4562, %v4558
        %v5363 = vpack.c.b16 %v4563, %v4559
        %v5364 = vpack.c.b16 %v4564, %v4560
        %v5365 = vpack.c.b16 %v4565, %v4561
        %v5366 = vpack.c.b16 %v4570, %v4566
        %v5367 = vpack.c.b16 %v4571, %v4567
        %v5368 = vpack.c.b16 %v4572, %v4568
        %v5369 = vpack.c.b16 %v4573, %v4569
        %v5370 = vpack.c.b16 %v4578, %v4574
        %v5371 = vpack.c.b16 %v4579, %v4575
        %v5372 = vpack.c.b16 %v4580, %v4576
        %v5373 = vpack.c.b16 %v4581, %v4577
        %v5374 = vpack.c.b16 %v4586, %v4582
        %v5375 = vpack.c.b16 %v4587, %v4583
        %v5376 = vpack.c.b16 %v4588, %v4584
        %v5377 = vpack.c.b16 %v4589, %v4585
        %v5378 = vpack.c.b16 %v4594, %v4590
        %v5379 = vpack.c.b16 %v4595, %v4591
        %v5380 = vpack.c.b16 %v4596, %v4592
        %v5381 = vpack.c.b16 %v4597, %v4593
        %v5382 = vpack.c.b16 %v4602, %v4598
        %v5383 = vpack.c.b16 %v4603, %v4599
        %v5384 = vpack.c.b16 %v4604, %v4600
        %v5385 = vpack.c.b16 %v4605, %v4601
        %v5386 = vpack.c.b16 %v4610, %v4606
        %v5387 = vpack.c.b16 %v4611, %v4607
        %v5388 = vpack.c.b16 %v4612, %v4608
        %v5389 = vpack.c.b16 %v4613, %v4609
        %v5390 = vpack.c.b16 %v4618, %v4614
        %v5391 = vpack.c.b16 %v4619, %v4615
        %v5392 = vpack.c.b16 %v4620, %v4616
        %v5393 = vpack.c.b16 %v4621, %v4617
        %v5394 = vpack.c.b16 %v4626, %v4622
        %v5395 = vpack.c.b16 %v4627, %v4623
        %v5396 = vpack.c.b16 %v4628, %v4624
        %v5397 = vpack.c.b16 %v4629, %v4625
        %v5398 = vpack.c.b16 %v4634, %v4630
        %v5399 = vpack.c.b16 %v4635, %v4631
        %v5400 = vpack.c.b16 %v4636, %v4632
        %v5401 = vpack.c.b16 %v4637, %v4633
        %v5402 = vpack.c.b16 %v4642, %v4638
        %v5403 = vpack.c.b16 %v4643, %v4639
        %v5404 = vpack.c.b16 %v4644, %v4640
        %v5405 = vpack.c.b16 %v4645, %v4641
        %v5406 = vpack.c.b16 %v4650, %v4646
        %v5407 = vpack.c.b16 %v4651, %v4647
        %v5408 = vpack.c.b16 %v4652, %v4648
        %v5409 = vpack.c.b16 %v4653, %v4649
        %v5410 = vpack.c.b16 %v4658, %v4654
        %v5411 = vpack.c.b16 %v4659, %v4655
        %v5412 = vpack.c.b16 %v4660, %v4656
        %v5413 = vpack.c.b16 %v4661, %v4657
        %v5414 = vpack.c.b16 %v4666, %v4662
        %v5415 = vpack.c.b16 %v4667, %v4663
        %v5416 = vpack.c.b16 %v4668, %v4664
        %v5417 = vpack.c.b16 %v4669, %v4665
        %v5418 = vpack.c.b16 %v4674, %v4670
        %v5419 = vpack.c.b16 %v4675, %v4671
        %v5420 = vpack.c.b16 %v4676, %v4672
        %v5421 = vpack.c.b16 %v4677, %v4673
        %v5422 = vpack.c.b16 %v4682, %v4678
        %v5423 = vpack.c.b16 %v4683, %v4679
        %v5424 = vpack.c.b16 %v4684, %v4680
        %v5425 = vpack.c.b16 %v4685, %v4681
        %v5426 = vpack.c.b16 %v4690, %v4686
        %v5427 = vpack.c.b16 %v4691, %v4687
        %v5428 = vpack.c.b16 %v4692, %v4688
        %v5429 = vpack.c.b16 %v4693, %v4689
        %v5430 = vpack.c.b16 %v4698, %v4694
        %v5431 = vpack.c.b16 %v4699, %v4695
        %v5432 = vpack.c.b16 %v4700, %v4696
        %v5433 = vpack.c.b16 %v4701, %v4697
        %v5434 = vpack.c.b16 %v4706, %v4702
        %v5435 = vpack.c.b16 %v4707, %v4703
        %v5436 = vpack.c.b16 %v4708, %v4704
        %v5437 = vpack.c.b16 %v4709, %v4705
        %v5438 = vpack.c.b16 %v4714, %v4710
        %v5439 = vpack.c.b16 %v4715, %v4711
        %v5440 = vpack.c.b16 %v4716, %v4712
        %v5441 = vpack.c.b16 %v4717, %v4713
        %v5442 = vpack.c.b16 %v4722, %v4718
        %v5443 = vpack.c.b16 %v4723, %v4719
        %v5444 = vpack.c.b16 %v4724, %v4720
        %v5445 = vpack.c.b16 %v4725, %v4721
        %v5446 = vpack.c.b16 %v4730, %v4726
        %v5447 = vpack.c.b16 %v4731, %v4727
        %v5448 = vpack.c.b16 %v4732, %v4728
        %v5449 = vpack.c.b16 %v4733, %v4729
        %v5450 = vpack.c.b16 %v4738, %v4734
        %v5451 = vpack.c.b16 %v4739, %v4735
        %v5452 = vpack.c.b16 %v4740, %v4736
        %v5453 = vpack.c.b16 %v4741, %v4737
        %v5454 = vpack.c.b16 %v4746, %v4742
        %v5455 = vpack.c.b16 %v4747, %v4743
        %v5456 = vpack.c.b16 %v4748, %v4744
        %v5457 = vpack.c.b16 %v4749, %v4745
        %v5458 = vpack.c.b16 %v4754, %v4750
        %v5459 = vpack.c.b16 %v4755, %v4751
        %v5460 = vpack.c.b16 %v4756, %v4752
        %v5461 = vpack.c.b16 %v4757, %v4753
        %v5462 = vpack.c.b16 %v4762, %v4758
        %v5463 = vpack.c.b16 %v4763, %v4759
        %v5464 = vpack.c.b16 %v4764, %v4760
        %v5465 = vpack.c.b16 %v4765, %v4761
        %v5466 = vpack.c.b16 %v4770, %v4766
        %v5467 = vpack.c.b16 %v4771, %v4767
        %v5468 = vpack.c.b16 %v4772, %v4768
        %v5469 = vpack.c.b16 %v4773, %v4769
        %v5470 = vpack.c.b16 %v4778, %v4774
        %v5471 = vpack.c.b16 %v4779, %v4775
        %v5472 = vpack.c.b16 %v4780, %v4776
        %v5473 = vpack.c.b16 %v4781, %v4777
        %v5474 = vpack.c.b16 %v4786, %v4782
        %v5475 = vpack.c.b16 %v4787, %v4783
        %v5476 = vpack.c.b16 %v4788, %v4784
        %v5477 = vpack.c.b16 %v4789, %v4785
        %v5478 = vpack.c.b16 %v4794, %v4790
        %v5479 = vpack.c.b16 %v4795, %v4791
        %v5480 = vpack.c.b16 %v4796, %v4792
        %v5481 = vpack.c.b16 %v4797, %v4793
        %v5482 = vpack.c.b16 %v4802, %v4798
        %v5483 = vpack.c.b16 %v4803, %v4799
        %v5484 = vpack.c.b16 %v4804, %v4800
        %v5485 = vpack.c.b16 %v4805, %v4801
        %v5486 = vpack.c.b16 %v4810, %v4806
        %v5487 = vpack.c.b16 %v4811, %v4807
        %v5488 = vpack.c.b16 %v4812, %v4808
        %v5489 = vpack.c.b16 %v4813, %v4809
        %v5490 = vpack.c.b16 %v4818, %v4814
        %v5491 = vpack.c.b16 %v4819, %v4815
        %v5492 = vpack.c.b16 %v4820, %v4816
        %v5493 = vpack.c.b16 %v4821, %v4817
        %v5494 = vpack.c.b16 %v4826, %v4822
        %v5495 = vpack.c.b16 %v4827, %v4823
        %v5496 = vpack.c.b16 %v4828, %v4824
        %v5497 = vpack.c.b16 %v4829, %v4825
        %v5498 = vpack.c.b16 %v4834, %v4830
        %v5499 = vpack.c.b16 %v4835, %v4831
        %v5500 = vpack.c.b16 %v4836, %v4832
        %v5501 = vpack.c.b16 %v4837, %v4833
        %v5502 = vpack.c.b16 %v4842, %v4838
        %v5503 = vpack.c.b16 %v4843, %v4839
        %v5504 = vpack.c.b16 %v4844, %v4840
        %v5505 = vpack.c.b16 %v4845, %v4841
        %v5506 = vpack.c.b16 %v4850, %v4846
        %v5507 = vpack.c.b16 %v4851, %v4847
        %v5508 = vpack.c.b16 %v4852, %v4848
        %v5509 = vpack.c.b16 %v4853, %v4849
        %v5510 = vpack.c.b16 %v4858, %v4854
        %v5511 = vpack.c.b16 %v4859, %v4855
        %v5512 = vpack.c.b16 %v4860, %v4856
        %v5513 = vpack.c.b16 %v4861, %v4857
        %v5514 = vpack.c.b16 %v4866, %v4862
        %v5515 = vpack.c.b16 %v4867, %v4863
        %v5516 = vpack.c.b16 %v4868, %v4864
        %v5517 = vpack.c.b16 %v4869, %v4865
        %v5518 = vpack.c.b16 %v4874, %v4870
        %v5519 = vpack.c.b16 %v4875, %v4871
        %v5520 = vpack.c.b16 %v4876, %v4872
        %v5521 = vpack.c.b16 %v4877, %v4873
        %v5522 = vpack.c.b16 %v4882, %v4878
        %v5523 = vpack.c.b16 %v4883, %v4879
        %v5524 = vpack.c.b16 %v4884, %v4880
        %v5525 = vpack.c.b16 %v4885, %v4881
        %v5526 = vpack.c.b16 %v4890, %v4886
        %v5527 = vpack.c.b16 %v4891, %v4887
        %v5528 = vpack.c.b16 %v4892, %v4888
        %v5529 = vpack.c.b16 %v4893, %v4889
        %v5530 = vpack.c.b16 %v4898, %v4894
        %v5531 = vpack.c.b16 %v4899, %v4895
        %v5532 = vpack.c.b16 %v4900, %v4896
        %v5533 = vpack.c.b16 %v4901, %v4897
        %v5534 = vpack.c.b16 %v4906, %v4902
        %v5535 = vpack.c.b16 %v4907, %v4903
        %v5536 = vpack.c.b16 %v4908, %v4904
        %v5537 = vpack.c.b16 %v4909, %v4905
        %v5538 = vpack.c.b16 %v4914, %v4910
        %v5539 = vpack.c.b16 %v4915, %v4911
        %v5540 = vpack.c.b16 %v4916, %v4912
        %v5541 = vpack.c.b16 %v4917, %v4913
        %v5542 = vpack.c.b16 %v4922, %v4918
        %v5543 = vpack.c.b16 %v4923, %v4919
        %v5544 = vpack.c.b16 %v4924, %v4920
        %v5545 = vpack.c.b16 %v4925, %v4921
        %v5546 = vpack.c.b16 %v4930, %v4926
        %v5547 = vpack.c.b16 %v4931, %v4927
        %v5548 = vpack.c.b16 %v4932, %v4928
        %v5549 = vpack.c.b16 %v4933, %v4929
        %v5550 = vpack.c.b16 %v4938, %v4934
        %v5551 = vpack.c.b16 %v4939, %v4935
        %v5552 = vpack.c.b16 %v4940, %v4936
        %v5553 = vpack.c.b16 %v4941, %v4937
        %v5554 = vpack.c.b16 %v4946, %v4942
        %v5555 = vpack.c.b16 %v4947, %v4943
        %v5556 = vpack.c.b16 %v4948, %v4944
        %v5557 = vpack.c.b16 %v4949, %v4945
        %v5558 = vpack.c.b16 %v4954, %v4950
        %v5559 = vpack.c.b16 %v4955, %v4951
        %v5560 = vpack.c.b16 %v4956, %v4952
        %v5561 = vpack.c.b16 %v4957, %v4953
        %v5562 = vpack.c.b16 %v4962, %v4958
        %v5563 = vpack.c.b16 %v4963, %v4959
        %v5564 = vpack.c.b16 %v4964, %v4960
        %v5565 = vpack.c.b16 %v4965, %v4961
        %v5566 = vpack.c.b16 %v4970, %v4966
        %v5567 = vpack.c.b16 %v4971, %v4967
        %v5568 = vpack.c.b16 %v4972, %v4968
        %v5569 = vpack.c.b16 %v4973, %v4969
        %v5570 = vpack.c.b16 %v4978, %v4974
        %v5571 = vpack.c.b16 %v4979, %v4975
        %v5572 = vpack.c.b16 %v4980, %v4976
        %v5573 = vpack.c.b16 %v4981, %v4977
        %v5574 = vpack.c.b16 %v4986, %v4982
        %v5575 = vpack.c.b16 %v4987, %v4983
        %v5576 = vpack.c.b16 %v4988, %v4984
        %v5577 = vpack.c.b16 %v4989, %v4985
        %v5578 = vpack.c.b16 %v4994, %v4990
        %v5579 = vpack.c.b16 %v4995, %v4991
        %v5580 = vpack.c.b16 %v4996, %v4992
        %v5581 = vpack.c.b16 %v4997, %v4993
        %v5582 = vpack.c.b16 %v5002, %v4998
        %v5583 = vpack.c.b16 %v5003, %v4999
        %v5584 = vpack.c.b16 %v5004, %v5000
        %v5585 = vpack.c.b16 %v5005, %v5001
        %v5586 = vpack.c.b16 %v5010, %v5006
        %v5587 = vpack.c.b16 %v5011, %v5007
        %v5588 = vpack.c.b16 %v5012, %v5008
        %v5589 = vpack.c.b16 %v5013, %v5009
        %v5590 = vpack.c.b16 %v5018, %v5014
        %v5591 = vpack.c.b16 %v5019, %v5015
        %v5592 = vpack.c.b16 %v5020, %v5016
        %v5593 = vpack.c.b16 %v5021, %v5017
        %v5594 = vpack.c.b16 %v5026, %v5022
        %v5595 = vpack.c.b16 %v5027, %v5023
        %v5596 = vpack.c.b16 %v5028, %v5024
        %v5597 = vpack.c.b16 %v5029, %v5025
        %v5598 = vpack.c.b16 %v5034, %v5030
        %v5599 = vpack.c.b16 %v5035, %v5031
        %v5600 = vpack.c.b16 %v5036, %v5032
        %v5601 = vpack.c.b16 %v5037, %v5033
        %v5602 = vpack.c.b16 %v5042, %v5038
        %v5603 = vpack.c.b16 %v5043, %v5039
        %v5604 = vpack.c.b16 %v5044, %v5040
        %v5605 = vpack.c.b16 %v5045, %v5041
        %v5606 = vpack.c.b16 %v5050, %v5046
        %v5607 = vpack.c.b16 %v5051, %v5047
        %v5608 = vpack.c.b16 %v5052, %v5048
        %v5609 = vpack.c.b16 %v5053, %v5049
        %v5610 = vpack.c.b16 %v5058, %v5054
        %v5611 = vpack.c.b16 %v5059, %v5055
        %v5612 = vpack.c.b16 %v5060, %v5056
        %v5613 = vpack.c.b16 %v5061, %v5057
        %v5614 = vpack.c.b16 %v5066, %v5062
        %v5615 = vpack.c.b16 %v5067, %v5063
        %v5616 = vpack.c.b16 %v5068, %v5064
        %v5617 = vpack.c.b16 %v5069, %v5065
        %v5618 = vpack.c.b16 %v5074, %v5070
        %v5619 = vpack.c.b16 %v5075, %v5071
        %v5620 = vpack.c.b16 %v5076, %v5072
        %v5621 = vpack.c.b16 %v5077, %v5073
        %v5622 = vpack.c.b16 %v5082, %v5078
        %v5623 = vpack.c.b16 %v5083, %v5079
        %v5624 = vpack.c.b16 %v5084, %v5080
        %v5625 = vpack.c.b16 %v5085, %v5081
        %v5626 = vpack.c.b16 %v5090, %v5086
        %v5627 = vpack.c.b16 %v5091, %v5087
        %v5628 = vpack.c.b16 %v5092, %v5088
        %v5629 = vpack.c.b16 %v5093, %v5089
        %v5630 = vpack.c.b16 %v5098, %v5094
        %v5631 = vpack.c.b16 %v5099, %v5095
        %v5632 = vpack.c.b16 %v5100, %v5096
        %v5633 = vpack.c.b16 %v5101, %v5097
        %v5634 = vpack.c.b16 %v5106, %v5102
        %v5635 = vpack.c.b16 %v5107, %v5103
        %v5636 = vpack.c.b16 %v5108, %v5104
        %v5637 = vpack.c.b16 %v5109, %v5105
        %v5638 = vpack.c.b16 %v5114, %v5110
        %v5639 = vpack.c.b16 %v5115, %v5111
        %v5640 = vpack.c.b16 %v5116, %v5112
        %v5641 = vpack.c.b16 %v5117, %v5113
        %v5642 = vpack.c.b16 %v5122, %v5118
        %v5643 = vpack.c.b16 %v5123, %v5119
        %v5644 = vpack.c.b16 %v5124, %v5120
        %v5645 = vpack.c.b16 %v5125, %v5121
        %v5646 = vpack.c.b16 %v5130, %v5126
        %v5647 = vpack.c.b16 %v5131, %v5127
        %v5648 = vpack.c.b16 %v5132, %v5128
        %v5649 = vpack.c.b16 %v5133, %v5129
        %v5650 = vpack.c.b16 %v5138, %v5134
        %v5651 = vpack.c.b16 %v5139, %v5135
        %v5652 = vpack.c.b16 %v5140, %v5136
        %v5653 = vpack.c.b16 %v5141, %v5137
        %v5654 = vpack.c.b16 %v5146, %v5142
        %v5655 = vpack.c.b16 %v5147, %v5143
        %v5656 = vpack.c.b16 %v5148, %v5144
        %v5657 = vpack.c.b16 %v5149, %v5145
        %v5658 = vpack.c.b16 %v5154, %v5150
        %v5659 = vpack.c.b16 %v5155, %v5151
        %v5660 = vpack.c.b16 %v5156, %v5152
        %v5661 = vpack.c.b16 %v5157, %v5153
        %v5662 = vpack.c.b16 %v5162, %v5158
        %v5663 = vpack.c.b16 %v5163, %v5159
        %v5664 = vpack.c.b16 %v5164, %v5160
        %v5665 = vpack.c.b16 %v5165, %v5161
        %v5666 = vpack.c.b16 %v5170, %v5166
        %v5667 = vpack.c.b16 %v5171, %v5167
        %v5668 = vpack.c.b16 %v5172, %v5168
        %v5669 = vpack.c.b16 %v5173, %v5169
        %v5670 = vpack.c.b16 %v5178, %v5174
        %v5671 = vpack.c.b16 %v5179, %v5175
        %v5672 = vpack.c.b16 %v5180, %v5176
        %v5673 = vpack.c.b16 %v5181, %v5177
        %v5674 = vpack.c.b16 %v5186, %v5182
        %v5675 = vpack.c.b16 %v5187, %v5183
        %v5676 = vpack.c.b16 %v5188, %v5184
        %v5677 = vpack.c.b16 %v5189, %v5185
        %v5678 = vpack.c.b16 %v5194, %v5190
        %v5679 = vpack.c.b16 %v5195, %v5191
        %v5680 = vpack.c.b16 %v5196, %v5192
        %v5681 = vpack.c.b16 %v5197, %v5193
        %v5682 = vpack.c.b16 %v5202, %v5198
        %v5683 = vpack.c.b16 %v5203, %v5199
        %v5684 = vpack.c.b16 %v5204, %v5200
        %v5685 = vpack.c.b16 %v5205, %v5201
        %v5686 = vpack.c.b16 %v5210, %v5206
        %v5687 = vpack.c.b16 %v5211, %v5207
        %v5688 = vpack.c.b16 %v5212, %v5208
        %v5689 = vpack.c.b16 %v5213, %v5209
        %v5690 = vpack.c.b16 %v5218, %v5214
        %v5691 = vpack.c.b16 %v5219, %v5215
        %v5692 = vpack.c.b16 %v5220, %v5216
        %v5693 = vpack.c.b16 %v5221, %v5217
        %vm6162 = vcmask 744448
        %v6164 = vsel %vm6162, %v3805, 0
        %v6167 = vand.u32 %v5690, %v3223
        %v6170 = vand.u32 %v5691, %v3223
        %v6173 = vand.u32 %v5692, %v3223
        %v6176 = vand.u32 %v5693, %v3223
        %6178 = vmatprep.subr.bf16.mxu0 %v5223
        %6179 = vmatpush1.bf16.msra.mxu0 %v5222
        %6180 = vmatprep.subr.bf16.mxu0 %v5227
        %6181 = vmatpush1.bf16.msra.mxu0 %v5226
        %6182 = vmatprep.subr.bf16.mxu0 %v5231
        %6183 = vmatpush1.bf16.msra.mxu0 %v5230
        %6184 = vmatprep.subr.bf16.mxu0 %v5235
        %6185 = vmatpush1.bf16.msra.mxu0 %v5234
        %6186 = vmatprep.subr.bf16.mxu0 %v5239
        %6187 = vmatpush1.bf16.msra.mxu0 %v5238
        %6188 = vmatprep.subr.bf16.mxu0 %v5243
        %6189 = vmatpush1.bf16.msra.mxu0 %v5242
        %6190 = vmatprep.subr.bf16.mxu0 %v5247
        %6191 = vmatpush1.bf16.msra.mxu0 %v5246
        %6192 = vmatprep.subr.bf16.mxu0 %v5251
        %6193 = vmatpush1.bf16.msra.mxu0 %v5250
        %6194 = vmatprep.subr.bf16.mxu0 %v5255
        %6195 = vmatpush1.bf16.msra.mxu0 %v5254
        %6196 = vmatprep.subr.bf16.mxu0 %v5259
        %6197 = vmatpush1.bf16.msra.mxu0 %v5258
        %6198 = vmatprep.subr.bf16.mxu0 %v5263
        %6199 = vmatpush1.bf16.msra.mxu0 %v5262
        %6200 = vmatprep.subr.bf16.mxu0 %v5267
        %6201 = vmatpush1.bf16.msra.mxu0 %v5266
        %6202 = vmatprep.subr.bf16.mxu0 %v5271
        %6203 = vmatpush1.bf16.msra.mxu0 %v5270
        %6204 = vmatprep.subr.bf16.mxu0 %v5275
        %6205 = vmatpush1.bf16.msra.mxu0 %v5274
        %6206 = vmatprep.subr.bf16.mxu0 %v5279
        %6207 = vmatpush1.bf16.msra.mxu0 %v5278
        %6208 = vmatprep.subr.bf16.mxu0 %v5283
        %6209 = vmatpush1.bf16.msra.mxu0 %v5282
        %6210 = vmatprep.mubr.bf16.mxu0 %v3792
        %6211 = vmatmul.mubr.bf16.gmra.mrb[0].mxu0 %v3791
        %v6212 = vpop.f32.mrb[0].mxu0
        %v6213 = vadd.f32 0.0, %v6212
        %v6214 = vpop.f32.mrb[0].mxu0
        %v6215 = vadd.f32 0.0, %v6214
        %v6216 = vpop.f32.mrb[0].mxu0
        %v6217 = vpop.f32.mrb[0].mxu0
        %6218 = vdwg.mxu0
        %6219 = vmatprep.subr.bf16.mxu0 %v5287
        %6220 = vmatpush1.bf16.msra.mxu0 %v5286
        %6221 = vmatprep.subr.bf16.mxu0 %v5291
        %6222 = vmatpush1.bf16.msra.mxu0 %v5290
        %6223 = vmatprep.subr.bf16.mxu0 %v5295
        %6224 = vmatpush1.bf16.msra.mxu0 %v5294
        %6225 = vmatprep.subr.bf16.mxu0 %v5299
        %6226 = vmatpush1.bf16.msra.mxu0 %v5298
        %6227 = vmatprep.subr.bf16.mxu0 %v5303
        %6228 = vmatpush1.bf16.msra.mxu0 %v5302
        %6229 = vmatprep.subr.bf16.mxu0 %v5307
        %6230 = vmatpush1.bf16.msra.mxu0 %v5306
        %6231 = vmatprep.subr.bf16.mxu0 %v5311
        %6232 = vmatpush1.bf16.msra.mxu0 %v5310
        %6233 = vmatprep.subr.bf16.mxu0 %v5315
        %6234 = vmatpush1.bf16.msra.mxu0 %v5314
        %6235 = vmatprep.subr.bf16.mxu0 %v5319
        %6236 = vmatpush1.bf16.msra.mxu0 %v5318
        %6237 = vmatprep.subr.bf16.mxu0 %v5323
        %6238 = vmatpush1.bf16.msra.mxu0 %v5322
        %6239 = vmatprep.subr.bf16.mxu0 %v5327
        %6240 = vmatpush1.bf16.msra.mxu0 %v5326
        %6241 = vmatprep.subr.bf16.mxu0 %v5331
        %6242 = vmatpush1.bf16.msra.mxu0 %v5330
        %6243 = vmatprep.subr.bf16.mxu0 %v5335
        %6244 = vmatpush1.bf16.msra.mxu0 %v5334
        %6245 = vmatprep.subr.bf16.mxu0 %v5339
        %6246 = vmatpush1.bf16.msra.mxu0 %v5338
        %6247 = vmatprep.subr.bf16.mxu0 %v5343
        %6248 = vmatpush1.bf16.msra.mxu0 %v5342
        %6249 = vmatprep.subr.bf16.mxu0 %v5347
        %6250 = vmatpush1.bf16.msra.mxu0 %v5346
        %6251 = vmatprep.mubr.bf16.mxu0 %v3794
        %6252 = vmatmul.mubr.bf16.gmra.mrb[0].mxu0 %v3793
        %v6253 = vpop.f32.mrb[0].mxu0
        %v6254 = vadd.f32 %v6213, %v6253
        %v6255 = vpop.f32.mrb[0].mxu0
        %v6256 = vadd.f32 %v6215, %v6255
        %v6257 = vpop.f32.mrb[0].mxu0
        %v6258 = vpop.f32.mrb[0].mxu0
        %6259 = vdwg.mxu0
        %6260 = vmatprep.subr.bf16.mxu0 %v5351
        %6261 = vmatpush1.bf16.msra.mxu0 %v5350
        %6262 = vmatprep.subr.bf16.mxu0 %v5355
        %6263 = vmatpush1.bf16.msra.mxu0 %v5354
        %6264 = vmatprep.subr.bf16.mxu0 %v5359
        %6265 = vmatpush1.bf16.msra.mxu0 %v5358
        %6266 = vmatprep.subr.bf16.mxu0 %v5363
        %6267 = vmatpush1.bf16.msra.mxu0 %v5362
        %6268 = vmatprep.subr.bf16.mxu0 %v5367
        %6269 = vmatpush1.bf16.msra.mxu0 %v5366
        %6270 = vmatprep.subr.bf16.mxu0 %v5371
        %6271 = vmatpush1.bf16.msra.mxu0 %v5370
        %6272 = vmatprep.subr.bf16.mxu0 %v5375
        %6273 = vmatpush1.bf16.msra.mxu0 %v5374
        %6274 = vmatprep.subr.bf16.mxu0 %v5379
        %6275 = vmatpush1.bf16.msra.mxu0 %v5378
        %6276 = vmatprep.subr.bf16.mxu0 %v5383
        %6277 = vmatpush1.bf16.msra.mxu0 %v5382
        %6278 = vmatprep.subr.bf16.mxu0 %v5387
        %6279 = vmatpush1.bf16.msra.mxu0 %v5386
        %6280 = vmatprep.subr.bf16.mxu0 %v5391
        %6281 = vmatpush1.bf16.msra.mxu0 %v5390
        %6282 = vmatprep.subr.bf16.mxu0 %v5395
        %6283 = vmatpush1.bf16.msra.mxu0 %v5394
        %6284 = vmatprep.subr.bf16.mxu0 %v5399
        %6285 = vmatpush1.bf16.msra.mxu0 %v5398
        %6286 = vmatprep.subr.bf16.mxu0 %v5403
        %6287 = vmatpush1.bf16.msra.mxu0 %v5402
        %6288 = vmatprep.subr.bf16.mxu0 %v5407
        %6289 = vmatpush1.bf16.msra.mxu0 %v5406
        %6290 = vmatprep.subr.bf16.mxu0 %v5411
        %6291 = vmatpush1.bf16.msra.mxu0 %v5410
        %6292 = vmatprep.mubr.bf16.mxu0 %v3796
        %6293 = vmatmul.mubr.bf16.gmra.mrb[0].mxu0 %v3795
        %v6294 = vpop.f32.mrb[0].mxu0
        %v6295 = vadd.f32 %v6254, %v6294
        %v6296 = vpop.f32.mrb[0].mxu0
        %v6297 = vadd.f32 %v6256, %v6296
        %v6298 = vpop.f32.mrb[0].mxu0
        %v6299 = vpop.f32.mrb[0].mxu0
        %6300 = vdwg.mxu0
        %6301 = vmatprep.subr.bf16.mxu0 %v5415
        %6302 = vmatpush1.bf16.msra.mxu0 %v5414
        %6303 = vmatprep.subr.bf16.mxu0 %v5419
        %6304 = vmatpush1.bf16.msra.mxu0 %v5418
        %6305 = vmatprep.subr.bf16.mxu0 %v5423
        %6306 = vmatpush1.bf16.msra.mxu0 %v5422
        %6307 = vmatprep.subr.bf16.mxu0 %v5427
        %6308 = vmatpush1.bf16.msra.mxu0 %v5426
        %6309 = vmatprep.subr.bf16.mxu0 %v5431
        %6310 = vmatpush1.bf16.msra.mxu0 %v5430
        %6311 = vmatprep.subr.bf16.mxu0 %v5435
        %6312 = vmatpush1.bf16.msra.mxu0 %v5434
        %6313 = vmatprep.subr.bf16.mxu0 %v5439
        %6314 = vmatpush1.bf16.msra.mxu0 %v5438
        %6315 = vmatprep.subr.bf16.mxu0 %v5443
        %6316 = vmatpush1.bf16.msra.mxu0 %v5442
        %6317 = vmatprep.subr.bf16.mxu0 %v5447
        %6318 = vmatpush1.bf16.msra.mxu0 %v5446
        %6319 = vmatprep.subr.bf16.mxu0 %v5451
        %6320 = vmatpush1.bf16.msra.mxu0 %v5450
        %6321 = vmatprep.subr.bf16.mxu0 %v5455
        %6322 = vmatpush1.bf16.msra.mxu0 %v5454
        %6323 = vmatprep.subr.bf16.mxu0 %v5459
        %6324 = vmatpush1.bf16.msra.mxu0 %v5458
        %6325 = vmatprep.subr.bf16.mxu0 %v5463
        %6326 = vmatpush1.bf16.msra.mxu0 %v5462
        %6327 = vmatprep.subr.bf16.mxu0 %v5467
        %6328 = vmatpush1.bf16.msra.mxu0 %v5466
        %6329 = vmatprep.subr.bf16.mxu0 %v5471
        %6330 = vmatpush1.bf16.msra.mxu0 %v5470
        %6331 = vmatprep.subr.bf16.mxu0 %v5475
        %6332 = vmatpush1.bf16.msra.mxu0 %v5474
        %6333 = vmatprep.mubr.bf16.mxu0 %v3798
        %6334 = vmatmul.mubr.bf16.gmra.mrb[0].mxu0 %v3797
        %v6335 = vpop.f32.mrb[0].mxu0
        %v6336 = vadd.f32 %v6295, %v6335
        %v6337 = vpop.f32.mrb[0].mxu0
        %v6338 = vadd.f32 %v6297, %v6337
        %v6339 = vpop.f32.mrb[0].mxu0
        %v6340 = vpop.f32.mrb[0].mxu0
        %6341 = vdwg.mxu0
        %6342 = vmatprep.subr.bf16.mxu0 %v5479
        %6343 = vmatpush1.bf16.msra.mxu0 %v5478
        %6344 = vmatprep.subr.bf16.mxu0 %v5483
        %6345 = vmatpush1.bf16.msra.mxu0 %v5482
        %6346 = vmatprep.subr.bf16.mxu0 %v5487
        %6347 = vmatpush1.bf16.msra.mxu0 %v5486
        %6348 = vmatprep.subr.bf16.mxu0 %v5491
        %6349 = vmatpush1.bf16.msra.mxu0 %v5490
        %6350 = vmatprep.subr.bf16.mxu0 %v5495
        %6351 = vmatpush1.bf16.msra.mxu0 %v5494
        %6352 = vmatprep.subr.bf16.mxu0 %v5499
        %6353 = vmatpush1.bf16.msra.mxu0 %v5498
        %6354 = vmatprep.subr.bf16.mxu0 %v5503
        %6355 = vmatpush1.bf16.msra.mxu0 %v5502
        %6356 = vmatprep.subr.bf16.mxu0 %v5507
        %6357 = vmatpush1.bf16.msra.mxu0 %v5506
        %6358 = vmatprep.subr.bf16.mxu0 %v5511
        %6359 = vmatpush1.bf16.msra.mxu0 %v5510
        %6360 = vmatprep.subr.bf16.mxu0 %v5515
        %6361 = vmatpush1.bf16.msra.mxu0 %v5514
        %6362 = vmatprep.subr.bf16.mxu0 %v5519
        %6363 = vmatpush1.bf16.msra.mxu0 %v5518
        %6364 = vmatprep.subr.bf16.mxu0 %v5523
        %6365 = vmatpush1.bf16.msra.mxu0 %v5522
        %6366 = vmatprep.subr.bf16.mxu0 %v5527
        %6367 = vmatpush1.bf16.msra.mxu0 %v5526
        %6368 = vmatprep.subr.bf16.mxu0 %v5531
        %6369 = vmatpush1.bf16.msra.mxu0 %v5530
        %6370 = vmatprep.subr.bf16.mxu0 %v5535
        %6371 = vmatpush1.bf16.msra.mxu0 %v5534
        %6372 = vmatprep.subr.bf16.mxu0 %v5539
        %6373 = vmatpush1.bf16.msra.mxu0 %v5538
        %6374 = vmatprep.mubr.bf16.mxu0 %v3800
        %6375 = vmatmul.mubr.bf16.gmra.mrb[0].mxu0 %v3799
        %v6376 = vpop.f32.mrb[0].mxu0
        %v6377 = vadd.f32 %v6336, %v6376
        %v6378 = vpop.f32.mrb[0].mxu0
        %v6379 = vadd.f32 %v6338, %v6378
        %v6380 = vpop.f32.mrb[0].mxu0
        %v6381 = vpop.f32.mrb[0].mxu0
        %6382 = vdwg.mxu0
        %6383 = vmatprep.subr.bf16.mxu0 %v5543
        %6384 = vmatpush1.bf16.msra.mxu0 %v5542
        %6385 = vmatprep.subr.bf16.mxu0 %v5547
        %6386 = vmatpush1.bf16.msra.mxu0 %v5546
        %6387 = vmatprep.subr.bf16.mxu0 %v5551
        %6388 = vmatpush1.bf16.msra.mxu0 %v5550
        %6389 = vmatprep.subr.bf16.mxu0 %v5555
        %6390 = vmatpush1.bf16.msra.mxu0 %v5554
        %6391 = vmatprep.subr.bf16.mxu0 %v5559
        %6392 = vmatpush1.bf16.msra.mxu0 %v5558
        %6393 = vmatprep.subr.bf16.mxu0 %v5563
        %6394 = vmatpush1.bf16.msra.mxu0 %v5562
        %6395 = vmatprep.subr.bf16.mxu0 %v5567
        %6396 = vmatpush1.bf16.msra.mxu0 %v5566
        %6397 = vmatprep.subr.bf16.mxu0 %v5571
        %6398 = vmatpush1.bf16.msra.mxu0 %v5570
        %6399 = vmatprep.subr.bf16.mxu0 %v5575
        %6400 = vmatpush1.bf16.msra.mxu0 %v5574
        %6401 = vmatprep.subr.bf16.mxu0 %v5579
        %6402 = vmatpush1.bf16.msra.mxu0 %v5578
        %6403 = vmatprep.subr.bf16.mxu0 %v5583
        %6404 = vmatpush1.bf16.msra.mxu0 %v5582
        %6405 = vmatprep.subr.bf16.mxu0 %v5587
        %6406 = vmatpush1.bf16.msra.mxu0 %v5586
        %6407 = vmatprep.subr.bf16.mxu0 %v5591
        %6408 = vmatpush1.bf16.msra.mxu0 %v5590
        %6409 = vmatprep.subr.bf16.mxu0 %v5595
        %6410 = vmatpush1.bf16.msra.mxu0 %v5594
        %6411 = vmatprep.subr.bf16.mxu0 %v5599
        %6412 = vmatpush1.bf16.msra.mxu0 %v5598
        %6413 = vmatprep.subr.bf16.mxu0 %v5603
        %6414 = vmatpush1.bf16.msra.mxu0 %v5602
        %6415 = vmatprep.mubr.bf16.mxu0 %v3802
        %6416 = vmatmul.mubr.bf16.gmra.mrb[0].mxu0 %v3801
        %v6417 = vpop.f32.mrb[0].mxu0
        %v6418 = vadd.f32 %v6377, %v6417
        %v6419 = vpop.f32.mrb[0].mxu0
        %v6420 = vadd.f32 %v6379, %v6419
        %v6421 = vpop.f32.mrb[0].mxu0
        %v6422 = vpop.f32.mrb[0].mxu0
        %6423 = vdwg.mxu0
        %6424 = vmatprep.subr.bf16.mxu0 %v5607
        %6425 = vmatpush1.bf16.msra.mxu0 %v5606
        %6426 = vmatprep.subr.bf16.mxu0 %v5611
        %6427 = vmatpush1.bf16.msra.mxu0 %v5610
        %6428 = vmatprep.subr.bf16.mxu0 %v5615
        %6429 = vmatpush1.bf16.msra.mxu0 %v5614
        %6430 = vmatprep.subr.bf16.mxu0 %v5619
        %6431 = vmatpush1.bf16.msra.mxu0 %v5618
        %6432 = vmatprep.subr.bf16.mxu0 %v5623
        %6433 = vmatpush1.bf16.msra.mxu0 %v5622
        %6434 = vmatprep.subr.bf16.mxu0 %v5627
        %6435 = vmatpush1.bf16.msra.mxu0 %v5626
        %6436 = vmatprep.subr.bf16.mxu0 %v5631
        %6437 = vmatpush1.bf16.msra.mxu0 %v5630
        %6438 = vmatprep.subr.bf16.mxu0 %v5635
        %6439 = vmatpush1.bf16.msra.mxu0 %v5634
        %6440 = vmatprep.subr.bf16.mxu0 %v5639
        %6441 = vmatpush1.bf16.msra.mxu0 %v5638
        %6442 = vmatprep.subr.bf16.mxu0 %v5643
        %6443 = vmatpush1.bf16.msra.mxu0 %v5642
        %6444 = vmatprep.subr.bf16.mxu0 %v5647
        %6445 = vmatpush1.bf16.msra.mxu0 %v5646
        %6446 = vmatprep.subr.bf16.mxu0 %v5651
        %6447 = vmatpush1.bf16.msra.mxu0 %v5650
        %6448 = vmatprep.subr.bf16.mxu0 %v5655
        %6449 = vmatpush1.bf16.msra.mxu0 %v5654
        %6450 = vmatprep.subr.bf16.mxu0 %v5659
        %6451 = vmatpush1.bf16.msra.mxu0 %v5658
        %6452 = vmatprep.subr.bf16.mxu0 %v5663
        %6453 = vmatpush1.bf16.msra.mxu0 %v5662
        %6454 = vmatprep.subr.bf16.mxu0 %v5667
        %6455 = vmatpush1.bf16.msra.mxu0 %v5666
        %6456 = vmatprep.mubr.bf16.mxu0 %v3804
        %6457 = vmatmul.mubr.bf16.gmra.mrb[0].mxu0 %v3803
        %v6458 = vpop.f32.mrb[0].mxu0
        %v6459 = vadd.f32 %v6418, %v6458
        %v6460 = vpop.f32.mrb[0].mxu0
        %v6461 = vadd.f32 %v6420, %v6460
        %v6462 = vpop.f32.mrb[0].mxu0
        %v6463 = vpop.f32.mrb[0].mxu0
        %6464 = vdwg.mxu0
        %6465 = vmatprep.subr.bf16.mxu0 %v5671
        %6466 = vmatpush1.bf16.msra.mxu0 %v5670
        %6467 = vmatprep.subr.bf16.mxu0 %v5675
        %6468 = vmatpush1.bf16.msra.mxu0 %v5674
        %6469 = vmatprep.subr.bf16.mxu0 %v5679
        %6470 = vmatpush1.bf16.msra.mxu0 %v5678
        %6471 = vmatprep.subr.bf16.mxu0 %v5683
        %6472 = vmatpush1.bf16.msra.mxu0 %v5682
        %6473 = vmatprep.subr.bf16.mxu0 %v5687
        %6474 = vmatpush1.bf16.msra.mxu0 %v5686
        %6475 = vmatprep.subr.bf16.mxu0 %v6170
        %6476 = vmatpush1.bf16.msra.mxu0 %v6167
        %6477 = vmatprep.subr.bf16.mxu0 0
        %6478 = vmatpush1.bf16.msra.mxu0 0
        %6479 = vmatprep.subr.bf16.mxu0 0
        %6480 = vmatpush1.bf16.msra.mxu0 0
        %6481 = vmatprep.subr.bf16.mxu0 0
        %6482 = vmatpush1.bf16.msra.mxu0 0
        %6483 = vmatprep.subr.bf16.mxu0 0
        %6484 = vmatpush1.bf16.msra.mxu0 0
        %6485 = vmatprep.subr.bf16.mxu0 0
        %6486 = vmatpush1.bf16.msra.mxu0 0
        %6487 = vmatprep.subr.bf16.mxu0 0
        %6488 = vmatpush1.bf16.msra.mxu0 0
        %6489 = vmatprep.subr.bf16.mxu0 0
        %6490 = vmatpush1.bf16.msra.mxu0 0
        %6491 = vmatprep.subr.bf16.mxu0 0
        %6492 = vmatpush1.bf16.msra.mxu0 0
        %6493 = vmatprep.subr.bf16.mxu0 0
        %6494 = vmatpush1.bf16.msra.mxu0 0
        %6495 = vmatprep.subr.bf16.mxu0 0
        %6496 = vmatpush1.bf16.msra.mxu0 0
        %6497 = vmatprep.mubr.bf16.mxu0 0
        %6498 = vmatmul.mubr.bf16.gmra.mrb[0].mxu0 %v6164
        %v6499 = vpop.f32.mrb[0].mxu0
        %v6500 = vadd.f32 %v6459, %v6499
        %v6501 = vpop.f32.mrb[0].mxu0
        %v6502 = vadd.f32 %v6461, %v6501
        %v6503 = vpop.f32.mrb[0].mxu0
        %v6504 = vpop.f32.mrb[0].mxu0
        %6505 = vdwg.mxu0
        %6506 = vmatprep.subr.bf16.mxu0 %v5225
        %6507 = vmatpush1.bf16.msra.mxu0 %v5224
        %6508 = vmatprep.subr.bf16.mxu0 %v5229
        %6509 = vmatpush1.bf16.msra.mxu0 %v5228
        %6510 = vmatprep.subr.bf16.mxu0 %v5233
        %6511 = vmatpush1.bf16.msra.mxu0 %v5232
        %6512 = vmatprep.subr.bf16.mxu0 %v5237
        %6513 = vmatpush1.bf16.msra.mxu0 %v5236
        %6514 = vmatprep.subr.bf16.mxu0 %v5241
        %6515 = vmatpush1.bf16.msra.mxu0 %v5240
        %6516 = vmatprep.subr.bf16.mxu0 %v5245
        %6517 = vmatpush1.bf16.msra.mxu0 %v5244
        %6518 = vmatprep.subr.bf16.mxu0 %v5249
        %6519 = vmatpush1.bf16.msra.mxu0 %v5248
        %6520 = vmatprep.subr.bf16.mxu0 %v5253
        %6521 = vmatpush1.bf16.msra.mxu0 %v5252
        %6522 = vmatprep.subr.bf16.mxu0 %v5257
        %6523 = vmatpush1.bf16.msra.mxu0 %v5256
        %6524 = vmatprep.subr.bf16.mxu0 %v5261
        %6525 = vmatpush1.bf16.msra.mxu0 %v5260
        %6526 = vmatprep.subr.bf16.mxu0 %v5265
        %6527 = vmatpush1.bf16.msra.mxu0 %v5264
        %6528 = vmatprep.subr.bf16.mxu0 %v5269
        %6529 = vmatpush1.bf16.msra.mxu0 %v5268
        %6530 = vmatprep.subr.bf16.mxu0 %v5273
        %6531 = vmatpush1.bf16.msra.mxu0 %v5272
        %6532 = vmatprep.subr.bf16.mxu0 %v5277
        %6533 = vmatpush1.bf16.msra.mxu0 %v5276
        %6534 = vmatprep.subr.bf16.mxu0 %v5281
        %6535 = vmatpush1.bf16.msra.mxu0 %v5280
        %6536 = vmatprep.subr.bf16.mxu0 %v5285
        %6537 = vmatpush1.bf16.msra.mxu0 %v5284
        %6538 = vmatprep.mubr.bf16.mxu0 %v3792
        %6539 = vmatmul.mubr.bf16.gmra.mrb[0].mxu0 %v3791
        %v6540 = vpop.f32.mrb[0].mxu0
        %v6541 = vadd.f32 0.0, %v6540
        %v6542 = vpop.f32.mrb[0].mxu0
        %v6543 = vadd.f32 0.0, %v6542
        %v6544 = vpop.f32.mrb[0].mxu0
        %v6545 = vpop.f32.mrb[0].mxu0
        %6546 = vdwg.mxu0
        %6547 = vmatprep.subr.bf16.mxu0 %v5289
        %6548 = vmatpush1.bf16.msra.mxu0 %v5288
        %6549 = vmatprep.subr.bf16.mxu0 %v5293
        %6550 = vmatpush1.bf16.msra.mxu0 %v5292
        %6551 = vmatprep.subr.bf16.mxu0 %v5297
        %6552 = vmatpush1.bf16.msra.mxu0 %v5296
        %6553 = vmatprep.subr.bf16.mxu0 %v5301
        %6554 = vmatpush1.bf16.msra.mxu0 %v5300
        %6555 = vmatprep.subr.bf16.mxu0 %v5305
        %6556 = vmatpush1.bf16.msra.mxu0 %v5304
        %6557 = vmatprep.subr.bf16.mxu0 %v5309
        %6558 = vmatpush1.bf16.msra.mxu0 %v5308
        %6559 = vmatprep.subr.bf16.mxu0 %v5313
        %6560 = vmatpush1.bf16.msra.mxu0 %v5312
        %6561 = vmatprep.subr.bf16.mxu0 %v5317
        %6562 = vmatpush1.bf16.msra.mxu0 %v5316
        %6563 = vmatprep.subr.bf16.mxu0 %v5321
        %6564 = vmatpush1.bf16.msra.mxu0 %v5320
        %6565 = vmatprep.subr.bf16.mxu0 %v5325
        %6566 = vmatpush1.bf16.msra.mxu0 %v5324
        %6567 = vmatprep.subr.bf16.mxu0 %v5329
        %6568 = vmatpush1.bf16.msra.mxu0 %v5328
        %6569 = vmatprep.subr.bf16.mxu0 %v5333
        %6570 = vmatpush1.bf16.msra.mxu0 %v5332
        %6571 = vmatprep.subr.bf16.mxu0 %v5337
        %6572 = vmatpush1.bf16.msra.mxu0 %v5336
        %6573 = vmatprep.subr.bf16.mxu0 %v5341
        %6574 = vmatpush1.bf16.msra.mxu0 %v5340
        %6575 = vmatprep.subr.bf16.mxu0 %v5345
        %6576 = vmatpush1.bf16.msra.mxu0 %v5344
        %6577 = vmatprep.subr.bf16.mxu0 %v5349
        %6578 = vmatpush1.bf16.msra.mxu0 %v5348
        %6579 = vmatprep.mubr.bf16.mxu0 %v3794
        %6580 = vmatmul.mubr.bf16.gmra.mrb[0].mxu0 %v3793
        %v6581 = vpop.f32.mrb[0].mxu0
        %v6582 = vadd.f32 %v6541, %v6581
        %v6583 = vpop.f32.mrb[0].mxu0
        %v6584 = vadd.f32 %v6543, %v6583
        %v6585 = vpop.f32.mrb[0].mxu0
        %v6586 = vpop.f32.mrb[0].mxu0
        %6587 = vdwg.mxu0
        %6588 = vmatprep.subr.bf16.mxu0 %v5353
        %6589 = vmatpush1.bf16.msra.mxu0 %v5352
        %6590 = vmatprep.subr.bf16.mxu0 %v5357
        %6591 = vmatpush1.bf16.msra.mxu0 %v5356
        %6592 = vmatprep.subr.bf16.mxu0 %v5361
        %6593 = vmatpush1.bf16.msra.mxu0 %v5360
        %6594 = vmatprep.subr.bf16.mxu0 %v5365
        %6595 = vmatpush1.bf16.msra.mxu0 %v5364
        %6596 = vmatprep.subr.bf16.mxu0 %v5369
        %6597 = vmatpush1.bf16.msra.mxu0 %v5368
        %6598 = vmatprep.subr.bf16.mxu0 %v5373
        %6599 = vmatpush1.bf16.msra.mxu0 %v5372
        %6600 = vmatprep.subr.bf16.mxu0 %v5377
        %6601 = vmatpush1.bf16.msra.mxu0 %v5376
        %6602 = vmatprep.subr.bf16.mxu0 %v5381
        %6603 = vmatpush1.bf16.msra.mxu0 %v5380
        %6604 = vmatprep.subr.bf16.mxu0 %v5385
        %6605 = vmatpush1.bf16.msra.mxu0 %v5384
        %6606 = vmatprep.subr.bf16.mxu0 %v5389
        %6607 = vmatpush1.bf16.msra.mxu0 %v5388
        %6608 = vmatprep.subr.bf16.mxu0 %v5393
        %6609 = vmatpush1.bf16.msra.mxu0 %v5392
        %6610 = vmatprep.subr.bf16.mxu0 %v5397
        %6611 = vmatpush1.bf16.msra.mxu0 %v5396
        %6612 = vmatprep.subr.bf16.mxu0 %v5401
        %6613 = vmatpush1.bf16.msra.mxu0 %v5400
        %6614 = vmatprep.subr.bf16.mxu0 %v5405
        %6615 = vmatpush1.bf16.msra.mxu0 %v5404
        %6616 = vmatprep.subr.bf16.mxu0 %v5409
        %6617 = vmatpush1.bf16.msra.mxu0 %v5408
        %6618 = vmatprep.subr.bf16.mxu0 %v5413
        %6619 = vmatpush1.bf16.msra.mxu0 %v5412
        %6620 = vmatprep.mubr.bf16.mxu0 %v3796
        %6621 = vmatmul.mubr.bf16.gmra.mrb[0].mxu0 %v3795
        %v6622 = vpop.f32.mrb[0].mxu0
        %v6623 = vadd.f32 %v6582, %v6622
        %v6624 = vpop.f32.mrb[0].mxu0
        %v6625 = vadd.f32 %v6584, %v6624
        %v6626 = vpop.f32.mrb[0].mxu0
        %v6627 = vpop.f32.mrb[0].mxu0
        %6628 = vdwg.mxu0
        %6629 = vmatprep.subr.bf16.mxu0 %v5417
        %6630 = vmatpush1.bf16.msra.mxu0 %v5416
        %6631 = vmatprep.subr.bf16.mxu0 %v5421
        %6632 = vmatpush1.bf16.msra.mxu0 %v5420
        %6633 = vmatprep.subr.bf16.mxu0 %v5425
        %6634 = vmatpush1.bf16.msra.mxu0 %v5424
        %6635 = vmatprep.subr.bf16.mxu0 %v5429
        %6636 = vmatpush1.bf16.msra.mxu0 %v5428
        %6637 = vmatprep.subr.bf16.mxu0 %v5433
        %6638 = vmatpush1.bf16.msra.mxu0 %v5432
        %6639 = vmatprep.subr.bf16.mxu0 %v5437
        %6640 = vmatpush1.bf16.msra.mxu0 %v5436
        %6641 = vmatprep.subr.bf16.mxu0 %v5441
        %6642 = vmatpush1.bf16.msra.mxu0 %v5440
        %6643 = vmatprep.subr.bf16.mxu0 %v5445
        %6644 = vmatpush1.bf16.msra.mxu0 %v5444
        %6645 = vmatprep.subr.bf16.mxu0 %v5449
        %6646 = vmatpush1.bf16.msra.mxu0 %v5448
        %6647 = vmatprep.subr.bf16.mxu0 %v5453
        %6648 = vmatpush1.bf16.msra.mxu0 %v5452
        %6649 = vmatprep.subr.bf16.mxu0 %v5457
        %6650 = vmatpush1.bf16.msra.mxu0 %v5456
        %6651 = vmatprep.subr.bf16.mxu0 %v5461
        %6652 = vmatpush1.bf16.msra.mxu0 %v5460
        %6653 = vmatprep.subr.bf16.mxu0 %v5465
        %6654 = vmatpush1.bf16.msra.mxu0 %v5464
        %6655 = vmatprep.subr.bf16.mxu0 %v5469
        %6656 = vmatpush1.bf16.msra.mxu0 %v5468
        %6657 = vmatprep.subr.bf16.mxu0 %v5473
        %6658 = vmatpush1.bf16.msra.mxu0 %v5472
        %6659 = vmatprep.subr.bf16.mxu0 %v5477
        %6660 = vmatpush1.bf16.msra.mxu0 %v5476
        %6661 = vmatprep.mubr.bf16.mxu0 %v3798
        %6662 = vmatmul.mubr.bf16.gmra.mrb[0].mxu0 %v3797
        %v6663 = vpop.f32.mrb[0].mxu0
        %v6664 = vadd.f32 %v6623, %v6663
        %v6665 = vpop.f32.mrb[0].mxu0
        %v6666 = vadd.f32 %v6625, %v6665
        %v6667 = vpop.f32.mrb[0].mxu0
        %v6668 = vpop.f32.mrb[0].mxu0
        %6669 = vdwg.mxu0
        %6670 = vmatprep.subr.bf16.mxu0 %v5481
        %6671 = vmatpush1.bf16.msra.mxu0 %v5480
        %6672 = vmatprep.subr.bf16.mxu0 %v5485
        %6673 = vmatpush1.bf16.msra.mxu0 %v5484
        %6674 = vmatprep.subr.bf16.mxu0 %v5489
        %6675 = vmatpush1.bf16.msra.mxu0 %v5488
        %6676 = vmatprep.subr.bf16.mxu0 %v5493
        %6677 = vmatpush1.bf16.msra.mxu0 %v5492
        %6678 = vmatprep.subr.bf16.mxu0 %v5497
        %6679 = vmatpush1.bf16.msra.mxu0 %v5496
        %6680 = vmatprep.subr.bf16.mxu0 %v5501
        %6681 = vmatpush1.bf16.msra.mxu0 %v5500
        %6682 = vmatprep.subr.bf16.mxu0 %v5505
        %6683 = vmatpush1.bf16.msra.mxu0 %v5504
        %6684 = vmatprep.subr.bf16.mxu0 %v5509
        %6685 = vmatpush1.bf16.msra.mxu0 %v5508
        %6686 = vmatprep.subr.bf16.mxu0 %v5513
        %6687 = vmatpush1.bf16.msra.mxu0 %v5512
        %6688 = vmatprep.subr.bf16.mxu0 %v5517
        %6689 = vmatpush1.bf16.msra.mxu0 %v5516
        %6690 = vmatprep.subr.bf16.mxu0 %v5521
        %6691 = vmatpush1.bf16.msra.mxu0 %v5520
        %6692 = vmatprep.subr.bf16.mxu0 %v5525
        %6693 = vmatpush1.bf16.msra.mxu0 %v5524
        %6694 = vmatprep.subr.bf16.mxu0 %v5529
        %6695 = vmatpush1.bf16.msra.mxu0 %v5528
        %6696 = vmatprep.subr.bf16.mxu0 %v5533
        %6697 = vmatpush1.bf16.msra.mxu0 %v5532
        %6698 = vmatprep.subr.bf16.mxu0 %v5537
        %6699 = vmatpush1.bf16.msra.mxu0 %v5536
        %6700 = vmatprep.subr.bf16.mxu0 %v5541
        %6701 = vmatpush1.bf16.msra.mxu0 %v5540
        %6702 = vmatprep.mubr.bf16.mxu0 %v3800
        %6703 = vmatmul.mubr.bf16.gmra.mrb[0].mxu0 %v3799
        %v6704 = vpop.f32.mrb[0].mxu0
        %v6705 = vadd.f32 %v6664, %v6704
        %v6706 = vpop.f32.mrb[0].mxu0
        %v6707 = vadd.f32 %v6666, %v6706
        %v6708 = vpop.f32.mrb[0].mxu0
        %v6709 = vpop.f32.mrb[0].mxu0
        %6710 = vdwg.mxu0
        %6711 = vmatprep.subr.bf16.mxu0 %v5545
        %6712 = vmatpush1.bf16.msra.mxu0 %v5544
        %6713 = vmatprep.subr.bf16.mxu0 %v5549
        %6714 = vmatpush1.bf16.msra.mxu0 %v5548
        %6715 = vmatprep.subr.bf16.mxu0 %v5553
        %6716 = vmatpush1.bf16.msra.mxu0 %v5552
        %6717 = vmatprep.subr.bf16.mxu0 %v5557
        %6718 = vmatpush1.bf16.msra.mxu0 %v5556
        %6719 = vmatprep.subr.bf16.mxu0 %v5561
        %6720 = vmatpush1.bf16.msra.mxu0 %v5560
        %6721 = vmatprep.subr.bf16.mxu0 %v5565
        %6722 = vmatpush1.bf16.msra.mxu0 %v5564
        %6723 = vmatprep.subr.bf16.mxu0 %v5569
        %6724 = vmatpush1.bf16.msra.mxu0 %v5568
        %6725 = vmatprep.subr.bf16.mxu0 %v5573
        %6726 = vmatpush1.bf16.msra.mxu0 %v5572
        %6727 = vmatprep.subr.bf16.mxu0 %v5577
        %6728 = vmatpush1.bf16.msra.mxu0 %v5576
        %6729 = vmatprep.subr.bf16.mxu0 %v5581
        %6730 = vmatpush1.bf16.msra.mxu0 %v5580
        %6731 = vmatprep.subr.bf16.mxu0 %v5585
        %6732 = vmatpush1.bf16.msra.mxu0 %v5584
        %6733 = vmatprep.subr.bf16.mxu0 %v5589
        %6734 = vmatpush1.bf16.msra.mxu0 %v5588
        %6735 = vmatprep.subr.bf16.mxu0 %v5593
        %6736 = vmatpush1.bf16.msra.mxu0 %v5592
        %6737 = vmatprep.subr.bf16.mxu0 %v5597
        %6738 = vmatpush1.bf16.msra.mxu0 %v5596
        %6739 = vmatprep.subr.bf16.mxu0 %v5601
        %6740 = vmatpush1.bf16.msra.mxu0 %v5600
        %6741 = vmatprep.subr.bf16.mxu0 %v5605
        %6742 = vmatpush1.bf16.msra.mxu0 %v5604
        %6743 = vmatprep.mubr.bf16.mxu0 %v3802
        %6744 = vmatmul.mubr.bf16.gmra.mrb[0].mxu0 %v3801
        %v6745 = vpop.f32.mrb[0].mxu0
        %v6746 = vadd.f32 %v6705, %v6745
        %v6747 = vpop.f32.mrb[0].mxu0
        %v6748 = vadd.f32 %v6707, %v6747
        %v6749 = vpop.f32.mrb[0].mxu0
        %v6750 = vpop.f32.mrb[0].mxu0
        %6751 = vdwg.mxu0
        %6752 = vmatprep.subr.bf16.mxu0 %v5609
        %6753 = vmatpush1.bf16.msra.mxu0 %v5608
        %6754 = vmatprep.subr.bf16.mxu0 %v5613
        %6755 = vmatpush1.bf16.msra.mxu0 %v5612
        %6756 = vmatprep.subr.bf16.mxu0 %v5617
        %6757 = vmatpush1.bf16.msra.mxu0 %v5616
        %6758 = vmatprep.subr.bf16.mxu0 %v5621
        %6759 = vmatpush1.bf16.msra.mxu0 %v5620
        %6760 = vmatprep.subr.bf16.mxu0 %v5625
        %6761 = vmatpush1.bf16.msra.mxu0 %v5624
        %6762 = vmatprep.subr.bf16.mxu0 %v5629
        %6763 = vmatpush1.bf16.msra.mxu0 %v5628
        %6764 = vmatprep.subr.bf16.mxu0 %v5633
        %6765 = vmatpush1.bf16.msra.mxu0 %v5632
        %6766 = vmatprep.subr.bf16.mxu0 %v5637
        %6767 = vmatpush1.bf16.msra.mxu0 %v5636
        %6768 = vmatprep.subr.bf16.mxu0 %v5641
        %6769 = vmatpush1.bf16.msra.mxu0 %v5640
        %6770 = vmatprep.subr.bf16.mxu0 %v5645
        %6771 = vmatpush1.bf16.msra.mxu0 %v5644
        %6772 = vmatprep.subr.bf16.mxu0 %v5649
        %6773 = vmatpush1.bf16.msra.mxu0 %v5648
        %6774 = vmatprep.subr.bf16.mxu0 %v5653
        %6775 = vmatpush1.bf16.msra.mxu0 %v5652
        %6776 = vmatprep.subr.bf16.mxu0 %v5657
        %6777 = vmatpush1.bf16.msra.mxu0 %v5656
        %6778 = vmatprep.subr.bf16.mxu0 %v5661
        %6779 = vmatpush1.bf16.msra.mxu0 %v5660
        %6780 = vmatprep.subr.bf16.mxu0 %v5665
        %6781 = vmatpush1.bf16.msra.mxu0 %v5664
        %6782 = vmatprep.subr.bf16.mxu0 %v5669
        %6783 = vmatpush1.bf16.msra.mxu0 %v5668
        %6784 = vmatprep.mubr.bf16.mxu0 %v3804
        %6785 = vmatmul.mubr.bf16.gmra.mrb[0].mxu0 %v3803
        %v6786 = vpop.f32.mrb[0].mxu0
        %v6787 = vadd.f32 %v6746, %v6786
        %v6788 = vpop.f32.mrb[0].mxu0
        %v6789 = vadd.f32 %v6748, %v6788
        %v6790 = vpop.f32.mrb[0].mxu0
        %v6791 = vpop.f32.mrb[0].mxu0
        %6792 = vdwg.mxu0
        %6793 = vmatprep.subr.bf16.mxu0 %v5673
        %6794 = vmatpush1.bf16.msra.mxu0 %v5672
        %6795 = vmatprep.subr.bf16.mxu0 %v5677
        %6796 = vmatpush1.bf16.msra.mxu0 %v5676
        %6797 = vmatprep.subr.bf16.mxu0 %v5681
        %6798 = vmatpush1.bf16.msra.mxu0 %v5680
        %6799 = vmatprep.subr.bf16.mxu0 %v5685
        %6800 = vmatpush1.bf16.msra.mxu0 %v5684
        %6801 = vmatprep.subr.bf16.mxu0 %v5689
        %6802 = vmatpush1.bf16.msra.mxu0 %v5688
        %6803 = vmatprep.subr.bf16.mxu0 %v6176
        %6804 = vmatpush1.bf16.msra.mxu0 %v6173
        %6805 = vmatprep.subr.bf16.mxu0 0
        %6806 = vmatpush1.bf16.msra.mxu0 0
        %6807 = vmatprep.subr.bf16.mxu0 0
        %6808 = vmatpush1.bf16.msra.mxu0 0
        %6809 = vmatprep.subr.bf16.mxu0 0
        %6810 = vmatpush1.bf16.msra.mxu0 0
        %6811 = vmatprep.subr.bf16.mxu0 0
        %6812 = vmatpush1.bf16.msra.mxu0 0
        %6813 = vmatprep.subr.bf16.mxu0 0
        %6814 = vmatpush1.bf16.msra.mxu0 0
        %6815 = vmatprep.subr.bf16.mxu0 0
        %6816 = vmatpush1.bf16.msra.mxu0 0
        %6817 = vmatprep.subr.bf16.mxu0 0
        %6818 = vmatpush1.bf16.msra.mxu0 0
        %6819 = vmatprep.subr.bf16.mxu0 0
        %6820 = vmatpush1.bf16.msra.mxu0 0
        %6821 = vmatprep.subr.bf16.mxu0 0
        %6822 = vmatpush1.bf16.msra.mxu0 0
        %6823 = vmatprep.subr.bf16.mxu0 0
        %6824 = vmatpush1.bf16.msra.mxu0 0
        %6825 = vmatprep.mubr.bf16.mxu0 0
        %6826 = vmatmul.mubr.bf16.gmra.mrb[0].mxu0 %v6164
        %v6827 = vpop.f32.mrb[0].mxu0
        %v6828 = vadd.f32 %v6787, %v6827
        %v6829 = vpop.f32.mrb[0].mxu0
        %v6830 = vadd.f32 %v6789, %v6829
        %v6831 = vpop.f32.mrb[0].mxu0
        %v6832 = vpop.f32.mrb[0].mxu0
        %6833 = vdwg.mxu0
        %v6834 = vld [vmem:[%s4] sm:$0xf]
        %v6835 = vld [vmem:[%s4 + $0x4] sm:$0xf]
        %v6836 = vld [vmem:[%s4 + $0x8] sm:$0xf]
        %v6837 = vld [vmem:[%s4 + $0xc] sm:$0xf]
        %v6838 = vld [vmem:[%s4 + $0x10] sm:$0xf]
        %v6839 = vld [vmem:[%s4 + $0x14] sm:$0xf]
        %v6840 = vld [vmem:[%s4 + $0x18] sm:$0xf]
        %v6841 = vld [vmem:[%s4 + $0x1c] sm:$0xf]
        %v6842 = vld [vmem:[%s4 + $0x20] sm:$0xf]
        %v6843 = vld [vmem:[%s4 + $0x24] sm:$0xf]
        %v6844 = vld [vmem:[%s4 + $0x28] sm:$0xf]
        %v6845 = vld [vmem:[%s4 + $0x2c] sm:$0xf]
        %v6846 = vld [vmem:[%s4 + $0x30] sm:$0xf]
        %v6847 = vld [vmem:[%s4 + $0x34] sm:$0xf]
        %v6848 = vld [vmem:[%s4 + $0x38] sm:$0xf]
        %v6849 = vld [vmem:[%s4 + $0x3c] sm:$0xf]
        %v6850 = vld [vmem:[%s4 + $0x40] sm:$0xf]
        %v6851 = vld [vmem:[%s4 + $0x44] sm:$0xf]
        %v6852 = vld [vmem:[%s4 + $0x48] sm:$0xf]
        %v6853 = vld [vmem:[%s4 + $0x4c] sm:$0xf]
        %v6854 = vld [vmem:[%s4 + $0x50] sm:$0xf]
        %v6855 = vld [vmem:[%s4 + $0x54] sm:$0xf]
        %v6856 = vld [vmem:[%s4 + $0x58] sm:$0xf]
        %v6857 = vld [vmem:[%s4 + $0x5c] sm:$0xf]
        %v6858 = vld [vmem:[%s4 + $0x60] sm:$0xf]
        %v6859 = vld [vmem:[%s4 + $0x64] sm:$0xf]
        %v6860 = vld [vmem:[%s4 + $0x68] sm:$0xf]
        %v6861 = vld [vmem:[%s4 + $0x6c] sm:$0xf]
        %v6862 = vld [vmem:[%s4 + $0x70] sm:$0xf]
        %v6863 = vld [vmem:[%s4 + $0x74] sm:$0xf]
        %v6864 = vld [vmem:[%s4 + $0x78] sm:$0xf]
        %v6865 = vld [vmem:[%s4 + $0x7c] sm:$0xf]
        %v6866 = vld [vmem:[%s4 + $0x80] sm:$0xf]
        %v6867 = vld [vmem:[%s4 + $0x84] sm:$0xf]
        %v6868 = vld [vmem:[%s4 + $0x88] sm:$0xf]
        %v6869 = vld [vmem:[%s4 + $0x8c] sm:$0xf]
        %v6870 = vld [vmem:[%s4 + $0x90] sm:$0xf]
        %v6871 = vld [vmem:[%s4 + $0x94] sm:$0xf]
        %v6872 = vld [vmem:[%s4 + $0x98] sm:$0xf]
        %v6873 = vld [vmem:[%s4 + $0x9c] sm:$0x7]
        %v6874 = vpack.c.bf16 %v6500, %v6500
        %v6875 = vpack.c.bf16 %v6502, %v6502
        %v6876 = vpack.c.bf16 %v6828, %v6828
        %v6877 = vpack.c.bf16 %v6830, %v6830
        %v6881 = vrot.slane %v6874, 5
        %v6882 = vrot.slane %v6875, 5
        %v6883 = vrot.slane %v6876, 5
        %6884 = vrot.lane.b32.xlu0 %v6881, 127
        %v6885 = vpop.permute.xlu0 %6884
        %6886 = vrot.lane.b32.xlu0 %v6882, 127
        %v6887 = vpop.permute.xlu0 %6886
        %6888 = vrot.lane.b32.xlu0 %v6883, 127
        %v6889 = vpop.permute.xlu0 %6888
        %v6890 = vsel %vm1058, %v6885, %v6887
        %v6891 = vsel %vm1058, %v6887, %v6889
        %v6892 = vrot.slane %v6874, 2
        %v6893 = vrot.slane %v6875, 2
        %v6894 = vrot.slane %v6876, 2
        %6895 = vrot.lane.b32.xlu0 %v6892, 126
        %v6896 = vpop.permute.xlu0 %6895
        %6897 = vrot.lane.b32.xlu0 %v6893, 126
        %v6898 = vpop.permute.xlu0 %6897
        %6899 = vrot.lane.b32.xlu0 %v6894, 126
        %v6900 = vpop.permute.xlu0 %6899
        %v6901 = vsel %vm1133, %v6896, %v6898
        %v6902 = vsel %vm1133, %v6898, %v6900
        %v6903 = vrot.slane %v6874, 7
        %v6904 = vrot.slane %v6875, 7
        %v6905 = vrot.slane %v6876, 7
        %6906 = vrot.lane.b32.xlu0 %v6903, 125
        %v6907 = vpop.permute.xlu0 %6906
        %6908 = vrot.lane.b32.xlu0 %v6904, 125
        %v6909 = vpop.permute.xlu0 %6908
        %6910 = vrot.lane.b32.xlu0 %v6905, 125
        %v6911 = vpop.permute.xlu0 %6910
        %v6912 = vsel %vm1223, %v6907, %v6909
        %v6913 = vsel %vm1223, %v6909, %v6911
        %v6914 = vrot.slane %v6874, 4
        %v6915 = vrot.slane %v6875, 4
        %v6916 = vrot.slane %v6876, 4
        %6917 = vrot.lane.b32.xlu0 %v6914, 124
        %v6918 = vpop.permute.xlu0 %6917
        %6919 = vrot.lane.b32.xlu0 %v6915, 124
        %v6920 = vpop.permute.xlu0 %6919
        %6921 = vrot.lane.b32.xlu0 %v6916, 124
        %v6922 = vpop.permute.xlu0 %6921
        %v6923 = vsel %vm1323, %v6918, %v6920
        %v6924 = vsel %vm1323, %v6920, %v6922
        %v6925 = vrot.slane %v6874, 1
        %v6926 = vrot.slane %v6875, 1
        %v6927 = vrot.slane %v6876, 1
        %6928 = vrot.lane.b32.xlu0 %v6925, 114
        %v6929 = vpop.permute.xlu0 %6928
        %6930 = vrot.lane.b32.xlu0 %v6926, 114
        %v6931 = vpop.permute.xlu0 %6930
        %6932 = vrot.lane.b32.xlu0 %v6927, 114
        %v6933 = vpop.permute.xlu0 %6932
        %vm6934 = vcmask 932864
        %v6935 = vsel %vm6934, %v6929, %v6931
        %v6936 = vsel %vm6934, %v6931, %v6933
        %v6937 = vrot.slane %v6874, 6
        %v6938 = vrot.slane %v6875, 6
        %v6939 = vrot.slane %v6876, 6
        %6940 = vrot.lane.b32.xlu0 %v6937, 113
        %v6941 = vpop.permute.xlu0 %6940
        %6942 = vrot.lane.b32.xlu0 %v6938, 113
        %v6943 = vpop.permute.xlu0 %6942
        %6944 = vrot.lane.b32.xlu0 %v6939, 113
        %v6945 = vpop.permute.xlu0 %6944
        %vm6946 = vcmask 924672
        %v6947 = vsel %vm6946, %v6941, %v6943
        %v6948 = vsel %vm6946, %v6943, %v6945
        %v6949 = vrot.slane %v6874, 3
        %v6950 = vrot.slane %v6875, 3
        %v6951 = vrot.slane %v6876, 3
        %6952 = vrot.lane.b32.xlu0 %v6949, 112
        %v6953 = vpop.permute.xlu0 %6952
        %6954 = vrot.lane.b32.xlu0 %v6950, 112
        %v6955 = vpop.permute.xlu0 %6954
        %6956 = vrot.lane.b32.xlu0 %v6951, 112
        %v6957 = vpop.permute.xlu0 %6956
        %vm6958 = vcmask 916480
        %v6959 = vsel %vm6958, %v6953, %v6955
        %v6960 = vsel %vm6958, %v6955, %v6957
        %6961 = vrot.lane.b32.xlu0 %v6874, 111
        %v6962 = vpop.permute.xlu0 %6961
        %6963 = vrot.lane.b32.xlu0 %v6875, 111
        %v6964 = vpop.permute.xlu0 %6963
        %6965 = vrot.lane.b32.xlu0 %v6876, 111
        %v6966 = vpop.permute.xlu0 %6965
        %vm6967 = vcmask 908288
        %v6968 = vsel %vm6967, %v6962, %v6964
        %v6969 = vsel %vm6967, %v6964, %v6966
        %6970 = vrot.lane.b32.xlu0 %v6881, 110
        %v6971 = vpop.permute.xlu0 %6970
        %6972 = vrot.lane.b32.xlu0 %v6882, 110
        %v6973 = vpop.permute.xlu0 %6972
        %6974 = vrot.lane.b32.xlu0 %v6883, 110
        %v6975 = vpop.permute.xlu0 %6974
        %vm6976 = vcmask 900096
        %v6977 = vsel %vm6976, %v6971, %v6973
        %v6978 = vsel %vm6976, %v6973, %v6975
        %6979 = vrot.lane.b32.xlu0 %v6892, 100
        %v6980 = vpop.permute.xlu0 %6979
        %6981 = vrot.lane.b32.xlu0 %v6893, 100
        %v6982 = vpop.permute.xlu0 %6981
        %6983 = vrot.lane.b32.xlu0 %v6894, 100
        %v6984 = vpop.permute.xlu0 %6983
        %vm6985 = vcmask 818176
        %v6986 = vsel %vm6985, %v6980, %v6982
        %v6987 = vsel %vm6985, %v6982, %v6984
        %6988 = vrot.lane.b32.xlu0 %v6903, 99
        %v6989 = vpop.permute.xlu0 %6988
        %6990 = vrot.lane.b32.xlu0 %v6904, 99
        %v6991 = vpop.permute.xlu0 %6990
        %6992 = vrot.lane.b32.xlu0 %v6905, 99
        %v6993 = vpop.permute.xlu0 %6992
        %vm6994 = vcmask 809984
        %v6995 = vsel %vm6994, %v6989, %v6991
        %v6996 = vsel %vm6994, %v6991, %v6993
        %6997 = vrot.lane.b32.xlu0 %v6914, 98
        %v6998 = vpop.permute.xlu0 %6997
        %6999 = vrot.lane.b32.xlu0 %v6915, 98
        %v7000 = vpop.permute.xlu0 %6999
        %7001 = vrot.lane.b32.xlu0 %v6916, 98
        %v7002 = vpop.permute.xlu0 %7001
        %vm7003 = vcmask 801792
        %v7004 = vsel %vm7003, %v6998, %v7000
        %v7005 = vsel %vm7003, %v7000, %v7002
        %7006 = vrot.lane.b32.xlu0 %v6925, 97
        %v7007 = vpop.permute.xlu0 %7006
        %7008 = vrot.lane.b32.xlu0 %v6926, 97
        %v7009 = vpop.permute.xlu0 %7008
        %7010 = vrot.lane.b32.xlu0 %v6927, 97
        %v7011 = vpop.permute.xlu0 %7010
        %v7012 = vsel %vm2958, %v7007, %v7009
        %v7013 = vsel %vm2958, %v7009, %v7011
        %7014 = vrot.lane.b32.xlu0 %v6937, 96
        %v7015 = vpop.permute.xlu0 %7014
        %7016 = vrot.lane.b32.xlu0 %v6938, 96
        %v7017 = vpop.permute.xlu0 %7016
        %7018 = vrot.lane.b32.xlu0 %v6939, 96
        %v7019 = vpop.permute.xlu0 %7018
        %v7020 = vsel %vm1440, %v7015, %v7017
        %v7021 = vsel %vm1440, %v7017, %v7019
        %7022 = vrot.lane.b32.xlu0 %v6949, 86
        %v7023 = vpop.permute.xlu0 %7022
        %7024 = vrot.lane.b32.xlu0 %v6950, 86
        %v7025 = vpop.permute.xlu0 %7024
        %7026 = vrot.lane.b32.xlu0 %v6951, 86
        %v7027 = vpop.permute.xlu0 %7026
        %vm7028 = vcmask 703488
        %v7029 = vsel %vm7028, %v7023, %v7025
        %v7030 = vsel %vm7028, %v7025, %v7027
        %v7033 = vsel %vm2354, %v6874, %v6890
        %v7036 = vsel %vm2354, %v6875, %v6891
        %v7039 = vsel %vm2354, %v6876, %v6889
        %v7041 = vsel %vm2433, %v7033, %v6901
        %v7044 = vsel %vm2433, %v7036, %v6902
        %v7047 = vsel %vm2433, %v7039, %v6900
        %v7050 = vsel %vm2512, %v6901, %v6912
        %v7052 = vsel %vm2512, %v6902, %v6913
        %v7054 = vsel %vm2512, %v6900, %v6911
        %v7056 = vsel %vm2591, %v7050, %v6923
        %v7058 = vsel %vm2591, %v7052, %v6924
        %v7060 = vsel %vm2591, %v7054, %v6922
        %v7062 = vsel %vm2670, %v7056, %v6935
        %v7065 = vsel %vm2670, %v7058, %v6936
        %v7068 = vsel %vm2670, %v7060, %v6933
        %v7071 = vsel %vm2749, %v6935, %v6947
        %v7073 = vsel %vm2749, %v6936, %v6948
        %v7075 = vsel %vm2749, %v6933, %v6945
        %v7077 = vsel %vm2828, %v7071, %v6959
        %v7080 = vsel %vm2828, %v7073, %v6960
        %v7083 = vsel %vm2828, %v7075, %v6957
        %v7087 = vsel %vm2354, %v6968, %v6977
        %v7090 = vsel %vm2354, %v6969, %v6978
        %v7093 = vsel %vm2354, %v6966, %v6975
        %v7095 = vsel %vm2433, %v7087, %v6986
        %v7098 = vsel %vm2433, %v7090, %v6987
        %v7101 = vsel %vm2433, %v7093, %v6984
        %v7104 = vsel %vm2512, %v6986, %v6995
        %v7106 = vsel %vm2512, %v6987, %v6996
        %v7108 = vsel %vm2512, %v6984, %v6993
        %v7110 = vsel %vm2591, %v7104, %v7004
        %v7112 = vsel %vm2591, %v7106, %v7005
        %v7114 = vsel %vm2591, %v7108, %v7002
        %v7116 = vsel %vm2670, %v7110, %v7012
        %v7119 = vsel %vm2670, %v7112, %v7013
        %v7122 = vsel %vm2670, %v7114, %v7011
        %v7125 = vsel %vm2749, %v7012, %v7020
        %v7127 = vsel %vm2749, %v7013, %v7021
        %v7129 = vsel %vm2749, %v7011, %v7019
        %v7131 = vsel %vm2828, %v7125, %v7029
        %v7134 = vsel %vm2828, %v7127, %v7030
        %v7137 = vsel %vm2828, %v7129, %v7027
        %v7140 = vrot.slane %v6877, 4
        %7141 = vrot.lane.b32.xlu0 %v6914, 115
        %v7142 = vpop.permute.xlu0 %7141
        %7143 = vrot.lane.b32.xlu0 %v6915, 115
        %v7144 = vpop.permute.xlu0 %7143
        %7145 = vrot.lane.b32.xlu0 %v6916, 115
        %v7146 = vpop.permute.xlu0 %7145
        %7147 = vrot.lane.b32.xlu0 %v7140, 115
        %v7148 = vpop.permute.xlu0 %7147
        %vm7149 = vcmask 941056
        %v7150 = vsel %vm7149, %v7142, %v7144
        %v7151 = vsel %vm7149, %v7144, %v7146
        %v7152 = vsel %vm7149, %v7146, %v7148
        %v7153 = vrot.slane %v6877, 1
        %7154 = vrot.lane.b32.xlu0 %v7153, 114
        %v7155 = vpop.permute.xlu0 %7154
        %v7156 = vsel %vm6934, %v6933, %v7155
        %v7157 = vrot.slane %v6877, 6
        %7158 = vrot.lane.b32.xlu0 %v7157, 113
        %v7159 = vpop.permute.xlu0 %7158
        %v7160 = vsel %vm6946, %v6945, %v7159
        %v7161 = vrot.slane %v6877, 3
        %7162 = vrot.lane.b32.xlu0 %v7161, 112
        %v7163 = vpop.permute.xlu0 %7162
        %v7164 = vsel %vm6958, %v6957, %v7163
        %7165 = vrot.lane.b32.xlu0 %v6877, 111
        %v7166 = vpop.permute.xlu0 %7165
        %v7167 = vsel %vm6967, %v6966, %v7166
        %v7169 = vsel %vm2591, %v7050, %v7150
        %v7171 = vsel %vm2591, %v7052, %v7151
        %v7173 = vsel %vm2591, %v7054, %v7152
        %v7174 = vsel %vm2670, %v7169, %v6935
        %v7175 = vsel %vm2670, %v7171, %v6936
        %v7177 = vsel %vm2670, %v7173, %v7156
        %v7179 = vsel %vm2749, %v7156, %v7160
        %v7181 = vsel %vm2828, %v7179, %v7164
        %7191 = vrot.lane.b32.xlu0 %v7041, 85
        %v7192 = vpop.permute.xlu0 %7191
        %7193 = vrot.lane.b32.xlu0 %v7044, 85
        %v7194 = vpop.permute.xlu0 %7193
        %7195 = vrot.lane.b32.xlu0 %v7047, 85
        %v7196 = vpop.permute.xlu0 %7195
        %7197 = vrot.lane.b32.xlu0 %v7174, 85
        %v7198 = vpop.permute.xlu0 %7197
        %7199 = vrot.lane.b32.xlu0 %v7175, 85
        %v7200 = vpop.permute.xlu0 %7199
        %7201 = vrot.lane.b32.xlu0 %v7177, 85
        %v7202 = vpop.permute.xlu0 %7201
        %7203 = vrot.lane.b32.xlu0 %v7077, 85
        %v7204 = vpop.permute.xlu0 %7203
        %7205 = vrot.lane.b32.xlu0 %v7080, 85
        %v7206 = vpop.permute.xlu0 %7205
        %7207 = vrot.lane.b32.xlu0 %v7181, 85
        %v7208 = vpop.permute.xlu0 %7207
        %7209 = vrot.lane.b32.xlu0 %v6968, 85
        %v7210 = vpop.permute.xlu0 %7209
        %7211 = vrot.lane.b32.xlu0 %v6969, 85
        %v7212 = vpop.permute.xlu0 %7211
        %7213 = vrot.lane.b32.xlu0 %v7167, 85
        %v7214 = vpop.permute.xlu0 %7213
        %vm7215 = vcmask 695296
        %v7216 = vsel %vm7215, %v7192, %v7194
        %v7217 = vsel %vm7215, %v7194, %v7196
        %v7218 = vsel %vm7215, %v7198, %v7200
        %v7219 = vsel %vm7215, %v7200, %v7202
        %v7220 = vsel %vm7215, %v7204, %v7206
        %v7221 = vsel %vm7215, %v7206, %v7208
        %v7222 = vsel %vm7215, %v7210, %v7212
        %v7223 = vsel %vm7215, %v7212, %v7214
        %7234 = vset.pattern.permute.xlu0 0
        %7235 = vperm.xlu0 %7234, %v315
        %v7236 = vpop.permute.xlu0 %7235
        %7238 = vset.pattern.permute.xlu0 0
        %7239 = vperm.xlu0 %7238, %v316
        %v7240 = vpop.permute.xlu0 %7239
        %v7244 = vunpack.c.l.b16 %v311
        %v7245 = vunpack.c.h.b16 %v311
        %v7246 = vunpack.c.l.b16 %v312
        %v7247 = vunpack.c.h.b16 %v312
        %v7248 = vunpack.c.l.b16 %v313
        %v7249 = vunpack.c.h.b16 %v313
        %v7250 = vpack.c.b16 %v7246, %v7244
        %v7251 = vpack.c.b16 %v7247, %v7245
        %v7252 = vpack.c.b16 %v7248, %v7248
        %v7253 = vpack.c.b16 %v7249, %v7249
        %v7254 = vrot.slane %v7250, 3
        %v7255 = vrot.slane %v7252, 3
        %v7256 = vsel %vm2415, %v7254, %v7255
        %v7257 = vrot.slane %v7251, 3
        %v7258 = vrot.slane %v7253, 3
        %v7259 = vsel %vm2415, %v7257, %v7258
        %v7261 = vrot.slane %v3216, 6
        %v7262 = vrot.slane %v7236, 6
        %v7263 = vsel %vm2749, %v7261, %v7262
        %v7264 = vrot.slane %v7240, 6
        %v7265 = vsel %vm2749, %v7262, %v7264
        %vm7268 = vcmask 179200
        %v7270 = vsel %vm7268, %v7259, 0
        %v7273 = vsel %vm2354, %v7222, 0
        %v7276 = vsel %vm2354, %v7223, 0
        %v7279 = vsel %vm2354, %v7214, 0
        %7281 = vmatprep.subr.bf16.mxu0 %v7044
        %7282 = vmatpush1.bf16.msra.mxu0 %v7041
        %7283 = vmatprep.subr.bf16.mxu0 %v7065
        %7284 = vmatpush1.bf16.msra.mxu0 %v7062
        %7285 = vmatprep.subr.bf16.mxu0 %v7080
        %7286 = vmatpush1.bf16.msra.mxu0 %v7077
        %7287 = vmatprep.subr.bf16.mxu0 %v7098
        %7288 = vmatpush1.bf16.msra.mxu0 %v7095
        %7289 = vmatprep.subr.bf16.mxu0 %v7119
        %7290 = vmatpush1.bf16.msra.mxu0 %v7116
        %7291 = vmatprep.subr.bf16.mxu0 %v7134
        %7292 = vmatpush1.bf16.msra.mxu0 %v7131
        %7293 = vmatprep.subr.bf16.mxu0 %v7217
        %7294 = vmatpush1.bf16.msra.mxu0 %v7216
        %7295 = vmatprep.subr.bf16.mxu0 %v7219
        %7296 = vmatpush1.bf16.msra.mxu0 %v7218
        %7297 = vmatprep.subr.bf16.mxu0 %v7221
        %7298 = vmatpush1.bf16.msra.mxu0 %v7220
        %7299 = vmatprep.subr.bf16.mxu0 %v7276
        %7300 = vmatpush1.bf16.msra.mxu0 %v7273
        %7301 = vmatprep.subr.bf16.mxu0 0
        %7302 = vmatpush1.bf16.msra.mxu0 0
        %7303 = vmatprep.subr.bf16.mxu0 0
        %7304 = vmatpush1.bf16.msra.mxu0 0
        %7305 = vmatprep.subr.bf16.mxu0 0
        %7306 = vmatpush1.bf16.msra.mxu0 0
        %7307 = vmatprep.subr.bf16.mxu0 0
        %7308 = vmatpush1.bf16.msra.mxu0 0
        %7309 = vmatprep.subr.bf16.mxu0 0
        %7310 = vmatpush1.bf16.msra.mxu0 0
        %7311 = vmatprep.subr.bf16.mxu0 0
        %7312 = vmatpush1.bf16.msra.mxu0 0
        %7313 = vmatprep.mubr.bf16.mxu0 %v7270
        %7314 = vmatmul.mubr.bf16.gmra.mrb[0].mxu0 %v7256
        %v7315 = vpop.f32.mrb[0].mxu0
        %v7316 = vadd.f32 %v7263, %v7315
        %v7317 = vpop.f32.mrb[0].mxu0
        %v7318 = vadd.f32 %v7263, %v7317
        %v7319 = vpop.f32.mrb[0].mxu0
        %v7320 = vadd.f32 %v7265, %v7319
        %v7321 = vpop.f32.mrb[0].mxu0
        %v7322 = vadd.f32 %v7265, %v7321
        %7323 = vdwg.mxu0
        %7324 = vmatprep.subr.bf16.mxu0 0
        %7325 = vmatpush1.bf16.msra.mxu0 %v7047
        %7326 = vmatprep.subr.bf16.mxu0 0
        %7327 = vmatpush1.bf16.msra.mxu0 %v7068
        %7328 = vmatprep.subr.bf16.mxu0 0
        %7329 = vmatpush1.bf16.msra.mxu0 %v7083
        %7330 = vmatprep.subr.bf16.mxu0 0
        %7331 = vmatpush1.bf16.msra.mxu0 %v7101
        %7332 = vmatprep.subr.bf16.mxu0 0
        %7333 = vmatpush1.bf16.msra.mxu0 %v7122
        %7334 = vmatprep.subr.bf16.mxu0 0
        %7335 = vmatpush1.bf16.msra.mxu0 %v7137
        %7336 = vmatprep.subr.bf16.mxu0 0
        %7337 = vmatpush1.bf16.msra.mxu0 %v7196
        %7338 = vmatprep.subr.bf16.mxu0 0
        %7339 = vmatpush1.bf16.msra.mxu0 %v7202
        %7340 = vmatprep.subr.bf16.mxu0 0
        %7341 = vmatpush1.bf16.msra.mxu0 %v7208
        %7342 = vmatprep.subr.bf16.mxu0 0
        %7343 = vmatpush1.bf16.msra.mxu0 %v7279
        %7344 = vmatprep.subr.bf16.mxu0 0
        %7345 = vmatpush1.bf16.msra.mxu0 0
        %7346 = vmatprep.subr.bf16.mxu0 0
        %7347 = vmatpush1.bf16.msra.mxu0 0
        %7348 = vmatprep.subr.bf16.mxu0 0
        %7349 = vmatpush1.bf16.msra.mxu0 0
        %7350 = vmatprep.subr.bf16.mxu0 0
        %7351 = vmatpush1.bf16.msra.mxu0 0
        %7352 = vmatprep.subr.bf16.mxu0 0
        %7353 = vmatpush1.bf16.msra.mxu0 0
        %7354 = vmatprep.subr.bf16.mxu0 0
        %7355 = vmatpush1.bf16.msra.mxu0 0
        %7356 = vmatprep.mubr.bf16.mxu0 %v7270
        %7357 = vmatmul.mubr.bf16.gmra.mrb[0].mxu0 %v7256
        %v7358 = vpop.f32.mrb[0].mxu0
        %v7359 = vadd.f32 %v7263, %v7358
        %v7360 = vpop.f32.mrb[0].mxu0
        %v7361 = vpop.f32.mrb[0].mxu0
        %v7362 = vadd.f32 %v7265, %v7361
        %v7363 = vpop.f32.mrb[0].mxu0
        %7364 = vdwg.mxu0
        %v7365 = vmax.f32 %v7316, 0.0
        %v7366 = vmax.f32 %v7318, 0.0
        %v7367 = vmax.f32 %v7359, 0.0
        %v7368 = vmax.f32 %v7320, 0.0
        %v7369 = vmax.f32 %v7322, 0.0
        %v7370 = vmax.f32 %v7362, 0.0
        %7377 = vrot.lane.b32.xlu0 %v7365, 114
        %v7378 = vpop.permute.xlu0 %7377
        %7379 = vrot.lane.b32.xlu0 %v7366, 114
        %v7380 = vpop.permute.xlu0 %7379
        %7381 = vrot.lane.b32.xlu0 %v7367, 114
        %v7382 = vpop.permute.xlu0 %7381
        %7383 = vrot.lane.b32.xlu0 %v7368, 114
        %v7384 = vpop.permute.xlu0 %7383
        %7385 = vrot.lane.b32.xlu0 %v7369, 114
        %v7386 = vpop.permute.xlu0 %7385
        %7387 = vrot.lane.b32.xlu0 %v7370, 114
        %v7388 = vpop.permute.xlu0 %7387
        %vm7389 = vcmask 932864
        %v7390 = vsel %vm7389, %v7378, %v7380
        %v7391 = vsel %vm7389, %v7380, %v7382
        %v7392 = vsel %vm7389, %v7384, %v7386
        %v7393 = vsel %vm7389, %v7386, %v7388
        %v7400 = vmax.f32 %v7365, %v7390
        %v7401 = vmax.f32 %v7366, %v7391
        %v7402 = vmax.f32 %v7367, %v7382
        %v7403 = vmax.f32 %v7368, %v7392
        %v7404 = vmax.f32 %v7369, %v7393
        %v7405 = vmax.f32 %v7370, %v7388
        %7412 = vrot.lane.b32.xlu0 %v7400, 127
        %v7413 = vpop.permute.xlu0 %7412
        %7414 = vrot.lane.b32.xlu0 %v7401, 127
        %v7415 = vpop.permute.xlu0 %7414
        %7416 = vrot.lane.b32.xlu0 %v7402, 127
        %v7417 = vpop.permute.xlu0 %7416
        %7418 = vrot.lane.b32.xlu0 %v7403, 127
        %v7419 = vpop.permute.xlu0 %7418
        %7420 = vrot.lane.b32.xlu0 %v7404, 127
        %v7421 = vpop.permute.xlu0 %7420
        %7422 = vrot.lane.b32.xlu0 %v7405, 127
        %v7423 = vpop.permute.xlu0 %7422
        %v7424 = vsel %vm3746, %v7413, %v7415
        %v7425 = vsel %vm3746, %v7415, %v7417
        %v7426 = vsel %vm3746, %v7419, %v7421
        %v7427 = vsel %vm3746, %v7421, %v7423
        %v7434 = vmax.f32 %v7400, %v7424
        %v7435 = vmax.f32 %v7401, %v7425
        %v7436 = vmax.f32 %v7402, %v7417
        %v7437 = vmax.f32 %v7403, %v7426
        %v7438 = vmax.f32 %v7404, %v7427
        %v7439 = vmax.f32 %v7405, %v7423
        %v7440 = vpack.c.bf16 %v7437, %v7434
        %v7441 = vpack.c.bf16 %v7438, %v7435
        %v7442 = vpack.c.bf16 %v7439, %v7436
        %v7483 = vunpack.c.l.b16 %v6834
        %v7484 = vunpack.c.l.b16 %v6835
        %v7485 = vunpack.c.l.b16 %v6836
        %v7486 = vunpack.c.l.b16 %v6837
        %v7487 = vunpack.c.l.b16 %v6838
        %v7488 = vunpack.c.l.b16 %v6839
        %v7489 = vunpack.c.l.b16 %v6840
        %v7490 = vunpack.c.l.b16 %v6841
        %v7491 = vunpack.c.l.b16 %v6842
        %v7492 = vunpack.c.l.b16 %v6843
        %v7493 = vunpack.c.l.b16 %v6844
        %v7494 = vunpack.c.l.b16 %v6845
        %v7495 = vunpack.c.l.b16 %v6846
        %v7496 = vunpack.c.l.b16 %v6847
        %v7497 = vunpack.c.l.b16 %v6848
        %v7498 = vunpack.c.l.b16 %v6849
        %v7499 = vunpack.c.l.b16 %v6850
        %v7500 = vunpack.c.l.b16 %v6851
        %v7501 = vunpack.c.l.b16 %v6852
        %v7502 = vunpack.c.l.b16 %v6853
        %v7503 = vunpack.c.l.b16 %v6854
        %v7504 = vunpack.c.l.b16 %v6855
        %v7505 = vunpack.c.l.b16 %v6856
        %v7506 = vunpack.c.l.b16 %v6857
        %v7507 = vunpack.c.l.b16 %v6858
        %v7508 = vunpack.c.l.b16 %v6859
        %v7509 = vunpack.c.l.b16 %v6860
        %v7510 = vunpack.c.l.b16 %v6861
        %v7511 = vunpack.c.l.b16 %v6862
        %v7512 = vunpack.c.l.b16 %v6863
        %v7513 = vunpack.c.l.b16 %v6864
        %v7514 = vunpack.c.l.b16 %v6865
        %v7515 = vunpack.c.l.b16 %v6866
        %v7516 = vunpack.c.l.b16 %v6867
        %v7517 = vunpack.c.l.b16 %v6868
        %v7518 = vunpack.c.l.b16 %v6869
        %v7519 = vunpack.c.l.b16 %v6870
        %v7520 = vunpack.c.l.b16 %v6871
        %v7521 = vunpack.c.l.b16 %v6872
        %v7522 = vunpack.c.l.b16 %v6873
        %v7523 = vpack.c.b16 %v7484, %v7483
        %v7524 = vpack.c.b16 %v7486, %v7485
        %v7525 = vpack.c.b16 %v7488, %v7487
        %v7526 = vpack.c.b16 %v7490, %v7489
        %v7527 = vpack.c.b16 %v7492, %v7491
        %v7528 = vpack.c.b16 %v7494, %v7493
        %v7529 = vpack.c.b16 %v7496, %v7495
        %v7530 = vpack.c.b16 %v7498, %v7497
        %v7531 = vpack.c.b16 %v7500, %v7499
        %v7532 = vpack.c.b16 %v7502, %v7501
        %v7533 = vpack.c.b16 %v7504, %v7503
        %v7534 = vpack.c.b16 %v7506, %v7505
        %v7535 = vpack.c.b16 %v7508, %v7507
        %v7536 = vpack.c.b16 %v7510, %v7509
        %v7537 = vpack.c.b16 %v7512, %v7511
        %v7538 = vpack.c.b16 %v7514, %v7513
        %v7539 = vpack.c.b16 %v7516, %v7515
        %v7540 = vpack.c.b16 %v7518, %v7517
        %v7541 = vpack.c.b16 %v7520, %v7519
        %v7542 = vpack.c.b16 %v7522, %v7521
        %vm7562 = vcmask 498688
        %v7564 = vsel %vm7562, %v7442, 0
        %v7566 = vsel %vm2433, 4294967295, 65535
        %v7567 = vsel %vm2670, %v7566, 0
        %v7569 = vand.u32 %v7542, %v7567
        %7571 = vmatprep.subr.bf16.mxu0 0
        %7572 = vmatpush1.bf16.msra.mxu0 %v7523
        %7573 = vmatprep.subr.bf16.mxu0 0
        %7574 = vmatpush1.bf16.msra.mxu0 %v7524
        %7575 = vmatprep.subr.bf16.mxu0 0
        %7576 = vmatpush1.bf16.msra.mxu0 %v7525
        %7577 = vmatprep.subr.bf16.mxu0 0
        %7578 = vmatpush1.bf16.msra.mxu0 %v7526
        %7579 = vmatprep.subr.bf16.mxu0 0
        %7580 = vmatpush1.bf16.msra.mxu0 %v7527
        %7581 = vmatprep.subr.bf16.mxu0 0
        %7582 = vmatpush1.bf16.msra.mxu0 %v7528
        %7583 = vmatprep.subr.bf16.mxu0 0
        %7584 = vmatpush1.bf16.msra.mxu0 %v7529
        %7585 = vmatprep.subr.bf16.mxu0 0
        %7586 = vmatpush1.bf16.msra.mxu0 %v7530
        %7587 = vmatprep.subr.bf16.mxu0 0
        %7588 = vmatpush1.bf16.msra.mxu0 %v7531
        %7589 = vmatprep.subr.bf16.mxu0 0
        %7590 = vmatpush1.bf16.msra.mxu0 %v7532
        %7591 = vmatprep.subr.bf16.mxu0 0
        %7592 = vmatpush1.bf16.msra.mxu0 %v7533
        %7593 = vmatprep.subr.bf16.mxu0 0
        %7594 = vmatpush1.bf16.msra.mxu0 %v7534
        %7595 = vmatprep.subr.bf16.mxu0 0
        %7596 = vmatpush1.bf16.msra.mxu0 %v7535
        %7597 = vmatprep.subr.bf16.mxu0 0
        %7598 = vmatpush1.bf16.msra.mxu0 %v7536
        %7599 = vmatprep.subr.bf16.mxu0 0
        %7600 = vmatpush1.bf16.msra.mxu0 %v7537
        %7601 = vmatprep.subr.bf16.mxu0 0
        %7602 = vmatpush1.bf16.msra.mxu0 %v7538
        %7603 = vmatprep.mubr.bf16.mxu0 %v7441
        %7604 = vmatmul.mubr.bf16.gmra.mrb[0].mxu0 %v7440
        %v7605 = vpop.f32.mrb[0].mxu0
        %v7606 = vadd.f32 0.0, %v7605
        %v7607 = vpop.f32.mrb[0].mxu0
        %v7608 = vpop.f32.mrb[0].mxu0
        %v7609 = vadd.f32 0.0, %v7608
        %v7610 = vpop.f32.mrb[0].mxu0
        %7611 = vdwg.mxu0
        %7612 = vmatprep.subr.bf16.mxu0 0
        %7613 = vmatpush1.bf16.msra.mxu0 %v7539
        %7614 = vmatprep.subr.bf16.mxu0 0
        %7615 = vmatpush1.bf16.msra.mxu0 %v7540
        %7616 = vmatprep.subr.bf16.mxu0 0
        %7617 = vmatpush1.bf16.msra.mxu0 %v7541
        %7618 = vmatprep.subr.bf16.mxu0 0
        %7619 = vmatpush1.bf16.msra.mxu0 %v7569
        %7620 = vmatprep.subr.bf16.mxu0 0
        %7621 = vmatpush1.bf16.msra.mxu0 0
        %7622 = vmatprep.subr.bf16.mxu0 0
        %7623 = vmatpush1.bf16.msra.mxu0 0
        %7624 = vmatprep.subr.bf16.mxu0 0
        %7625 = vmatpush1.bf16.msra.mxu0 0
        %7626 = vmatprep.subr.bf16.mxu0 0
        %7627 = vmatpush1.bf16.msra.mxu0 0
        %7628 = vmatprep.subr.bf16.mxu0 0
        %7629 = vmatpush1.bf16.msra.mxu0 0
        %7630 = vmatprep.subr.bf16.mxu0 0
        %7631 = vmatpush1.bf16.msra.mxu0 0
        %7632 = vmatprep.subr.bf16.mxu0 0
        %7633 = vmatpush1.bf16.msra.mxu0 0
        %7634 = vmatprep.subr.bf16.mxu0 0
        %7635 = vmatpush1.bf16.msra.mxu0 0
        %7636 = vmatprep.subr.bf16.mxu0 0
        %7637 = vmatpush1.bf16.msra.mxu0 0
        %7638 = vmatprep.subr.bf16.mxu0 0
        %7639 = vmatpush1.bf16.msra.mxu0 0
        %7640 = vmatprep.subr.bf16.mxu0 0
        %7641 = vmatpush1.bf16.msra.mxu0 0
        %7642 = vmatprep.subr.bf16.mxu0 0
        %7643 = vmatpush1.bf16.msra.mxu0 0
        %7644 = vmatprep.mubr.bf16.mxu0 0
        %7645 = vmatmul.mubr.bf16.gmra.mrb[0].mxu0 %v7564
        %v7646 = vpop.f32.mrb[0].mxu0
        %v7647 = vadd.f32 %v7606, %v7646
        %v7648 = vpop.f32.mrb[0].mxu0
        %v7649 = vpop.f32.mrb[0].mxu0
        %v7650 = vadd.f32 %v7609, %v7649
        %v7651 = vpop.f32.mrb[0].mxu0
        %7652 = vdwg.mxu0
        %v7654 = vrot.slane %v7647, 1
        %7655 = vrot.lane.b32.xlu0 %v7654, 25
        %v7656 = vpop.permute.xlu0 %7655
        %v7658 = vrot.slane %v7647, 2
        %7659 = vrot.lane.b32.xlu0 %v7658, 50
        %v7660 = vpop.permute.xlu0 %7659
        %v7662 = vrot.slane %v7647, 3
        %7663 = vrot.lane.b32.xlu0 %v7662, 75
        %v7664 = vpop.permute.xlu0 %7663
        %v7666 = vrot.slane %v7647, 4
        %7667 = vrot.lane.b32.xlu0 %v7666, 100
        %v7668 = vpop.permute.xlu0 %7667
        %v7670 = vrot.slane %v7647, 5
        %7671 = vrot.lane.b32.xlu0 %v7670, 125
        %v7672 = vpop.permute.xlu0 %7671
        %v7674 = vrot.slane %v7647, 6
        %7675 = vrot.lane.b32.xlu0 %v7674, 22
        %v7676 = vpop.permute.xlu0 %7675
        %v7678 = vrot.slane %v7647, 7
        %7679 = vrot.lane.b32.xlu0 %v7678, 47
        %v7680 = vpop.permute.xlu0 %7679
        %7683 = vrot.lane.b32.xlu0 %v7650, 72
        %v7684 = vpop.permute.xlu0 %7683
        %v7686 = vrot.slane %v7650, 1
        %7687 = vrot.lane.b32.xlu0 %v7686, 97
        %v7688 = vpop.permute.xlu0 %7687
        %v7690 = vrot.slane %v7650, 2
        %7691 = vrot.lane.b32.xlu0 %v7690, 122
        %v7692 = vpop.permute.xlu0 %7691
        %v7694 = vrot.slane %v7650, 3
        %7695 = vrot.lane.b32.xlu0 %v7694, 19
        %v7696 = vpop.permute.xlu0 %7695
        %v7698 = vrot.slane %v7650, 4
        %7699 = vrot.lane.b32.xlu0 %v7698, 44
        %v7700 = vpop.permute.xlu0 %7699
        %v7702 = vrot.slane %v7650, 5
        %7703 = vrot.lane.b32.xlu0 %v7702, 69
        %v7704 = vpop.permute.xlu0 %7703
        %v7706 = vrot.slane %v7650, 6
        %7707 = vrot.lane.b32.xlu0 %v7706, 94
        %v7708 = vpop.permute.xlu0 %7707
        %v7710 = vrot.slane %v7650, 7
        %7711 = vrot.lane.b32.xlu0 %v7710, 119
        %v7712 = vpop.permute.xlu0 %7711
        %vm7714 = vcmask 203776
        %v7715 = vsel %vm7714, %v7647, %v7656
        %vm7716 = vcmask 408576
        %v7717 = vsel %vm7716, %v7715, %v7660
        %v7718 = vsel %vm3218, %v7717, %v7664
        %vm7719 = vcmask 818176
        %v7720 = vsel %vm7719, %v7718, %v7668
        %vm7721 = vcmask 1022976
        %v7722 = vsel %vm7721, %v7720, %v7672
        %v7723 = vsel %vm7268, %v7672, %v7676
        %vm7724 = vcmask 384000
        %v7725 = vsel %vm7724, %v7723, %v7680
        %vm7726 = vcmask 588800
        %v7727 = vsel %vm7726, %v7725, %v7684
        %vm7728 = vcmask 793600
        %v7729 = vsel %vm7728, %v7727, %v7688
        %vm7730 = vcmask 998400
        %v7731 = vsel %vm7730, %v7729, %v7692
        %vm7732 = vcmask 154624
        %v7733 = vsel %vm7732, %v7692, %v7696
        %vm7734 = vcmask 359424
        %v7735 = vsel %vm7734, %v7733, %v7700
        %vm7736 = vcmask 564224
        %v7737 = vsel %vm7736, %v7735, %v7704
        %vm7738 = vcmask 769024
        %v7739 = vsel %vm7738, %v7737, %v7708
        %vm7740 = vcmask 973824
        %v7741 = vsel %vm7740, %v7739, %v7712
        %7742 = vrot.lane.b32.xlu0 %v7647, 103
        %v7743 = vpop.permute.xlu0 %7742
        %7746 = vrot.lane.b32.xlu0 %v7658, 25
        %v7747 = vpop.permute.xlu0 %7746
        %7749 = vrot.lane.b32.xlu0 %v7662, 50
        %v7750 = vpop.permute.xlu0 %7749
        %7752 = vrot.lane.b32.xlu0 %v7666, 75
        %v7753 = vpop.permute.xlu0 %7752
        %7755 = vrot.lane.b32.xlu0 %v7670, 100
        %v7756 = vpop.permute.xlu0 %7755
        %7758 = vrot.lane.b32.xlu0 %v7674, 125
        %v7759 = vpop.permute.xlu0 %7758
        %7761 = vrot.lane.b32.xlu0 %v7678, 22
        %v7762 = vpop.permute.xlu0 %7761
        %7764 = vrot.lane.b32.xlu0 %v7650, 47
        %v7765 = vpop.permute.xlu0 %7764
        %7767 = vrot.lane.b32.xlu0 %v7686, 72
        %v7768 = vpop.permute.xlu0 %7767
        %7770 = vrot.lane.b32.xlu0 %v7690, 97
        %v7771 = vpop.permute.xlu0 %7770
        %7773 = vrot.lane.b32.xlu0 %v7694, 122
        %v7774 = vpop.permute.xlu0 %7773
        %7776 = vrot.lane.b32.xlu0 %v7698, 19
        %v7777 = vpop.permute.xlu0 %7776
        %7779 = vrot.lane.b32.xlu0 %v7702, 44
        %v7780 = vpop.permute.xlu0 %7779
        %7782 = vrot.lane.b32.xlu0 %v7706, 69
        %v7783 = vpop.permute.xlu0 %7782
        %7785 = vrot.lane.b32.xlu0 %v7710, 94
        %v7786 = vpop.permute.xlu0 %7785
        %v7788 = vsel %vm7714, %v7743, %v7654
        %v7789 = vsel %vm7716, %v7788, %v7747
        %v7790 = vsel %vm3218, %v7789, %v7750
        %v7791 = vsel %vm7719, %v7790, %v7753
        %v7792 = vsel %vm7721, %v7791, %v7756
        %v7793 = vsel %vm7268, %v7756, %v7759
        %v7794 = vsel %vm7724, %v7793, %v7762
        %v7795 = vsel %vm7726, %v7794, %v7765
        %v7796 = vsel %vm7728, %v7795, %v7768
        %v7797 = vsel %vm7730, %v7796, %v7771
        %v7798 = vsel %vm7732, %v7771, %v7774
        %v7799 = vsel %vm7734, %v7798, %v7777
        %v7800 = vsel %vm7736, %v7799, %v7780
        %v7801 = vsel %vm7738, %v7800, %v7783
        %v7802 = vsel %vm7740, %v7801, %v7786
        %v7806 = vrot.slane %v7792, 7
        %v7807 = vrot.slane %v7797, 7
        %v7808 = vrot.slane %v7802, 7
        %v7809 = vrot.slane %v7786, 7
        %v7814 = vsel %vm2512, %v7722, %v7806
        %v7815 = vsel %vm2512, %v7731, %v7807
        %v7816 = vsel %vm2512, %v7741, %v7808
        %v7817 = vsel %vm2512, %v7712, %v7809
        %v7818 = vpack.c.bf16 %v7814, %v7814
        %v7819 = vpack.c.bf16 %v7815, %v7815
        %v7820 = vpack.c.bf16 %v7816, %v7816
        %v7821 = vpack.c.bf16 %v7817, %v7817
        %v7822 = vld [vmem:[%s5] sm:$0xf]
        %v7823 = vld [vmem:[%s5 + $0x4] sm:$0xf]
        %v7824 = vld [vmem:[%s5 + $0x8] sm:$0xf]
        %v7825 = vld [vmem:[%s5 + $0xc] sm:$0xf]
        %v7826 = vld [vmem:[%s5 + $0x10] sm:$0xf]
        %v7827 = vld [vmem:[%s5 + $0x14] sm:$0xf]
        %v7828 = vld [vmem:[%s5 + $0x18] sm:$0xf]
        %v7829 = vld [vmem:[%s5 + $0x1c] sm:$0xf]
        %v7830 = vld [vmem:[%s5 + $0x20] sm:$0xf]
        %v7831 = vld [vmem:[%s5 + $0x24] sm:$0xf]
        %v7832 = vld [vmem:[%s5 + $0x28] sm:$0xf]
        %v7833 = vld [vmem:[%s5 + $0x2c] sm:$0xf]
        %v7834 = vld [vmem:[%s5 + $0x30] sm:$0xf]
        %v7835 = vld [vmem:[%s5 + $0x34] sm:$0xf]
        %v7836 = vld [vmem:[%s5 + $0x38] sm:$0xf]
        %v7837 = vld [vmem:[%s5 + $0x3c] sm:$0xf]
        %v7838 = vld [vmem:[%s5 + $0x40] sm:$0xf]
        %v7839 = vld [vmem:[%s5 + $0x44] sm:$0xf]
        %v7840 = vld [vmem:[%s5 + $0x48] sm:$0xf]
        %v7841 = vld [vmem:[%s5 + $0x4c] sm:$0xf]
        %v7842 = vld [vmem:[%s5 + $0x50] sm:$0xf]
        %v7843 = vld [vmem:[%s5 + $0x54] sm:$0xf]
        %v7844 = vld [vmem:[%s5 + $0x58] sm:$0xf]
        %v7845 = vld [vmem:[%s5 + $0x5c] sm:$0xf]
        %v7846 = vld [vmem:[%s5 + $0x60] sm:$0xf]
        %v7847 = vld [vmem:[%s5 + $0x64] sm:$0xf]
        %v7848 = vld [vmem:[%s5 + $0x68] sm:$0xf]
        %v7849 = vld [vmem:[%s5 + $0x6c] sm:$0xf]
        %v7850 = vld [vmem:[%s5 + $0x70] sm:$0xf]
        %v7851 = vld [vmem:[%s5 + $0x74] sm:$0xf]
        %v7852 = vld [vmem:[%s5 + $0x78] sm:$0xf]
        %v7853 = vld [vmem:[%s5 + $0x7c] sm:$0xf]
        %v7854 = vld [vmem:[%s5 + $0x80] sm:$0xf]
        %v7855 = vld [vmem:[%s5 + $0x84] sm:$0xf]
        %v7856 = vld [vmem:[%s5 + $0x88] sm:$0xf]
        %v7857 = vld [vmem:[%s5 + $0x8c] sm:$0xf]
        %v7858 = vld [vmem:[%s5 + $0x90] sm:$0xf]
        %v7859 = vld [vmem:[%s5 + $0x94] sm:$0xf]
        %v7860 = vld [vmem:[%s5 + $0x98] sm:$0xf]
        %v7861 = vld [vmem:[%s5 + $0x9c] sm:$0xf]
        %v7862 = vld [vmem:[%s5 + $0xa0] sm:$0xf]
        %v7863 = vld [vmem:[%s5 + $0xa4] sm:$0xf]
        %v7864 = vld [vmem:[%s5 + $0xa8] sm:$0xf]
        %v7865 = vld [vmem:[%s5 + $0xac] sm:$0xf]
        %v7866 = vld [vmem:[%s5 + $0xb0] sm:$0xf]
        %v7867 = vld [vmem:[%s5 + $0xb4] sm:$0xf]
        %v7868 = vld [vmem:[%s5 + $0xb8] sm:$0xf]
        %v7869 = vld [vmem:[%s5 + $0xbc] sm:$0xf]
        %v7870 = vld [vmem:[%s5 + $0xc0] sm:$0xf]
        %v7871 = vld [vmem:[%s5 + $0xc4] sm:$0xf]
        %v7872 = vlaneseq
        %v7873 = vshrl.u32 %v7872, 7
        %v7874 = vsub.s32 0, %v7873
        %v7875 = vrot.slane %v317, %v7874
        %v7926 = vunpack.c.l.b16 %v7822
        %v7927 = vunpack.c.l.b16 %v7823
        %v7928 = vunpack.c.l.b16 %v7824
        %v7929 = vunpack.c.l.b16 %v7825
        %v7930 = vunpack.c.l.b16 %v7826
        %v7931 = vunpack.c.l.b16 %v7827
        %v7932 = vunpack.c.l.b16 %v7828
        %v7933 = vunpack.c.l.b16 %v7829
        %v7934 = vunpack.c.l.b16 %v7830
        %v7935 = vunpack.c.l.b16 %v7831
        %v7936 = vunpack.c.l.b16 %v7832
        %v7937 = vunpack.c.l.b16 %v7833
        %v7938 = vunpack.c.l.b16 %v7834
        %v7939 = vunpack.c.l.b16 %v7835
        %v7940 = vunpack.c.l.b16 %v7836
        %v7941 = vunpack.c.l.b16 %v7837
        %v7942 = vunpack.c.l.b16 %v7838
        %v7943 = vunpack.c.l.b16 %v7839
        %v7944 = vunpack.c.l.b16 %v7840
        %v7945 = vunpack.c.l.b16 %v7841
        %v7946 = vunpack.c.l.b16 %v7842
        %v7947 = vunpack.c.l.b16 %v7843
        %v7948 = vunpack.c.l.b16 %v7844
        %v7949 = vunpack.c.l.b16 %v7845
        %v7950 = vunpack.c.l.b16 %v7846
        %v7951 = vunpack.c.l.b16 %v7847
        %v7952 = vunpack.c.l.b16 %v7848
        %v7953 = vunpack.c.l.b16 %v7849
        %v7954 = vunpack.c.l.b16 %v7850
        %v7955 = vunpack.c.l.b16 %v7851
        %v7956 = vunpack.c.l.b16 %v7852
        %v7957 = vunpack.c.l.b16 %v7853
        %v7958 = vunpack.c.l.b16 %v7854
        %v7959 = vunpack.c.l.b16 %v7855
        %v7960 = vunpack.c.l.b16 %v7856
        %v7961 = vunpack.c.l.b16 %v7857
        %v7962 = vunpack.c.l.b16 %v7858
        %v7963 = vunpack.c.l.b16 %v7859
        %v7964 = vunpack.c.l.b16 %v7860
        %v7965 = vunpack.c.l.b16 %v7861
        %v7966 = vunpack.c.l.b16 %v7862
        %v7967 = vunpack.c.l.b16 %v7863
        %v7968 = vunpack.c.l.b16 %v7864
        %v7969 = vunpack.c.l.b16 %v7865
        %v7970 = vunpack.c.l.b16 %v7866
        %v7971 = vunpack.c.l.b16 %v7867
        %v7972 = vunpack.c.l.b16 %v7868
        %v7973 = vunpack.c.l.b16 %v7869
        %v7974 = vunpack.c.l.b16 %v7870
        %v7975 = vunpack.c.l.b16 %v7871
        %v7976 = vpack.c.b16 %v7927, %v7926
        %v7977 = vpack.c.b16 %v7929, %v7928
        %v7978 = vpack.c.b16 %v7931, %v7930
        %v7979 = vpack.c.b16 %v7933, %v7932
        %v7980 = vpack.c.b16 %v7935, %v7934
        %v7981 = vpack.c.b16 %v7937, %v7936
        %v7982 = vpack.c.b16 %v7939, %v7938
        %v7983 = vpack.c.b16 %v7941, %v7940
        %v7984 = vpack.c.b16 %v7943, %v7942
        %v7985 = vpack.c.b16 %v7945, %v7944
        %v7986 = vpack.c.b16 %v7947, %v7946
        %v7987 = vpack.c.b16 %v7949, %v7948
        %v7988 = vpack.c.b16 %v7951, %v7950
        %v7989 = vpack.c.b16 %v7953, %v7952
        %v7990 = vpack.c.b16 %v7955, %v7954
        %v7991 = vpack.c.b16 %v7957, %v7956
        %v7992 = vpack.c.b16 %v7959, %v7958
        %v7993 = vpack.c.b16 %v7961, %v7960
        %v7994 = vpack.c.b16 %v7963, %v7962
        %v7995 = vpack.c.b16 %v7965, %v7964
        %v7996 = vpack.c.b16 %v7967, %v7966
        %v7997 = vpack.c.b16 %v7969, %v7968
        %v7998 = vpack.c.b16 %v7971, %v7970
        %v7999 = vpack.c.b16 %v7973, %v7972
        %v8000 = vpack.c.b16 %v7975, %v7974
        %vm8026 = vcmask 130048
        %v8028 = vsel %vm8026, %v7821, 0
        %8030 = vmatprep.subr.bf16.mxu0 0
        %8031 = vmatpush1.bf16.msra.mxu0 %v7976
        %8032 = vmatprep.subr.bf16.mxu0 0
        %8033 = vmatpush1.bf16.msra.mxu0 %v7977
        %8034 = vmatprep.subr.bf16.mxu0 0
        %8035 = vmatpush1.bf16.msra.mxu0 %v7978
        %8036 = vmatprep.subr.bf16.mxu0 0
        %8037 = vmatpush1.bf16.msra.mxu0 %v7979
        %8038 = vmatprep.subr.bf16.mxu0 0
        %8039 = vmatpush1.bf16.msra.mxu0 %v7980
        %8040 = vmatprep.subr.bf16.mxu0 0
        %8041 = vmatpush1.bf16.msra.mxu0 %v7981
        %8042 = vmatprep.subr.bf16.mxu0 0
        %8043 = vmatpush1.bf16.msra.mxu0 %v7982
        %8044 = vmatprep.subr.bf16.mxu0 0
        %8045 = vmatpush1.bf16.msra.mxu0 %v7983
        %8046 = vmatprep.subr.bf16.mxu0 0
        %8047 = vmatpush1.bf16.msra.mxu0 %v7984
        %8048 = vmatprep.subr.bf16.mxu0 0
        %8049 = vmatpush1.bf16.msra.mxu0 %v7985
        %8050 = vmatprep.subr.bf16.mxu0 0
        %8051 = vmatpush1.bf16.msra.mxu0 %v7986
        %8052 = vmatprep.subr.bf16.mxu0 0
        %8053 = vmatpush1.bf16.msra.mxu0 %v7987
        %8054 = vmatprep.subr.bf16.mxu0 0
        %8055 = vmatpush1.bf16.msra.mxu0 %v7988
        %8056 = vmatprep.subr.bf16.mxu0 0
        %8057 = vmatpush1.bf16.msra.mxu0 %v7989
        %8058 = vmatprep.subr.bf16.mxu0 0
        %8059 = vmatpush1.bf16.msra.mxu0 %v7990
        %8060 = vmatprep.subr.bf16.mxu0 0
        %8061 = vmatpush1.bf16.msra.mxu0 %v7991
        %8062 = vmatprep.mubr.bf16.mxu0 %v7819
        %8063 = vmatmul.mubr.bf16.gmra.mrb[0].mxu0 %v7818
        %v8064 = vpop.f32.mrb[0].mxu0
        %v8065 = vadd.f32 %v7875, %v8064
        %v8066 = vpop.f32.mrb[0].mxu0
        %v8067 = vpop.f32.mrb[0].mxu0
        %v8068 = vpop.f32.mrb[0].mxu0
        %8069 = vdwg.mxu0
        %8070 = vmatprep.subr.bf16.mxu0 0
        %8071 = vmatpush1.bf16.msra.mxu0 %v7992
        %8072 = vmatprep.subr.bf16.mxu0 0
        %8073 = vmatpush1.bf16.msra.mxu0 %v7993
        %8074 = vmatprep.subr.bf16.mxu0 0
        %8075 = vmatpush1.bf16.msra.mxu0 %v7994
        %8076 = vmatprep.subr.bf16.mxu0 0
        %8077 = vmatpush1.bf16.msra.mxu0 %v7995
        %8078 = vmatprep.subr.bf16.mxu0 0
        %8079 = vmatpush1.bf16.msra.mxu0 %v7996
        %8080 = vmatprep.subr.bf16.mxu0 0
        %8081 = vmatpush1.bf16.msra.mxu0 %v7997
        %8082 = vmatprep.subr.bf16.mxu0 0
        %8083 = vmatpush1.bf16.msra.mxu0 %v7998
        %8084 = vmatprep.subr.bf16.mxu0 0
        %8085 = vmatpush1.bf16.msra.mxu0 %v7999
        %8086 = vmatprep.subr.bf16.mxu0 0
        %8087 = vmatpush1.bf16.msra.mxu0 %v8000
        %8088 = vmatprep.subr.bf16.mxu0 0
        %8089 = vmatpush1.bf16.msra.mxu0 0
        %8090 = vmatprep.subr.bf16.mxu0 0
        %8091 = vmatpush1.bf16.msra.mxu0 0
        %8092 = vmatprep.subr.bf16.mxu0 0
        %8093 = vmatpush1.bf16.msra.mxu0 0
        %8094 = vmatprep.subr.bf16.mxu0 0
        %8095 = vmatpush1.bf16.msra.mxu0 0
        %8096 = vmatprep.subr.bf16.mxu0 0
        %8097 = vmatpush1.bf16.msra.mxu0 0
        %8098 = vmatprep.subr.bf16.mxu0 0
        %8099 = vmatpush1.bf16.msra.mxu0 0
        %8100 = vmatprep.subr.bf16.mxu0 0
        %8101 = vmatpush1.bf16.msra.mxu0 0
        %8102 = vmatprep.mubr.bf16.mxu0 %v8028
        %8103 = vmatmul.mubr.bf16.gmra.mrb[0].mxu0 %v7820
        %v8104 = vpop.f32.mrb[0].mxu0
        %v8105 = vadd.f32 %v8065, %v8104
        %v8106 = vpop.f32.mrb[0].mxu0
        %v8107 = vpop.f32.mrb[0].mxu0
        %v8108 = vpop.f32.mrb[0].mxu0
        %8109 = vdwg.mxu0
        %v8110 = vmax.f32 %v8105, 0.0
        %v8111 = vpack.c.bf16 %v8110, %v8110
        %v8112 = vlaneseq
        %v8113 = vshrl.u32 %v8112, 7
        %v8114 = vsub.s32 1, %v8113
        %v8115 = vrot.slane %v317, %v8114
        %v8132 = vunpack.c.l.b16 %v318
        %v8133 = vunpack.c.l.b16 %v319
        %v8134 = vunpack.c.l.b16 %v320
        %v8135 = vunpack.c.l.b16 %v321
        %v8136 = vunpack.c.l.b16 %v322
        %v8137 = vunpack.c.l.b16 %v323
        %v8138 = vunpack.c.l.b16 %v324
        %v8139 = vunpack.c.l.b16 %v325
        %v8140 = vunpack.c.l.b16 %v326
        %v8141 = vunpack.c.l.b16 %v327
        %v8142 = vunpack.c.l.b16 %v328
        %v8143 = vunpack.c.l.b16 %v329
        %v8144 = vunpack.c.l.b16 %v330
        %v8145 = vunpack.c.l.b16 %v331
        %v8146 = vunpack.c.l.b16 %v332
        %v8147 = vunpack.c.l.b16 %v333
        %v8148 = vpack.c.b16 %v8133, %v8132
        %v8149 = vpack.c.b16 %v8135, %v8134
        %v8150 = vpack.c.b16 %v8137, %v8136
        %v8151 = vpack.c.b16 %v8139, %v8138
        %v8152 = vpack.c.b16 %v8141, %v8140
        %v8153 = vpack.c.b16 %v8143, %v8142
        %v8154 = vpack.c.b16 %v8145, %v8144
        %v8155 = vpack.c.b16 %v8147, %v8146
        %8164 = vmatprep.subr.bf16.mxu0 0
        %8165 = vmatpush1.bf16.msra.mxu0 %v8148
        %8166 = vmatprep.subr.bf16.mxu0 0
        %8167 = vmatpush1.bf16.msra.mxu0 %v8149
        %8168 = vmatprep.subr.bf16.mxu0 0
        %8169 = vmatpush1.bf16.msra.mxu0 %v8150
        %8170 = vmatprep.subr.bf16.mxu0 0
        %8171 = vmatpush1.bf16.msra.mxu0 %v8151
        %8172 = vmatprep.subr.bf16.mxu0 0
        %8173 = vmatpush1.bf16.msra.mxu0 %v8152
        %8174 = vmatprep.subr.bf16.mxu0 0
        %8175 = vmatpush1.bf16.msra.mxu0 %v8153
        %8176 = vmatprep.subr.bf16.mxu0 0
        %8177 = vmatpush1.bf16.msra.mxu0 %v8154
        %8178 = vmatprep.subr.bf16.mxu0 0
        %8179 = vmatpush1.bf16.msra.mxu0 %v8155
        %8180 = vmatprep.subr.bf16.mxu0 0
        %8181 = vmatpush1.bf16.msra.mxu0 0
        %8182 = vmatprep.subr.bf16.mxu0 0
        %8183 = vmatpush1.bf16.msra.mxu0 0
        %8184 = vmatprep.subr.bf16.mxu0 0
        %8185 = vmatpush1.bf16.msra.mxu0 0
        %8186 = vmatprep.subr.bf16.mxu0 0
        %8187 = vmatpush1.bf16.msra.mxu0 0
        %8188 = vmatprep.subr.bf16.mxu0 0
        %8189 = vmatpush1.bf16.msra.mxu0 0
        %8190 = vmatprep.subr.bf16.mxu0 0
        %8191 = vmatpush1.bf16.msra.mxu0 0
        %8192 = vmatprep.subr.bf16.mxu0 0
        %8193 = vmatpush1.bf16.msra.mxu0 0
        %8194 = vmatprep.subr.bf16.mxu0 0
        %8195 = vmatpush1.bf16.msra.mxu0 0
        %8196 = vmatprep.mubr.bf16.mxu0 0
        %8197 = vmatmul.mubr.bf16.gmra.mrb[0].mxu0 %v8111
        %v8198 = vpop.f32.mrb[0].mxu0
        %v8199 = vadd.f32 %v8115, %v8198
        %v8200 = vpop.f32.mrb[0].mxu0
        %v8201 = vpop.f32.mrb[0].mxu0
        %v8202 = vpop.f32.mrb[0].mxu0
        %8203 = vdwg.mxu0
        %v8204 = vmax.f32 %v8199, 0.0
        %v8205 = vpack.c.bf16 %v8204, %v8204
        %v8206 = vlaneseq
        %v8207 = vshrl.u32 %v8206, 7
        %v8208 = vsub.s32 2, %v8207
        %v8209 = vrot.slane %v317, %v8208
        %v8226 = vunpack.c.l.b16 %v334
        %v8227 = vunpack.c.l.b16 %v335
        %v8228 = vunpack.c.l.b16 %v336
        %v8229 = vunpack.c.l.b16 %v337
        %v8230 = vunpack.c.l.b16 %v338
        %v8231 = vunpack.c.l.b16 %v339
        %v8232 = vunpack.c.l.b16 %v340
        %v8233 = vunpack.c.l.b16 %v341
        %v8234 = vunpack.c.l.b16 %v342
        %v8235 = vunpack.c.l.b16 %v343
        %v8236 = vunpack.c.l.b16 %v344
        %v8237 = vunpack.c.l.b16 %v345
        %v8238 = vunpack.c.l.b16 %v346
        %v8239 = vunpack.c.l.b16 %v347
        %v8240 = vunpack.c.l.b16 %v348
        %v8241 = vunpack.c.l.b16 %v349
        %v8242 = vpack.c.b16 %v8227, %v8226
        %v8243 = vpack.c.b16 %v8229, %v8228
        %v8244 = vpack.c.b16 %v8231, %v8230
        %v8245 = vpack.c.b16 %v8233, %v8232
        %v8246 = vpack.c.b16 %v8235, %v8234
        %v8247 = vpack.c.b16 %v8237, %v8236
        %v8248 = vpack.c.b16 %v8239, %v8238
        %v8249 = vpack.c.b16 %v8241, %v8240
        %8258 = vmatprep.subr.bf16.mxu0 0
        %8259 = vmatpush1.bf16.msra.mxu0 %v8242
        %8260 = vmatprep.subr.bf16.mxu0 0
        %8261 = vmatpush1.bf16.msra.mxu0 %v8243
        %8262 = vmatprep.subr.bf16.mxu0 0
        %8263 = vmatpush1.bf16.msra.mxu0 %v8244
        %8264 = vmatprep.subr.bf16.mxu0 0
        %8265 = vmatpush1.bf16.msra.mxu0 %v8245
        %8266 = vmatprep.subr.bf16.mxu0 0
        %8267 = vmatpush1.bf16.msra.mxu0 %v8246
        %8268 = vmatprep.subr.bf16.mxu0 0
        %8269 = vmatpush1.bf16.msra.mxu0 %v8247
        %8270 = vmatprep.subr.bf16.mxu0 0
        %8271 = vmatpush1.bf16.msra.mxu0 %v8248
        %8272 = vmatprep.subr.bf16.mxu0 0
        %8273 = vmatpush1.bf16.msra.mxu0 %v8249
        %8274 = vmatprep.subr.bf16.mxu0 0
        %8275 = vmatpush1.bf16.msra.mxu0 0
        %8276 = vmatprep.subr.bf16.mxu0 0
        %8277 = vmatpush1.bf16.msra.mxu0 0
        %8278 = vmatprep.subr.bf16.mxu0 0
        %8279 = vmatpush1.bf16.msra.mxu0 0
        %8280 = vmatprep.subr.bf16.mxu0 0
        %8281 = vmatpush1.bf16.msra.mxu0 0
        %8282 = vmatprep.subr.bf16.mxu0 0
        %8283 = vmatpush1.bf16.msra.mxu0 0
        %8284 = vmatprep.subr.bf16.mxu0 0
        %8285 = vmatpush1.bf16.msra.mxu0 0
        %8286 = vmatprep.subr.bf16.mxu0 0
        %8287 = vmatpush1.bf16.msra.mxu0 0
        %8288 = vmatprep.subr.bf16.mxu0 0
        %8289 = vmatpush1.bf16.msra.mxu0 0
        %8290 = vmatprep.mubr.bf16.mxu0 0
        %8291 = vmatmul.mubr.bf16.gmra.mrb[0].mxu0 %v8205
        %v8292 = vpop.f32.mrb[0].mxu0
        %v8293 = vadd.f32 %v8209, %v8292
        %v8294 = vpop.f32.mrb[0].mxu0
        %v8295 = vpop.f32.mrb[0].mxu0
        %v8296 = vpop.f32.mrb[0].mxu0
        %8297 = vdwg.mxu0
        %8298 = vst [vmem:[%s299] sm:$0x3] %v8293
        %s8299 = sand.u32 %s203, 1
        %s8300 = scalar_lea.sflag [#allocation3], %s8299
        %s8301 = sand.u32 %s203, 1
        %s8302 = smul.addr %s8301, 2
        %s8303 = scalar_lea.vmem [#allocation2], %s8302
        // Predicated region
        $region53: #{net_forward.1} parent=51 // pred_check
          %p8304 = pneg %p213
        $region54: #{net_forward.1} parent=51 // pred_check_branch
          %8306 = sbr.rel (%p8304) target = $region56
        $region55: #{net_forward.1} parent=51 // pred_region
          %s8308 = ssub.s32 32, 32
          %8309 = vsyncadd %s8300, %s8308
          %s8310 = smul.addr %s22, 32
          %s8311 = scalar_lea.hbm %s8, %s8310
          %s8313 = sshll.u32 %s8303, 4
          %s8314 = int_to_ptr.vmem [resolvable:$true] %s8313
          %8316 = dma.vmem_to_hbm [thread:$0]  %s8314, 32, %s8311, %s8300
        $region56: #{net_forward.1} parent=51 // pred_fallthru
          _
      $region52: #{net_forward.1} parent=5 // pred_fallthru
        _
      %p8317 = scmp.le.s32.totalorder 2, %s17
      // Predicated region
      $region57: #{net_forward.1} parent=5 // pred_check
        %p8318 = pneg %p8317
      $region58: #{net_forward.1} parent=5 // pred_check_branch
        %8320 = sbr.rel (%p8318) target = $region60
      $region59: #{net_forward.1} parent=5 // pred_region
        %s8321 = ssub.s32 %s17, 2
        // Predicated region
        $region61: #{net_forward.1} parent=59 // pred_check
          %p8322 = pneg %p219
        $region62: #{net_forward.1} parent=59 // pred_check_branch
          %8324 = sbr.rel (%p8322) target = $region64
        $region63: #{net_forward.1} parent=59 // pred_region
          %s8325 = sand.u32 %s204, 1
          %s8326 = scalar_lea.sflag [#allocation3], %s8325
          %s8327 = sand.u32 %s204, 1
          %s8328 = smul.addr %s8327, 2
          %s8329 = scalar_lea.vmem [#allocation2], %s8328
          %8330 = dma.done %s8326, 32
        $region64: #{net_forward.1} parent=59 // pred_fallthru
          _
      $region60: #{net_forward.1} parent=5 // pred_fallthru
        _
    $region6: #{net_forward.1} parent=1 // loop_footer
      %s21 = sadd.s32 1, %s17
    $region7: #{net_forward.1} parent=1 // loop_footer_branch
      %16 = sbr.rel target = $region3
    $region8: #{net_forward.1} parent=1 // loop_exit
      _
    %8331 = vsyncpa [#allocation3], 1
    %s8332 = scalar_lea.sflag [#allocation3], 1
    %8333 = vsyncpa %s8332, 1

</llo_original>
